<compile_context>
chip_gen: v6e
topology: v6e:2x2x1
jax: 0.10.0
libtpu: 0.0.40
codegen_flags: <defaults>
</compile_context>

<pallas_src>
import jax
import jax.numpy as jnp
from jax.experimental import pallas as pl
from jax.experimental.pallas import tpu as pltpu


# ---------------------------------------------------------------------------
# Kernel 1: bilinear x2 upsample (align_corners=True) + 1x1 conv + ReLU
# ---------------------------------------------------------------------------
def _up_path_kernel(x1_ref, up_mat_ref, rmat_ref, bias_ref, o_ref):
    """x1_ref  : (1, H, W*Cin)      lane-flattened NHWC input (bf16)
       up_mat  : (W*Cin, W2*Cmid)   kron(Cmat^T, W1): W-interp fused with 1x1 conv
       rmat    : (H2, H)            H-interp matrix
       bias    : (1, W2*Cmid)       1x1-conv bias tiled over W2 (f32)
       o_ref   : (1, H2, W2*Cmid)   bf16 output
    """
    t = jnp.dot(x1_ref[0], up_mat_ref[...],
                preferred_element_type=jnp.float32)          # (H, W2*Cmid)
    y = jnp.dot(rmat_ref[...], t.astype(jnp.bfloat16),
                preferred_element_type=jnp.float32)          # (H2, W2*Cmid)
    y = jnp.maximum(y + bias_ref[0], 0.0)
    o_ref[0] = y.astype(o_ref.dtype)


# ---------------------------------------------------------------------------
# Kernel 2: fused DoubleConv (virtual concat + conv3x3+BN+ReLU twice)
# ---------------------------------------------------------------------------
def _double_conv_kernel(skip_ref, up_ref, w1_ref, s1_ref, b1_ref,
                        w2_ref, s2_ref, b2_ref, o_ref,
                        cat_pad, mid_pad, patches1, patches2):
    H2, W2, Cout = o_ref.shape[1], o_ref.shape[2], o_ref.shape[3]
    Csk = skip_ref.shape[3]
    Cup = up_ref.shape[3]
    C1 = Csk + Cup

    # "Concat" [skip, up] straight into a zero-padded VMEM buffer (SAME padding
    # handled here; no jnp.pad and no HBM concat in the wrapper).
    cat_pad[...] = jnp.zeros(cat_pad.shape, cat_pad.dtype)
    cat_pad[pl.ds(1, H2), pl.ds(1, W2), pl.ds(0, Csk)] = skip_ref[0]
    cat_pad[pl.ds(1, H2), pl.ds(1, W2), pl.ds(Csk, Cup)] = up_ref[0]

    # conv1: one big-K matmul (K = 9*C1) via an im2col VMEM scratch.
    for k in range(9):
        dy, dx = k // 3, k % 3
        patches1[:, pl.ds(k * C1, C1)] = (
            cat_pad[pl.ds(dy, H2), pl.ds(dx, W2), :].reshape(H2 * W2, C1))
    acc1 = jnp.dot(patches1[...], w1_ref[...],
                   preferred_element_type=jnp.float32)       # (H2*W2, Cout)
    t1 = jnp.maximum(acc1 * s1_ref[0] + b1_ref[0], 0.0)      # folded BN + ReLU

    # Intermediate activation stays in VMEM (never written to HBM).
    mid_pad[...] = jnp.zeros(mid_pad.shape, mid_pad.dtype)
    mid_pad[pl.ds(1, H2), pl.ds(1, W2), :] = (
        t1.reshape(H2, W2, Cout).astype(mid_pad.dtype))

    # conv2: second big-K matmul (K = 9*Cout).
    for k in range(9):
        dy, dx = k // 3, k % 3
        patches2[:, pl.ds(k * Cout, Cout)] = (
            mid_pad[pl.ds(dy, H2), pl.ds(dx, W2), :].reshape(H2 * W2, Cout))
    acc2 = jnp.dot(patches2[...], w2_ref[...],
                   preferred_element_type=jnp.float32)
    out = jnp.maximum(acc2 * s2_ref[0] + b2_ref[0], 0.0)
    o_ref[0] = out.reshape(H2, W2, Cout).astype(o_ref.dtype)


# ---------------------------------------------------------------------------
# Host-side helpers / wrappers
# ---------------------------------------------------------------------------
def _interp_matrix(n_out, n_in):
    """Interpolation matrix for bilinear upsampling with align_corners=True."""
    if n_in == 1:
        return jnp.ones((n_out, 1), jnp.float32)
    src = jnp.arange(n_out, dtype=jnp.float32) * (n_in - 1) / (n_out - 1)
    i0 = jnp.clip(jnp.floor(src).astype(jnp.int32), 0, n_in - 2)
    frac = src - i0.astype(jnp.float32)
    rows = jnp.arange(n_out)
    m = jnp.zeros((n_out, n_in), jnp.float32)
    m = m.at[rows, i0].add(1.0 - frac)
    m = m.at[rows, i0 + 1].add(frac)
    return m


def _fold_bn(conv_bias, gamma, beta, running_mean, running_var, eps=1e-5):
    """Fold conv bias + eval-mode BatchNorm into per-channel scale/bias."""
    scale = gamma / jnp.sqrt(running_var + eps)
    bias = (conv_bias - running_mean) * scale + beta
    return scale, bias


def up_path(x1_nchw, w_up, b_up):
    """Upsample(x2, bilinear, align_corners=True) -> Conv1x1 -> ReLU (NHWC bf16 out)."""
    N, Cin, H, W = x1_nchw.shape
    Cmid = w_up.shape[0]                     # torch layout (Cmid, Cin, 1, 1)
    H2, W2 = 2 * H, 2 * W

    rmat = _interp_matrix(H2, H)
    cmat = _interp_matrix(W2, W)
    w1 = w_up[:, :, 0, 0].T                  # (Cin, Cmid)
    up_mat = jnp.kron(cmat.T, w1)            # (W*Cin, W2*Cmid): W-interp (x) 1x1 conv
    bias_flat = jnp.tile(b_up, W2).reshape(1, W2 * Cmid)

    x1_2d = jnp.transpose(x1_nchw, (0, 2, 3, 1)).reshape(N, H, W * Cin)

    y2d = pl.pallas_call(
        _up_path_kernel,
        out_shape=jax.ShapeDtypeStruct((N, H2, W2 * Cmid), jnp.bfloat16),
        grid=(N,),
        in_specs=[
            pl.BlockSpec((1, H, W * Cin), lambda n: (n, 0, 0)),
            pl.BlockSpec((W * Cin, W2 * Cmid), lambda n: (0, 0)),
            pl.BlockSpec((H2, H), lambda n: (0, 0)),
            pl.BlockSpec((1, W2 * Cmid), lambda n: (0, 0)),
        ],
        out_specs=pl.BlockSpec((1, H2, W2 * Cmid), lambda n: (n, 0, 0)),
        compiler_params=pltpu.CompilerParams(dimension_semantics=("parallel",)),
    )(x1_2d.astype(jnp.bfloat16), up_mat.astype(jnp.bfloat16),
      rmat.astype(jnp.bfloat16), bias_flat)
    return y2d.reshape(N, H2, W2, Cmid)      # free reshape (contiguous layout)


def fused_double_conv(skip_nhwc, up_nhwc, w1_hwio, s1, b1, w2_hwio, s2, b2,
                      out_dtype=jnp.float32):
    N, H2, W2, Csk = skip_nhwc.shape
    Cup = up_nhwc.shape[3]
    C1 = Csk + Cup
    Cout = w1_hwio.shape[3]

    w1_2d = w1_hwio.reshape(9 * C1, Cout).astype(jnp.bfloat16)
    w2_2d = w2_hwio.reshape(9 * Cout, Cout).astype(jnp.bfloat16)

    return pl.pallas_call(
        _double_conv_kernel,
        out_shape=jax.ShapeDtypeStruct((N, H2, W2, Cout), out_dtype),
        grid=(N,),
        in_specs=[
            pl.BlockSpec((1, H2, W2, Csk), lambda n: (n, 0, 0, 0)),
            pl.BlockSpec((1, H2, W2, Cup), lambda n: (n, 0, 0, 0)),
            pl.BlockSpec((9 * C1, Cout), lambda n: (0, 0)),
            pl.BlockSpec((1, Cout), lambda n: (0, 0)),
            pl.BlockSpec((1, Cout), lambda n: (0, 0)),
            pl.BlockSpec((9 * Cout, Cout), lambda n: (0, 0)),
            pl.BlockSpec((1, Cout), lambda n: (0, 0)),
            pl.BlockSpec((1, Cout), lambda n: (0, 0)),
        ],
        out_specs=pl.BlockSpec((1, H2, W2, Cout), lambda n: (n, 0, 0, 0)),
        scratch_shapes=[
            pltpu.VMEM((H2 + 2, W2 + 2, C1), jnp.bfloat16),      # padded concat
            pltpu.VMEM((H2 + 2, W2 + 2, Cout), jnp.bfloat16),    # padded mid act
            pltpu.VMEM((H2 * W2, 9 * C1), jnp.bfloat16),         # im2col conv1
            pltpu.VMEM((H2 * W2, 9 * Cout), jnp.bfloat16),       # im2col conv2
        ],
        compiler_params=pltpu.CompilerParams(dimension_semantics=("parallel",)),
    )(skip_nhwc.astype(jnp.bfloat16), up_nhwc.astype(jnp.bfloat16),
      w1_2d, s1.reshape(1, Cout), b1.reshape(1, Cout),
      w2_2d, s2.reshape(1, Cout), b2.reshape(1, Cout))


def init_up_params(key, in_channels, out_channels, n_concat=2):
    cmid = in_channels // 2
    c1 = in_channels + (n_concat - 2) * out_channels
    cout = out_channels
    ks = jax.random.split(key, 12)

    def conv_w(k, co, ci, kh, kw):
        fan_in = ci * kh * kw
        return jax.random.normal(k, (co, ci, kh, kw), jnp.float32) / jnp.sqrt(fan_in)

    return {
        "w_up": conv_w(ks[0], cmid, in_channels, 1, 1),
        "b_up": 0.1 * jax.random.normal(ks[1], (cmid,), jnp.float32),
        "w1": conv_w(ks[2], cout, c1, 3, 3),
        "b1": 0.1 * jax.random.normal(ks[3], (cout,), jnp.float32),
        "gamma1": 1.0 + 0.1 * jax.random.normal(ks[4], (cout,), jnp.float32),
        "beta1": 0.1 * jax.random.normal(ks[5], (cout,), jnp.float32),
        "mean1": 0.05 * jax.random.normal(ks[6], (cout,), jnp.float32),
        "var1": 1.0 + 0.1 * jax.random.uniform(ks[7], (cout,), jnp.float32),
        "w2": conv_w(ks[8], cout, cout, 3, 3),
        "b2": 0.1 * jax.random.normal(ks[9], (cout,), jnp.float32),
        "gamma2": 1.0 + 0.1 * jax.random.normal(ks[10], (cout,), jnp.float32),
        "beta2": 0.1 * jax.random.normal(ks[11], (cout,), jnp.float32),
        "mean2": jnp.zeros((cout,), jnp.float32),
        "var2": jnp.ones((cout,), jnp.float32),
    }


@jax.jit
def up_forward(x1_nchw, skips, params):
    """Forward of Up(x1, *x2). Inputs/outputs are NCHW to match PyTorch.
    (If the surrounding model is kept NHWC, the boundary transposes disappear.)"""
    y = up_path(x1_nchw, params["w_up"], params["b_up"])        # (N,H2,W2,Cmid) bf16

    # torch: for x in x2: x1 = cat([x, x1], dim=1)  =>  [x2[-1], ..., x2[0], up]
    skips_nhwc = [jnp.transpose(s, (0, 2, 3, 1)) for s in reversed(skips)]
    skip = skips_nhwc[0] if len(skips_nhwc) == 1 else jnp.concatenate(skips_nhwc, -1)

    s1, c1 = _fold_bn(params["b1"], params["gamma1"], params["beta1"],
                      params["mean1"], params["var1"])
    s2, c2 = _fold_bn(params["b2"], params["gamma2"], params["beta2"],
                      params["mean2"], params["var2"])
    w1_hwio = jnp.transpose(params["w1"], (2, 3, 1, 0))
    w2_hwio = jnp.transpose(params["w2"], (2, 3, 1, 0))

    out = fused_double_conv(skip, y, w1_hwio, s1, c1, w2_hwio, s2, c2)
    return jnp.transpose(out, (0, 3, 1, 2))                     # NHWC -> NCHW


# ---------------------------------------------------------------------------
# Pure-JAX reference (canonical op order, f32 compute on bf16-quantized data)
# ---------------------------------------------------------------------------
def _reference_forward(x1_nchw, skips, params):
    f32 = jnp.float32
    q = lambda a: a.astype(jnp.bfloat16).astype(f32)

    x1 = q(jnp.transpose(x1_nchw, (0, 2, 3, 1)))
    N, H, W, Cin = x1.shape
    H2, W2 = 2 * H, 2 * W

    rmat = _interp_matrix(H2, H)
    cmat = _interp_matrix(W2, W)
    u = jnp.einsum("gh,nhwc->ngwc", rmat, x1)
    u = jnp.einsum("vw,ngwc->ngvc", cmat, u)                    # bilinear, align_corners
    w_up = q(params["w_up"][:, :, 0, 0].T)
    y = jnp.maximum(jnp.einsum("ngvc,cm->ngvm", u, w_up) + params["b_up"], 0.0)
    y = q(y)

    skips_nhwc = [q(jnp.transpose(s, (0, 2, 3, 1))) for s in reversed(skips)]
    x = jnp.concatenate(skips_nhwc + [y], axis=-1)

    def stage(x, w_oihw, conv_b, gamma, beta, mean, var):
        w = q(jnp.transpose(w_oihw, (2, 3, 1, 0)))
        yy = jax.lax.conv_general_dilated(
            x, w, (1, 1), "SAME", dimension_numbers=("NHWC", "HWIO", "NHWC"))
        scale, bias = _fold_bn(conv_b, gamma, beta, mean, var)
        return jnp.maximum(yy * scale + bias, 0.0)

    x = q(stage(x, params["w1"], params["b1"], params["gamma1"], params["beta1"],
                params["mean1"], params["var1"]))
    x = stage(x, params["w2"], params["b2"], params["gamma2"], params["beta2"],
              params["mean2"], params["var2"])
    return jnp.transpose(x, (0, 3, 1, 2))


if __name__ == "__main__":
    key = jax.random.PRNGKey(0)
    k_x1, k_sk, k_p = jax.random.split(key, 3)

    N, in_ch, out_ch = 2, 8, 16
    H, W = 8, 8                                   # x1 spatial; output is 16x16
    x1 = jax.random.normal(k_x1, (N, in_ch, H, W), jnp.float32)
    skip = jax.random.normal(k_sk, (N, in_ch // 2, 2 * H, 2 * W), jnp.float32)
    params = init_up_params(k_p, in_ch, out_ch)

    out = jax.block_until_ready(up_forward(x1, (skip,), params))
    assert out.shape == (N, out_ch, 2 * H, 2 * W), out.shape

    ref = jax.block_until_ready(_reference_forward(x1, (skip,), params))
    max_err = float(jnp.max(jnp.abs(out - ref)))
    assert jnp.allclose(out, ref, atol=5e-2, rtol=5e-2), f"max abs err {max_err}"

    print("KERNEL_OK")
</pallas_src>

<mosaic_0001>
module attributes {stable_mosaic.version = 11 : i64} {
  func.func private @main(%arg0: i32) attributes {dimension_semantics = [#tpu.dimension_semantics<core_parallel>], iteration_bounds = array<i64: 2>, tpu.core_type = #tpu.core_type<sc_scalar_subcore>, window_params = []} {
    return
  }
}

module attributes {stable_mosaic.version = 11 : i64} {
  func.func private @main(%arg0: i32) attributes {dimension_semantics = [#tpu.dimension_semantics<core_parallel>], iteration_bounds = array<i64: 2>, tpu.core_type = #tpu.core_type<sc_scalar_subcore>, window_params = []} {
    return
  }
}

module attributes {stable_mosaic.version = 11 : i64} {
  func.func @_up_path_kernel(%arg0: i32, %arg1: memref<1x8x64xbf16, #tpu.memory_space<vmem>>, %arg2: memref<64x64xbf16, #tpu.memory_space<vmem>>, %arg3: memref<16x8xbf16, #tpu.memory_space<vmem>>, %arg4: memref<1x64xf32, #tpu.memory_space<vmem>>, %arg5: memref<1x16x64xbf16, #tpu.memory_space<vmem>>) attributes {dimension_semantics = [#tpu.dimension_semantics<parallel>], iteration_bounds = array<i64: 2>, scalar_prefetch = 0 : i64, scratch_operands = 0 : i64, tpu.core_type = #tpu.core_type<tc>, window_params = [{transform_indices = @transform_0, window_bounds = array<i64: 1, 8, 64>}, {pipeline_mode = #tpu.pipeline_mode<synchronous>, transform_indices = @transform_1, window_bounds = array<i64: 64, 64>}, {pipeline_mode = #tpu.pipeline_mode<synchronous>, transform_indices = @transform_2, window_bounds = array<i64: 16, 8>}, {pipeline_mode = #tpu.pipeline_mode<synchronous>, transform_indices = @transform_3, window_bounds = array<i64: 1, 64>}, {transform_indices = @transform_4, window_bounds = array<i64: 1, 16, 64>}]} {
    %c0 = arith.constant 0 : index
    %c0_0 = arith.constant 0 : index
    %c0_1 = arith.constant 0 : index
    %0 = vector.load %arg1[%c0, %c0_0, %c0_1] : memref<1x8x64xbf16, #tpu.memory_space<vmem>>, vector<1x8x64xbf16>
    %1 = vector.shape_cast %0 : vector<1x8x64xbf16> to vector<8x64xbf16>
    %c0_2 = arith.constant 0 : index
    %c0_3 = arith.constant 0 : index
    %2 = vector.load %arg2[%c0_2, %c0_3] : memref<64x64xbf16, #tpu.memory_space<vmem>>, vector<64x64xbf16>
    %cst = arith.constant dense<0.000000e+00> : vector<8x64xf32>
    %3 = tpu.matmul %1, %2, %cst {dimension_numbers = #tpu.dot_dimension_numbers<[1], [0], [0], [1], [0, 0, 1, 1], [], []>} : vector<8x64xbf16>, vector<64x64xbf16>, vector<8x64xf32> -> vector<8x64xf32>
    %c0_4 = arith.constant 0 : index
    %c0_5 = arith.constant 0 : index
    %4 = vector.load %arg3[%c0_4, %c0_5] : memref<16x8xbf16, #tpu.memory_space<vmem>>, vector<16x8xbf16>
    %5 = arith.truncf %3 : vector<8x64xf32> to vector<8x64xbf16>
    %cst_6 = arith.constant dense<0.000000e+00> : vector<16x64xf32>
    %6 = tpu.matmul %4, %5, %cst_6 {dimension_numbers = #tpu.dot_dimension_numbers<[1], [0], [0], [1], [0, 0, 1, 1], [], []>} : vector<16x8xbf16>, vector<8x64xbf16>, vector<16x64xf32> -> vector<16x64xf32>
    %c0_7 = arith.constant 0 : index
    %c0_8 = arith.constant 0 : index
    %7 = vector.load %arg4[%c0_7, %c0_8] : memref<1x64xf32, #tpu.memory_space<vmem>>, vector<1x64xf32>
    %8 = vector.shape_cast %7 : vector<1x64xf32> to vector<64xf32>
    %9 = vector.shape_cast %8 : vector<64xf32> to vector<1x64xf32>
    %10 = vector.broadcast %9 : vector<1x64xf32> to vector<16x64xf32>
    %11 = arith.addf %6, %10 : vector<16x64xf32>
    %cst_9 = arith.constant 0.000000e+00 : f32
    %12 = vector.broadcast %cst_9 : f32 to vector<16x64xf32>
    %13 = arith.maximumf %11, %12 : vector<16x64xf32>
    %14 = arith.truncf %13 : vector<16x64xf32> to vector<16x64xbf16>
    %c0_10 = arith.constant 0 : index
    %c0_11 = arith.constant 0 : index
    %c0_12 = arith.constant 0 : index
    %15 = vector.load %arg5[%c0_10, %c0_11, %c0_12] : memref<1x16x64xbf16, #tpu.memory_space<vmem>>, vector<1x16x64xbf16>
    %16 = vector.shape_cast %15 : vector<1x16x64xbf16> to vector<16x64xbf16>
    %17 = vector.shape_cast %14 : vector<16x64xbf16> to vector<1x16x64xbf16>
    tpu.vector_store %arg5[%c0_10, %c0_11, %c0_12], %17 {strides = array<i32>} : memref<1x16x64xbf16, #tpu.memory_space<vmem>>, vector<1x16x64xbf16>,
    return
  }
  func.func @transform_0(%arg0: i32) -> (i32, i32, i32) {
    %c0_i32 = arith.constant 0 : i32
    %c0_i32_0 = arith.constant 0 : i32
    %c0_i32_1 = arith.constant 0 : i32
    return %arg0, %c0_i32, %c0_i32_0 : i32, i32, i32
  }
  func.func @transform_1(%arg0: i32) -> (i32, i32) {
    %c0_i32 = arith.constant 0 : i32
    %c0_i32_0 = arith.constant 0 : i32
    %c0_i32_1 = arith.constant 0 : i32
    return %c0_i32, %c0_i32_0 : i32, i32
  }
  func.func @transform_2(%arg0: i32) -> (i32, i32) {
    %c0_i32 = arith.constant 0 : i32
    %c0_i32_0 = arith.constant 0 : i32
    %c0_i32_1 = arith.constant 0 : i32
    return %c0_i32, %c0_i32_0 : i32, i32
  }
  func.func @transform_3(%arg0: i32) -> (i32, i32) {
    %c0_i32 = arith.constant 0 : i32
    %c0_i32_0 = arith.constant 0 : i32
    %c0_i32_1 = arith.constant 0 : i32
    return %c0_i32, %c0_i32_0 : i32, i32
  }
  func.func @transform_4(%arg0: i32) -> (i32, i32, i32) {
    %c0_i32 = arith.constant 0 : i32
    %c0_i32_0 = arith.constant 0 : i32
    %c0_i32_1 = arith.constant 0 : i32
    return %arg0, %c0_i32, %c0_i32_0 : i32, i32, i32
  }
}

module attributes {stable_mosaic.version = 11 : i64} {
  func.func @_double_conv_kernel(%arg0: i32, %arg1: memref<1x16x16x4xbf16, #tpu.memory_space<vmem>>, %arg2: memref<1x16x16x4xbf16, #tpu.memory_space<vmem>>, %arg3: memref<72x16xbf16, #tpu.memory_space<vmem>>, %arg4: memref<1x16xf32, #tpu.memory_space<vmem>>, %arg5: memref<1x16xf32, #tpu.memory_space<vmem>>, %arg6: memref<144x16xbf16, #tpu.memory_space<vmem>>, %arg7: memref<1x16xf32, #tpu.memory_space<vmem>>, %arg8: memref<1x16xf32, #tpu.memory_space<vmem>>, %arg9: memref<1x16x16x16xf32, #tpu.memory_space<vmem>>, %arg10: memref<18x18x8xbf16, #tpu.memory_space<vmem>>, %arg11: memref<18x18x16xbf16, #tpu.memory_space<vmem>>, %arg12: memref<256x72xbf16, #tpu.memory_space<vmem>>, %arg13: memref<256x144xbf16, #tpu.memory_space<vmem>>) attributes {dimension_semantics = [#tpu.dimension_semantics<parallel>], iteration_bounds = array<i64: 2>, scalar_prefetch = 0 : i64, scratch_operands = 4 : i64, tpu.core_type = #tpu.core_type<tc>, window_params = [{transform_indices = @transform_0, window_bounds = array<i64: 1, 16, 16, 4>}, {transform_indices = @transform_1, window_bounds = array<i64: 1, 16, 16, 4>}, {pipeline_mode = #tpu.pipeline_mode<synchronous>, transform_indices = @transform_2, window_bounds = array<i64: 72, 16>}, {pipeline_mode = #tpu.pipeline_mode<synchronous>, transform_indices = @transform_3, window_bounds = array<i64: 1, 16>}, {pipeline_mode = #tpu.pipeline_mode<synchronous>, transform_indices = @transform_4, window_bounds = array<i64: 1, 16>}, {pipeline_mode = #tpu.pipeline_mode<synchronous>, transform_indices = @transform_5, window_bounds = array<i64: 144, 16>}, {pipeline_mode = #tpu.pipeline_mode<synchronous>, transform_indices = @transform_6, window_bounds = array<i64: 1, 16>}, {pipeline_mode = #tpu.pipeline_mode<synchronous>, transform_indices = @transform_7, window_bounds = array<i64: 1, 16>}, {transform_indices = @transform_8, window_bounds = array<i64: 1, 16, 16, 16>}]} {
    %cst = arith.constant 0.000000e+00 : bf16
    %0 = vector.broadcast %cst : bf16 to vector<18x18x8xbf16>
    %c0 = arith.constant 0 : index
    %c0_0 = arith.constant 0 : index
    %c0_1 = arith.constant 0 : index
    %1 = vector.load %arg10[%c0, %c0_0, %c0_1] : memref<18x18x8xbf16, #tpu.memory_space<vmem>>, vector<18x18x8xbf16>
    tpu.vector_store %arg10[%c0, %c0_0, %c0_1], %0 {strides = array<i32>} : memref<18x18x8xbf16, #tpu.memory_space<vmem>>, vector<18x18x8xbf16>,
    %c0_2 = arith.constant 0 : index
    %c0_3 = arith.constant 0 : index
    %c0_4 = arith.constant 0 : index
    %c0_5 = arith.constant 0 : index
    %2 = vector.load %arg1[%c0_2, %c0_3, %c0_4, %c0_5] : memref<1x16x16x4xbf16, #tpu.memory_space<vmem>>, vector<1x16x16x4xbf16>
    %3 = vector.shape_cast %2 : vector<1x16x16x4xbf16> to vector<16x16x4xbf16>
    %c1 = arith.constant 1 : index
    %c1_6 = arith.constant 1 : index
    %c0_7 = arith.constant 0 : index
    %4 = vector.load %arg10[%c1, %c1_6, %c0_7] : memref<18x18x8xbf16, #tpu.memory_space<vmem>>, vector<16x16x4xbf16>
    tpu.vector_store %arg10[%c1, %c1_6, %c0_7], %3 {strides = array<i32>} : memref<18x18x8xbf16, #tpu.memory_space<vmem>>, vector<16x16x4xbf16>,
    %c0_8 = arith.constant 0 : index
    %c0_9 = arith.constant 0 : index
    %c0_10 = arith.constant 0 : index
    %c0_11 = arith.constant 0 : index
    %5 = vector.load %arg2[%c0_8, %c0_9, %c0_10, %c0_11] : memref<1x16x16x4xbf16, #tpu.memory_space<vmem>>, vector<1x16x16x4xbf16>
    %6 = vector.shape_cast %5 : vector<1x16x16x4xbf16> to vector<16x16x4xbf16>
    %c1_12 = arith.constant 1 : index
    %c1_13 = arith.constant 1 : index
    %c4 = arith.constant 4 : index
    %7 = vector.load %arg10[%c1_12, %c1_13, %c4] : memref<18x18x8xbf16, #tpu.memory_space<vmem>>, vector<16x16x4xbf16>
    tpu.vector_store %arg10[%c1_12, %c1_13, %c4], %6 {strides = array<i32>} : memref<18x18x8xbf16, #tpu.memory_space<vmem>>, vector<16x16x4xbf16>,
    %c0_14 = arith.constant 0 : index
    %c0_15 = arith.constant 0 : index
    %c0_16 = arith.constant 0 : index
    %8 = vector.load %arg10[%c0_14, %c0_15, %c0_16] : memref<18x18x8xbf16, #tpu.memory_space<vmem>>, vector<16x16x8xbf16>
    %9 = vector.shape_cast %8 : vector<16x16x8xbf16> to vector<256x8xbf16>
    %c0_17 = arith.constant 0 : index
    %c0_18 = arith.constant 0 : index
    %10 = vector.load %arg12[%c0_17, %c0_18] : memref<256x72xbf16, #tpu.memory_space<vmem>>, vector<256x8xbf16>
    tpu.vector_store %arg12[%c0_17, %c0_18], %9 {strides = array<i32>} : memref<256x72xbf16, #tpu.memory_space<vmem>>, vector<256x8xbf16>,
    %c0_19 = arith.constant 0 : index
    %c1_20 = arith.constant 1 : index
    %c0_21 = arith.constant 0 : index
    %11 = vector.load %arg10[%c0_19, %c1_20, %c0_21] : memref<18x18x8xbf16, #tpu.memory_space<vmem>>, vector<16x16x8xbf16>
    %12 = vector.shape_cast %11 : vector<16x16x8xbf16> to vector<256x8xbf16>
    %c0_22 = arith.constant 0 : index
    %c8 = arith.constant 8 : index
    %13 = vector.load %arg12[%c0_22, %c8] : memref<256x72xbf16, #tpu.memory_space<vmem>>, vector<256x8xbf16>
    tpu.vector_store %arg12[%c0_22, %c8], %12 {strides = array<i32>} : memref<256x72xbf16, #tpu.memory_space<vmem>>, vector<256x8xbf16>,
    %c0_23 = arith.constant 0 : index
    %c2 = arith.constant 2 : index
    %c0_24 = arith.constant 0 : index
    %14 = vector.load %arg10[%c0_23, %c2, %c0_24] : memref<18x18x8xbf16, #tpu.memory_space<vmem>>, vector<16x16x8xbf16>
    %15 = vector.shape_cast %14 : vector<16x16x8xbf16> to vector<256x8xbf16>
    %c0_25 = arith.constant 0 : index
    %c16 = arith.constant 16 : index
    %16 = vector.load %arg12[%c0_25, %c16] : memref<256x72xbf16, #tpu.memory_space<vmem>>, vector<256x8xbf16>
    tpu.vector_store %arg12[%c0_25, %c16], %15 {strides = array<i32>} : memref<256x72xbf16, #tpu.memory_space<vmem>>, vector<256x8xbf16>,
    %c1_26 = arith.constant 1 : index
    %c0_27 = arith.constant 0 : index
    %c0_28 = arith.constant 0 : index
    %17 = vector.load %arg10[%c1_26, %c0_27, %c0_28] : memref<18x18x8xbf16, #tpu.memory_space<vmem>>, vector<16x16x8xbf16>
    %18 = vector.shape_cast %17 : vector<16x16x8xbf16> to vector<256x8xbf16>
    %c0_29 = arith.constant 0 : index
    %c24 = arith.constant 24 : index
    %19 = vector.load %arg12[%c0_29, %c24] : memref<256x72xbf16, #tpu.memory_space<vmem>>, vector<256x8xbf16>
    tpu.vector_store %arg12[%c0_29, %c24], %18 {strides = array<i32>} : memref<256x72xbf16, #tpu.memory_space<vmem>>, vector<256x8xbf16>,
    %c1_30 = arith.constant 1 : index
    %c1_31 = arith.constant 1 : index
    %c0_32 = arith.constant 0 : index
    %20 = vector.load %arg10[%c1_30, %c1_31, %c0_32] : memref<18x18x8xbf16, #tpu.memory_space<vmem>>, vector<16x16x8xbf16>
    %21 = vector.shape_cast %20 : vector<16x16x8xbf16> to vector<256x8xbf16>
    %c0_33 = arith.constant 0 : index
    %c32 = arith.constant 32 : index
    %22 = vector.load %arg12[%c0_33, %c32] : memref<256x72xbf16, #tpu.memory_space<vmem>>, vector<256x8xbf16>
    tpu.vector_store %arg12[%c0_33, %c32], %21 {strides = array<i32>} : memref<256x72xbf16, #tpu.memory_space<vmem>>, vector<256x8xbf16>,
    %c1_34 = arith.constant 1 : index
    %c2_35 = arith.constant 2 : index
    %c0_36 = arith.constant 0 : index
    %23 = vector.load %arg10[%c1_34, %c2_35, %c0_36] : memref<18x18x8xbf16, #tpu.memory_space<vmem>>, vector<16x16x8xbf16>
    %24 = vector.shape_cast %23 : vector<16x16x8xbf16> to vector<256x8xbf16>
    %c0_37 = arith.constant 0 : index
    %c40 = arith.constant 40 : index
    %25 = vector.load %arg12[%c0_37, %c40] : memref<256x72xbf16, #tpu.memory_space<vmem>>, vector<256x8xbf16>
    tpu.vector_store %arg12[%c0_37, %c40], %24 {strides = array<i32>} : memref<256x72xbf16, #tpu.memory_space<vmem>>, vector<256x8xbf16>,
    %c2_38 = arith.constant 2 : index
    %c0_39 = arith.constant 0 : index
    %c0_40 = arith.constant 0 : index
    %26 = vector.load %arg10[%c2_38, %c0_39, %c0_40] : memref<18x18x8xbf16, #tpu.memory_space<vmem>>, vector<16x16x8xbf16>
    %27 = vector.shape_cast %26 : vector<16x16x8xbf16> to vector<256x8xbf16>
    %c0_41 = arith.constant 0 : index
    %c48 = arith.constant 48 : index
    %28 = vector.load %arg12[%c0_41, %c48] : memref<256x72xbf16, #tpu.memory_space<vmem>>, vector<256x8xbf16>
    tpu.vector_store %arg12[%c0_41, %c48], %27 {strides = array<i32>} : memref<256x72xbf16, #tpu.memory_space<vmem>>, vector<256x8xbf16>,
    %c2_42 = arith.constant 2 : index
    %c1_43 = arith.constant 1 : index
    %c0_44 = arith.constant 0 : index
    %29 = vector.load %arg10[%c2_42, %c1_43, %c0_44] : memref<18x18x8xbf16, #tpu.memory_space<vmem>>, vector<16x16x8xbf16>
    %30 = vector.shape_cast %29 : vector<16x16x8xbf16> to vector<256x8xbf16>
    %c0_45 = arith.constant 0 : index
    %c56 = arith.constant 56 : index
    %31 = vector.load %arg12[%c0_45, %c56] : memref<256x72xbf16, #tpu.memory_space<vmem>>, vector<256x8xbf16>
    tpu.vector_store %arg12[%c0_45, %c56], %30 {strides = array<i32>} : memref<256x72xbf16, #tpu.memory_space<vmem>>, vector<256x8xbf16>,
    %c2_46 = arith.constant 2 : index
    %c2_47 = arith.constant 2 : index
    %c0_48 = arith.constant 0 : index
    %32 = vector.load %arg10[%c2_46, %c2_47, %c0_48] : memref<18x18x8xbf16, #tpu.memory_space<vmem>>, vector<16x16x8xbf16>
    %33 = vector.shape_cast %32 : vector<16x16x8xbf16> to vector<256x8xbf16>
    %c0_49 = arith.constant 0 : index
    %c64 = arith.constant 64 : index
    %34 = vector.load %arg12[%c0_49, %c64] : memref<256x72xbf16, #tpu.memory_space<vmem>>, vector<256x8xbf16>
    tpu.vector_store %arg12[%c0_49, %c64], %33 {strides = array<i32>} : memref<256x72xbf16, #tpu.memory_space<vmem>>, vector<256x8xbf16>,
    %c0_50 = arith.constant 0 : index
    %c0_51 = arith.constant 0 : index
    %35 = vector.load %arg12[%c0_50, %c0_51] : memref<256x72xbf16, #tpu.memory_space<vmem>>, vector<256x72xbf16>
    %c0_52 = arith.constant 0 : index
    %c0_53 = arith.constant 0 : index
    %36 = vector.load %arg3[%c0_52, %c0_53] : memref<72x16xbf16, #tpu.memory_space<vmem>>, vector<72x16xbf16>
    %cst_54 = arith.constant dense<0.000000e+00> : vector<256x16xf32>
    %37 = tpu.matmul %35, %36, %cst_54 {dimension_numbers = #tpu.dot_dimension_numbers<[1], [0], [0], [1], [0, 0, 1, 1], [], []>} : vector<256x72xbf16>, vector<72x16xbf16>, vector<256x16xf32> -> vector<256x16xf32>
    %c0_55 = arith.constant 0 : index
    %c0_56 = arith.constant 0 : index
    %38 = vector.load %arg4[%c0_55, %c0_56] : memref<1x16xf32, #tpu.memory_space<vmem>>, vector<1x16xf32>
    %39 = vector.shape_cast %38 : vector<1x16xf32> to vector<16xf32>
    %40 = vector.shape_cast %39 : vector<16xf32> to vector<1x16xf32>
    %41 = vector.broadcast %40 : vector<1x16xf32> to vector<256x16xf32>
    %42 = arith.mulf %37, %41 : vector<256x16xf32>
    %c0_57 = arith.constant 0 : index
    %c0_58 = arith.constant 0 : index
    %43 = vector.load %arg5[%c0_57, %c0_58] : memref<1x16xf32, #tpu.memory_space<vmem>>, vector<1x16xf32>
    %44 = vector.shape_cast %43 : vector<1x16xf32> to vector<16xf32>
    %45 = vector.shape_cast %44 : vector<16xf32> to vector<1x16xf32>
    %46 = vector.broadcast %45 : vector<1x16xf32> to vector<256x16xf32>
    %47 = arith.addf %42, %46 : vector<256x16xf32>
    %cst_59 = arith.constant 0.000000e+00 : f32
    %48 = vector.broadcast %cst_59 : f32 to vector<256x16xf32>
    %49 = arith.maximumf %47, %48 : vector<256x16xf32>
    %cst_60 = arith.constant 0.000000e+00 : bf16
    %50 = vector.broadcast %cst_60 : bf16 to vector<18x18x16xbf16>
    %c0_61 = arith.constant 0 : index
    %c0_62 = arith.constant 0 : index
    %c0_63 = arith.constant 0 : index
    %51 = vector.load %arg11[%c0_61, %c0_62, %c0_63] : memref<18x18x16xbf16, #tpu.memory_space<vmem>>, vector<18x18x16xbf16>
    tpu.vector_store %arg11[%c0_61, %c0_62, %c0_63], %50 {strides = array<i32>} : memref<18x18x16xbf16, #tpu.memory_space<vmem>>, vector<18x18x16xbf16>,
    %52 = vector.shape_cast %49 : vector<256x16xf32> to vector<16x16x16xf32>
    %53 = arith.truncf %52 : vector<16x16x16xf32> to vector<16x16x16xbf16>
    %c1_64 = arith.constant 1 : index
    %c1_65 = arith.constant 1 : index
    %c0_66 = arith.constant 0 : index
    %54 = vector.load %arg11[%c1_64, %c1_65, %c0_66] : memref<18x18x16xbf16, #tpu.memory_space<vmem>>, vector<16x16x16xbf16>
    tpu.vector_store %arg11[%c1_64, %c1_65, %c0_66], %53 {strides = array<i32>} : memref<18x18x16xbf16, #tpu.memory_space<vmem>>, vector<16x16x16xbf16>,
    %c0_67 = arith.constant 0 : index
    %c0_68 = arith.constant 0 : index
    %c0_69 = arith.constant 0 : index
    %55 = vector.load %arg11[%c0_67, %c0_68, %c0_69] : memref<18x18x16xbf16, #tpu.memory_space<vmem>>, vector<16x16x16xbf16>
    %56 = vector.shape_cast %55 : vector<16x16x16xbf16> to vector<256x16xbf16>
    %c0_70 = arith.constant 0 : index
    %c0_71 = arith.constant 0 : index
    %57 = vector.load %arg13[%c0_70, %c0_71] : memref<256x144xbf16, #tpu.memory_space<vmem>>, vector<256x16xbf16>
    tpu.vector_store %arg13[%c0_70, %c0_71], %56 {strides = array<i32>} : memref<256x144xbf16, #tpu.memory_space<vmem>>, vector<256x16xbf16>,
    %c0_72 = arith.constant 0 : index
    %c1_73 = arith.constant 1 : index
    %c0_74 = arith.constant 0 : index
    %58 = vector.load %arg11[%c0_72, %c1_73, %c0_74] : memref<18x18x16xbf16, #tpu.memory_space<vmem>>, vector<16x16x16xbf16>
    %59 = vector.shape_cast %58 : vector<16x16x16xbf16> to vector<256x16xbf16>
    %c0_75 = arith.constant 0 : index
    %c16_76 = arith.constant 16 : index
    %60 = vector.load %arg13[%c0_75, %c16_76] : memref<256x144xbf16, #tpu.memory_space<vmem>>, vector<256x16xbf16>
    tpu.vector_store %arg13[%c0_75, %c16_76], %59 {strides = array<i32>} : memref<256x144xbf16, #tpu.memory_space<vmem>>, vector<256x16xbf16>,
    %c0_77 = arith.constant 0 : index
    %c2_78 = arith.constant 2 : index
    %c0_79 = arith.constant 0 : index
    %61 = vector.load %arg11[%c0_77, %c2_78, %c0_79] : memref<18x18x16xbf16, #tpu.memory_space<vmem>>, vector<16x16x16xbf16>
    %62 = vector.shape_cast %61 : vector<16x16x16xbf16> to vector<256x16xbf16>
    %c0_80 = arith.constant 0 : index
    %c32_81 = arith.constant 32 : index
    %63 = vector.load %arg13[%c0_80, %c32_81] : memref<256x144xbf16, #tpu.memory_space<vmem>>, vector<256x16xbf16>
    tpu.vector_store %arg13[%c0_80, %c32_81], %62 {strides = array<i32>} : memref<256x144xbf16, #tpu.memory_space<vmem>>, vector<256x16xbf16>,
    %c1_82 = arith.constant 1 : index
    %c0_83 = arith.constant 0 : index
    %c0_84 = arith.constant 0 : index
    %64 = vector.load %arg11[%c1_82, %c0_83, %c0_84] : memref<18x18x16xbf16, #tpu.memory_space<vmem>>, vector<16x16x16xbf16>
    %65 = vector.shape_cast %64 : vector<16x16x16xbf16> to vector<256x16xbf16>
    %c0_85 = arith.constant 0 : index
    %c48_86 = arith.constant 48 : index
    %66 = vector.load %arg13[%c0_85, %c48_86] : memref<256x144xbf16, #tpu.memory_space<vmem>>, vector<256x16xbf16>
    tpu.vector_store %arg13[%c0_85, %c48_86], %65 {strides = array<i32>} : memref<256x144xbf16, #tpu.memory_space<vmem>>, vector<256x16xbf16>,
    %c1_87 = arith.constant 1 : index
    %c1_88 = arith.constant 1 : index
    %c0_89 = arith.constant 0 : index
    %67 = vector.load %arg11[%c1_87, %c1_88, %c0_89] : memref<18x18x16xbf16, #tpu.memory_space<vmem>>, vector<16x16x16xbf16>
    %68 = vector.shape_cast %67 : vector<16x16x16xbf16> to vector<256x16xbf16>
    %c0_90 = arith.constant 0 : index
    %c64_91 = arith.constant 64 : index
    %69 = vector.load %arg13[%c0_90, %c64_91] : memref<256x144xbf16, #tpu.memory_space<vmem>>, vector<256x16xbf16>
    tpu.vector_store %arg13[%c0_90, %c64_91], %68 {strides = array<i32>} : memref<256x144xbf16, #tpu.memory_space<vmem>>, vector<256x16xbf16>,
    %c1_92 = arith.constant 1 : index
    %c2_93 = arith.constant 2 : index
    %c0_94 = arith.constant 0 : index
    %70 = vector.load %arg11[%c1_92, %c2_93, %c0_94] : memref<18x18x16xbf16, #tpu.memory_space<vmem>>, vector<16x16x16xbf16>
    %71 = vector.shape_cast %70 : vector<16x16x16xbf16> to vector<256x16xbf16>
    %c0_95 = arith.constant 0 : index
    %c80 = arith.constant 80 : index
    %72 = vector.load %arg13[%c0_95, %c80] : memref<256x144xbf16, #tpu.memory_space<vmem>>, vector<256x16xbf16>
    tpu.vector_store %arg13[%c0_95, %c80], %71 {strides = array<i32>} : memref<256x144xbf16, #tpu.memory_space<vmem>>, vector<256x16xbf16>,
    %c2_96 = arith.constant 2 : index
    %c0_97 = arith.constant 0 : index
    %c0_98 = arith.constant 0 : index
    %73 = vector.load %arg11[%c2_96, %c0_97, %c0_98] : memref<18x18x16xbf16, #tpu.memory_space<vmem>>, vector<16x16x16xbf16>
    %74 = vector.shape_cast %73 : vector<16x16x16xbf16> to vector<256x16xbf16>
    %c0_99 = arith.constant 0 : index
    %c96 = arith.constant 96 : index
    %75 = vector.load %arg13[%c0_99, %c96] : memref<256x144xbf16, #tpu.memory_space<vmem>>, vector<256x16xbf16>
    tpu.vector_store %arg13[%c0_99, %c96], %74 {strides = array<i32>} : memref<256x144xbf16, #tpu.memory_space<vmem>>, vector<256x16xbf16>,
    %c2_100 = arith.constant 2 : index
    %c1_101 = arith.constant 1 : index
    %c0_102 = arith.constant 0 : index
    %76 = vector.load %arg11[%c2_100, %c1_101, %c0_102] : memref<18x18x16xbf16, #tpu.memory_space<vmem>>, vector<16x16x16xbf16>
    %77 = vector.shape_cast %76 : vector<16x16x16xbf16> to vector<256x16xbf16>
    %c0_103 = arith.constant 0 : index
    %c112 = arith.constant 112 : index
    %78 = vector.load %arg13[%c0_103, %c112] : memref<256x144xbf16, #tpu.memory_space<vmem>>, vector<256x16xbf16>
    tpu.vector_store %arg13[%c0_103, %c112], %77 {strides = array<i32>} : memref<256x144xbf16, #tpu.memory_space<vmem>>, vector<256x16xbf16>,
    %c2_104 = arith.constant 2 : index
    %c2_105 = arith.constant 2 : index
    %c0_106 = arith.constant 0 : index
    %79 = vector.load %arg11[%c2_104, %c2_105, %c0_106] : memref<18x18x16xbf16, #tpu.memory_space<vmem>>, vector<16x16x16xbf16>
    %80 = vector.shape_cast %79 : vector<16x16x16xbf16> to vector<256x16xbf16>
    %c0_107 = arith.constant 0 : index
    %c128 = arith.constant 128 : index
    %81 = vector.load %arg13[%c0_107, %c128] : memref<256x144xbf16, #tpu.memory_space<vmem>>, vector<256x16xbf16>
    tpu.vector_store %arg13[%c0_107, %c128], %80 {strides = array<i32>} : memref<256x144xbf16, #tpu.memory_space<vmem>>, vector<256x16xbf16>,
    %c0_108 = arith.constant 0 : index
    %c0_109 = arith.constant 0 : index
    %82 = vector.load %arg13[%c0_108, %c0_109] : memref<256x144xbf16, #tpu.memory_space<vmem>>, vector<256x144xbf16>
    %c0_110 = arith.constant 0 : index
    %c0_111 = arith.constant 0 : index
    %83 = vector.load %arg6[%c0_110, %c0_111] : memref<144x16xbf16, #tpu.memory_space<vmem>>, vector<144x16xbf16>
    %cst_112 = arith.constant dense<0.000000e+00> : vector<256x16xf32>
    %84 = tpu.matmul %82, %83, %cst_112 {dimension_numbers = #tpu.dot_dimension_numbers<[1], [0], [0], [1], [0, 0, 1, 1], [], []>} : vector<256x144xbf16>, vector<144x16xbf16>, vector<256x16xf32> -> vector<256x16xf32>
    %c0_113 = arith.constant 0 : index
    %c0_114 = arith.constant 0 : index
    %85 = vector.load %arg7[%c0_113, %c0_114] : memref<1x16xf32, #tpu.memory_space<vmem>>, vector<1x16xf32>
    %86 = vector.shape_cast %85 : vector<1x16xf32> to vector<16xf32>
    %87 = vector.shape_cast %86 : vector<16xf32> to vector<1x16xf32>
    %88 = vector.broadcast %87 : vector<1x16xf32> to vector<256x16xf32>
    %89 = arith.mulf %84, %88 : vector<256x16xf32>
    %c0_115 = arith.constant 0 : index
    %c0_116 = arith.constant 0 : index
    %90 = vector.load %arg8[%c0_115, %c0_116] : memref<1x16xf32, #tpu.memory_space<vmem>>, vector<1x16xf32>
    %91 = vector.shape_cast %90 : vector<1x16xf32> to vector<16xf32>
    %92 = vector.shape_cast %91 : vector<16xf32> to vector<1x16xf32>
    %93 = vector.broadcast %92 : vector<1x16xf32> to vector<256x16xf32>
    %94 = arith.addf %89, %93 : vector<256x16xf32>
    %cst_117 = arith.constant 0.000000e+00 : f32
    %95 = vector.broadcast %cst_117 : f32 to vector<256x16xf32>
    %96 = arith.maximumf %94, %95 : vector<256x16xf32>
    %97 = vector.shape_cast %96 : vector<256x16xf32> to vector<16x16x16xf32>
    %c0_118 = arith.constant 0 : index
    %c0_119 = arith.constant 0 : index
    %c0_120 = arith.constant 0 : index
    %c0_121 = arith.constant 0 : index
    %98 = vector.load %arg9[%c0_118, %c0_119, %c0_120, %c0_121] : memref<1x16x16x16xf32, #tpu.memory_space<vmem>>, vector<1x16x16x16xf32>
    %99 = vector.shape_cast %98 : vector<1x16x16x16xf32> to vector<16x16x16xf32>
    %100 = vector.shape_cast %97 : vector<16x16x16xf32> to vector<1x16x16x16xf32>
    tpu.vector_store %arg9[%c0_118, %c0_119, %c0_120, %c0_121], %100 {strides = array<i32>} : memref<1x16x16x16xf32, #tpu.memory_space<vmem>>, vector<1x16x16x16xf32>,
    return
  }
  func.func @transform_0(%arg0: i32) -> (i32, i32, i32, i32) {
    %c0_i32 = arith.constant 0 : i32
    %c0_i32_0 = arith.constant 0 : i32
    %c0_i32_1 = arith.constant 0 : i32
    %c0_i32_2 = arith.constant 0 : i32
    return %arg0, %c0_i32, %c0_i32_0, %c0_i32_1 : i32, i32, i32, i32
  }
  func.func @transform_1(%arg0: i32) -> (i32, i32, i32, i32) {
    %c0_i32 = arith.constant 0 : i32
    %c0_i32_0 = arith.constant 0 : i32
    %c0_i32_1 = arith.constant 0 : i32
    %c0_i32_2 = arith.constant 0 : i32
    return %arg0, %c0_i32, %c0_i32_0, %c0_i32_1 : i32, i32, i32, i32
  }
  func.func @transform_2(%arg0: i32) -> (i32, i32) {
    %c0_i32 = arith.constant 0 : i32
    %c0_i32_0 = arith.constant 0 : i32
    %c0_i32_1 = arith.constant 0 : i32
    return %c0_i32, %c0_i32_0 : i32, i32
  }
  func.func @transform_3(%arg0: i32) -> (i32, i32) {
    %c0_i32 = arith.constant 0 : i32
    %c0_i32_0 = arith.constant 0 : i32
    %c0_i32_1 = arith.constant 0 : i32
    return %c0_i32, %c0_i32_0 : i32, i32
  }
  func.func @transform_4(%arg0: i32) -> (i32, i32) {
    %c0_i32 = arith.constant 0 : i32
    %c0_i32_0 = arith.constant 0 : i32
    %c0_i32_1 = arith.constant 0 : i32
    return %c0_i32, %c0_i32_0 : i32, i32
  }
  func.func @transform_5(%arg0: i32) -> (i32, i32) {
    %c0_i32 = arith.constant 0 : i32
    %c0_i32_0 = arith.constant 0 : i32
    %c0_i32_1 = arith.constant 0 : i32
    return %c0_i32, %c0_i32_0 : i32, i32
  }
  func.func @transform_6(%arg0: i32) -> (i32, i32) {
    %c0_i32 = arith.constant 0 : i32
    %c0_i32_0 = arith.constant 0 : i32
    %c0_i32_1 = arith.constant 0 : i32
    return %c0_i32, %c0_i32_0 : i32, i32
  }
  func.func @transform_7(%arg0: i32) -> (i32, i32) {
    %c0_i32 = arith.constant 0 : i32
    %c0_i32_0 = arith.constant 0 : i32
    %c0_i32_1 = arith.constant 0 : i32
    return %c0_i32, %c0_i32_0 : i32, i32
  }
  func.func @transform_8(%arg0: i32) -> (i32, i32, i32, i32) {
    %c0_i32 = arith.constant 0 : i32
    %c0_i32_0 = arith.constant 0 : i32
    %c0_i32_1 = arith.constant 0 : i32
    %c0_i32_2 = arith.constant 0 : i32
    return %arg0, %c0_i32, %c0_i32_0, %c0_i32_1 : i32, i32, i32, i32
  }
}

</mosaic_0001>

<llo_original>
// kernel: tile.8
$region0: #{tile.8}
  #allocation2 [shape = 's32[1]{0}', space=sflag, size = 0x4, scoped, tag = 'scoped memory for tile.8']
  %s0 = inlined_call_operand.hbm [shape: f32[4], index: 0, kind: input, shape index: {}]
  %s1 = inlined_call_operand.vmem [shape: f32[16,4], index: 1, kind: output, shape index: {}]
  $region1: #{tile.8} parent=0
    #allocation0 [shape = 'u8[512]{0}', space=vmem, size = 0x400, scoped, tag = 'operand span for operand 0']
    #allocation1 [shape = 's32[1]{0}', space=sflag, size = 0x4, scoped, tag = 'scoped memory for tile.8']
    %2 = vsyncpa [#allocation1], 0
    // Predicated region
    $region2: #{tile.8} parent=1 // pred_check
      _
    $region3: #{tile.8} parent=1 // pred_check_branch
      %4 = sbr.rel (0) target = $region5
    $region4: #{tile.8} parent=1 // pred_region
      %s6 = ssub.s32 16, 16
      %7 = vsyncadd [#allocation1], %s6
      %s9 = sshll.u32 [#allocation0], 4
      %s10 = int_to_ptr.vmem [resolvable:$true] %s9
      %12 = dma.hbm_to_vmem [thread:$0]  %s0, 16, %s10, [#allocation1]
    $region5: #{tile.8} parent=1 // pred_fallthru
      _
    // Predicated region
    $region6: #{tile.8} parent=1 // pred_check
      _
    $region7: #{tile.8} parent=1 // pred_check_branch
      %14 = sbr.rel (0) target = $region9
    $region8: #{tile.8} parent=1 // pred_region
      %15 = dma.done [#allocation1], 16
    $region9: #{tile.8} parent=1 // pred_fallthru
      _
    %v16 = vld [vmem:[#allocation0] ss:$0 sm:$0xff]
    %17 = vst [vmem:[%s1] sm:$0xff] %v16
    %s18 = scalar_lea.vmem %s1, 8
    %19 = vst [vmem:[%s18] sm:$0xff] %v16
    %20 = vsyncpa [#allocation1], 1

// kernel: tile.9
$region0: #{tile.9}
  %s0 = inlined_call_operand.vmem [shape: f32[16,4], index: 0, kind: input, shape index: {}]
  %s1 = inlined_call_operand.vmem [shape: f32[1,64], index: 1, kind: output, shape index: {}]
  $region1: #{tile.9} parent=0
    #allocation0 [shape = 'u8[4096]{0}', space=vmem, size = 0x1000, scoped, tag = 'scoped mem for output reshape']
    %v2 = vld [vmem:[%s0] sm:$0x1]
    %vm3 = vcmask 31744
    %4 = vst.msk [vmem:[#allocation0] sm:$0x1] %vm3, %v2
    %s5 = scalar_lea.vmem %s0, 15
    %v6 = vld [vmem:[%s5] sm:$0x1]
    %7 = vrot.lane.b32.xlu0 %v6, 60
    %v8 = vpop.permute.xlu0 %7
    %vm9 = vcmask 523744
    %10 = vst.msk [vmem:[#allocation0] sm:$0x1] %vm9, %v8
    %s11 = scalar_lea.vmem %s0, 14
    %v12 = vld [vmem:[%s11] sm:$0x1]
    %13 = vrot.lane.b32.xlu0 %v12, 56
    %v14 = vpop.permute.xlu0 %13
    %vm15 = vcmask 490944
    %16 = vst.msk [vmem:[#allocation0] sm:$0x1] %vm15, %v14
    %s17 = scalar_lea.vmem %s0, 13
    %v18 = vld [vmem:[%s17] sm:$0x1]
    %19 = vrot.lane.b32.xlu0 %v18, 52
    %v20 = vpop.permute.xlu0 %19
    %vm21 = vcmask 458144
    %22 = vst.msk [vmem:[#allocation0] sm:$0x1] %vm21, %v20
    %s23 = scalar_lea.vmem %s0, 12
    %v24 = vld [vmem:[%s23] sm:$0x1]
    %25 = vrot.lane.b32.xlu0 %v24, 48
    %v26 = vpop.permute.xlu0 %25
    %vm27 = vcmask 425344
    %28 = vst.msk [vmem:[#allocation0] sm:$0x1] %vm27, %v26
    %s29 = scalar_lea.vmem %s0, 11
    %v30 = vld [vmem:[%s29] sm:$0x1]
    %31 = vrot.lane.b32.xlu0 %v30, 44
    %v32 = vpop.permute.xlu0 %31
    %vm33 = vcmask 392544
    %34 = vst.msk [vmem:[#allocation0] sm:$0x1] %vm33, %v32
    %s35 = scalar_lea.vmem %s0, 10
    %v36 = vld [vmem:[%s35] sm:$0x1]
    %37 = vrot.lane.b32.xlu0 %v36, 40
    %v38 = vpop.permute.xlu0 %37
    %vm39 = vcmask 359744
    %40 = vst.msk [vmem:[#allocation0] sm:$0x1] %vm39, %v38
    %s41 = scalar_lea.vmem %s0, 9
    %v42 = vld [vmem:[%s41] sm:$0x1]
    %43 = vrot.lane.b32.xlu0 %v42, 36
    %v44 = vpop.permute.xlu0 %43
    %vm45 = vcmask 326944
    %46 = vst.msk [vmem:[#allocation0] sm:$0x1] %vm45, %v44
    %s47 = scalar_lea.vmem %s0, 8
    %v48 = vld [vmem:[%s47] sm:$0x1]
    %49 = vrot.lane.b32.xlu0 %v48, 32
    %v50 = vpop.permute.xlu0 %49
    %vm51 = vcmask 294144
    %52 = vst.msk [vmem:[#allocation0] sm:$0x1] %vm51, %v50
    %s53 = scalar_lea.vmem %s0, 7
    %v54 = vld [vmem:[%s53] sm:$0x1]
    %55 = vrot.lane.b32.xlu0 %v54, 28
    %v56 = vpop.permute.xlu0 %55
    %vm57 = vcmask 261344
    %58 = vst.msk [vmem:[#allocation0] sm:$0x1] %vm57, %v56
    %s59 = scalar_lea.vmem %s0, 6
    %v60 = vld [vmem:[%s59] sm:$0x1]
    %61 = vrot.lane.b32.xlu0 %v60, 24
    %v62 = vpop.permute.xlu0 %61
    %vm63 = vcmask 228544
    %64 = vst.msk [vmem:[#allocation0] sm:$0x1] %vm63, %v62
    %s65 = scalar_lea.vmem %s0, 5
    %v66 = vld [vmem:[%s65] sm:$0x1]
    %67 = vrot.lane.b32.xlu0 %v66, 20
    %v68 = vpop.permute.xlu0 %67
    %vm69 = vcmask 195744
    %70 = vst.msk [vmem:[#allocation0] sm:$0x1] %vm69, %v68
    %s71 = scalar_lea.vmem %s0, 4
    %v72 = vld [vmem:[%s71] sm:$0x1]
    %73 = vrot.lane.b32.xlu0 %v72, 16
    %v74 = vpop.permute.xlu0 %73
    %vm75 = vcmask 162944
    %76 = vst.msk [vmem:[#allocation0] sm:$0x1] %vm75, %v74
    %s77 = scalar_lea.vmem %s0, 3
    %v78 = vld [vmem:[%s77] sm:$0x1]
    %79 = vrot.lane.b32.xlu0 %v78, 12
    %v80 = vpop.permute.xlu0 %79
    %vm81 = vcmask 130144
    %82 = vst.msk [vmem:[#allocation0] sm:$0x1] %vm81, %v80
    %s83 = scalar_lea.vmem %s0, 2
    %v84 = vld [vmem:[%s83] sm:$0x1]
    %85 = vrot.lane.b32.xlu0 %v84, 8
    %v86 = vpop.permute.xlu0 %85
    %vm87 = vcmask 97344
    %88 = vst.msk [vmem:[#allocation0] sm:$0x1] %vm87, %v86
    %s89 = scalar_lea.vmem %s0, 1
    %v90 = vld [vmem:[%s89] sm:$0x1]
    %91 = vrot.lane.b32.xlu0 %v90, 4
    %v92 = vpop.permute.xlu0 %91
    %vm93 = vcmask 64544
    %94 = vst.msk [vmem:[#allocation0] sm:$0x1] %vm93, %v92
    %s96 = sshll.u32 1, 1
    %s97 = ssub.s32 %s96, 1
    %v99 = vld [vmem:[#allocation0] sm:%s97]
    %s100 = sshll.u32 1, 1
    %s101 = ssub.s32 %s100, 1
    %102 = vst [vmem:[%s1] sm:%s101] %v99

// kernel: up_forward.2
$region0: #{up_forward.2}
  #allocation0 [shape = 'u32[]', space=smem, size = 0x4, offset = 0x4, fixed_abs, tag = 'smem constant byte address 0x4 - core index']
  #allocation1 [shape = 'u32[144,128]{1,0:T(1,128)}', space=vmem, size = 0x12000, scoped, tag = 'internal scratch']
  %s0 = inlined_call_operand.vmem [shape: bf16[2,8,64], index: 0, kind: input, shape index: {}]
  %s1 = inlined_call_operand.vmem [shape: bf16[64,64], index: 1, kind: input, shape index: {}]
  %s2 = inlined_call_operand.vmem [shape: bf16[16,8], index: 2, kind: input, shape index: {}]
  %s3 = inlined_call_operand.vmem [shape: f32[1,64], index: 3, kind: input, shape index: {}]
  %s4 = inlined_call_operand.vmem [shape: bf16[2,16,64], index: 4, kind: output, shape index: {}]
  %s5 = sld [smem:[#allocation0]]
  $region49: #{up_forward.2} parent=0
    _
  %s7 = ssub.s32 1, %s5
  %s8 = scalar_select 0, %s7, %s5
  loop: start=0, step=1, limit=4
  $region2: #{up_forward.2} parent=0 // loop_pre_header
    _
  $region3: #{up_forward.2} parent=0 // loop_header
    %s10 = sphi 0, %s14
    %p11 = scmp.ge.s32.totalorder %s10, 4
    %s20 = sphi 0, %s22
    %s23 = sphi 0, %s20
    %s24 = sphi 0, %s23
    %s40 = sphi 0, %s24
    %s44 = sphi 0, %s44
    %s46 = sphi 0, %s44
    %s47 = sphi 0, %s46
    %s61 = sphi 0, %s47
    %s65 = sphi 0, %s65
    %s67 = sphi 0, %s65
    %s68 = sphi 0, %s67
    %s82 = sphi 0, %s68
    %s86 = sphi 0, %s86
    %s88 = sphi 0, %s86
    %s89 = sphi 0, %s88
    %s103 = sphi 0, %s89
    %s109 = sphi 0, %s111
    %s112 = sphi 0, %s109
    %s113 = sphi 0, %s112
    %s129 = sphi 0, %s113
  $region4: #{up_forward.2} parent=0 // loop_header_branch
    %13 = sbr.rel (%p11) target = $region8
  $region5: #{up_forward.2} parent=0 // loop_body
    %s15 = ssub.s32 %s10, 1
    %s16 = ssub.s32 %s10, 2
    %s17 = sadd.s32 %s10, 1
    %s18 = ssub.s32 %s10, %s17
    %p19 = scmp.eq.s32.totalorder %s18, 0
    %s21 = sadd.s32 %s20, 1
    %s22 = scalar_select %p19, %s20, %s21
    %p25 = pneg %p19
    %p26 = scmp.eq.s32.totalorder %s10, 1
    %p27 = por %p25, %p26
    %p28 = scmp.ne.s32.totalorder %s20, %s23
    %p29 = scmp.eq.s32.totalorder %s10, 0
    %p30 = por %p28, %p29
    %p31 = scmp.ne.s32.totalorder %s20, %s23
    %p32 = scmp.eq.s32.totalorder %s15, 1
    %p33 = por %p31, %p32
    %p34 = scmp.ne.s32.totalorder %s23, %s24
    %p35 = scmp.eq.s32.totalorder %s15, 0
    %p36 = por %p34, %p35
    %p37 = scmp.ne.s32.totalorder %s23, %s24
    %p38 = scmp.eq.s32.totalorder %s16, 1
    %p39 = por %p37, %p38
    %p41 = scmp.ne.s32.totalorder %s24, %s40
    %p42 = scmp.eq.s32.totalorder %s16, 0
    %p43 = por %p41, %p42
    %s45 = sadd.s32 %s44, 1
    %p48 = scmp.eq.s32.totalorder %s10, 1
    %p49 = scmp.ne.s32.totalorder %s44, %s46
    %p50 = scmp.eq.s32.totalorder %s10, 0
    %p51 = por %p49, %p50
    %p52 = scmp.ne.s32.totalorder %s44, %s46
    %p53 = scmp.eq.s32.totalorder %s15, 1
    %p54 = por %p52, %p53
    %p55 = scmp.ne.s32.totalorder %s46, %s47
    %p56 = scmp.eq.s32.totalorder %s15, 0
    %p57 = por %p55, %p56
    %p58 = scmp.ne.s32.totalorder %s46, %s47
    %p59 = scmp.eq.s32.totalorder %s16, 1
    %p60 = por %p58, %p59
    %p62 = scmp.ne.s32.totalorder %s47, %s61
    %p63 = scmp.eq.s32.totalorder %s16, 0
    %p64 = por %p62, %p63
    %s66 = sadd.s32 %s65, 1
    %p69 = scmp.eq.s32.totalorder %s10, 1
    %p70 = scmp.ne.s32.totalorder %s65, %s67
    %p71 = scmp.eq.s32.totalorder %s10, 0
    %p72 = por %p70, %p71
    %p73 = scmp.ne.s32.totalorder %s65, %s67
    %p74 = scmp.eq.s32.totalorder %s15, 1
    %p75 = por %p73, %p74
    %p76 = scmp.ne.s32.totalorder %s67, %s68
    %p77 = scmp.eq.s32.totalorder %s15, 0
    %p78 = por %p76, %p77
    %p79 = scmp.ne.s32.totalorder %s67, %s68
    %p80 = scmp.eq.s32.totalorder %s16, 1
    %p81 = por %p79, %p80
    %p83 = scmp.ne.s32.totalorder %s68, %s82
    %p84 = scmp.eq.s32.totalorder %s16, 0
    %p85 = por %p83, %p84
    %s87 = sadd.s32 %s86, 1
    %p90 = scmp.eq.s32.totalorder %s10, 1
    %p91 = scmp.ne.s32.totalorder %s86, %s88
    %p92 = scmp.eq.s32.totalorder %s10, 0
    %p93 = por %p91, %p92
    %p94 = scmp.ne.s32.totalorder %s86, %s88
    %p95 = scmp.eq.s32.totalorder %s15, 1
    %p96 = por %p94, %p95
    %p97 = scmp.ne.s32.totalorder %s88, %s89
    %p98 = scmp.eq.s32.totalorder %s15, 0
    %p99 = por %p97, %p98
    %p100 = scmp.ne.s32.totalorder %s88, %s89
    %p101 = scmp.eq.s32.totalorder %s16, 1
    %p102 = por %p100, %p101
    %p104 = scmp.ne.s32.totalorder %s89, %s103
    %p105 = scmp.eq.s32.totalorder %s16, 0
    %p106 = por %p104, %p105
    %s107 = ssub.s32 %s10, %s17
    %p108 = scmp.eq.s32.totalorder %s107, 0
    %s110 = sadd.s32 %s109, 1
    %s111 = scalar_select %p108, %s109, %s110
    %p114 = pneg %p108
    %p115 = scmp.eq.s32.totalorder %s10, 1
    %p116 = por %p114, %p115
    %p117 = scmp.ne.s32.totalorder %s109, %s112
    %p118 = scmp.eq.s32.totalorder %s10, 0
    %p119 = por %p117, %p118
    %p120 = scmp.ne.s32.totalorder %s109, %s112
    %p121 = scmp.eq.s32.totalorder %s15, 1
    %p122 = por %p120, %p121
    %p123 = scmp.ne.s32.totalorder %s112, %s113
    %p124 = scmp.eq.s32.totalorder %s15, 0
    %p125 = por %p123, %p124
    %p126 = scmp.ne.s32.totalorder %s112, %s113
    %p127 = scmp.eq.s32.totalorder %s16, 1
    %p128 = por %p126, %p127
    %p130 = scmp.ne.s32.totalorder %s113, %s129
    %p131 = scmp.eq.s32.totalorder %s16, 0
    %p132 = por %p130, %p131
    %p133 = scmp.le.s32.totalorder 1, %s10
    %p134 = scmp.lt.s32.totalorder %s10, 3
    %p135 = pnand %p133, %p134
    %p136 = pneg %p135
    // Predicated region
    $region9: #{up_forward.2} parent=5 // pred_check
      _
    $region10: #{up_forward.2} parent=5 // pred_check_branch
      %138 = sbr.rel (%p135) target = $region12
    $region11: #{up_forward.2} parent=5 // pred_region
      %s139 = ssub.s32 %s10, 1
      // Predicated region
      $region13: #{up_forward.2} parent=11 // pred_check
        %p140 = pneg %p57
      $region14: #{up_forward.2} parent=11 // pred_check_branch
        %142 = sbr.rel (%p140) target = $region16
      $region15: #{up_forward.2} parent=11 // pred_region
        _
      $region16: #{up_forward.2} parent=11 // pred_fallthru
        _
      // Predicated region
      $region17: #{up_forward.2} parent=11 // pred_check
        %p143 = pneg %p78
      $region18: #{up_forward.2} parent=11 // pred_check_branch
        %145 = sbr.rel (%p143) target = $region20
      $region19: #{up_forward.2} parent=11 // pred_region
        _
      $region20: #{up_forward.2} parent=11 // pred_fallthru
        _
      // Predicated region
      $region21: #{up_forward.2} parent=11 // pred_check
        %p146 = pneg %p99
      $region22: #{up_forward.2} parent=11 // pred_check_branch
        %148 = sbr.rel (%p146) target = $region24
      $region23: #{up_forward.2} parent=11 // pred_region
        _
      $region24: #{up_forward.2} parent=11 // pred_fallthru
        _
    $region12: #{up_forward.2} parent=5 // pred_fallthru
      _
    %p149 = scmp.lt.s32.totalorder %s10, 2
    // Predicated region
    $region25: #{up_forward.2} parent=5 // pred_check
      %p150 = pneg %p149
    $region26: #{up_forward.2} parent=5 // pred_check_branch
      %152 = sbr.rel (%p150) target = $region28
    $region27: #{up_forward.2} parent=5 // pred_region
      // Predicated region
      $region29: #{up_forward.2} parent=27 // pred_check
        %p153 = pneg %p30
      $region30: #{up_forward.2} parent=27 // pred_check_branch
        %155 = sbr.rel (%p153) target = $region32
      $region31: #{up_forward.2} parent=27 // pred_region
        %p156 = scmp.lt.s32.totalorder %s10, 1
        %s157 = scalar_select %p156, %s10, 1
        %s158 = smul.addr %s157, 4
        %s159 = scalar_lea.vmem %s0, %s158
      $region32: #{up_forward.2} parent=27 // pred_fallthru
        _
    $region28: #{up_forward.2} parent=5 // pred_fallthru
      _
    %p160 = scmp.le.s32.totalorder 1, %s10
    %p161 = scmp.lt.s32.totalorder %s10, 3
    %p162 = pnand %p160, %p161
    %p163 = pneg %p162
    // Predicated region
    $region33: #{up_forward.2} parent=5 // pred_check
      _
    $region34: #{up_forward.2} parent=5 // pred_check_branch
      %165 = sbr.rel (%p162) target = $region36
    $region35: #{up_forward.2} parent=5 // pred_region
      %s166 = ssub.s32 %s10, 1
      %p167 = scmp.lt.s32.totalorder %s15, 1
      %s168 = scalar_select %p167, %s15, 1
      %s169 = smul.addr %s168, 4
      %s170 = scalar_lea.vmem %s0, %s169
      %p171 = pneg %p36
      %p172 = pneg %p33
      %p173 = pneg %p57
      %p174 = pneg %p54
      %p175 = pneg %p78
      %p176 = pneg %p75
      %p177 = pneg %p99
      %p178 = pneg %p96
      %p179 = pneg %p125
      %p180 = pneg %p122
      %p181 = scmp.lt.s32.totalorder %s15, 1
      %s182 = scalar_select %p181, %s15, 1
      %s183 = smul.addr %s182, 2
      %s184 = smul.addr %s183, 4
      %s185 = scalar_lea.vmem %s4, %s184
      %p186 = scmp.lt.s32.totalorder %s15, 1
      %s187 = scalar_select %p186, %s15, 1
      %s188 = smul.addr %s187, 4
      %s189 = scalar_lea.vmem %s0, %s188
      %p190 = scmp.lt.s32.totalorder %s15, 1
      %s191 = scalar_select %p190, %s15, 1
      %s192 = smul.addr %s191, 2
      %s193 = smul.addr %s192, 4
      %s194 = scalar_lea.vmem %s4, %s193
      %v196 = vld [vmem:[%s189] sm:$0xf]
      %v197 = vld [vmem:[%s1] sm:$0xf]
      %v198 = vld [vmem:[%s1 + $0x4] sm:$0xf]
      %v199 = vld [vmem:[%s1 + $0x8] sm:$0xf]
      %v200 = vld [vmem:[%s1 + $0xc] sm:$0xf]
      %v201 = vld [vmem:[%s1 + $0x10] sm:$0xf]
      %v202 = vld [vmem:[%s1 + $0x14] sm:$0xf]
      %v203 = vld [vmem:[%s1 + $0x18] sm:$0xf]
      %v204 = vld [vmem:[%s1 + $0x1c] sm:$0xf]
      %v213 = vunpack.c.l.b16 %v197
      %v214 = vunpack.c.l.b16 %v198
      %v215 = vunpack.c.l.b16 %v199
      %v216 = vunpack.c.l.b16 %v200
      %v217 = vunpack.c.l.b16 %v201
      %v218 = vunpack.c.l.b16 %v202
      %v219 = vunpack.c.l.b16 %v203
      %v220 = vunpack.c.l.b16 %v204
      %v221 = vpack.c.b16 %v214, %v213
      %v222 = vpack.c.b16 %v216, %v215
      %v223 = vpack.c.b16 %v218, %v217
      %v224 = vpack.c.b16 %v220, %v219
      %vm229 = vcmask 523264
      %v231 = vsel %vm229, %v196, 0
      %233 = vmatprep.subr.bf16.mxu0 0
      %234 = vmatpush1.bf16.msra.mxu0 0
      %235 = vmatprep.subr.bf16.mxu0 0
      %236 = vmatpush1.bf16.msra.mxu0 0
      %237 = vmatprep.subr.bf16.mxu0 0
      %238 = vmatpush1.bf16.msra.mxu0 0
      %239 = vmatprep.subr.bf16.mxu0 0
      %240 = vmatpush1.bf16.msra.mxu0 0
      %241 = vmatprep.subr.bf16.mxu0 0
      %242 = vmatpush1.bf16.msra.mxu0 %v224
      %243 = vmatprep.subr.bf16.mxu0 0
      %244 = vmatpush1.bf16.msra.mxu0 %v223
      %245 = vmatprep.subr.bf16.mxu0 0
      %246 = vmatpush1.bf16.msra.mxu0 %v222
      %247 = vmatprep.subr.bf16.mxu0 0
      %248 = vmatpush1.bf16.msra.mxu0 %v221
      %249 = vmatprep.subr.bf16.mxu0 0
      %250 = vmatpush2.bf16.msra.mxu0 0
      %251 = vmatprep.subr.bf16.mxu0 0
      %252 = vmatpush2.bf16.msra.mxu0 0
      %253 = vmatprep.subr.bf16.mxu0 0
      %254 = vmatpush2.bf16.msra.mxu0 0
      %255 = vmatprep.subr.bf16.mxu0 0
      %256 = vmatpush2.bf16.msra.mxu0 0
      %257 = vmatprep.subr.bf16.mxu0 0
      %258 = vmatpush2.bf16.msra.mxu0 0
      %259 = vmatprep.subr.bf16.mxu0 0
      %260 = vmatpush2.bf16.msra.mxu0 0
      %261 = vmatprep.subr.bf16.mxu0 0
      %262 = vmatpush2.bf16.msra.mxu0 0
      %263 = vmatprep.subr.bf16.mxu0 0
      %264 = vmatpush2.bf16.msra.mxu0 0
      %265 = vmatprep.mubr.bf16.mxu0 0
      %266 = vmatmul.mubr.bf16.gmra.mxu0 %v231
      %v267 = vpop.f32.mrf.mxu0
      %v268 = vadd.f32 0.0, %v267
      %v269 = vpop.f32.mrf.mxu0
      %v270 = vpop.f32.mrf.mxu0
      %v271 = vpop.f32.mrf.mxu0
      %272 = vdwg.mxu0
      %v273 = vld [vmem:[%s2] sm:$0xf]
      %v274 = vld [vmem:[%s2 + $0x4] sm:$0xf]
      %v275 = vpack.c.bf16 %v268, %v268
      %v276 = vld [vmem:[%s3] sm:$0x1]
      %v278 = vlaneseq
      %v279 = vshrl.u32 %v278, 7
      %v280 = vsub.s32 0, %v279
      %v281 = vrot.slane %v276, %v280
      %v285 = vunpack.c.l.b16 %v273
      %v286 = vunpack.c.l.b16 %v274
      %v287 = vpack.c.b16 %v286, %v285
      %vm288 = vcmask 64512
      %v290 = vsel %vm288, %v287, 0
      %vm292 = vcmask 1043456
      %v294 = vsel %vm292, %v275, 0
      %296 = vmatprep.subr.bf16.mxu0 0
      %297 = vmatpush1.bf16.msra.mxu0 0
      %298 = vmatprep.subr.bf16.mxu0 0
      %299 = vmatpush1.bf16.msra.mxu0 0
      %300 = vmatprep.subr.bf16.mxu0 0
      %301 = vmatpush1.bf16.msra.mxu0 0
      %302 = vmatprep.subr.bf16.mxu0 0
      %303 = vmatpush1.bf16.msra.mxu0 0
      %304 = vmatprep.subr.bf16.mxu0 0
      %305 = vmatpush1.bf16.msra.mxu0 0
      %306 = vmatprep.subr.bf16.mxu0 0
      %307 = vmatpush1.bf16.msra.mxu0 0
      %308 = vmatprep.subr.bf16.mxu0 0
      %309 = vmatpush1.bf16.msra.mxu0 0
      %310 = vmatprep.subr.bf16.mxu0 0
      %311 = vmatpush1.bf16.msra.mxu0 %v294
      %312 = vmatprep.subr.bf16.mxu0 0
      %313 = vmatpush2.bf16.msra.mxu0 0
      %314 = vmatprep.subr.bf16.mxu0 0
      %315 = vmatpush2.bf16.msra.mxu0 0
      %316 = vmatprep.subr.bf16.mxu0 0
      %317 = vmatpush2.bf16.msra.mxu0 0
      %318 = vmatprep.subr.bf16.mxu0 0
      %319 = vmatpush2.bf16.msra.mxu0 0
      %320 = vmatprep.subr.bf16.mxu0 0
      %321 = vmatpush2.bf16.msra.mxu0 0
      %322 = vmatprep.subr.bf16.mxu0 0
      %323 = vmatpush2.bf16.msra.mxu0 0
      %324 = vmatprep.subr.bf16.mxu0 0
      %325 = vmatpush2.bf16.msra.mxu0 0
      %326 = vmatprep.subr.bf16.mxu0 0
      %327 = vmatpush2.bf16.msra.mxu0 0
      %328 = vmatprep.mubr.bf16.mxu0 0
      %329 = vmatmul.mubr.bf16.gmra.mxu0 %v290
      %v330 = vpop.f32.mrf.mxu0
      %v331 = vadd.f32 %v281, %v330
      %v332 = vpop.f32.mrf.mxu0
      %v333 = vpop.f32.mrf.mxu0
      %v334 = vadd.f32 %v281, %v333
      %v335 = vpop.f32.mrf.mxu0
      %336 = vdwg.mxu0
      %v337 = vmax.f32 %v331, 0.0
      %v338 = vmax.f32 %v334, 0.0
      %v339 = vpack.c.bf16 %v338, %v337
      %v341 = vunpack.c.l.b16 %v339
      %v342 = vunpack.c.h.b16 %v339
      %v343 = vpack.c.b16 %v341, %v341
      %v344 = vpack.c.b16 %v342, %v342
      %vm347 = vcmask 519168
      %348 = vst.msk [vmem:[%s194] sm:$0xf] %vm347, %v343
      %349 = vst.msk [vmem:[%s194 + $0x4] sm:$0xf] %vm347, %v344
      %p350 = scmp.lt.s32.totalorder %s15, 1
      %s351 = scalar_select %p350, %s15, 1
      %s352 = smul.addr %s351, 2
      %s353 = smul.addr %s352, 4
      %s354 = scalar_lea.vmem %s4, %s353
      // Predicated region
      $region37: #{up_forward.2} parent=35 // pred_check
        %p355 = pneg %p122
      $region38: #{up_forward.2} parent=35 // pred_check_branch
        %357 = sbr.rel (%p355) target = $region40
      $region39: #{up_forward.2} parent=35 // pred_region
        _
      $region40: #{up_forward.2} parent=35 // pred_fallthru
        _
    $region36: #{up_forward.2} parent=5 // pred_fallthru
      _
    %p358 = scmp.le.s32.totalorder 2, %s10
    // Predicated region
    $region41: #{up_forward.2} parent=5 // pred_check
      %p359 = pneg %p358
    $region42: #{up_forward.2} parent=5 // pred_check_branch
      %361 = sbr.rel (%p359) target = $region44
    $region43: #{up_forward.2} parent=5 // pred_region
      %s362 = ssub.s32 %s10, 2
      // Predicated region
      $region45: #{up_forward.2} parent=43 // pred_check
        %p363 = pneg %p128
      $region46: #{up_forward.2} parent=43 // pred_check_branch
        %365 = sbr.rel (%p363) target = $region48
      $region47: #{up_forward.2} parent=43 // pred_region
        %p366 = scmp.lt.s32.totalorder %s16, 1
        %s367 = scalar_select %p366, %s16, 1
        %s368 = smul.addr %s367, 2
        %s369 = smul.addr %s368, 4
        %s370 = scalar_lea.vmem %s4, %s369
      $region48: #{up_forward.2} parent=43 // pred_fallthru
        _
    $region44: #{up_forward.2} parent=5 // pred_fallthru
      _
  $region6: #{up_forward.2} parent=0 // loop_footer
    %s14 = sadd.s32 1, %s10
  $region7: #{up_forward.2} parent=0 // loop_footer_branch
    %9 = sbr.rel target = $region3
  $region8: #{up_forward.2} parent=0 // loop_exit
    _

// kernel: up_forward.3
$region0: #{up_forward.3}
  #allocation0 [shape = 'u32[]', space=smem, size = 0x4, offset = 0x4, fixed_abs, tag = 'smem constant byte address 0x4 - core index']
  #allocation1 [shape = 'u32[144,128]{1,0:T(1,128)}', space=vmem, size = 0x12000, scoped, tag = 'internal scratch']
  #allocation2 [shape = 'bf16[18,18,8]{2,1,0:T(8,128)(2,1)}', space=vmem, size = 0x1b000, scoped, tag = 'scratch operand']
  #allocation3 [shape = 'bf16[18,18,16]{2,1,0:T(8,128)(2,1)}', space=vmem, size = 0x1b000, scoped, tag = 'scratch operand']
  #allocation4 [shape = 'bf16[256,72]{1,0:T(8,128)(2,1)}', space=vmem, size = 0x10000, scoped, tag = 'scratch operand']
  #allocation5 [shape = 'bf16[256,144]{1,0:T(8,128)(2,1)}', space=vmem, size = 0x20000, scoped, tag = 'scratch operand']
  %s0 = inlined_call_operand.vmem [shape: bf16[2,16,16,4], index: 0, kind: input, shape index: {}]
  %s1 = inlined_call_operand.vmem [shape: bf16[2,16,16,4], index: 1, kind: input, shape index: {}]
  %s2 = inlined_call_operand.vmem [shape: bf16[72,16], index: 2, kind: input, shape index: {}]
  %s3 = inlined_call_operand.vmem [shape: f32[1,16], index: 3, kind: input, shape index: {}]
  %s4 = inlined_call_operand.vmem [shape: f32[1,16], index: 4, kind: input, shape index: {}]
  %s5 = inlined_call_operand.vmem [shape: bf16[144,16], index: 5, kind: input, shape index: {}]
  %s6 = inlined_call_operand.vmem [shape: f32[1,16], index: 6, kind: input, shape index: {}]
  %s7 = inlined_call_operand.vmem [shape: f32[1,16], index: 7, kind: input, shape index: {}]
  %s8 = inlined_call_operand.vmem [shape: f32[2,16,16,16], index: 8, kind: output, shape index: {}]
  %s9 = sld [smem:[#allocation0]]
  $region65: #{up_forward.3} parent=0
    _
  %s11 = ssub.s32 1, %s9
  %s12 = scalar_select 0, %s11, %s9
  loop: start=0, step=1, limit=4
  $region2: #{up_forward.3} parent=0 // loop_pre_header
    _
  $region3: #{up_forward.3} parent=0 // loop_header
    %s14 = sphi 0, %s18
    %p15 = scmp.ge.s32.totalorder %s14, 4
    %s24 = sphi 0, %s26
    %s27 = sphi 0, %s24
    %s28 = sphi 0, %s27
    %s44 = sphi 0, %s28
    %s50 = sphi 0, %s52
    %s53 = sphi 0, %s50
    %s54 = sphi 0, %s53
    %s70 = sphi 0, %s54
    %s74 = sphi 0, %s74
    %s76 = sphi 0, %s74
    %s77 = sphi 0, %s76
    %s91 = sphi 0, %s77
    %s95 = sphi 0, %s95
    %s97 = sphi 0, %s95
    %s98 = sphi 0, %s97
    %s112 = sphi 0, %s98
    %s116 = sphi 0, %s116
    %s118 = sphi 0, %s116
    %s119 = sphi 0, %s118
    %s133 = sphi 0, %s119
    %s137 = sphi 0, %s137
    %s139 = sphi 0, %s137
    %s140 = sphi 0, %s139
    %s154 = sphi 0, %s140
    %s158 = sphi 0, %s158
    %s160 = sphi 0, %s158
    %s161 = sphi 0, %s160
    %s175 = sphi 0, %s161
    %s179 = sphi 0, %s179
    %s181 = sphi 0, %s179
    %s182 = sphi 0, %s181
    %s196 = sphi 0, %s182
    %s202 = sphi 0, %s204
    %s205 = sphi 0, %s202
    %s206 = sphi 0, %s205
    %s222 = sphi 0, %s206
  $region4: #{up_forward.3} parent=0 // loop_header_branch
    %17 = sbr.rel (%p15) target = $region8
  $region5: #{up_forward.3} parent=0 // loop_body
    %s19 = ssub.s32 %s14, 1
    %s20 = ssub.s32 %s14, 2
    %s21 = sadd.s32 %s14, 1
    %s22 = ssub.s32 %s14, %s21
    %p23 = scmp.eq.s32.totalorder %s22, 0
    %s25 = sadd.s32 %s24, 1
    %s26 = scalar_select %p23, %s24, %s25
    %p29 = pneg %p23
    %p30 = scmp.eq.s32.totalorder %s14, 1
    %p31 = por %p29, %p30
    %p32 = scmp.ne.s32.totalorder %s24, %s27
    %p33 = scmp.eq.s32.totalorder %s14, 0
    %p34 = por %p32, %p33
    %p35 = scmp.ne.s32.totalorder %s24, %s27
    %p36 = scmp.eq.s32.totalorder %s19, 1
    %p37 = por %p35, %p36
    %p38 = scmp.ne.s32.totalorder %s27, %s28
    %p39 = scmp.eq.s32.totalorder %s19, 0
    %p40 = por %p38, %p39
    %p41 = scmp.ne.s32.totalorder %s27, %s28
    %p42 = scmp.eq.s32.totalorder %s20, 1
    %p43 = por %p41, %p42
    %p45 = scmp.ne.s32.totalorder %s28, %s44
    %p46 = scmp.eq.s32.totalorder %s20, 0
    %p47 = por %p45, %p46
    %s48 = ssub.s32 %s14, %s21
    %p49 = scmp.eq.s32.totalorder %s48, 0
    %s51 = sadd.s32 %s50, 1
    %s52 = scalar_select %p49, %s50, %s51
    %p55 = pneg %p49
    %p56 = scmp.eq.s32.totalorder %s14, 1
    %p57 = por %p55, %p56
    %p58 = scmp.ne.s32.totalorder %s50, %s53
    %p59 = scmp.eq.s32.totalorder %s14, 0
    %p60 = por %p58, %p59
    %p61 = scmp.ne.s32.totalorder %s50, %s53
    %p62 = scmp.eq.s32.totalorder %s19, 1
    %p63 = por %p61, %p62
    %p64 = scmp.ne.s32.totalorder %s53, %s54
    %p65 = scmp.eq.s32.totalorder %s19, 0
    %p66 = por %p64, %p65
    %p67 = scmp.ne.s32.totalorder %s53, %s54
    %p68 = scmp.eq.s32.totalorder %s20, 1
    %p69 = por %p67, %p68
    %p71 = scmp.ne.s32.totalorder %s54, %s70
    %p72 = scmp.eq.s32.totalorder %s20, 0
    %p73 = por %p71, %p72
    %s75 = sadd.s32 %s74, 1
    %p78 = scmp.eq.s32.totalorder %s14, 1
    %p79 = scmp.ne.s32.totalorder %s74, %s76
    %p80 = scmp.eq.s32.totalorder %s14, 0
    %p81 = por %p79, %p80
    %p82 = scmp.ne.s32.totalorder %s74, %s76
    %p83 = scmp.eq.s32.totalorder %s19, 1
    %p84 = por %p82, %p83
    %p85 = scmp.ne.s32.totalorder %s76, %s77
    %p86 = scmp.eq.s32.totalorder %s19, 0
    %p87 = por %p85, %p86
    %p88 = scmp.ne.s32.totalorder %s76, %s77
    %p89 = scmp.eq.s32.totalorder %s20, 1
    %p90 = por %p88, %p89
    %p92 = scmp.ne.s32.totalorder %s77, %s91
    %p93 = scmp.eq.s32.totalorder %s20, 0
    %p94 = por %p92, %p93
    %s96 = sadd.s32 %s95, 1
    %p99 = scmp.eq.s32.totalorder %s14, 1
    %p100 = scmp.ne.s32.totalorder %s95, %s97
    %p101 = scmp.eq.s32.totalorder %s14, 0
    %p102 = por %p100, %p101
    %p103 = scmp.ne.s32.totalorder %s95, %s97
    %p104 = scmp.eq.s32.totalorder %s19, 1
    %p105 = por %p103, %p104
    %p106 = scmp.ne.s32.totalorder %s97, %s98
    %p107 = scmp.eq.s32.totalorder %s19, 0
    %p108 = por %p106, %p107
    %p109 = scmp.ne.s32.totalorder %s97, %s98
    %p110 = scmp.eq.s32.totalorder %s20, 1
    %p111 = por %p109, %p110
    %p113 = scmp.ne.s32.totalorder %s98, %s112
    %p114 = scmp.eq.s32.totalorder %s20, 0
    %p115 = por %p113, %p114
    %s117 = sadd.s32 %s116, 1
    %p120 = scmp.eq.s32.totalorder %s14, 1
    %p121 = scmp.ne.s32.totalorder %s116, %s118
    %p122 = scmp.eq.s32.totalorder %s14, 0
    %p123 = por %p121, %p122
    %p124 = scmp.ne.s32.totalorder %s116, %s118
    %p125 = scmp.eq.s32.totalorder %s19, 1
    %p126 = por %p124, %p125
    %p127 = scmp.ne.s32.totalorder %s118, %s119
    %p128 = scmp.eq.s32.totalorder %s19, 0
    %p129 = por %p127, %p128
    %p130 = scmp.ne.s32.totalorder %s118, %s119
    %p131 = scmp.eq.s32.totalorder %s20, 1
    %p132 = por %p130, %p131
    %p134 = scmp.ne.s32.totalorder %s119, %s133
    %p135 = scmp.eq.s32.totalorder %s20, 0
    %p136 = por %p134, %p135
    %s138 = sadd.s32 %s137, 1
    %p141 = scmp.eq.s32.totalorder %s14, 1
    %p142 = scmp.ne.s32.totalorder %s137, %s139
    %p143 = scmp.eq.s32.totalorder %s14, 0
    %p144 = por %p142, %p143
    %p145 = scmp.ne.s32.totalorder %s137, %s139
    %p146 = scmp.eq.s32.totalorder %s19, 1
    %p147 = por %p145, %p146
    %p148 = scmp.ne.s32.totalorder %s139, %s140
    %p149 = scmp.eq.s32.totalorder %s19, 0
    %p150 = por %p148, %p149
    %p151 = scmp.ne.s32.totalorder %s139, %s140
    %p152 = scmp.eq.s32.totalorder %s20, 1
    %p153 = por %p151, %p152
    %p155 = scmp.ne.s32.totalorder %s140, %s154
    %p156 = scmp.eq.s32.totalorder %s20, 0
    %p157 = por %p155, %p156
    %s159 = sadd.s32 %s158, 1
    %p162 = scmp.eq.s32.totalorder %s14, 1
    %p163 = scmp.ne.s32.totalorder %s158, %s160
    %p164 = scmp.eq.s32.totalorder %s14, 0
    %p165 = por %p163, %p164
    %p166 = scmp.ne.s32.totalorder %s158, %s160
    %p167 = scmp.eq.s32.totalorder %s19, 1
    %p168 = por %p166, %p167
    %p169 = scmp.ne.s32.totalorder %s160, %s161
    %p170 = scmp.eq.s32.totalorder %s19, 0
    %p171 = por %p169, %p170
    %p172 = scmp.ne.s32.totalorder %s160, %s161
    %p173 = scmp.eq.s32.totalorder %s20, 1
    %p174 = por %p172, %p173
    %p176 = scmp.ne.s32.totalorder %s161, %s175
    %p177 = scmp.eq.s32.totalorder %s20, 0
    %p178 = por %p176, %p177
    %s180 = sadd.s32 %s179, 1
    %p183 = scmp.eq.s32.totalorder %s14, 1
    %p184 = scmp.ne.s32.totalorder %s179, %s181
    %p185 = scmp.eq.s32.totalorder %s14, 0
    %p186 = por %p184, %p185
    %p187 = scmp.ne.s32.totalorder %s179, %s181
    %p188 = scmp.eq.s32.totalorder %s19, 1
    %p189 = por %p187, %p188
    %p190 = scmp.ne.s32.totalorder %s181, %s182
    %p191 = scmp.eq.s32.totalorder %s19, 0
    %p192 = por %p190, %p191
    %p193 = scmp.ne.s32.totalorder %s181, %s182
    %p194 = scmp.eq.s32.totalorder %s20, 1
    %p195 = por %p193, %p194
    %p197 = scmp.ne.s32.totalorder %s182, %s196
    %p198 = scmp.eq.s32.totalorder %s20, 0
    %p199 = por %p197, %p198
    %s200 = ssub.s32 %s14, %s21
    %p201 = scmp.eq.s32.totalorder %s200, 0
    %s203 = sadd.s32 %s202, 1
    %s204 = scalar_select %p201, %s202, %s203
    %p207 = pneg %p201
    %p208 = scmp.eq.s32.totalorder %s14, 1
    %p209 = por %p207, %p208
    %p210 = scmp.ne.s32.totalorder %s202, %s205
    %p211 = scmp.eq.s32.totalorder %s14, 0
    %p212 = por %p210, %p211
    %p213 = scmp.ne.s32.totalorder %s202, %s205
    %p214 = scmp.eq.s32.totalorder %s19, 1
    %p215 = por %p213, %p214
    %p216 = scmp.ne.s32.totalorder %s205, %s206
    %p217 = scmp.eq.s32.totalorder %s19, 0
    %p218 = por %p216, %p217
    %p219 = scmp.ne.s32.totalorder %s205, %s206
    %p220 = scmp.eq.s32.totalorder %s20, 1
    %p221 = por %p219, %p220
    %p223 = scmp.ne.s32.totalorder %s206, %s222
    %p224 = scmp.eq.s32.totalorder %s20, 0
    %p225 = por %p223, %p224
    %p226 = scmp.le.s32.totalorder 1, %s14
    %p227 = scmp.lt.s32.totalorder %s14, 3
    %p228 = pnand %p226, %p227
    %p229 = pneg %p228
    // Predicated region
    $region9: #{up_forward.3} parent=5 // pred_check
      _
    $region10: #{up_forward.3} parent=5 // pred_check_branch
      %231 = sbr.rel (%p228) target = $region12
    $region11: #{up_forward.3} parent=5 // pred_region
      %s232 = ssub.s32 %s14, 1
      // Predicated region
      $region13: #{up_forward.3} parent=11 // pred_check
        %p233 = pneg %p87
      $region14: #{up_forward.3} parent=11 // pred_check_branch
        %235 = sbr.rel (%p233) target = $region16
      $region15: #{up_forward.3} parent=11 // pred_region
        _
      $region16: #{up_forward.3} parent=11 // pred_fallthru
        _
      // Predicated region
      $region17: #{up_forward.3} parent=11 // pred_check
        %p236 = pneg %p108
      $region18: #{up_forward.3} parent=11 // pred_check_branch
        %238 = sbr.rel (%p236) target = $region20
      $region19: #{up_forward.3} parent=11 // pred_region
        _
      $region20: #{up_forward.3} parent=11 // pred_fallthru
        _
      // Predicated region
      $region21: #{up_forward.3} parent=11 // pred_check
        %p239 = pneg %p129
      $region22: #{up_forward.3} parent=11 // pred_check_branch
        %241 = sbr.rel (%p239) target = $region24
      $region23: #{up_forward.3} parent=11 // pred_region
        _
      $region24: #{up_forward.3} parent=11 // pred_fallthru
        _
      // Predicated region
      $region25: #{up_forward.3} parent=11 // pred_check
        %p242 = pneg %p150
      $region26: #{up_forward.3} parent=11 // pred_check_branch
        %244 = sbr.rel (%p242) target = $region28
      $region27: #{up_forward.3} parent=11 // pred_region
        _
      $region28: #{up_forward.3} parent=11 // pred_fallthru
        _
      // Predicated region
      $region29: #{up_forward.3} parent=11 // pred_check
        %p245 = pneg %p171
      $region30: #{up_forward.3} parent=11 // pred_check_branch
        %247 = sbr.rel (%p245) target = $region32
      $region31: #{up_forward.3} parent=11 // pred_region
        _
      $region32: #{up_forward.3} parent=11 // pred_fallthru
        _
      // Predicated region
      $region33: #{up_forward.3} parent=11 // pred_check
        %p248 = pneg %p192
      $region34: #{up_forward.3} parent=11 // pred_check_branch
        %250 = sbr.rel (%p248) target = $region36
      $region35: #{up_forward.3} parent=11 // pred_region
        _
      $region36: #{up_forward.3} parent=11 // pred_fallthru
        _
    $region12: #{up_forward.3} parent=5 // pred_fallthru
      _
    %p251 = scmp.lt.s32.totalorder %s14, 2
    // Predicated region
    $region37: #{up_forward.3} parent=5 // pred_check
      %p252 = pneg %p251
    $region38: #{up_forward.3} parent=5 // pred_check_branch
      %254 = sbr.rel (%p252) target = $region40
    $region39: #{up_forward.3} parent=5 // pred_region
      // Predicated region
      $region41: #{up_forward.3} parent=39 // pred_check
        %p255 = pneg %p34
      $region42: #{up_forward.3} parent=39 // pred_check_branch
        %257 = sbr.rel (%p255) target = $region44
      $region43: #{up_forward.3} parent=39 // pred_region
        %p258 = scmp.lt.s32.totalorder %s14, 1
        %s259 = scalar_select %p258, %s14, 1
        %s260 = smul.addr %s259, 32
        %s261 = smul.addr %s260, 4
        %s262 = scalar_lea.vmem %s0, %s261
      $region44: #{up_forward.3} parent=39 // pred_fallthru
        _
      // Predicated region
      $region45: #{up_forward.3} parent=39 // pred_check
        %p263 = pneg %p60
      $region46: #{up_forward.3} parent=39 // pred_check_branch
        %265 = sbr.rel (%p263) target = $region48
      $region47: #{up_forward.3} parent=39 // pred_region
        %p266 = scmp.lt.s32.totalorder %s14, 1
        %s267 = scalar_select %p266, %s14, 1
        %s268 = smul.addr %s267, 32
        %s269 = smul.addr %s268, 4
        %s270 = scalar_lea.vmem %s1, %s269
      $region48: #{up_forward.3} parent=39 // pred_fallthru
        _
    $region40: #{up_forward.3} parent=5 // pred_fallthru
      _
    %p271 = scmp.le.s32.totalorder 1, %s14
    %p272 = scmp.lt.s32.totalorder %s14, 3
    %p273 = pnand %p271, %p272
    %p274 = pneg %p273
    // Predicated region
    $region49: #{up_forward.3} parent=5 // pred_check
      _
    $region50: #{up_forward.3} parent=5 // pred_check_branch
      %276 = sbr.rel (%p273) target = $region52
    $region51: #{up_forward.3} parent=5 // pred_region
      %s277 = ssub.s32 %s14, 1
      %p278 = scmp.lt.s32.totalorder %s19, 1
      %s279 = scalar_select %p278, %s19, 1
      %s280 = smul.addr %s279, 32
      %s281 = smul.addr %s280, 4
      %s282 = scalar_lea.vmem %s0, %s281
      %p283 = pneg %p40
      %p284 = pneg %p37
      %p285 = scmp.lt.s32.totalorder %s19, 1
      %s286 = scalar_select %p285, %s19, 1
      %s287 = smul.addr %s286, 32
      %s288 = smul.addr %s287, 4
      %s289 = scalar_lea.vmem %s1, %s288
      %p290 = pneg %p66
      %p291 = pneg %p63
      %p292 = pneg %p87
      %p293 = pneg %p84
      %p294 = pneg %p108
      %p295 = pneg %p105
      %p296 = pneg %p129
      %p297 = pneg %p126
      %p298 = pneg %p150
      %p299 = pneg %p147
      %p300 = pneg %p171
      %p301 = pneg %p168
      %p302 = pneg %p192
      %p303 = pneg %p189
      %p304 = pneg %p218
      %p305 = pneg %p215
      %p306 = scmp.lt.s32.totalorder %s19, 1
      %s307 = scalar_select %p306, %s19, 1
      %s308 = smul.addr %s307, 32
      %s309 = smul.addr %s308, 8
      %s310 = scalar_lea.vmem %s8, %s309
      %p311 = scmp.lt.s32.totalorder %s19, 1
      %s312 = scalar_select %p311, %s19, 1
      %s313 = smul.addr %s312, 32
      %s314 = smul.addr %s313, 4
      %s315 = scalar_lea.vmem %s0, %s314
      %p316 = scmp.lt.s32.totalorder %s19, 1
      %s317 = scalar_select %p316, %s19, 1
      %s318 = smul.addr %s317, 32
      %s319 = smul.addr %s318, 4
      %s320 = scalar_lea.vmem %s1, %s319
      %p321 = scmp.lt.s32.totalorder %s19, 1
      %s322 = scalar_select %p321, %s19, 1
      %s323 = smul.addr %s322, 32
      %s324 = smul.addr %s323, 8
      %s325 = scalar_lea.vmem %s8, %s324
      %vm327 = vcmask 60416
      %328 = vst.msk [vmem:[#allocation2] sm:$0xf] %vm327, 0
      %329 = vst.msk [vmem:[#allocation2 + $0x4] sm:$0xf] %vm327, 0
      %vm330 = vcmask 57344
      %331 = vst.msk [vmem:[#allocation2 + $0x8] sm:$0x1] %vm330, 0
      %332 = vst.msk [vmem:[#allocation2 + $0xc] sm:$0xf] %vm327, 0
      %333 = vst.msk [vmem:[#allocation2 + $0x10] sm:$0xf] %vm327, 0
      %334 = vst.msk [vmem:[#allocation2 + $0x14] sm:$0x1] %vm330, 0
      %335 = vst.msk [vmem:[#allocation2 + $0x18] sm:$0xf] %vm327, 0
      %336 = vst.msk [vmem:[#allocation2 + $0x1c] sm:$0xf] %vm327, 0
      %337 = vst.msk [vmem:[#allocation2 + $0x20] sm:$0x1] %vm330, 0
      %338 = vst.msk [vmem:[#allocation2 + $0x24] sm:$0xf] %vm327, 0
      %339 = vst.msk [vmem:[#allocation2 + $0x28] sm:$0xf] %vm327, 0
      %340 = vst.msk [vmem:[#allocation2 + $0x2c] sm:$0x1] %vm330, 0
      %341 = vst.msk [vmem:[#allocation2 + $0x30] sm:$0xf] %vm327, 0
      %342 = vst.msk [vmem:[#allocation2 + $0x34] sm:$0xf] %vm327, 0
      %343 = vst.msk [vmem:[#allocation2 + $0x38] sm:$0x1] %vm330, 0
      %344 = vst.msk [vmem:[#allocation2 + $0x3c] sm:$0xf] %vm327, 0
      %345 = vst.msk [vmem:[#allocation2 + $0x40] sm:$0xf] %vm327, 0
      %346 = vst.msk [vmem:[#allocation2 + $0x44] sm:$0x1] %vm330, 0
      %347 = vst.msk [vmem:[#allocation2 + $0x48] sm:$0xf] %vm327, 0
      %348 = vst.msk [vmem:[#allocation2 + $0x4c] sm:$0xf] %vm327, 0
      %349 = vst.msk [vmem:[#allocation2 + $0x50] sm:$0x1] %vm330, 0
      %350 = vst.msk [vmem:[#allocation2 + $0x54] sm:$0xf] %vm327, 0
      %351 = vst.msk [vmem:[#allocation2 + $0x58] sm:$0xf] %vm327, 0
      %352 = vst.msk [vmem:[#allocation2 + $0x5c] sm:$0x1] %vm330, 0
      %353 = vst.msk [vmem:[#allocation2 + $0x60] sm:$0xf] %vm327, 0
      %354 = vst.msk [vmem:[#allocation2 + $0x64] sm:$0xf] %vm327, 0
      %355 = vst.msk [vmem:[#allocation2 + $0x68] sm:$0x1] %vm330, 0
      %356 = vst.msk [vmem:[#allocation2 + $0x6c] sm:$0xf] %vm327, 0
      %357 = vst.msk [vmem:[#allocation2 + $0x70] sm:$0xf] %vm327, 0
      %358 = vst.msk [vmem:[#allocation2 + $0x74] sm:$0x1] %vm330, 0
      %359 = vst.msk [vmem:[#allocation2 + $0x78] sm:$0xf] %vm327, 0
      %360 = vst.msk [vmem:[#allocation2 + $0x7c] sm:$0xf] %vm327, 0
      %361 = vst.msk [vmem:[#allocation2 + $0x80] sm:$0x1] %vm330, 0
      %362 = vst.msk [vmem:[#allocation2 + $0x84] sm:$0xf] %vm327, 0
      %363 = vst.msk [vmem:[#allocation2 + $0x88] sm:$0xf] %vm327, 0
      %364 = vst.msk [vmem:[#allocation2 + $0x8c] sm:$0x1] %vm330, 0
      %365 = vst.msk [vmem:[#allocation2 + $0x90] sm:$0xf] %vm327, 0
      %366 = vst.msk [vmem:[#allocation2 + $0x94] sm:$0xf] %vm327, 0
      %367 = vst.msk [vmem:[#allocation2 + $0x98] sm:$0x1] %vm330, 0
      %368 = vst.msk [vmem:[#allocation2 + $0x9c] sm:$0xf] %vm327, 0
      %369 = vst.msk [vmem:[#allocation2 + $0xa0] sm:$0xf] %vm327, 0
      %370 = vst.msk [vmem:[#allocation2 + $0xa4] sm:$0x1] %vm330, 0
      %371 = vst.msk [vmem:[#allocation2 + $0xa8] sm:$0xf] %vm327, 0
      %372 = vst.msk [vmem:[#allocation2 + $0xac] sm:$0xf] %vm327, 0
      %373 = vst.msk [vmem:[#allocation2 + $0xb0] sm:$0x1] %vm330, 0
      %374 = vst.msk [vmem:[#allocation2 + $0xb4] sm:$0xf] %vm327, 0
      %375 = vst.msk [vmem:[#allocation2 + $0xb8] sm:$0xf] %vm327, 0
      %376 = vst.msk [vmem:[#allocation2 + $0xbc] sm:$0x1] %vm330, 0
      %377 = vst.msk [vmem:[#allocation2 + $0xc0] sm:$0xf] %vm327, 0
      %378 = vst.msk [vmem:[#allocation2 + $0xc4] sm:$0xf] %vm327, 0
      %379 = vst.msk [vmem:[#allocation2 + $0xc8] sm:$0x1] %vm330, 0
      %380 = vst.msk [vmem:[#allocation2 + $0xcc] sm:$0xf] %vm327, 0
      %381 = vst.msk [vmem:[#allocation2 + $0xd0] sm:$0xf] %vm327, 0
      %382 = vst.msk [vmem:[#allocation2 + $0xd4] sm:$0x1] %vm330, 0
      %v383 = vld [vmem:[%s315] sm:$0xf]
      %v384 = vld [vmem:[%s315 + $0x4] sm:$0xf]
      %v385 = vld [vmem:[%s315 + $0x8] sm:$0xf]
      %v386 = vld [vmem:[%s315 + $0xc] sm:$0xf]
      %v387 = vld [vmem:[%s315 + $0x10] sm:$0xf]
      %v388 = vld [vmem:[%s315 + $0x14] sm:$0xf]
      %v389 = vld [vmem:[%s315 + $0x18] sm:$0xf]
      %v390 = vld [vmem:[%s315 + $0x1c] sm:$0xf]
      %v391 = vld [vmem:[%s315 + $0x20] sm:$0xf]
      %v392 = vld [vmem:[%s315 + $0x24] sm:$0xf]
      %v393 = vld [vmem:[%s315 + $0x28] sm:$0xf]
      %v394 = vld [vmem:[%s315 + $0x2c] sm:$0xf]
      %v395 = vld [vmem:[%s315 + $0x30] sm:$0xf]
      %v396 = vld [vmem:[%s315 + $0x34] sm:$0xf]
      %v397 = vld [vmem:[%s315 + $0x38] sm:$0xf]
      %v398 = vld [vmem:[%s315 + $0x3c] sm:$0xf]
      %v399 = vld [vmem:[%s315 + $0x40] sm:$0xf]
      %v400 = vld [vmem:[%s315 + $0x44] sm:$0xf]
      %v401 = vld [vmem:[%s315 + $0x48] sm:$0xf]
      %v402 = vld [vmem:[%s315 + $0x4c] sm:$0xf]
      %v403 = vld [vmem:[%s315 + $0x50] sm:$0xf]
      %v404 = vld [vmem:[%s315 + $0x54] sm:$0xf]
      %v405 = vld [vmem:[%s315 + $0x58] sm:$0xf]
      %v406 = vld [vmem:[%s315 + $0x5c] sm:$0xf]
      %v407 = vld [vmem:[%s315 + $0x60] sm:$0xf]
      %v408 = vld [vmem:[%s315 + $0x64] sm:$0xf]
      %v409 = vld [vmem:[%s315 + $0x68] sm:$0xf]
      %v410 = vld [vmem:[%s315 + $0x6c] sm:$0xf]
      %v411 = vld [vmem:[%s315 + $0x70] sm:$0xf]
      %v412 = vld [vmem:[%s315 + $0x74] sm:$0xf]
      %v413 = vld [vmem:[%s315 + $0x78] sm:$0xf]
      %v414 = vld [vmem:[%s315 + $0x7c] sm:$0xf]
      %vm415 = vsmask.f32 256
      %vm416 = vsmask.f32 4368
      %vm417 = vmor %vm415, %vm416
      %v419 = vshrl.u32 %v383, 16
      %v421 = vrot.slane %v419, 7
      %v422 = vshll.u32 %v383, 16
      %v424 = vor.u32 %v421, %v422
      %v425 = vrot.slane %v421, 4
      %v427 = vshrl.u32 %v384, 16
      %v429 = vrot.slane %v427, 7
      %v430 = vshll.u32 %v384, 16
      %v432 = vor.u32 %v429, %v430
      %v433 = vsel %vm417, %v425, %v432
      %v434 = vrot.slane %v429, 4
      %v436 = vshrl.u32 %v385, 16
      %v438 = vrot.slane %v436, 7
      %v439 = vshll.u32 %v385, 16
      %v441 = vor.u32 %v438, %v439
      %v442 = vrot.slane %v438, 4
      %v444 = vshrl.u32 %v386, 16
      %v446 = vrot.slane %v444, 7
      %v447 = vshll.u32 %v386, 16
      %v449 = vor.u32 %v446, %v447
      %v450 = vsel %vm417, %v442, %v449
      %v451 = vrot.slane %v446, 4
      %v453 = vshrl.u32 %v387, 16
      %v455 = vrot.slane %v453, 7
      %v456 = vshll.u32 %v387, 16
      %v458 = vor.u32 %v455, %v456
      %v459 = vrot.slane %v455, 4
      %v461 = vshrl.u32 %v388, 16
      %v463 = vrot.slane %v461, 7
      %v464 = vshll.u32 %v388, 16
      %v466 = vor.u32 %v463, %v464
      %v467 = vsel %vm417, %v459, %v466
      %v468 = vrot.slane %v463, 4
      %v470 = vshrl.u32 %v389, 16
      %v472 = vrot.slane %v470, 7
      %v473 = vshll.u32 %v389, 16
      %v475 = vor.u32 %v472, %v473
      %v476 = vrot.slane %v472, 4
      %v478 = vshrl.u32 %v390, 16
      %v480 = vrot.slane %v478, 7
      %v481 = vshll.u32 %v390, 16
      %v483 = vor.u32 %v480, %v481
      %v484 = vsel %vm417, %v476, %v483
      %v485 = vrot.slane %v480, 4
      %v487 = vshrl.u32 %v391, 16
      %v489 = vrot.slane %v487, 7
      %v490 = vshll.u32 %v391, 16
      %v492 = vor.u32 %v489, %v490
      %v493 = vrot.slane %v489, 4
      %v495 = vshrl.u32 %v392, 16
      %v497 = vrot.slane %v495, 7
      %v498 = vshll.u32 %v392, 16
      %v500 = vor.u32 %v497, %v498
      %v501 = vsel %vm417, %v493, %v500
      %v502 = vrot.slane %v497, 4
      %v504 = vshrl.u32 %v393, 16
      %v506 = vrot.slane %v504, 7
      %v507 = vshll.u32 %v393, 16
      %v509 = vor.u32 %v506, %v507
      %v510 = vrot.slane %v506, 4
      %v512 = vshrl.u32 %v394, 16
      %v514 = vrot.slane %v512, 7
      %v515 = vshll.u32 %v394, 16
      %v517 = vor.u32 %v514, %v515
      %v518 = vsel %vm417, %v510, %v517
      %v519 = vrot.slane %v514, 4
      %v521 = vshrl.u32 %v395, 16
      %v523 = vrot.slane %v521, 7
      %v524 = vshll.u32 %v395, 16
      %v526 = vor.u32 %v523, %v524
      %v527 = vrot.slane %v523, 4
      %v529 = vshrl.u32 %v396, 16
      %v531 = vrot.slane %v529, 7
      %v532 = vshll.u32 %v396, 16
      %v534 = vor.u32 %v531, %v532
      %v535 = vsel %vm417, %v527, %v534
      %v536 = vrot.slane %v531, 4
      %v538 = vshrl.u32 %v397, 16
      %v540 = vrot.slane %v538, 7
      %v541 = vshll.u32 %v397, 16
      %v543 = vor.u32 %v540, %v541
      %v544 = vrot.slane %v540, 4
      %v546 = vshrl.u32 %v398, 16
      %v548 = vrot.slane %v546, 7
      %v549 = vshll.u32 %v398, 16
      %v551 = vor.u32 %v548, %v549
      %v552 = vsel %vm417, %v544, %v551
      %v553 = vrot.slane %v548, 4
      %v555 = vshrl.u32 %v399, 16
      %v557 = vrot.slane %v555, 7
      %v558 = vshll.u32 %v399, 16
      %v560 = vor.u32 %v557, %v558
      %v561 = vrot.slane %v557, 4
      %v563 = vshrl.u32 %v400, 16
      %v565 = vrot.slane %v563, 7
      %v566 = vshll.u32 %v400, 16
      %v568 = vor.u32 %v565, %v566
      %v569 = vsel %vm417, %v561, %v568
      %v570 = vrot.slane %v565, 4
      %v572 = vshrl.u32 %v401, 16
      %v574 = vrot.slane %v572, 7
      %v575 = vshll.u32 %v401, 16
      %v577 = vor.u32 %v574, %v575
      %v578 = vrot.slane %v574, 4
      %v580 = vshrl.u32 %v402, 16
      %v582 = vrot.slane %v580, 7
      %v583 = vshll.u32 %v402, 16
      %v585 = vor.u32 %v582, %v583
      %v586 = vsel %vm417, %v578, %v585
      %v587 = vrot.slane %v582, 4
      %v589 = vshrl.u32 %v403, 16
      %v591 = vrot.slane %v589, 7
      %v592 = vshll.u32 %v403, 16
      %v594 = vor.u32 %v591, %v592
      %v595 = vrot.slane %v591, 4
      %v597 = vshrl.u32 %v404, 16
      %v599 = vrot.slane %v597, 7
      %v600 = vshll.u32 %v404, 16
      %v602 = vor.u32 %v599, %v600
      %v603 = vsel %vm417, %v595, %v602
      %v604 = vrot.slane %v599, 4
      %v606 = vshrl.u32 %v405, 16
      %v608 = vrot.slane %v606, 7
      %v609 = vshll.u32 %v405, 16
      %v611 = vor.u32 %v608, %v609
      %v612 = vrot.slane %v608, 4
      %v614 = vshrl.u32 %v406, 16
      %v616 = vrot.slane %v614, 7
      %v617 = vshll.u32 %v406, 16
      %v619 = vor.u32 %v616, %v617
      %v620 = vsel %vm417, %v612, %v619
      %v621 = vrot.slane %v616, 4
      %v623 = vshrl.u32 %v407, 16
      %v625 = vrot.slane %v623, 7
      %v626 = vshll.u32 %v407, 16
      %v628 = vor.u32 %v625, %v626
      %v629 = vrot.slane %v625, 4
      %v631 = vshrl.u32 %v408, 16
      %v633 = vrot.slane %v631, 7
      %v634 = vshll.u32 %v408, 16
      %v636 = vor.u32 %v633, %v634
      %v637 = vsel %vm417, %v629, %v636
      %v638 = vrot.slane %v633, 4
      %v640 = vshrl.u32 %v409, 16
      %v642 = vrot.slane %v640, 7
      %v643 = vshll.u32 %v409, 16
      %v645 = vor.u32 %v642, %v643
      %v646 = vrot.slane %v642, 4
      %v648 = vshrl.u32 %v410, 16
      %v650 = vrot.slane %v648, 7
      %v651 = vshll.u32 %v410, 16
      %v653 = vor.u32 %v650, %v651
      %v654 = vsel %vm417, %v646, %v653
      %v655 = vrot.slane %v650, 4
      %v657 = vshrl.u32 %v411, 16
      %v659 = vrot.slane %v657, 7
      %v660 = vshll.u32 %v411, 16
      %v662 = vor.u32 %v659, %v660
      %v663 = vrot.slane %v659, 4
      %v665 = vshrl.u32 %v412, 16
      %v667 = vrot.slane %v665, 7
      %v668 = vshll.u32 %v412, 16
      %v670 = vor.u32 %v667, %v668
      %v671 = vsel %vm417, %v663, %v670
      %v672 = vrot.slane %v667, 4
      %v674 = vshrl.u32 %v413, 16
      %v676 = vrot.slane %v674, 7
      %v677 = vshll.u32 %v413, 16
      %v679 = vor.u32 %v676, %v677
      %v680 = vrot.slane %v676, 4
      %v682 = vshrl.u32 %v414, 16
      %v684 = vrot.slane %v682, 7
      %v685 = vshll.u32 %v414, 16
      %v687 = vor.u32 %v684, %v685
      %v688 = vsel %vm417, %v680, %v687
      %v689 = vrot.slane %v684, 4
      %s738 = scalar_lea.vmem [#allocation2], 12
      %vm739 = vcmask 27648
      %vm740 = vsmask.f32 7938
      %vm741 = vmand %vm739, %vm740
      %v742 = vld [vmem:[%s738] sm:$0xf]
      %v743 = vsel %vm741, %v424, %v742
      %744 = vst [vmem:[%s738] sm:$0xf] %v743
      %vm745 = vcmask 27648
      %746 = vst.msk [vmem:[%s738 + $0x4] sm:$0xf] %vm745, %v433
      %vm747 = vcmask 24576
      %vm748 = vmand %vm747, %vm415
      %v749 = vld [vmem:[%s738 + $0x8] sm:$0x1]
      %v750 = vsel %vm748, %v434, %v749
      %751 = vst [vmem:[%s738 + $0x8] sm:$0x1] %v750
      %v752 = vld [vmem:[%s738 + $0xc] sm:$0xf]
      %v753 = vsel %vm741, %v441, %v752
      %754 = vst [vmem:[%s738 + $0xc] sm:$0xf] %v753
      %755 = vst.msk [vmem:[%s738 + $0x10] sm:$0xf] %vm745, %v450
      %v756 = vld [vmem:[%s738 + $0x14] sm:$0x1]
      %v757 = vsel %vm748, %v451, %v756
      %758 = vst [vmem:[%s738 + $0x14] sm:$0x1] %v757
      %v759 = vld [vmem:[%s738 + $0x18] sm:$0xf]
      %v760 = vsel %vm741, %v458, %v759
      %761 = vst [vmem:[%s738 + $0x18] sm:$0xf] %v760
      %762 = vst.msk [vmem:[%s738 + $0x1c] sm:$0xf] %vm745, %v467
      %v763 = vld [vmem:[%s738 + $0x20] sm:$0x1]
      %v764 = vsel %vm748, %v468, %v763
      %765 = vst [vmem:[%s738 + $0x20] sm:$0x1] %v764
      %v766 = vld [vmem:[%s738 + $0x24] sm:$0xf]
      %v767 = vsel %vm741, %v475, %v766
      %768 = vst [vmem:[%s738 + $0x24] sm:$0xf] %v767
      %769 = vst.msk [vmem:[%s738 + $0x28] sm:$0xf] %vm745, %v484
      %v770 = vld [vmem:[%s738 + $0x2c] sm:$0x1]
      %v771 = vsel %vm748, %v485, %v770
      %772 = vst [vmem:[%s738 + $0x2c] sm:$0x1] %v771
      %v773 = vld [vmem:[%s738 + $0x30] sm:$0xf]
      %v774 = vsel %vm741, %v492, %v773
      %775 = vst [vmem:[%s738 + $0x30] sm:$0xf] %v774
      %776 = vst.msk [vmem:[%s738 + $0x34] sm:$0xf] %vm745, %v501
      %v777 = vld [vmem:[%s738 + $0x38] sm:$0x1]
      %v778 = vsel %vm748, %v502, %v777
      %779 = vst [vmem:[%s738 + $0x38] sm:$0x1] %v778
      %v780 = vld [vmem:[%s738 + $0x3c] sm:$0xf]
      %v781 = vsel %vm741, %v509, %v780
      %782 = vst [vmem:[%s738 + $0x3c] sm:$0xf] %v781
      %783 = vst.msk [vmem:[%s738 + $0x40] sm:$0xf] %vm745, %v518
      %v784 = vld [vmem:[%s738 + $0x44] sm:$0x1]
      %v785 = vsel %vm748, %v519, %v784
      %786 = vst [vmem:[%s738 + $0x44] sm:$0x1] %v785
      %v787 = vld [vmem:[%s738 + $0x48] sm:$0xf]
      %v788 = vsel %vm741, %v526, %v787
      %789 = vst [vmem:[%s738 + $0x48] sm:$0xf] %v788
      %790 = vst.msk [vmem:[%s738 + $0x4c] sm:$0xf] %vm745, %v535
      %v791 = vld [vmem:[%s738 + $0x50] sm:$0x1]
      %v792 = vsel %vm748, %v536, %v791
      %793 = vst [vmem:[%s738 + $0x50] sm:$0x1] %v792
      %v794 = vld [vmem:[%s738 + $0x54] sm:$0xf]
      %v795 = vsel %vm741, %v543, %v794
      %796 = vst [vmem:[%s738 + $0x54] sm:$0xf] %v795
      %797 = vst.msk [vmem:[%s738 + $0x58] sm:$0xf] %vm745, %v552
      %v798 = vld [vmem:[%s738 + $0x5c] sm:$0x1]
      %v799 = vsel %vm748, %v553, %v798
      %800 = vst [vmem:[%s738 + $0x5c] sm:$0x1] %v799
      %v801 = vld [vmem:[%s738 + $0x60] sm:$0xf]
      %v802 = vsel %vm741, %v560, %v801
      %803 = vst [vmem:[%s738 + $0x60] sm:$0xf] %v802
      %804 = vst.msk [vmem:[%s738 + $0x64] sm:$0xf] %vm745, %v569
      %v805 = vld [vmem:[%s738 + $0x68] sm:$0x1]
      %v806 = vsel %vm748, %v570, %v805
      %807 = vst [vmem:[%s738 + $0x68] sm:$0x1] %v806
      %v808 = vld [vmem:[%s738 + $0x6c] sm:$0xf]
      %v809 = vsel %vm741, %v577, %v808
      %810 = vst [vmem:[%s738 + $0x6c] sm:$0xf] %v809
      %811 = vst.msk [vmem:[%s738 + $0x70] sm:$0xf] %vm745, %v586
      %v812 = vld [vmem:[%s738 + $0x74] sm:$0x1]
      %v813 = vsel %vm748, %v587, %v812
      %814 = vst [vmem:[%s738 + $0x74] sm:$0x1] %v813
      %v815 = vld [vmem:[%s738 + $0x78] sm:$0xf]
      %v816 = vsel %vm741, %v594, %v815
      %817 = vst [vmem:[%s738 + $0x78] sm:$0xf] %v816
      %818 = vst.msk [vmem:[%s738 + $0x7c] sm:$0xf] %vm745, %v603
      %v819 = vld [vmem:[%s738 + $0x80] sm:$0x1]
      %v820 = vsel %vm748, %v604, %v819
      %821 = vst [vmem:[%s738 + $0x80] sm:$0x1] %v820
      %v822 = vld [vmem:[%s738 + $0x84] sm:$0xf]
      %v823 = vsel %vm741, %v611, %v822
      %824 = vst [vmem:[%s738 + $0x84] sm:$0xf] %v823
      %825 = vst.msk [vmem:[%s738 + $0x88] sm:$0xf] %vm745, %v620
      %v826 = vld [vmem:[%s738 + $0x8c] sm:$0x1]
      %v827 = vsel %vm748, %v621, %v826
      %828 = vst [vmem:[%s738 + $0x8c] sm:$0x1] %v827
      %v829 = vld [vmem:[%s738 + $0x90] sm:$0xf]
      %v830 = vsel %vm741, %v628, %v829
      %831 = vst [vmem:[%s738 + $0x90] sm:$0xf] %v830
      %832 = vst.msk [vmem:[%s738 + $0x94] sm:$0xf] %vm745, %v637
      %v833 = vld [vmem:[%s738 + $0x98] sm:$0x1]
      %v834 = vsel %vm748, %v638, %v833
      %835 = vst [vmem:[%s738 + $0x98] sm:$0x1] %v834
      %v836 = vld [vmem:[%s738 + $0x9c] sm:$0xf]
      %v837 = vsel %vm741, %v645, %v836
      %838 = vst [vmem:[%s738 + $0x9c] sm:$0xf] %v837
      %839 = vst.msk [vmem:[%s738 + $0xa0] sm:$0xf] %vm745, %v654
      %v840 = vld [vmem:[%s738 + $0xa4] sm:$0x1]
      %v841 = vsel %vm748, %v655, %v840
      %842 = vst [vmem:[%s738 + $0xa4] sm:$0x1] %v841
      %v843 = vld [vmem:[%s738 + $0xa8] sm:$0xf]
      %v844 = vsel %vm741, %v662, %v843
      %845 = vst [vmem:[%s738 + $0xa8] sm:$0xf] %v844
      %846 = vst.msk [vmem:[%s738 + $0xac] sm:$0xf] %vm745, %v671
      %v847 = vld [vmem:[%s738 + $0xb0] sm:$0x1]
      %v848 = vsel %vm748, %v672, %v847
      %849 = vst [vmem:[%s738 + $0xb0] sm:$0x1] %v848
      %v850 = vld [vmem:[%s738 + $0xb4] sm:$0xf]
      %v851 = vsel %vm741, %v679, %v850
      %852 = vst [vmem:[%s738 + $0xb4] sm:$0xf] %v851
      %853 = vst.msk [vmem:[%s738 + $0xb8] sm:$0xf] %vm745, %v688
      %v854 = vld [vmem:[%s738 + $0xbc] sm:$0x1]
      %v855 = vsel %vm748, %v689, %v854
      %856 = vst [vmem:[%s738 + $0xbc] sm:$0x1] %v855
      %v857 = vld [vmem:[%s320] sm:$0xf]
      %v858 = vld [vmem:[%s320 + $0x4] sm:$0xf]
      %v859 = vld [vmem:[%s320 + $0x8] sm:$0xf]
      %v860 = vld [vmem:[%s320 + $0xc] sm:$0xf]
      %v861 = vld [vmem:[%s320 + $0x10] sm:$0xf]
      %v862 = vld [vmem:[%s320 + $0x14] sm:$0xf]
      %v863 = vld [vmem:[%s320 + $0x18] sm:$0xf]
      %v864 = vld [vmem:[%s320 + $0x1c] sm:$0xf]
      %v865 = vld [vmem:[%s320 + $0x20] sm:$0xf]
      %v866 = vld [vmem:[%s320 + $0x24] sm:$0xf]
      %v867 = vld [vmem:[%s320 + $0x28] sm:$0xf]
      %v868 = vld [vmem:[%s320 + $0x2c] sm:$0xf]
      %v869 = vld [vmem:[%s320 + $0x30] sm:$0xf]
      %v870 = vld [vmem:[%s320 + $0x34] sm:$0xf]
      %v871 = vld [vmem:[%s320 + $0x38] sm:$0xf]
      %v872 = vld [vmem:[%s320 + $0x3c] sm:$0xf]
      %v873 = vld [vmem:[%s320 + $0x40] sm:$0xf]
      %v874 = vld [vmem:[%s320 + $0x44] sm:$0xf]
      %v875 = vld [vmem:[%s320 + $0x48] sm:$0xf]
      %v876 = vld [vmem:[%s320 + $0x4c] sm:$0xf]
      %v877 = vld [vmem:[%s320 + $0x50] sm:$0xf]
      %v878 = vld [vmem:[%s320 + $0x54] sm:$0xf]
      %v879 = vld [vmem:[%s320 + $0x58] sm:$0xf]
      %v880 = vld [vmem:[%s320 + $0x5c] sm:$0xf]
      %v881 = vld [vmem:[%s320 + $0x60] sm:$0xf]
      %v882 = vld [vmem:[%s320 + $0x64] sm:$0xf]
      %v883 = vld [vmem:[%s320 + $0x68] sm:$0xf]
      %v884 = vld [vmem:[%s320 + $0x6c] sm:$0xf]
      %v885 = vld [vmem:[%s320 + $0x70] sm:$0xf]
      %v886 = vld [vmem:[%s320 + $0x74] sm:$0xf]
      %v887 = vld [vmem:[%s320 + $0x78] sm:$0xf]
      %v888 = vld [vmem:[%s320 + $0x7c] sm:$0xf]
      %v890 = vshrl.u32 %v857, 16
      %v892 = vrot.slane %v890, 7
      %v893 = vshll.u32 %v857, 16
      %v895 = vor.u32 %v892, %v893
      %v896 = vrot.slane %v892, 4
      %v898 = vshrl.u32 %v858, 16
      %v900 = vrot.slane %v898, 7
      %v901 = vshll.u32 %v858, 16
      %v903 = vor.u32 %v900, %v901
      %v904 = vsel %vm417, %v896, %v903
      %v905 = vrot.slane %v900, 4
      %v907 = vshrl.u32 %v859, 16
      %v909 = vrot.slane %v907, 7
      %v910 = vshll.u32 %v859, 16
      %v912 = vor.u32 %v909, %v910
      %v913 = vrot.slane %v909, 4
      %v915 = vshrl.u32 %v860, 16
      %v917 = vrot.slane %v915, 7
      %v918 = vshll.u32 %v860, 16
      %v920 = vor.u32 %v917, %v918
      %v921 = vsel %vm417, %v913, %v920
      %v922 = vrot.slane %v917, 4
      %v924 = vshrl.u32 %v861, 16
      %v926 = vrot.slane %v924, 7
      %v927 = vshll.u32 %v861, 16
      %v929 = vor.u32 %v926, %v927
      %v930 = vrot.slane %v926, 4
      %v932 = vshrl.u32 %v862, 16
      %v934 = vrot.slane %v932, 7
      %v935 = vshll.u32 %v862, 16
      %v937 = vor.u32 %v934, %v935
      %v938 = vsel %vm417, %v930, %v937
      %v939 = vrot.slane %v934, 4
      %v941 = vshrl.u32 %v863, 16
      %v943 = vrot.slane %v941, 7
      %v944 = vshll.u32 %v863, 16
      %v946 = vor.u32 %v943, %v944
      %v947 = vrot.slane %v943, 4
      %v949 = vshrl.u32 %v864, 16
      %v951 = vrot.slane %v949, 7
      %v952 = vshll.u32 %v864, 16
      %v954 = vor.u32 %v951, %v952
      %v955 = vsel %vm417, %v947, %v954
      %v956 = vrot.slane %v951, 4
      %v958 = vshrl.u32 %v865, 16
      %v960 = vrot.slane %v958, 7
      %v961 = vshll.u32 %v865, 16
      %v963 = vor.u32 %v960, %v961
      %v964 = vrot.slane %v960, 4
      %v966 = vshrl.u32 %v866, 16
      %v968 = vrot.slane %v966, 7
      %v969 = vshll.u32 %v866, 16
      %v971 = vor.u32 %v968, %v969
      %v972 = vsel %vm417, %v964, %v971
      %v973 = vrot.slane %v968, 4
      %v975 = vshrl.u32 %v867, 16
      %v977 = vrot.slane %v975, 7
      %v978 = vshll.u32 %v867, 16
      %v980 = vor.u32 %v977, %v978
      %v981 = vrot.slane %v977, 4
      %v983 = vshrl.u32 %v868, 16
      %v985 = vrot.slane %v983, 7
      %v986 = vshll.u32 %v868, 16
      %v988 = vor.u32 %v985, %v986
      %v989 = vsel %vm417, %v981, %v988
      %v990 = vrot.slane %v985, 4
      %v992 = vshrl.u32 %v869, 16
      %v994 = vrot.slane %v992, 7
      %v995 = vshll.u32 %v869, 16
      %v997 = vor.u32 %v994, %v995
      %v998 = vrot.slane %v994, 4
      %v1000 = vshrl.u32 %v870, 16
      %v1002 = vrot.slane %v1000, 7
      %v1003 = vshll.u32 %v870, 16
      %v1005 = vor.u32 %v1002, %v1003
      %v1006 = vsel %vm417, %v998, %v1005
      %v1007 = vrot.slane %v1002, 4
      %v1009 = vshrl.u32 %v871, 16
      %v1011 = vrot.slane %v1009, 7
      %v1012 = vshll.u32 %v871, 16
      %v1014 = vor.u32 %v1011, %v1012
      %v1015 = vrot.slane %v1011, 4
      %v1017 = vshrl.u32 %v872, 16
      %v1019 = vrot.slane %v1017, 7
      %v1020 = vshll.u32 %v872, 16
      %v1022 = vor.u32 %v1019, %v1020
      %v1023 = vsel %vm417, %v1015, %v1022
      %v1024 = vrot.slane %v1019, 4
      %v1026 = vshrl.u32 %v873, 16
      %v1028 = vrot.slane %v1026, 7
      %v1029 = vshll.u32 %v873, 16
      %v1031 = vor.u32 %v1028, %v1029
      %v1032 = vrot.slane %v1028, 4
      %v1034 = vshrl.u32 %v874, 16
      %v1036 = vrot.slane %v1034, 7
      %v1037 = vshll.u32 %v874, 16
      %v1039 = vor.u32 %v1036, %v1037
      %v1040 = vsel %vm417, %v1032, %v1039
      %v1041 = vrot.slane %v1036, 4
      %v1043 = vshrl.u32 %v875, 16
      %v1045 = vrot.slane %v1043, 7
      %v1046 = vshll.u32 %v875, 16
      %v1048 = vor.u32 %v1045, %v1046
      %v1049 = vrot.slane %v1045, 4
      %v1051 = vshrl.u32 %v876, 16
      %v1053 = vrot.slane %v1051, 7
      %v1054 = vshll.u32 %v876, 16
      %v1056 = vor.u32 %v1053, %v1054
      %v1057 = vsel %vm417, %v1049, %v1056
      %v1058 = vrot.slane %v1053, 4
      %v1060 = vshrl.u32 %v877, 16
      %v1062 = vrot.slane %v1060, 7
      %v1063 = vshll.u32 %v877, 16
      %v1065 = vor.u32 %v1062, %v1063
      %v1066 = vrot.slane %v1062, 4
      %v1068 = vshrl.u32 %v878, 16
      %v1070 = vrot.slane %v1068, 7
      %v1071 = vshll.u32 %v878, 16
      %v1073 = vor.u32 %v1070, %v1071
      %v1074 = vsel %vm417, %v1066, %v1073
      %v1075 = vrot.slane %v1070, 4
      %v1077 = vshrl.u32 %v879, 16
      %v1079 = vrot.slane %v1077, 7
      %v1080 = vshll.u32 %v879, 16
      %v1082 = vor.u32 %v1079, %v1080
      %v1083 = vrot.slane %v1079, 4
      %v1085 = vshrl.u32 %v880, 16
      %v1087 = vrot.slane %v1085, 7
      %v1088 = vshll.u32 %v880, 16
      %v1090 = vor.u32 %v1087, %v1088
      %v1091 = vsel %vm417, %v1083, %v1090
      %v1092 = vrot.slane %v1087, 4
      %v1094 = vshrl.u32 %v881, 16
      %v1096 = vrot.slane %v1094, 7
      %v1097 = vshll.u32 %v881, 16
      %v1099 = vor.u32 %v1096, %v1097
      %v1100 = vrot.slane %v1096, 4
      %v1102 = vshrl.u32 %v882, 16
      %v1104 = vrot.slane %v1102, 7
      %v1105 = vshll.u32 %v882, 16
      %v1107 = vor.u32 %v1104, %v1105
      %v1108 = vsel %vm417, %v1100, %v1107
      %v1109 = vrot.slane %v1104, 4
      %v1111 = vshrl.u32 %v883, 16
      %v1113 = vrot.slane %v1111, 7
      %v1114 = vshll.u32 %v883, 16
      %v1116 = vor.u32 %v1113, %v1114
      %v1117 = vrot.slane %v1113, 4
      %v1119 = vshrl.u32 %v884, 16
      %v1121 = vrot.slane %v1119, 7
      %v1122 = vshll.u32 %v884, 16
      %v1124 = vor.u32 %v1121, %v1122
      %v1125 = vsel %vm417, %v1117, %v1124
      %v1126 = vrot.slane %v1121, 4
      %v1128 = vshrl.u32 %v885, 16
      %v1130 = vrot.slane %v1128, 7
      %v1131 = vshll.u32 %v885, 16
      %v1133 = vor.u32 %v1130, %v1131
      %v1134 = vrot.slane %v1130, 4
      %v1136 = vshrl.u32 %v886, 16
      %v1138 = vrot.slane %v1136, 7
      %v1139 = vshll.u32 %v886, 16
      %v1141 = vor.u32 %v1138, %v1139
      %v1142 = vsel %vm417, %v1134, %v1141
      %v1143 = vrot.slane %v1138, 4
      %v1145 = vshrl.u32 %v887, 16
      %v1147 = vrot.slane %v1145, 7
      %v1148 = vshll.u32 %v887, 16
      %v1150 = vor.u32 %v1147, %v1148
      %v1151 = vrot.slane %v1147, 4
      %v1153 = vshrl.u32 %v888, 16
      %v1155 = vrot.slane %v1153, 7
      %v1156 = vshll.u32 %v888, 16
      %v1158 = vor.u32 %v1155, %v1156
      %v1159 = vsel %vm417, %v1151, %v1158
      %v1160 = vrot.slane %v1155, 4
      %1161 = vrot.lane.b32.xlu0 %v895, 4
      %v1162 = vpop.permute.xlu0 %1161
      %1163 = vrot.lane.b32.xlu0 %v904, 4
      %v1164 = vpop.permute.xlu0 %1163
      %1165 = vrot.lane.b32.xlu0 %v905, 4
      %v1166 = vpop.permute.xlu0 %1165
      %1167 = vrot.lane.b32.xlu0 %v912, 4
      %v1168 = vpop.permute.xlu0 %1167
      %1169 = vrot.lane.b32.xlu0 %v921, 4
      %v1170 = vpop.permute.xlu0 %1169
      %1171 = vrot.lane.b32.xlu0 %v922, 4
      %v1172 = vpop.permute.xlu0 %1171
      %1173 = vrot.lane.b32.xlu0 %v929, 4
      %v1174 = vpop.permute.xlu0 %1173
      %1175 = vrot.lane.b32.xlu0 %v938, 4
      %v1176 = vpop.permute.xlu0 %1175
      %1177 = vrot.lane.b32.xlu0 %v939, 4
      %v1178 = vpop.permute.xlu0 %1177
      %1179 = vrot.lane.b32.xlu0 %v946, 4
      %v1180 = vpop.permute.xlu0 %1179
      %1181 = vrot.lane.b32.xlu0 %v955, 4
      %v1182 = vpop.permute.xlu0 %1181
      %1183 = vrot.lane.b32.xlu0 %v956, 4
      %v1184 = vpop.permute.xlu0 %1183
      %1185 = vrot.lane.b32.xlu0 %v963, 4
      %v1186 = vpop.permute.xlu0 %1185
      %1187 = vrot.lane.b32.xlu0 %v972, 4
      %v1188 = vpop.permute.xlu0 %1187
      %1189 = vrot.lane.b32.xlu0 %v973, 4
      %v1190 = vpop.permute.xlu0 %1189
      %1191 = vrot.lane.b32.xlu0 %v980, 4
      %v1192 = vpop.permute.xlu0 %1191
      %1193 = vrot.lane.b32.xlu0 %v989, 4
      %v1194 = vpop.permute.xlu0 %1193
      %1195 = vrot.lane.b32.xlu0 %v990, 4
      %v1196 = vpop.permute.xlu0 %1195
      %1197 = vrot.lane.b32.xlu0 %v997, 4
      %v1198 = vpop.permute.xlu0 %1197
      %1199 = vrot.lane.b32.xlu0 %v1006, 4
      %v1200 = vpop.permute.xlu0 %1199
      %1201 = vrot.lane.b32.xlu0 %v1007, 4
      %v1202 = vpop.permute.xlu0 %1201
      %1203 = vrot.lane.b32.xlu0 %v1014, 4
      %v1204 = vpop.permute.xlu0 %1203
      %1205 = vrot.lane.b32.xlu0 %v1023, 4
      %v1206 = vpop.permute.xlu0 %1205
      %1207 = vrot.lane.b32.xlu0 %v1024, 4
      %v1208 = vpop.permute.xlu0 %1207
      %1209 = vrot.lane.b32.xlu0 %v1031, 4
      %v1210 = vpop.permute.xlu0 %1209
      %1211 = vrot.lane.b32.xlu0 %v1040, 4
      %v1212 = vpop.permute.xlu0 %1211
      %1213 = vrot.lane.b32.xlu0 %v1041, 4
      %v1214 = vpop.permute.xlu0 %1213
      %1215 = vrot.lane.b32.xlu0 %v1048, 4
      %v1216 = vpop.permute.xlu0 %1215
      %1217 = vrot.lane.b32.xlu0 %v1057, 4
      %v1218 = vpop.permute.xlu0 %1217
      %1219 = vrot.lane.b32.xlu0 %v1058, 4
      %v1220 = vpop.permute.xlu0 %1219
      %1221 = vrot.lane.b32.xlu0 %v1065, 4
      %v1222 = vpop.permute.xlu0 %1221
      %1223 = vrot.lane.b32.xlu0 %v1074, 4
      %v1224 = vpop.permute.xlu0 %1223
      %1225 = vrot.lane.b32.xlu0 %v1075, 4
      %v1226 = vpop.permute.xlu0 %1225
      %1227 = vrot.lane.b32.xlu0 %v1082, 4
      %v1228 = vpop.permute.xlu0 %1227
      %1229 = vrot.lane.b32.xlu0 %v1091, 4
      %v1230 = vpop.permute.xlu0 %1229
      %1231 = vrot.lane.b32.xlu0 %v1092, 4
      %v1232 = vpop.permute.xlu0 %1231
      %1233 = vrot.lane.b32.xlu0 %v1099, 4
      %v1234 = vpop.permute.xlu0 %1233
      %1235 = vrot.lane.b32.xlu0 %v1108, 4
      %v1236 = vpop.permute.xlu0 %1235
      %1237 = vrot.lane.b32.xlu0 %v1109, 4
      %v1238 = vpop.permute.xlu0 %1237
      %1239 = vrot.lane.b32.xlu0 %v1116, 4
      %v1240 = vpop.permute.xlu0 %1239
      %1241 = vrot.lane.b32.xlu0 %v1125, 4
      %v1242 = vpop.permute.xlu0 %1241
      %1243 = vrot.lane.b32.xlu0 %v1126, 4
      %v1244 = vpop.permute.xlu0 %1243
      %1245 = vrot.lane.b32.xlu0 %v1133, 4
      %v1246 = vpop.permute.xlu0 %1245
      %1247 = vrot.lane.b32.xlu0 %v1142, 4
      %v1248 = vpop.permute.xlu0 %1247
      %1249 = vrot.lane.b32.xlu0 %v1143, 4
      %v1250 = vpop.permute.xlu0 %1249
      %1251 = vrot.lane.b32.xlu0 %v1150, 4
      %v1252 = vpop.permute.xlu0 %1251
      %1253 = vrot.lane.b32.xlu0 %v1159, 4
      %v1254 = vpop.permute.xlu0 %1253
      %1255 = vrot.lane.b32.xlu0 %v1160, 4
      %v1256 = vpop.permute.xlu0 %1255
      %vm1305 = vcmask 60448
      %vm1306 = vmand %vm1305, %vm740
      %v1307 = vld [vmem:[%s738] sm:$0xf]
      %v1308 = vsel %vm1306, %v1162, %v1307
      %1309 = vst [vmem:[%s738] sm:$0xf] %v1308
      %vm1310 = vcmask 60448
      %1311 = vst.msk [vmem:[%s738 + $0x4] sm:$0xf] %vm1310, %v1164
      %vm1312 = vcmask 57376
      %vm1313 = vmand %vm1312, %vm415
      %v1314 = vld [vmem:[%s738 + $0x8] sm:$0x1]
      %v1315 = vsel %vm1313, %v1166, %v1314
      %1316 = vst [vmem:[%s738 + $0x8] sm:$0x1] %v1315
      %v1317 = vld [vmem:[%s738 + $0xc] sm:$0xf]
      %v1318 = vsel %vm1306, %v1168, %v1317
      %1319 = vst [vmem:[%s738 + $0xc] sm:$0xf] %v1318
      %1320 = vst.msk [vmem:[%s738 + $0x10] sm:$0xf] %vm1310, %v1170
      %v1321 = vld [vmem:[%s738 + $0x14] sm:$0x1]
      %v1322 = vsel %vm1313, %v1172, %v1321
      %1323 = vst [vmem:[%s738 + $0x14] sm:$0x1] %v1322
      %v1324 = vld [vmem:[%s738 + $0x18] sm:$0xf]
      %v1325 = vsel %vm1306, %v1174, %v1324
      %1326 = vst [vmem:[%s738 + $0x18] sm:$0xf] %v1325
      %1327 = vst.msk [vmem:[%s738 + $0x1c] sm:$0xf] %vm1310, %v1176
      %v1328 = vld [vmem:[%s738 + $0x20] sm:$0x1]
      %v1329 = vsel %vm1313, %v1178, %v1328
      %1330 = vst [vmem:[%s738 + $0x20] sm:$0x1] %v1329
      %v1331 = vld [vmem:[%s738 + $0x24] sm:$0xf]
      %v1332 = vsel %vm1306, %v1180, %v1331
      %1333 = vst [vmem:[%s738 + $0x24] sm:$0xf] %v1332
      %1334 = vst.msk [vmem:[%s738 + $0x28] sm:$0xf] %vm1310, %v1182
      %v1335 = vld [vmem:[%s738 + $0x2c] sm:$0x1]
      %v1336 = vsel %vm1313, %v1184, %v1335
      %1337 = vst [vmem:[%s738 + $0x2c] sm:$0x1] %v1336
      %v1338 = vld [vmem:[%s738 + $0x30] sm:$0xf]
      %v1339 = vsel %vm1306, %v1186, %v1338
      %1340 = vst [vmem:[%s738 + $0x30] sm:$0xf] %v1339
      %1341 = vst.msk [vmem:[%s738 + $0x34] sm:$0xf] %vm1310, %v1188
      %v1342 = vld [vmem:[%s738 + $0x38] sm:$0x1]
      %v1343 = vsel %vm1313, %v1190, %v1342
      %1344 = vst [vmem:[%s738 + $0x38] sm:$0x1] %v1343
      %v1345 = vld [vmem:[%s738 + $0x3c] sm:$0xf]
      %v1346 = vsel %vm1306, %v1192, %v1345
      %1347 = vst [vmem:[%s738 + $0x3c] sm:$0xf] %v1346
      %1348 = vst.msk [vmem:[%s738 + $0x40] sm:$0xf] %vm1310, %v1194
      %v1349 = vld [vmem:[%s738 + $0x44] sm:$0x1]
      %v1350 = vsel %vm1313, %v1196, %v1349
      %1351 = vst [vmem:[%s738 + $0x44] sm:$0x1] %v1350
      %v1352 = vld [vmem:[%s738 + $0x48] sm:$0xf]
      %v1353 = vsel %vm1306, %v1198, %v1352
      %1354 = vst [vmem:[%s738 + $0x48] sm:$0xf] %v1353
      %1355 = vst.msk [vmem:[%s738 + $0x4c] sm:$0xf] %vm1310, %v1200
      %v1356 = vld [vmem:[%s738 + $0x50] sm:$0x1]
      %v1357 = vsel %vm1313, %v1202, %v1356
      %1358 = vst [vmem:[%s738 + $0x50] sm:$0x1] %v1357
      %v1359 = vld [vmem:[%s738 + $0x54] sm:$0xf]
      %v1360 = vsel %vm1306, %v1204, %v1359
      %1361 = vst [vmem:[%s738 + $0x54] sm:$0xf] %v1360
      %1362 = vst.msk [vmem:[%s738 + $0x58] sm:$0xf] %vm1310, %v1206
      %v1363 = vld [vmem:[%s738 + $0x5c] sm:$0x1]
      %v1364 = vsel %vm1313, %v1208, %v1363
      %1365 = vst [vmem:[%s738 + $0x5c] sm:$0x1] %v1364
      %v1366 = vld [vmem:[%s738 + $0x60] sm:$0xf]
      %v1367 = vsel %vm1306, %v1210, %v1366
      %1368 = vst [vmem:[%s738 + $0x60] sm:$0xf] %v1367
      %1369 = vst.msk [vmem:[%s738 + $0x64] sm:$0xf] %vm1310, %v1212
      %v1370 = vld [vmem:[%s738 + $0x68] sm:$0x1]
      %v1371 = vsel %vm1313, %v1214, %v1370
      %1372 = vst [vmem:[%s738 + $0x68] sm:$0x1] %v1371
      %v1373 = vld [vmem:[%s738 + $0x6c] sm:$0xf]
      %v1374 = vsel %vm1306, %v1216, %v1373
      %1375 = vst [vmem:[%s738 + $0x6c] sm:$0xf] %v1374
      %1376 = vst.msk [vmem:[%s738 + $0x70] sm:$0xf] %vm1310, %v1218
      %v1377 = vld [vmem:[%s738 + $0x74] sm:$0x1]
      %v1378 = vsel %vm1313, %v1220, %v1377
      %1379 = vst [vmem:[%s738 + $0x74] sm:$0x1] %v1378
      %v1380 = vld [vmem:[%s738 + $0x78] sm:$0xf]
      %v1381 = vsel %vm1306, %v1222, %v1380
      %1382 = vst [vmem:[%s738 + $0x78] sm:$0xf] %v1381
      %1383 = vst.msk [vmem:[%s738 + $0x7c] sm:$0xf] %vm1310, %v1224
      %v1384 = vld [vmem:[%s738 + $0x80] sm:$0x1]
      %v1385 = vsel %vm1313, %v1226, %v1384
      %1386 = vst [vmem:[%s738 + $0x80] sm:$0x1] %v1385
      %v1387 = vld [vmem:[%s738 + $0x84] sm:$0xf]
      %v1388 = vsel %vm1306, %v1228, %v1387
      %1389 = vst [vmem:[%s738 + $0x84] sm:$0xf] %v1388
      %1390 = vst.msk [vmem:[%s738 + $0x88] sm:$0xf] %vm1310, %v1230
      %v1391 = vld [vmem:[%s738 + $0x8c] sm:$0x1]
      %v1392 = vsel %vm1313, %v1232, %v1391
      %1393 = vst [vmem:[%s738 + $0x8c] sm:$0x1] %v1392
      %v1394 = vld [vmem:[%s738 + $0x90] sm:$0xf]
      %v1395 = vsel %vm1306, %v1234, %v1394
      %1396 = vst [vmem:[%s738 + $0x90] sm:$0xf] %v1395
      %1397 = vst.msk [vmem:[%s738 + $0x94] sm:$0xf] %vm1310, %v1236
      %v1398 = vld [vmem:[%s738 + $0x98] sm:$0x1]
      %v1399 = vsel %vm1313, %v1238, %v1398
      %1400 = vst [vmem:[%s738 + $0x98] sm:$0x1] %v1399
      %v1401 = vld [vmem:[%s738 + $0x9c] sm:$0xf]
      %v1402 = vsel %vm1306, %v1240, %v1401
      %1403 = vst [vmem:[%s738 + $0x9c] sm:$0xf] %v1402
      %1404 = vst.msk [vmem:[%s738 + $0xa0] sm:$0xf] %vm1310, %v1242
      %v1405 = vld [vmem:[%s738 + $0xa4] sm:$0x1]
      %v1406 = vsel %vm1313, %v1244, %v1405
      %1407 = vst [vmem:[%s738 + $0xa4] sm:$0x1] %v1406
      %v1408 = vld [vmem:[%s738 + $0xa8] sm:$0xf]
      %v1409 = vsel %vm1306, %v1246, %v1408
      %1410 = vst [vmem:[%s738 + $0xa8] sm:$0xf] %v1409
      %1411 = vst.msk [vmem:[%s738 + $0xac] sm:$0xf] %vm1310, %v1248
      %v1412 = vld [vmem:[%s738 + $0xb0] sm:$0x1]
      %v1413 = vsel %vm1313, %v1250, %v1412
      %1414 = vst [vmem:[%s738 + $0xb0] sm:$0x1] %v1413
      %v1415 = vld [vmem:[%s738 + $0xb4] sm:$0xf]
      %v1416 = vsel %vm1306, %v1252, %v1415
      %1417 = vst [vmem:[%s738 + $0xb4] sm:$0xf] %v1416
      %1418 = vst.msk [vmem:[%s738 + $0xb8] sm:$0xf] %vm1310, %v1254
      %v1419 = vld [vmem:[%s738 + $0xbc] sm:$0x1]
      %v1420 = vsel %vm1313, %v1256, %v1419
      %1421 = vst [vmem:[%s738 + $0xbc] sm:$0x1] %v1420
      %v1422 = vld [vmem:[#allocation2] sm:$0xf]
      %v1423 = vld [vmem:[#allocation2 + $0x4] sm:$0xf]
      %v1424 = vld [vmem:[#allocation2 + $0xc] sm:$0xf]
      %v1425 = vld [vmem:[#allocation2 + $0x10] sm:$0xf]
      %v1426 = vld [vmem:[#allocation2 + $0x18] sm:$0xf]
      %v1427 = vld [vmem:[#allocation2 + $0x1c] sm:$0xf]
      %v1428 = vld [vmem:[#allocation2 + $0x24] sm:$0xf]
      %v1429 = vld [vmem:[#allocation2 + $0x28] sm:$0xf]
      %v1430 = vld [vmem:[#allocation2 + $0x30] sm:$0xf]
      %v1431 = vld [vmem:[#allocation2 + $0x34] sm:$0xf]
      %v1432 = vld [vmem:[#allocation2 + $0x3c] sm:$0xf]
      %v1433 = vld [vmem:[#allocation2 + $0x40] sm:$0xf]
      %v1434 = vld [vmem:[#allocation2 + $0x48] sm:$0xf]
      %v1435 = vld [vmem:[#allocation2 + $0x4c] sm:$0xf]
      %v1436 = vld [vmem:[#allocation2 + $0x54] sm:$0xf]
      %v1437 = vld [vmem:[#allocation2 + $0x58] sm:$0xf]
      %v1438 = vld [vmem:[#allocation2 + $0x60] sm:$0xf]
      %v1439 = vld [vmem:[#allocation2 + $0x64] sm:$0xf]
      %v1440 = vld [vmem:[#allocation2 + $0x6c] sm:$0xf]
      %v1441 = vld [vmem:[#allocation2 + $0x70] sm:$0xf]
      %v1442 = vld [vmem:[#allocation2 + $0x78] sm:$0xf]
      %v1443 = vld [vmem:[#allocation2 + $0x7c] sm:$0xf]
      %v1444 = vld [vmem:[#allocation2 + $0x84] sm:$0xf]
      %v1445 = vld [vmem:[#allocation2 + $0x88] sm:$0xf]
      %v1446 = vld [vmem:[#allocation2 + $0x90] sm:$0xf]
      %v1447 = vld [vmem:[#allocation2 + $0x94] sm:$0xf]
      %v1448 = vld [vmem:[#allocation2 + $0x9c] sm:$0xf]
      %v1449 = vld [vmem:[#allocation2 + $0xa0] sm:$0xf]
      %v1450 = vld [vmem:[#allocation2 + $0xa8] sm:$0xf]
      %v1451 = vld [vmem:[#allocation2 + $0xac] sm:$0xf]
      %v1452 = vld [vmem:[#allocation2 + $0xb4] sm:$0xf]
      %v1453 = vld [vmem:[#allocation2 + $0xb8] sm:$0xf]
      %1454 = vst.msk [vmem:[#allocation4] sm:$0xf] %vm327, %v1422
      %1455 = vst.msk [vmem:[#allocation4 + $0x4] sm:$0xf] %vm327, %v1423
      %1456 = vst.msk [vmem:[#allocation4 + $0x8] sm:$0xf] %vm327, %v1424
      %1457 = vst.msk [vmem:[#allocation4 + $0xc] sm:$0xf] %vm327, %v1425
      %1458 = vst.msk [vmem:[#allocation4 + $0x10] sm:$0xf] %vm327, %v1426
      %1459 = vst.msk [vmem:[#allocation4 + $0x14] sm:$0xf] %vm327, %v1427
      %1460 = vst.msk [vmem:[#allocation4 + $0x18] sm:$0xf] %vm327, %v1428
      %1461 = vst.msk [vmem:[#allocation4 + $0x1c] sm:$0xf] %vm327, %v1429
      %1462 = vst.msk [vmem:[#allocation4 + $0x20] sm:$0xf] %vm327, %v1430
      %1463 = vst.msk [vmem:[#allocation4 + $0x24] sm:$0xf] %vm327, %v1431
      %1464 = vst.msk [vmem:[#allocation4 + $0x28] sm:$0xf] %vm327, %v1432
      %1465 = vst.msk [vmem:[#allocation4 + $0x2c] sm:$0xf] %vm327, %v1433
      %1466 = vst.msk [vmem:[#allocation4 + $0x30] sm:$0xf] %vm327, %v1434
      %1467 = vst.msk [vmem:[#allocation4 + $0x34] sm:$0xf] %vm327, %v1435
      %1468 = vst.msk [vmem:[#allocation4 + $0x38] sm:$0xf] %vm327, %v1436
      %1469 = vst.msk [vmem:[#allocation4 + $0x3c] sm:$0xf] %vm327, %v1437
      %1470 = vst.msk [vmem:[#allocation4 + $0x40] sm:$0xf] %vm327, %v1438
      %1471 = vst.msk [vmem:[#allocation4 + $0x44] sm:$0xf] %vm327, %v1439
      %1472 = vst.msk [vmem:[#allocation4 + $0x48] sm:$0xf] %vm327, %v1440
      %1473 = vst.msk [vmem:[#allocation4 + $0x4c] sm:$0xf] %vm327, %v1441
      %1474 = vst.msk [vmem:[#allocation4 + $0x50] sm:$0xf] %vm327, %v1442
      %1475 = vst.msk [vmem:[#allocation4 + $0x54] sm:$0xf] %vm327, %v1443
      %1476 = vst.msk [vmem:[#allocation4 + $0x58] sm:$0xf] %vm327, %v1444
      %1477 = vst.msk [vmem:[#allocation4 + $0x5c] sm:$0xf] %vm327, %v1445
      %1478 = vst.msk [vmem:[#allocation4 + $0x60] sm:$0xf] %vm327, %v1446
      %1479 = vst.msk [vmem:[#allocation4 + $0x64] sm:$0xf] %vm327, %v1447
      %1480 = vst.msk [vmem:[#allocation4 + $0x68] sm:$0xf] %vm327, %v1448
      %1481 = vst.msk [vmem:[#allocation4 + $0x6c] sm:$0xf] %vm327, %v1449
      %1482 = vst.msk [vmem:[#allocation4 + $0x70] sm:$0xf] %vm327, %v1450
      %1483 = vst.msk [vmem:[#allocation4 + $0x74] sm:$0xf] %vm327, %v1451
      %1484 = vst.msk [vmem:[#allocation4 + $0x78] sm:$0xf] %vm327, %v1452
      %1485 = vst.msk [vmem:[#allocation4 + $0x7c] sm:$0xf] %vm327, %v1453
      %v1486 = vld [vmem:[#allocation2] sm:$0xf]
      %v1487 = vld [vmem:[#allocation2 + $0x4] sm:$0xf]
      %v1488 = vld [vmem:[#allocation2 + $0x8] sm:$0x1]
      %v1489 = vld [vmem:[#allocation2 + $0xc] sm:$0xf]
      %v1490 = vld [vmem:[#allocation2 + $0x10] sm:$0xf]
      %v1491 = vld [vmem:[#allocation2 + $0x14] sm:$0x1]
      %v1492 = vld [vmem:[#allocation2 + $0x18] sm:$0xf]
      %v1493 = vld [vmem:[#allocation2 + $0x1c] sm:$0xf]
      %v1494 = vld [vmem:[#allocation2 + $0x20] sm:$0x1]
      %v1495 = vld [vmem:[#allocation2 + $0x24] sm:$0xf]
      %v1496 = vld [vmem:[#allocation2 + $0x28] sm:$0xf]
      %v1497 = vld [vmem:[#allocation2 + $0x2c] sm:$0x1]
      %v1498 = vld [vmem:[#allocation2 + $0x30] sm:$0xf]
      %v1499 = vld [vmem:[#allocation2 + $0x34] sm:$0xf]
      %v1500 = vld [vmem:[#allocation2 + $0x38] sm:$0x1]
      %v1501 = vld [vmem:[#allocation2 + $0x3c] sm:$0xf]
      %v1502 = vld [vmem:[#allocation2 + $0x40] sm:$0xf]
      %v1503 = vld [vmem:[#allocation2 + $0x44] sm:$0x1]
      %v1504 = vld [vmem:[#allocation2 + $0x48] sm:$0xf]
      %v1505 = vld [vmem:[#allocation2 + $0x4c] sm:$0xf]
      %v1506 = vld [vmem:[#allocation2 + $0x50] sm:$0x1]
      %v1507 = vld [vmem:[#allocation2 + $0x54] sm:$0xf]
      %v1508 = vld [vmem:[#allocation2 + $0x58] sm:$0xf]
      %v1509 = vld [vmem:[#allocation2 + $0x5c] sm:$0x1]
      %v1510 = vld [vmem:[#allocation2 + $0x60] sm:$0xf]
      %v1511 = vld [vmem:[#allocation2 + $0x64] sm:$0xf]
      %v1512 = vld [vmem:[#allocation2 + $0x68] sm:$0x1]
      %v1513 = vld [vmem:[#allocation2 + $0x6c] sm:$0xf]
      %v1514 = vld [vmem:[#allocation2 + $0x70] sm:$0xf]
      %v1515 = vld [vmem:[#allocation2 + $0x74] sm:$0x1]
      %v1516 = vld [vmem:[#allocation2 + $0x78] sm:$0xf]
      %v1517 = vld [vmem:[#allocation2 + $0x7c] sm:$0xf]
      %v1518 = vld [vmem:[#allocation2 + $0x80] sm:$0x1]
      %v1519 = vld [vmem:[#allocation2 + $0x84] sm:$0xf]
      %v1520 = vld [vmem:[#allocation2 + $0x88] sm:$0xf]
      %v1521 = vld [vmem:[#allocation2 + $0x8c] sm:$0x1]
      %v1522 = vld [vmem:[#allocation2 + $0x90] sm:$0xf]
      %v1523 = vld [vmem:[#allocation2 + $0x94] sm:$0xf]
      %v1524 = vld [vmem:[#allocation2 + $0x98] sm:$0x1]
      %v1525 = vld [vmem:[#allocation2 + $0x9c] sm:$0xf]
      %v1526 = vld [vmem:[#allocation2 + $0xa0] sm:$0xf]
      %v1527 = vld [vmem:[#allocation2 + $0xa4] sm:$0x1]
      %v1528 = vld [vmem:[#allocation2 + $0xa8] sm:$0xf]
      %v1529 = vld [vmem:[#allocation2 + $0xac] sm:$0xf]
      %v1530 = vld [vmem:[#allocation2 + $0xb0] sm:$0x1]
      %v1531 = vld [vmem:[#allocation2 + $0xb4] sm:$0xf]
      %v1532 = vld [vmem:[#allocation2 + $0xb8] sm:$0xf]
      %v1533 = vld [vmem:[#allocation2 + $0xbc] sm:$0x1]
      %vm1534 = vsmask.f32 3328
      %vm1535 = vsmask.f32 7440
      %vm1536 = vmor %vm1534, %vm1535
      %v1538 = vshrl.u32 %v1486, 16
      %v1540 = vrot.slane %v1538, 4
      %v1541 = vshll.u32 %v1486, 16
      %v1543 = vrot.slane %v1541, 5
      %v1544 = vor.u32 %v1540, %v1543
      %v1545 = vrot.slane %v1544, 4
      %v1547 = vshll.u32 %v1487, 16
      %v1549 = vrot.slane %v1547, 5
      %v1550 = vsel %vm1536, %v1545, %v1549
      %v1551 = vshrl.u32 %v1487, 16
      %v1553 = vrot.slane %v1551, 4
      %v1554 = vor.u32 %v1553, %v1549
      %v1555 = vrot.slane %v1554, 4
      %v1557 = vshll.u32 %v1488, 16
      %v1559 = vrot.slane %v1557, 5
      %v1560 = vsel %vm1536, %v1555, %v1559
      %v1562 = vshrl.u32 %v1489, 16
      %v1564 = vrot.slane %v1562, 4
      %v1565 = vshll.u32 %v1489, 16
      %v1567 = vrot.slane %v1565, 5
      %v1568 = vor.u32 %v1564, %v1567
      %v1569 = vrot.slane %v1568, 4
      %v1571 = vshll.u32 %v1490, 16
      %v1573 = vrot.slane %v1571, 5
      %v1574 = vsel %vm1536, %v1569, %v1573
      %v1575 = vshrl.u32 %v1490, 16
      %v1577 = vrot.slane %v1575, 4
      %v1578 = vor.u32 %v1577, %v1573
      %v1579 = vrot.slane %v1578, 4
      %v1581 = vshll.u32 %v1491, 16
      %v1583 = vrot.slane %v1581, 5
      %v1584 = vsel %vm1536, %v1579, %v1583
      %v1586 = vshrl.u32 %v1492, 16
      %v1588 = vrot.slane %v1586, 4
      %v1589 = vshll.u32 %v1492, 16
      %v1591 = vrot.slane %v1589, 5
      %v1592 = vor.u32 %v1588, %v1591
      %v1593 = vrot.slane %v1592, 4
      %v1595 = vshll.u32 %v1493, 16
      %v1597 = vrot.slane %v1595, 5
      %v1598 = vsel %vm1536, %v1593, %v1597
      %v1599 = vshrl.u32 %v1493, 16
      %v1601 = vrot.slane %v1599, 4
      %v1602 = vor.u32 %v1601, %v1597
      %v1603 = vrot.slane %v1602, 4
      %v1605 = vshll.u32 %v1494, 16
      %v1607 = vrot.slane %v1605, 5
      %v1608 = vsel %vm1536, %v1603, %v1607
      %v1610 = vshrl.u32 %v1495, 16
      %v1612 = vrot.slane %v1610, 4
      %v1613 = vshll.u32 %v1495, 16
      %v1615 = vrot.slane %v1613, 5
      %v1616 = vor.u32 %v1612, %v1615
      %v1617 = vrot.slane %v1616, 4
      %v1619 = vshll.u32 %v1496, 16
      %v1621 = vrot.slane %v1619, 5
      %v1622 = vsel %vm1536, %v1617, %v1621
      %v1623 = vshrl.u32 %v1496, 16
      %v1625 = vrot.slane %v1623, 4
      %v1626 = vor.u32 %v1625, %v1621
      %v1627 = vrot.slane %v1626, 4
      %v1629 = vshll.u32 %v1497, 16
      %v1631 = vrot.slane %v1629, 5
      %v1632 = vsel %vm1536, %v1627, %v1631
      %v1634 = vshrl.u32 %v1498, 16
      %v1636 = vrot.slane %v1634, 4
      %v1637 = vshll.u32 %v1498, 16
      %v1639 = vrot.slane %v1637, 5
      %v1640 = vor.u32 %v1636, %v1639
      %v1641 = vrot.slane %v1640, 4
      %v1643 = vshll.u32 %v1499, 16
      %v1645 = vrot.slane %v1643, 5
      %v1646 = vsel %vm1536, %v1641, %v1645
      %v1647 = vshrl.u32 %v1499, 16
      %v1649 = vrot.slane %v1647, 4
      %v1650 = vor.u32 %v1649, %v1645
      %v1651 = vrot.slane %v1650, 4
      %v1653 = vshll.u32 %v1500, 16
      %v1655 = vrot.slane %v1653, 5
      %v1656 = vsel %vm1536, %v1651, %v1655
      %v1658 = vshrl.u32 %v1501, 16
      %v1660 = vrot.slane %v1658, 4
      %v1661 = vshll.u32 %v1501, 16
      %v1663 = vrot.slane %v1661, 5
      %v1664 = vor.u32 %v1660, %v1663
      %v1665 = vrot.slane %v1664, 4
      %v1667 = vshll.u32 %v1502, 16
      %v1669 = vrot.slane %v1667, 5
      %v1670 = vsel %vm1536, %v1665, %v1669
      %v1671 = vshrl.u32 %v1502, 16
      %v1673 = vrot.slane %v1671, 4
      %v1674 = vor.u32 %v1673, %v1669
      %v1675 = vrot.slane %v1674, 4
      %v1677 = vshll.u32 %v1503, 16
      %v1679 = vrot.slane %v1677, 5
      %v1680 = vsel %vm1536, %v1675, %v1679
      %v1682 = vshrl.u32 %v1504, 16
      %v1684 = vrot.slane %v1682, 4
      %v1685 = vshll.u32 %v1504, 16
      %v1687 = vrot.slane %v1685, 5
      %v1688 = vor.u32 %v1684, %v1687
      %v1689 = vrot.slane %v1688, 4
      %v1691 = vshll.u32 %v1505, 16
      %v1693 = vrot.slane %v1691, 5
      %v1694 = vsel %vm1536, %v1689, %v1693
      %v1695 = vshrl.u32 %v1505, 16
      %v1697 = vrot.slane %v1695, 4
      %v1698 = vor.u32 %v1697, %v1693
      %v1699 = vrot.slane %v1698, 4
      %v1701 = vshll.u32 %v1506, 16
      %v1703 = vrot.slane %v1701, 5
      %v1704 = vsel %vm1536, %v1699, %v1703
      %v1706 = vshrl.u32 %v1507, 16
      %v1708 = vrot.slane %v1706, 4
      %v1709 = vshll.u32 %v1507, 16
      %v1711 = vrot.slane %v1709, 5
      %v1712 = vor.u32 %v1708, %v1711
      %v1713 = vrot.slane %v1712, 4
      %v1715 = vshll.u32 %v1508, 16
      %v1717 = vrot.slane %v1715, 5
      %v1718 = vsel %vm1536, %v1713, %v1717
      %v1719 = vshrl.u32 %v1508, 16
      %v1721 = vrot.slane %v1719, 4
      %v1722 = vor.u32 %v1721, %v1717
      %v1723 = vrot.slane %v1722, 4
      %v1725 = vshll.u32 %v1509, 16
      %v1727 = vrot.slane %v1725, 5
      %v1728 = vsel %vm1536, %v1723, %v1727
      %v1730 = vshrl.u32 %v1510, 16
      %v1732 = vrot.slane %v1730, 4
      %v1733 = vshll.u32 %v1510, 16
      %v1735 = vrot.slane %v1733, 5
      %v1736 = vor.u32 %v1732, %v1735
      %v1737 = vrot.slane %v1736, 4
      %v1739 = vshll.u32 %v1511, 16
      %v1741 = vrot.slane %v1739, 5
      %v1742 = vsel %vm1536, %v1737, %v1741
      %v1743 = vshrl.u32 %v1511, 16
      %v1745 = vrot.slane %v1743, 4
      %v1746 = vor.u32 %v1745, %v1741
      %v1747 = vrot.slane %v1746, 4
      %v1749 = vshll.u32 %v1512, 16
      %v1751 = vrot.slane %v1749, 5
      %v1752 = vsel %vm1536, %v1747, %v1751
      %v1754 = vshrl.u32 %v1513, 16
      %v1756 = vrot.slane %v1754, 4
      %v1757 = vshll.u32 %v1513, 16
      %v1759 = vrot.slane %v1757, 5
      %v1760 = vor.u32 %v1756, %v1759
      %v1761 = vrot.slane %v1760, 4
      %v1763 = vshll.u32 %v1514, 16
      %v1765 = vrot.slane %v1763, 5
      %v1766 = vsel %vm1536, %v1761, %v1765
      %v1767 = vshrl.u32 %v1514, 16
      %v1769 = vrot.slane %v1767, 4
      %v1770 = vor.u32 %v1769, %v1765
      %v1771 = vrot.slane %v1770, 4
      %v1773 = vshll.u32 %v1515, 16
      %v1775 = vrot.slane %v1773, 5
      %v1776 = vsel %vm1536, %v1771, %v1775
      %v1778 = vshrl.u32 %v1516, 16
      %v1780 = vrot.slane %v1778, 4
      %v1781 = vshll.u32 %v1516, 16
      %v1783 = vrot.slane %v1781, 5
      %v1784 = vor.u32 %v1780, %v1783
      %v1785 = vrot.slane %v1784, 4
      %v1787 = vshll.u32 %v1517, 16
      %v1789 = vrot.slane %v1787, 5
      %v1790 = vsel %vm1536, %v1785, %v1789
      %v1791 = vshrl.u32 %v1517, 16
      %v1793 = vrot.slane %v1791, 4
      %v1794 = vor.u32 %v1793, %v1789
      %v1795 = vrot.slane %v1794, 4
      %v1797 = vshll.u32 %v1518, 16
      %v1799 = vrot.slane %v1797, 5
      %v1800 = vsel %vm1536, %v1795, %v1799
      %v1802 = vshrl.u32 %v1519, 16
      %v1804 = vrot.slane %v1802, 4
      %v1805 = vshll.u32 %v1519, 16
      %v1807 = vrot.slane %v1805, 5
      %v1808 = vor.u32 %v1804, %v1807
      %v1809 = vrot.slane %v1808, 4
      %v1811 = vshll.u32 %v1520, 16
      %v1813 = vrot.slane %v1811, 5
      %v1814 = vsel %vm1536, %v1809, %v1813
      %v1815 = vshrl.u32 %v1520, 16
      %v1817 = vrot.slane %v1815, 4
      %v1818 = vor.u32 %v1817, %v1813
      %v1819 = vrot.slane %v1818, 4
      %v1821 = vshll.u32 %v1521, 16
      %v1823 = vrot.slane %v1821, 5
      %v1824 = vsel %vm1536, %v1819, %v1823
      %v1826 = vshrl.u32 %v1522, 16
      %v1828 = vrot.slane %v1826, 4
      %v1829 = vshll.u32 %v1522, 16
      %v1831 = vrot.slane %v1829, 5
      %v1832 = vor.u32 %v1828, %v1831
      %v1833 = vrot.slane %v1832, 4
      %v1835 = vshll.u32 %v1523, 16
      %v1837 = vrot.slane %v1835, 5
      %v1838 = vsel %vm1536, %v1833, %v1837
      %v1839 = vshrl.u32 %v1523, 16
      %v1841 = vrot.slane %v1839, 4
      %v1842 = vor.u32 %v1841, %v1837
      %v1843 = vrot.slane %v1842, 4
      %v1845 = vshll.u32 %v1524, 16
      %v1847 = vrot.slane %v1845, 5
      %v1848 = vsel %vm1536, %v1843, %v1847
      %v1850 = vshrl.u32 %v1525, 16
      %v1852 = vrot.slane %v1850, 4
      %v1853 = vshll.u32 %v1525, 16
      %v1855 = vrot.slane %v1853, 5
      %v1856 = vor.u32 %v1852, %v1855
      %v1857 = vrot.slane %v1856, 4
      %v1859 = vshll.u32 %v1526, 16
      %v1861 = vrot.slane %v1859, 5
      %v1862 = vsel %vm1536, %v1857, %v1861
      %v1863 = vshrl.u32 %v1526, 16
      %v1865 = vrot.slane %v1863, 4
      %v1866 = vor.u32 %v1865, %v1861
      %v1867 = vrot.slane %v1866, 4
      %v1869 = vshll.u32 %v1527, 16
      %v1871 = vrot.slane %v1869, 5
      %v1872 = vsel %vm1536, %v1867, %v1871
      %v1874 = vshrl.u32 %v1528, 16
      %v1876 = vrot.slane %v1874, 4
      %v1877 = vshll.u32 %v1528, 16
      %v1879 = vrot.slane %v1877, 5
      %v1880 = vor.u32 %v1876, %v1879
      %v1881 = vrot.slane %v1880, 4
      %v1883 = vshll.u32 %v1529, 16
      %v1885 = vrot.slane %v1883, 5
      %v1886 = vsel %vm1536, %v1881, %v1885
      %v1887 = vshrl.u32 %v1529, 16
      %v1889 = vrot.slane %v1887, 4
      %v1890 = vor.u32 %v1889, %v1885
      %v1891 = vrot.slane %v1890, 4
      %v1893 = vshll.u32 %v1530, 16
      %v1895 = vrot.slane %v1893, 5
      %v1896 = vsel %vm1536, %v1891, %v1895
      %v1898 = vshrl.u32 %v1531, 16
      %v1900 = vrot.slane %v1898, 4
      %v1901 = vshll.u32 %v1531, 16
      %v1903 = vrot.slane %v1901, 5
      %v1904 = vor.u32 %v1900, %v1903
      %v1905 = vrot.slane %v1904, 4
      %v1907 = vshll.u32 %v1532, 16
      %v1909 = vrot.slane %v1907, 5
      %v1910 = vsel %vm1536, %v1905, %v1909
      %v1911 = vshrl.u32 %v1532, 16
      %v1913 = vrot.slane %v1911, 4
      %v1914 = vor.u32 %v1913, %v1909
      %v1915 = vrot.slane %v1914, 4
      %v1917 = vshll.u32 %v1533, 16
      %v1919 = vrot.slane %v1917, 5
      %v1920 = vsel %vm1536, %v1915, %v1919
      %1921 = vrot.lane.b32.xlu0 %v1550, 8
      %v1922 = vpop.permute.xlu0 %1921
      %1923 = vrot.lane.b32.xlu0 %v1560, 8
      %v1924 = vpop.permute.xlu0 %1923
      %1925 = vrot.lane.b32.xlu0 %v1574, 8
      %v1926 = vpop.permute.xlu0 %1925
      %1927 = vrot.lane.b32.xlu0 %v1584, 8
      %v1928 = vpop.permute.xlu0 %1927
      %1929 = vrot.lane.b32.xlu0 %v1598, 8
      %v1930 = vpop.permute.xlu0 %1929
      %1931 = vrot.lane.b32.xlu0 %v1608, 8
      %v1932 = vpop.permute.xlu0 %1931
      %1933 = vrot.lane.b32.xlu0 %v1622, 8
      %v1934 = vpop.permute.xlu0 %1933
      %1935 = vrot.lane.b32.xlu0 %v1632, 8
      %v1936 = vpop.permute.xlu0 %1935
      %1937 = vrot.lane.b32.xlu0 %v1646, 8
      %v1938 = vpop.permute.xlu0 %1937
      %1939 = vrot.lane.b32.xlu0 %v1656, 8
      %v1940 = vpop.permute.xlu0 %1939
      %1941 = vrot.lane.b32.xlu0 %v1670, 8
      %v1942 = vpop.permute.xlu0 %1941
      %1943 = vrot.lane.b32.xlu0 %v1680, 8
      %v1944 = vpop.permute.xlu0 %1943
      %1945 = vrot.lane.b32.xlu0 %v1694, 8
      %v1946 = vpop.permute.xlu0 %1945
      %1947 = vrot.lane.b32.xlu0 %v1704, 8
      %v1948 = vpop.permute.xlu0 %1947
      %1949 = vrot.lane.b32.xlu0 %v1718, 8
      %v1950 = vpop.permute.xlu0 %1949
      %1951 = vrot.lane.b32.xlu0 %v1728, 8
      %v1952 = vpop.permute.xlu0 %1951
      %1953 = vrot.lane.b32.xlu0 %v1742, 8
      %v1954 = vpop.permute.xlu0 %1953
      %1955 = vrot.lane.b32.xlu0 %v1752, 8
      %v1956 = vpop.permute.xlu0 %1955
      %1957 = vrot.lane.b32.xlu0 %v1766, 8
      %v1958 = vpop.permute.xlu0 %1957
      %1959 = vrot.lane.b32.xlu0 %v1776, 8
      %v1960 = vpop.permute.xlu0 %1959
      %1961 = vrot.lane.b32.xlu0 %v1790, 8
      %v1962 = vpop.permute.xlu0 %1961
      %1963 = vrot.lane.b32.xlu0 %v1800, 8
      %v1964 = vpop.permute.xlu0 %1963
      %1965 = vrot.lane.b32.xlu0 %v1814, 8
      %v1966 = vpop.permute.xlu0 %1965
      %1967 = vrot.lane.b32.xlu0 %v1824, 8
      %v1968 = vpop.permute.xlu0 %1967
      %1969 = vrot.lane.b32.xlu0 %v1838, 8
      %v1970 = vpop.permute.xlu0 %1969
      %1971 = vrot.lane.b32.xlu0 %v1848, 8
      %v1972 = vpop.permute.xlu0 %1971
      %1973 = vrot.lane.b32.xlu0 %v1862, 8
      %v1974 = vpop.permute.xlu0 %1973
      %1975 = vrot.lane.b32.xlu0 %v1872, 8
      %v1976 = vpop.permute.xlu0 %1975
      %1977 = vrot.lane.b32.xlu0 %v1886, 8
      %v1978 = vpop.permute.xlu0 %1977
      %1979 = vrot.lane.b32.xlu0 %v1896, 8
      %v1980 = vpop.permute.xlu0 %1979
      %1981 = vrot.lane.b32.xlu0 %v1910, 8
      %v1982 = vpop.permute.xlu0 %1981
      %1983 = vrot.lane.b32.xlu0 %v1920, 8
      %v1984 = vpop.permute.xlu0 %1983
      %vm2017 = vcmask 126016
      %2018 = vst.msk [vmem:[#allocation4] sm:$0xf] %vm2017, %v1922
      %2019 = vst.msk [vmem:[#allocation4 + $0x4] sm:$0xf] %vm2017, %v1924
      %2020 = vst.msk [vmem:[#allocation4 + $0x8] sm:$0xf] %vm2017, %v1926
      %2021 = vst.msk [vmem:[#allocation4 + $0xc] sm:$0xf] %vm2017, %v1928
      %2022 = vst.msk [vmem:[#allocation4 + $0x10] sm:$0xf] %vm2017, %v1930
      %2023 = vst.msk [vmem:[#allocation4 + $0x14] sm:$0xf] %vm2017, %v1932
      %2024 = vst.msk [vmem:[#allocation4 + $0x18] sm:$0xf] %vm2017, %v1934
      %2025 = vst.msk [vmem:[#allocation4 + $0x1c] sm:$0xf] %vm2017, %v1936
      %2026 = vst.msk [vmem:[#allocation4 + $0x20] sm:$0xf] %vm2017, %v1938
      %2027 = vst.msk [vmem:[#allocation4 + $0x24] sm:$0xf] %vm2017, %v1940
      %2028 = vst.msk [vmem:[#allocation4 + $0x28] sm:$0xf] %vm2017, %v1942
      %2029 = vst.msk [vmem:[#allocation4 + $0x2c] sm:$0xf] %vm2017, %v1944
      %2030 = vst.msk [vmem:[#allocation4 + $0x30] sm:$0xf] %vm2017, %v1946
      %2031 = vst.msk [vmem:[#allocation4 + $0x34] sm:$0xf] %vm2017, %v1948
      %2032 = vst.msk [vmem:[#allocation4 + $0x38] sm:$0xf] %vm2017, %v1950
      %2033 = vst.msk [vmem:[#allocation4 + $0x3c] sm:$0xf] %vm2017, %v1952
      %2034 = vst.msk [vmem:[#allocation4 + $0x40] sm:$0xf] %vm2017, %v1954
      %2035 = vst.msk [vmem:[#allocation4 + $0x44] sm:$0xf] %vm2017, %v1956
      %2036 = vst.msk [vmem:[#allocation4 + $0x48] sm:$0xf] %vm2017, %v1958
      %2037 = vst.msk [vmem:[#allocation4 + $0x4c] sm:$0xf] %vm2017, %v1960
      %2038 = vst.msk [vmem:[#allocation4 + $0x50] sm:$0xf] %vm2017, %v1962
      %2039 = vst.msk [vmem:[#allocation4 + $0x54] sm:$0xf] %vm2017, %v1964
      %2040 = vst.msk [vmem:[#allocation4 + $0x58] sm:$0xf] %vm2017, %v1966
      %2041 = vst.msk [vmem:[#allocation4 + $0x5c] sm:$0xf] %vm2017, %v1968
      %2042 = vst.msk [vmem:[#allocation4 + $0x60] sm:$0xf] %vm2017, %v1970
      %2043 = vst.msk [vmem:[#allocation4 + $0x64] sm:$0xf] %vm2017, %v1972
      %2044 = vst.msk [vmem:[#allocation4 + $0x68] sm:$0xf] %vm2017, %v1974
      %2045 = vst.msk [vmem:[#allocation4 + $0x6c] sm:$0xf] %vm2017, %v1976
      %2046 = vst.msk [vmem:[#allocation4 + $0x70] sm:$0xf] %vm2017, %v1978
      %2047 = vst.msk [vmem:[#allocation4 + $0x74] sm:$0xf] %vm2017, %v1980
      %2048 = vst.msk [vmem:[#allocation4 + $0x78] sm:$0xf] %vm2017, %v1982
      %2049 = vst.msk [vmem:[#allocation4 + $0x7c] sm:$0xf] %vm2017, %v1984
      %v2050 = vld [vmem:[#allocation2] sm:$0xe]
      %v2051 = vld [vmem:[#allocation2 + $0x4] sm:$0xf]
      %v2052 = vld [vmem:[#allocation2 + $0x8] sm:$0x1]
      %v2053 = vld [vmem:[#allocation2 + $0xc] sm:$0xe]
      %v2054 = vld [vmem:[#allocation2 + $0x10] sm:$0xf]
      %v2055 = vld [vmem:[#allocation2 + $0x14] sm:$0x1]
      %v2056 = vld [vmem:[#allocation2 + $0x18] sm:$0xe]
      %v2057 = vld [vmem:[#allocation2 + $0x1c] sm:$0xf]
      %v2058 = vld [vmem:[#allocation2 + $0x20] sm:$0x1]
      %v2059 = vld [vmem:[#allocation2 + $0x24] sm:$0xe]
      %v2060 = vld [vmem:[#allocation2 + $0x28] sm:$0xf]
      %v2061 = vld [vmem:[#allocation2 + $0x2c] sm:$0x1]
      %v2062 = vld [vmem:[#allocation2 + $0x30] sm:$0xe]
      %v2063 = vld [vmem:[#allocation2 + $0x34] sm:$0xf]
      %v2064 = vld [vmem:[#allocation2 + $0x38] sm:$0x1]
      %v2065 = vld [vmem:[#allocation2 + $0x3c] sm:$0xe]
      %v2066 = vld [vmem:[#allocation2 + $0x40] sm:$0xf]
      %v2067 = vld [vmem:[#allocation2 + $0x44] sm:$0x1]
      %v2068 = vld [vmem:[#allocation2 + $0x48] sm:$0xe]
      %v2069 = vld [vmem:[#allocation2 + $0x4c] sm:$0xf]
      %v2070 = vld [vmem:[#allocation2 + $0x50] sm:$0x1]
      %v2071 = vld [vmem:[#allocation2 + $0x54] sm:$0xe]
      %v2072 = vld [vmem:[#allocation2 + $0x58] sm:$0xf]
      %v2073 = vld [vmem:[#allocation2 + $0x5c] sm:$0x1]
      %v2074 = vld [vmem:[#allocation2 + $0x60] sm:$0xe]
      %v2075 = vld [vmem:[#allocation2 + $0x64] sm:$0xf]
      %v2076 = vld [vmem:[#allocation2 + $0x68] sm:$0x1]
      %v2077 = vld [vmem:[#allocation2 + $0x6c] sm:$0xe]
      %v2078 = vld [vmem:[#allocation2 + $0x70] sm:$0xf]
      %v2079 = vld [vmem:[#allocation2 + $0x74] sm:$0x1]
      %v2080 = vld [vmem:[#allocation2 + $0x78] sm:$0xe]
      %v2081 = vld [vmem:[#allocation2 + $0x7c] sm:$0xf]
      %v2082 = vld [vmem:[#allocation2 + $0x80] sm:$0x1]
      %v2083 = vld [vmem:[#allocation2 + $0x84] sm:$0xe]
      %v2084 = vld [vmem:[#allocation2 + $0x88] sm:$0xf]
      %v2085 = vld [vmem:[#allocation2 + $0x8c] sm:$0x1]
      %v2086 = vld [vmem:[#allocation2 + $0x90] sm:$0xe]
      %v2087 = vld [vmem:[#allocation2 + $0x94] sm:$0xf]
      %v2088 = vld [vmem:[#allocation2 + $0x98] sm:$0x1]
      %v2089 = vld [vmem:[#allocation2 + $0x9c] sm:$0xe]
      %v2090 = vld [vmem:[#allocation2 + $0xa0] sm:$0xf]
      %v2091 = vld [vmem:[#allocation2 + $0xa4] sm:$0x1]
      %v2092 = vld [vmem:[#allocation2 + $0xa8] sm:$0xe]
      %v2093 = vld [vmem:[#allocation2 + $0xac] sm:$0xf]
      %v2094 = vld [vmem:[#allocation2 + $0xb0] sm:$0x1]
      %v2095 = vld [vmem:[#allocation2 + $0xb4] sm:$0xe]
      %v2096 = vld [vmem:[#allocation2 + $0xb8] sm:$0xf]
      %v2097 = vld [vmem:[#allocation2 + $0xbc] sm:$0x1]
      %vm2146 = vcmask 1042432
      %vm2147 = vcmask 1046532
      %vm2148 = vmor %vm2146, %vm2147
      %v2149 = vrot.slane %v2050, 5
      %v2150 = vrot.slane %v2149, 4
      %v2151 = vrot.slane %v2051, 5
      %v2152 = vsel %vm2148, %v2150, %v2151
      %v2153 = vrot.slane %v2151, 4
      %v2154 = vrot.slane %v2052, 5
      %v2155 = vsel %vm2148, %v2153, %v2154
      %v2156 = vrot.slane %v2053, 5
      %v2157 = vrot.slane %v2156, 4
      %v2158 = vrot.slane %v2054, 5
      %v2159 = vsel %vm2148, %v2157, %v2158
      %v2160 = vrot.slane %v2158, 4
      %v2161 = vrot.slane %v2055, 5
      %v2162 = vsel %vm2148, %v2160, %v2161
      %v2163 = vrot.slane %v2056, 5
      %v2164 = vrot.slane %v2163, 4
      %v2165 = vrot.slane %v2057, 5
      %v2166 = vsel %vm2148, %v2164, %v2165
      %v2167 = vrot.slane %v2165, 4
      %v2168 = vrot.slane %v2058, 5
      %v2169 = vsel %vm2148, %v2167, %v2168
      %v2170 = vrot.slane %v2059, 5
      %v2171 = vrot.slane %v2170, 4
      %v2172 = vrot.slane %v2060, 5
      %v2173 = vsel %vm2148, %v2171, %v2172
      %v2174 = vrot.slane %v2172, 4
      %v2175 = vrot.slane %v2061, 5
      %v2176 = vsel %vm2148, %v2174, %v2175
      %v2177 = vrot.slane %v2062, 5
      %v2178 = vrot.slane %v2177, 4
      %v2179 = vrot.slane %v2063, 5
      %v2180 = vsel %vm2148, %v2178, %v2179
      %v2181 = vrot.slane %v2179, 4
      %v2182 = vrot.slane %v2064, 5
      %v2183 = vsel %vm2148, %v2181, %v2182
      %v2184 = vrot.slane %v2065, 5
      %v2185 = vrot.slane %v2184, 4
      %v2186 = vrot.slane %v2066, 5
      %v2187 = vsel %vm2148, %v2185, %v2186
      %v2188 = vrot.slane %v2186, 4
      %v2189 = vrot.slane %v2067, 5
      %v2190 = vsel %vm2148, %v2188, %v2189
      %v2191 = vrot.slane %v2068, 5
      %v2192 = vrot.slane %v2191, 4
      %v2193 = vrot.slane %v2069, 5
      %v2194 = vsel %vm2148, %v2192, %v2193
      %v2195 = vrot.slane %v2193, 4
      %v2196 = vrot.slane %v2070, 5
      %v2197 = vsel %vm2148, %v2195, %v2196
      %v2198 = vrot.slane %v2071, 5
      %v2199 = vrot.slane %v2198, 4
      %v2200 = vrot.slane %v2072, 5
      %v2201 = vsel %vm2148, %v2199, %v2200
      %v2202 = vrot.slane %v2200, 4
      %v2203 = vrot.slane %v2073, 5
      %v2204 = vsel %vm2148, %v2202, %v2203
      %v2205 = vrot.slane %v2074, 5
      %v2206 = vrot.slane %v2205, 4
      %v2207 = vrot.slane %v2075, 5
      %v2208 = vsel %vm2148, %v2206, %v2207
      %v2209 = vrot.slane %v2207, 4
      %v2210 = vrot.slane %v2076, 5
      %v2211 = vsel %vm2148, %v2209, %v2210
      %v2212 = vrot.slane %v2077, 5
      %v2213 = vrot.slane %v2212, 4
      %v2214 = vrot.slane %v2078, 5
      %v2215 = vsel %vm2148, %v2213, %v2214
      %v2216 = vrot.slane %v2214, 4
      %v2217 = vrot.slane %v2079, 5
      %v2218 = vsel %vm2148, %v2216, %v2217
      %v2219 = vrot.slane %v2080, 5
      %v2220 = vrot.slane %v2219, 4
      %v2221 = vrot.slane %v2081, 5
      %v2222 = vsel %vm2148, %v2220, %v2221
      %v2223 = vrot.slane %v2221, 4
      %v2224 = vrot.slane %v2082, 5
      %v2225 = vsel %vm2148, %v2223, %v2224
      %v2226 = vrot.slane %v2083, 5
      %v2227 = vrot.slane %v2226, 4
      %v2228 = vrot.slane %v2084, 5
      %v2229 = vsel %vm2148, %v2227, %v2228
      %v2230 = vrot.slane %v2228, 4
      %v2231 = vrot.slane %v2085, 5
      %v2232 = vsel %vm2148, %v2230, %v2231
      %v2233 = vrot.slane %v2086, 5
      %v2234 = vrot.slane %v2233, 4
      %v2235 = vrot.slane %v2087, 5
      %v2236 = vsel %vm2148, %v2234, %v2235
      %v2237 = vrot.slane %v2235, 4
      %v2238 = vrot.slane %v2088, 5
      %v2239 = vsel %vm2148, %v2237, %v2238
      %v2240 = vrot.slane %v2089, 5
      %v2241 = vrot.slane %v2240, 4
      %v2242 = vrot.slane %v2090, 5
      %v2243 = vsel %vm2148, %v2241, %v2242
      %v2244 = vrot.slane %v2242, 4
      %v2245 = vrot.slane %v2091, 5
      %v2246 = vsel %vm2148, %v2244, %v2245
      %v2247 = vrot.slane %v2092, 5
      %v2248 = vrot.slane %v2247, 4
      %v2249 = vrot.slane %v2093, 5
      %v2250 = vsel %vm2148, %v2248, %v2249
      %v2251 = vrot.slane %v2249, 4
      %v2252 = vrot.slane %v2094, 5
      %v2253 = vsel %vm2148, %v2251, %v2252
      %v2254 = vrot.slane %v2095, 5
      %v2255 = vrot.slane %v2254, 4
      %v2256 = vrot.slane %v2096, 5
      %v2257 = vsel %vm2148, %v2255, %v2256
      %v2258 = vrot.slane %v2256, 4
      %v2259 = vrot.slane %v2097, 5
      %v2260 = vsel %vm2148, %v2258, %v2259
      %2261 = vrot.lane.b32.xlu0 %v2152, 16
      %v2262 = vpop.permute.xlu0 %2261
      %2263 = vrot.lane.b32.xlu0 %v2155, 16
      %v2264 = vpop.permute.xlu0 %2263
      %2265 = vrot.lane.b32.xlu0 %v2159, 16
      %v2266 = vpop.permute.xlu0 %2265
      %2267 = vrot.lane.b32.xlu0 %v2162, 16
      %v2268 = vpop.permute.xlu0 %2267
      %2269 = vrot.lane.b32.xlu0 %v2166, 16
      %v2270 = vpop.permute.xlu0 %2269
      %2271 = vrot.lane.b32.xlu0 %v2169, 16
      %v2272 = vpop.permute.xlu0 %2271
      %2273 = vrot.lane.b32.xlu0 %v2173, 16
      %v2274 = vpop.permute.xlu0 %2273
      %2275 = vrot.lane.b32.xlu0 %v2176, 16
      %v2276 = vpop.permute.xlu0 %2275
      %2277 = vrot.lane.b32.xlu0 %v2180, 16
      %v2278 = vpop.permute.xlu0 %2277
      %2279 = vrot.lane.b32.xlu0 %v2183, 16
      %v2280 = vpop.permute.xlu0 %2279
      %2281 = vrot.lane.b32.xlu0 %v2187, 16
      %v2282 = vpop.permute.xlu0 %2281
      %2283 = vrot.lane.b32.xlu0 %v2190, 16
      %v2284 = vpop.permute.xlu0 %2283
      %2285 = vrot.lane.b32.xlu0 %v2194, 16
      %v2286 = vpop.permute.xlu0 %2285
      %2287 = vrot.lane.b32.xlu0 %v2197, 16
      %v2288 = vpop.permute.xlu0 %2287
      %2289 = vrot.lane.b32.xlu0 %v2201, 16
      %v2290 = vpop.permute.xlu0 %2289
      %2291 = vrot.lane.b32.xlu0 %v2204, 16
      %v2292 = vpop.permute.xlu0 %2291
      %2293 = vrot.lane.b32.xlu0 %v2208, 16
      %v2294 = vpop.permute.xlu0 %2293
      %2295 = vrot.lane.b32.xlu0 %v2211, 16
      %v2296 = vpop.permute.xlu0 %2295
      %2297 = vrot.lane.b32.xlu0 %v2215, 16
      %v2298 = vpop.permute.xlu0 %2297
      %2299 = vrot.lane.b32.xlu0 %v2218, 16
      %v2300 = vpop.permute.xlu0 %2299
      %2301 = vrot.lane.b32.xlu0 %v2222, 16
      %v2302 = vpop.permute.xlu0 %2301
      %2303 = vrot.lane.b32.xlu0 %v2225, 16
      %v2304 = vpop.permute.xlu0 %2303
      %2305 = vrot.lane.b32.xlu0 %v2229, 16
      %v2306 = vpop.permute.xlu0 %2305
      %2307 = vrot.lane.b32.xlu0 %v2232, 16
      %v2308 = vpop.permute.xlu0 %2307
      %2309 = vrot.lane.b32.xlu0 %v2236, 16
      %v2310 = vpop.permute.xlu0 %2309
      %2311 = vrot.lane.b32.xlu0 %v2239, 16
      %v2312 = vpop.permute.xlu0 %2311
      %2313 = vrot.lane.b32.xlu0 %v2243, 16
      %v2314 = vpop.permute.xlu0 %2313
      %2315 = vrot.lane.b32.xlu0 %v2246, 16
      %v2316 = vpop.permute.xlu0 %2315
      %2317 = vrot.lane.b32.xlu0 %v2250, 16
      %v2318 = vpop.permute.xlu0 %2317
      %2319 = vrot.lane.b32.xlu0 %v2253, 16
      %v2320 = vpop.permute.xlu0 %2319
      %2321 = vrot.lane.b32.xlu0 %v2257, 16
      %v2322 = vpop.permute.xlu0 %2321
      %2323 = vrot.lane.b32.xlu0 %v2260, 16
      %v2324 = vpop.permute.xlu0 %2323
      %vm2357 = vcmask 191616
      %2358 = vst.msk [vmem:[#allocation4] sm:$0xf] %vm2357, %v2262
      %2359 = vst.msk [vmem:[#allocation4 + $0x4] sm:$0xf] %vm2357, %v2264
      %2360 = vst.msk [vmem:[#allocation4 + $0x8] sm:$0xf] %vm2357, %v2266
      %2361 = vst.msk [vmem:[#allocation4 + $0xc] sm:$0xf] %vm2357, %v2268
      %2362 = vst.msk [vmem:[#allocation4 + $0x10] sm:$0xf] %vm2357, %v2270
      %2363 = vst.msk [vmem:[#allocation4 + $0x14] sm:$0xf] %vm2357, %v2272
      %2364 = vst.msk [vmem:[#allocation4 + $0x18] sm:$0xf] %vm2357, %v2274
      %2365 = vst.msk [vmem:[#allocation4 + $0x1c] sm:$0xf] %vm2357, %v2276
      %2366 = vst.msk [vmem:[#allocation4 + $0x20] sm:$0xf] %vm2357, %v2278
      %2367 = vst.msk [vmem:[#allocation4 + $0x24] sm:$0xf] %vm2357, %v2280
      %2368 = vst.msk [vmem:[#allocation4 + $0x28] sm:$0xf] %vm2357, %v2282
      %2369 = vst.msk [vmem:[#allocation4 + $0x2c] sm:$0xf] %vm2357, %v2284
      %2370 = vst.msk [vmem:[#allocation4 + $0x30] sm:$0xf] %vm2357, %v2286
      %2371 = vst.msk [vmem:[#allocation4 + $0x34] sm:$0xf] %vm2357, %v2288
      %2372 = vst.msk [vmem:[#allocation4 + $0x38] sm:$0xf] %vm2357, %v2290
      %2373 = vst.msk [vmem:[#allocation4 + $0x3c] sm:$0xf] %vm2357, %v2292
      %2374 = vst.msk [vmem:[#allocation4 + $0x40] sm:$0xf] %vm2357, %v2294
      %2375 = vst.msk [vmem:[#allocation4 + $0x44] sm:$0xf] %vm2357, %v2296
      %2376 = vst.msk [vmem:[#allocation4 + $0x48] sm:$0xf] %vm2357, %v2298
      %2377 = vst.msk [vmem:[#allocation4 + $0x4c] sm:$0xf] %vm2357, %v2300
      %2378 = vst.msk [vmem:[#allocation4 + $0x50] sm:$0xf] %vm2357, %v2302
      %2379 = vst.msk [vmem:[#allocation4 + $0x54] sm:$0xf] %vm2357, %v2304
      %2380 = vst.msk [vmem:[#allocation4 + $0x58] sm:$0xf] %vm2357, %v2306
      %2381 = vst.msk [vmem:[#allocation4 + $0x5c] sm:$0xf] %vm2357, %v2308
      %2382 = vst.msk [vmem:[#allocation4 + $0x60] sm:$0xf] %vm2357, %v2310
      %2383 = vst.msk [vmem:[#allocation4 + $0x64] sm:$0xf] %vm2357, %v2312
      %2384 = vst.msk [vmem:[#allocation4 + $0x68] sm:$0xf] %vm2357, %v2314
      %2385 = vst.msk [vmem:[#allocation4 + $0x6c] sm:$0xf] %vm2357, %v2316
      %2386 = vst.msk [vmem:[#allocation4 + $0x70] sm:$0xf] %vm2357, %v2318
      %2387 = vst.msk [vmem:[#allocation4 + $0x74] sm:$0xf] %vm2357, %v2320
      %2388 = vst.msk [vmem:[#allocation4 + $0x78] sm:$0xf] %vm2357, %v2322
      %2389 = vst.msk [vmem:[#allocation4 + $0x7c] sm:$0xf] %vm2357, %v2324
      %v2390 = vld [vmem:[%s738] sm:$0xf]
      %v2391 = vld [vmem:[%s738 + $0x4] sm:$0xf]
      %v2392 = vld [vmem:[%s738 + $0xc] sm:$0xf]
      %v2393 = vld [vmem:[%s738 + $0x10] sm:$0xf]
      %v2394 = vld [vmem:[%s738 + $0x18] sm:$0xf]
      %v2395 = vld [vmem:[%s738 + $0x1c] sm:$0xf]
      %v2396 = vld [vmem:[%s738 + $0x24] sm:$0xf]
      %v2397 = vld [vmem:[%s738 + $0x28] sm:$0xf]
      %v2398 = vld [vmem:[%s738 + $0x30] sm:$0xf]
      %v2399 = vld [vmem:[%s738 + $0x34] sm:$0xf]
      %v2400 = vld [vmem:[%s738 + $0x3c] sm:$0xf]
      %v2401 = vld [vmem:[%s738 + $0x40] sm:$0xf]
      %v2402 = vld [vmem:[%s738 + $0x48] sm:$0xf]
      %v2403 = vld [vmem:[%s738 + $0x4c] sm:$0xf]
      %v2404 = vld [vmem:[%s738 + $0x54] sm:$0xf]
      %v2405 = vld [vmem:[%s738 + $0x58] sm:$0xf]
      %v2406 = vld [vmem:[%s738 + $0x60] sm:$0xf]
      %v2407 = vld [vmem:[%s738 + $0x64] sm:$0xf]
      %v2408 = vld [vmem:[%s738 + $0x6c] sm:$0xf]
      %v2409 = vld [vmem:[%s738 + $0x70] sm:$0xf]
      %v2410 = vld [vmem:[%s738 + $0x78] sm:$0xf]
      %v2411 = vld [vmem:[%s738 + $0x7c] sm:$0xf]
      %v2412 = vld [vmem:[%s738 + $0x84] sm:$0xf]
      %v2413 = vld [vmem:[%s738 + $0x88] sm:$0xf]
      %v2414 = vld [vmem:[%s738 + $0x90] sm:$0xf]
      %v2415 = vld [vmem:[%s738 + $0x94] sm:$0xf]
      %v2416 = vld [vmem:[%s738 + $0x9c] sm:$0xf]
      %v2417 = vld [vmem:[%s738 + $0xa0] sm:$0xf]
      %v2418 = vld [vmem:[%s738 + $0xa8] sm:$0xf]
      %v2419 = vld [vmem:[%s738 + $0xac] sm:$0xf]
      %v2420 = vld [vmem:[%s738 + $0xb4] sm:$0xf]
      %v2421 = vld [vmem:[%s738 + $0xb8] sm:$0xf]
      %2454 = vrot.lane.b32.xlu0 %v2390, 24
      %v2455 = vpop.permute.xlu0 %2454
      %2456 = vrot.lane.b32.xlu0 %v2391, 24
      %v2457 = vpop.permute.xlu0 %2456
      %2458 = vrot.lane.b32.xlu0 %v2392, 24
      %v2459 = vpop.permute.xlu0 %2458
      %2460 = vrot.lane.b32.xlu0 %v2393, 24
      %v2461 = vpop.permute.xlu0 %2460
      %2462 = vrot.lane.b32.xlu0 %v2394, 24
      %v2463 = vpop.permute.xlu0 %2462
      %2464 = vrot.lane.b32.xlu0 %v2395, 24
      %v2465 = vpop.permute.xlu0 %2464
      %2466 = vrot.lane.b32.xlu0 %v2396, 24
      %v2467 = vpop.permute.xlu0 %2466
      %2468 = vrot.lane.b32.xlu0 %v2397, 24
      %v2469 = vpop.permute.xlu0 %2468
      %2470 = vrot.lane.b32.xlu0 %v2398, 24
      %v2471 = vpop.permute.xlu0 %2470
      %2472 = vrot.lane.b32.xlu0 %v2399, 24
      %v2473 = vpop.permute.xlu0 %2472
      %2474 = vrot.lane.b32.xlu0 %v2400, 24
      %v2475 = vpop.permute.xlu0 %2474
      %2476 = vrot.lane.b32.xlu0 %v2401, 24
      %v2477 = vpop.permute.xlu0 %2476
      %2478 = vrot.lane.b32.xlu0 %v2402, 24
      %v2479 = vpop.permute.xlu0 %2478
      %2480 = vrot.lane.b32.xlu0 %v2403, 24
      %v2481 = vpop.permute.xlu0 %2480
      %2482 = vrot.lane.b32.xlu0 %v2404, 24
      %v2483 = vpop.permute.xlu0 %2482
      %2484 = vrot.lane.b32.xlu0 %v2405, 24
      %v2485 = vpop.permute.xlu0 %2484
      %2486 = vrot.lane.b32.xlu0 %v2406, 24
      %v2487 = vpop.permute.xlu0 %2486
      %2488 = vrot.lane.b32.xlu0 %v2407, 24
      %v2489 = vpop.permute.xlu0 %2488
      %2490 = vrot.lane.b32.xlu0 %v2408, 24
      %v2491 = vpop.permute.xlu0 %2490
      %2492 = vrot.lane.b32.xlu0 %v2409, 24
      %v2493 = vpop.permute.xlu0 %2492
      %2494 = vrot.lane.b32.xlu0 %v2410, 24
      %v2495 = vpop.permute.xlu0 %2494
      %2496 = vrot.lane.b32.xlu0 %v2411, 24
      %v2497 = vpop.permute.xlu0 %2496
      %2498 = vrot.lane.b32.xlu0 %v2412, 24
      %v2499 = vpop.permute.xlu0 %2498
      %2500 = vrot.lane.b32.xlu0 %v2413, 24
      %v2501 = vpop.permute.xlu0 %2500
      %2502 = vrot.lane.b32.xlu0 %v2414, 24
      %v2503 = vpop.permute.xlu0 %2502
      %2504 = vrot.lane.b32.xlu0 %v2415, 24
      %v2505 = vpop.permute.xlu0 %2504
      %2506 = vrot.lane.b32.xlu0 %v2416, 24
      %v2507 = vpop.permute.xlu0 %2506
      %2508 = vrot.lane.b32.xlu0 %v2417, 24
      %v2509 = vpop.permute.xlu0 %2508
      %2510 = vrot.lane.b32.xlu0 %v2418, 24
      %v2511 = vpop.permute.xlu0 %2510
      %2512 = vrot.lane.b32.xlu0 %v2419, 24
      %v2513 = vpop.permute.xlu0 %2512
      %2514 = vrot.lane.b32.xlu0 %v2420, 24
      %v2515 = vpop.permute.xlu0 %2514
      %2516 = vrot.lane.b32.xlu0 %v2421, 24
      %v2517 = vpop.permute.xlu0 %2516
      %vm2550 = vcmask 257216
      %2551 = vst.msk [vmem:[#allocation4] sm:$0xf] %vm2550, %v2455
      %2552 = vst.msk [vmem:[#allocation4 + $0x4] sm:$0xf] %vm2550, %v2457
      %2553 = vst.msk [vmem:[#allocation4 + $0x8] sm:$0xf] %vm2550, %v2459
      %2554 = vst.msk [vmem:[#allocation4 + $0xc] sm:$0xf] %vm2550, %v2461
      %2555 = vst.msk [vmem:[#allocation4 + $0x10] sm:$0xf] %vm2550, %v2463
      %2556 = vst.msk [vmem:[#allocation4 + $0x14] sm:$0xf] %vm2550, %v2465
      %2557 = vst.msk [vmem:[#allocation4 + $0x18] sm:$0xf] %vm2550, %v2467
      %2558 = vst.msk [vmem:[#allocation4 + $0x1c] sm:$0xf] %vm2550, %v2469
      %2559 = vst.msk [vmem:[#allocation4 + $0x20] sm:$0xf] %vm2550, %v2471
      %2560 = vst.msk [vmem:[#allocation4 + $0x24] sm:$0xf] %vm2550, %v2473
      %2561 = vst.msk [vmem:[#allocation4 + $0x28] sm:$0xf] %vm2550, %v2475
      %2562 = vst.msk [vmem:[#allocation4 + $0x2c] sm:$0xf] %vm2550, %v2477
      %2563 = vst.msk [vmem:[#allocation4 + $0x30] sm:$0xf] %vm2550, %v2479
      %2564 = vst.msk [vmem:[#allocation4 + $0x34] sm:$0xf] %vm2550, %v2481
      %2565 = vst.msk [vmem:[#allocation4 + $0x38] sm:$0xf] %vm2550, %v2483
      %2566 = vst.msk [vmem:[#allocation4 + $0x3c] sm:$0xf] %vm2550, %v2485
      %2567 = vst.msk [vmem:[#allocation4 + $0x40] sm:$0xf] %vm2550, %v2487
      %2568 = vst.msk [vmem:[#allocation4 + $0x44] sm:$0xf] %vm2550, %v2489
      %2569 = vst.msk [vmem:[#allocation4 + $0x48] sm:$0xf] %vm2550, %v2491
      %2570 = vst.msk [vmem:[#allocation4 + $0x4c] sm:$0xf] %vm2550, %v2493
      %2571 = vst.msk [vmem:[#allocation4 + $0x50] sm:$0xf] %vm2550, %v2495
      %2572 = vst.msk [vmem:[#allocation4 + $0x54] sm:$0xf] %vm2550, %v2497
      %2573 = vst.msk [vmem:[#allocation4 + $0x58] sm:$0xf] %vm2550, %v2499
      %2574 = vst.msk [vmem:[#allocation4 + $0x5c] sm:$0xf] %vm2550, %v2501
      %2575 = vst.msk [vmem:[#allocation4 + $0x60] sm:$0xf] %vm2550, %v2503
      %2576 = vst.msk [vmem:[#allocation4 + $0x64] sm:$0xf] %vm2550, %v2505
      %2577 = vst.msk [vmem:[#allocation4 + $0x68] sm:$0xf] %vm2550, %v2507
      %2578 = vst.msk [vmem:[#allocation4 + $0x6c] sm:$0xf] %vm2550, %v2509
      %2579 = vst.msk [vmem:[#allocation4 + $0x70] sm:$0xf] %vm2550, %v2511
      %2580 = vst.msk [vmem:[#allocation4 + $0x74] sm:$0xf] %vm2550, %v2513
      %2581 = vst.msk [vmem:[#allocation4 + $0x78] sm:$0xf] %vm2550, %v2515
      %2582 = vst.msk [vmem:[#allocation4 + $0x7c] sm:$0xf] %vm2550, %v2517
      %v2583 = vld [vmem:[%s738] sm:$0xf]
      %v2584 = vld [vmem:[%s738 + $0x4] sm:$0xf]
      %v2585 = vld [vmem:[%s738 + $0x8] sm:$0x1]
      %v2586 = vld [vmem:[%s738 + $0xc] sm:$0xf]
      %v2587 = vld [vmem:[%s738 + $0x10] sm:$0xf]
      %v2588 = vld [vmem:[%s738 + $0x14] sm:$0x1]
      %v2589 = vld [vmem:[%s738 + $0x18] sm:$0xf]
      %v2590 = vld [vmem:[%s738 + $0x1c] sm:$0xf]
      %v2591 = vld [vmem:[%s738 + $0x20] sm:$0x1]
      %v2592 = vld [vmem:[%s738 + $0x24] sm:$0xf]
      %v2593 = vld [vmem:[%s738 + $0x28] sm:$0xf]
      %v2594 = vld [vmem:[%s738 + $0x2c] sm:$0x1]
      %v2595 = vld [vmem:[%s738 + $0x30] sm:$0xf]
      %v2596 = vld [vmem:[%s738 + $0x34] sm:$0xf]
      %v2597 = vld [vmem:[%s738 + $0x38] sm:$0x1]
      %v2598 = vld [vmem:[%s738 + $0x3c] sm:$0xf]
      %v2599 = vld [vmem:[%s738 + $0x40] sm:$0xf]
      %v2600 = vld [vmem:[%s738 + $0x44] sm:$0x1]
      %v2601 = vld [vmem:[%s738 + $0x48] sm:$0xf]
      %v2602 = vld [vmem:[%s738 + $0x4c] sm:$0xf]
      %v2603 = vld [vmem:[%s738 + $0x50] sm:$0x1]
      %v2604 = vld [vmem:[%s738 + $0x54] sm:$0xf]
      %v2605 = vld [vmem:[%s738 + $0x58] sm:$0xf]
      %v2606 = vld [vmem:[%s738 + $0x5c] sm:$0x1]
      %v2607 = vld [vmem:[%s738 + $0x60] sm:$0xf]
      %v2608 = vld [vmem:[%s738 + $0x64] sm:$0xf]
      %v2609 = vld [vmem:[%s738 + $0x68] sm:$0x1]
      %v2610 = vld [vmem:[%s738 + $0x6c] sm:$0xf]
      %v2611 = vld [vmem:[%s738 + $0x70] sm:$0xf]
      %v2612 = vld [vmem:[%s738 + $0x74] sm:$0x1]
      %v2613 = vld [vmem:[%s738 + $0x78] sm:$0xf]
      %v2614 = vld [vmem:[%s738 + $0x7c] sm:$0xf]
      %v2615 = vld [vmem:[%s738 + $0x80] sm:$0x1]
      %v2616 = vld [vmem:[%s738 + $0x84] sm:$0xf]
      %v2617 = vld [vmem:[%s738 + $0x88] sm:$0xf]
      %v2618 = vld [vmem:[%s738 + $0x8c] sm:$0x1]
      %v2619 = vld [vmem:[%s738 + $0x90] sm:$0xf]
      %v2620 = vld [vmem:[%s738 + $0x94] sm:$0xf]
      %v2621 = vld [vmem:[%s738 + $0x98] sm:$0x1]
      %v2622 = vld [vmem:[%s738 + $0x9c] sm:$0xf]
      %v2623 = vld [vmem:[%s738 + $0xa0] sm:$0xf]
      %v2624 = vld [vmem:[%s738 + $0xa4] sm:$0x1]
      %v2625 = vld [vmem:[%s738 + $0xa8] sm:$0xf]
      %v2626 = vld [vmem:[%s738 + $0xac] sm:$0xf]
      %v2627 = vld [vmem:[%s738 + $0xb0] sm:$0x1]
      %v2628 = vld [vmem:[%s738 + $0xb4] sm:$0xf]
      %v2629 = vld [vmem:[%s738 + $0xb8] sm:$0xf]
      %v2630 = vld [vmem:[%s738 + $0xbc] sm:$0x1]
      %v2632 = vshrl.u32 %v2583, 16
      %v2634 = vrot.slane %v2632, 4
      %v2635 = vshll.u32 %v2583, 16
      %v2637 = vrot.slane %v2635, 5
      %v2638 = vor.u32 %v2634, %v2637
      %v2639 = vrot.slane %v2638, 4
      %v2641 = vshll.u32 %v2584, 16
      %v2643 = vrot.slane %v2641, 5
      %v2644 = vsel %vm1536, %v2639, %v2643
      %v2645 = vshrl.u32 %v2584, 16
      %v2647 = vrot.slane %v2645, 4
      %v2648 = vor.u32 %v2647, %v2643
      %v2649 = vrot.slane %v2648, 4
      %v2651 = vshll.u32 %v2585, 16
      %v2653 = vrot.slane %v2651, 5
      %v2654 = vsel %vm1536, %v2649, %v2653
      %v2656 = vshrl.u32 %v2586, 16
      %v2658 = vrot.slane %v2656, 4
      %v2659 = vshll.u32 %v2586, 16
      %v2661 = vrot.slane %v2659, 5
      %v2662 = vor.u32 %v2658, %v2661
      %v2663 = vrot.slane %v2662, 4
      %v2665 = vshll.u32 %v2587, 16
      %v2667 = vrot.slane %v2665, 5
      %v2668 = vsel %vm1536, %v2663, %v2667
      %v2669 = vshrl.u32 %v2587, 16
      %v2671 = vrot.slane %v2669, 4
      %v2672 = vor.u32 %v2671, %v2667
      %v2673 = vrot.slane %v2672, 4
      %v2675 = vshll.u32 %v2588, 16
      %v2677 = vrot.slane %v2675, 5
      %v2678 = vsel %vm1536, %v2673, %v2677
      %v2680 = vshrl.u32 %v2589, 16
      %v2682 = vrot.slane %v2680, 4
      %v2683 = vshll.u32 %v2589, 16
      %v2685 = vrot.slane %v2683, 5
      %v2686 = vor.u32 %v2682, %v2685
      %v2687 = vrot.slane %v2686, 4
      %v2689 = vshll.u32 %v2590, 16
      %v2691 = vrot.slane %v2689, 5
      %v2692 = vsel %vm1536, %v2687, %v2691
      %v2693 = vshrl.u32 %v2590, 16
      %v2695 = vrot.slane %v2693, 4
      %v2696 = vor.u32 %v2695, %v2691
      %v2697 = vrot.slane %v2696, 4
      %v2699 = vshll.u32 %v2591, 16
      %v2701 = vrot.slane %v2699, 5
      %v2702 = vsel %vm1536, %v2697, %v2701
      %v2704 = vshrl.u32 %v2592, 16
      %v2706 = vrot.slane %v2704, 4
      %v2707 = vshll.u32 %v2592, 16
      %v2709 = vrot.slane %v2707, 5
      %v2710 = vor.u32 %v2706, %v2709
      %v2711 = vrot.slane %v2710, 4
      %v2713 = vshll.u32 %v2593, 16
      %v2715 = vrot.slane %v2713, 5
      %v2716 = vsel %vm1536, %v2711, %v2715
      %v2717 = vshrl.u32 %v2593, 16
      %v2719 = vrot.slane %v2717, 4
      %v2720 = vor.u32 %v2719, %v2715
      %v2721 = vrot.slane %v2720, 4
      %v2723 = vshll.u32 %v2594, 16
      %v2725 = vrot.slane %v2723, 5
      %v2726 = vsel %vm1536, %v2721, %v2725
      %v2728 = vshrl.u32 %v2595, 16
      %v2730 = vrot.slane %v2728, 4
      %v2731 = vshll.u32 %v2595, 16
      %v2733 = vrot.slane %v2731, 5
      %v2734 = vor.u32 %v2730, %v2733
      %v2735 = vrot.slane %v2734, 4
      %v2737 = vshll.u32 %v2596, 16
      %v2739 = vrot.slane %v2737, 5
      %v2740 = vsel %vm1536, %v2735, %v2739
      %v2741 = vshrl.u32 %v2596, 16
      %v2743 = vrot.slane %v2741, 4
      %v2744 = vor.u32 %v2743, %v2739
      %v2745 = vrot.slane %v2744, 4
      %v2747 = vshll.u32 %v2597, 16
      %v2749 = vrot.slane %v2747, 5
      %v2750 = vsel %vm1536, %v2745, %v2749
      %v2752 = vshrl.u32 %v2598, 16
      %v2754 = vrot.slane %v2752, 4
      %v2755 = vshll.u32 %v2598, 16
      %v2757 = vrot.slane %v2755, 5
      %v2758 = vor.u32 %v2754, %v2757
      %v2759 = vrot.slane %v2758, 4
      %v2761 = vshll.u32 %v2599, 16
      %v2763 = vrot.slane %v2761, 5
      %v2764 = vsel %vm1536, %v2759, %v2763
      %v2765 = vshrl.u32 %v2599, 16
      %v2767 = vrot.slane %v2765, 4
      %v2768 = vor.u32 %v2767, %v2763
      %v2769 = vrot.slane %v2768, 4
      %v2771 = vshll.u32 %v2600, 16
      %v2773 = vrot.slane %v2771, 5
      %v2774 = vsel %vm1536, %v2769, %v2773
      %v2776 = vshrl.u32 %v2601, 16
      %v2778 = vrot.slane %v2776, 4
      %v2779 = vshll.u32 %v2601, 16
      %v2781 = vrot.slane %v2779, 5
      %v2782 = vor.u32 %v2778, %v2781
      %v2783 = vrot.slane %v2782, 4
      %v2785 = vshll.u32 %v2602, 16
      %v2787 = vrot.slane %v2785, 5
      %v2788 = vsel %vm1536, %v2783, %v2787
      %v2789 = vshrl.u32 %v2602, 16
      %v2791 = vrot.slane %v2789, 4
      %v2792 = vor.u32 %v2791, %v2787
      %v2793 = vrot.slane %v2792, 4
      %v2795 = vshll.u32 %v2603, 16
      %v2797 = vrot.slane %v2795, 5
      %v2798 = vsel %vm1536, %v2793, %v2797
      %v2800 = vshrl.u32 %v2604, 16
      %v2802 = vrot.slane %v2800, 4
      %v2803 = vshll.u32 %v2604, 16
      %v2805 = vrot.slane %v2803, 5
      %v2806 = vor.u32 %v2802, %v2805
      %v2807 = vrot.slane %v2806, 4
      %v2809 = vshll.u32 %v2605, 16
      %v2811 = vrot.slane %v2809, 5
      %v2812 = vsel %vm1536, %v2807, %v2811
      %v2813 = vshrl.u32 %v2605, 16
      %v2815 = vrot.slane %v2813, 4
      %v2816 = vor.u32 %v2815, %v2811
      %v2817 = vrot.slane %v2816, 4
      %v2819 = vshll.u32 %v2606, 16
      %v2821 = vrot.slane %v2819, 5
      %v2822 = vsel %vm1536, %v2817, %v2821
      %v2824 = vshrl.u32 %v2607, 16
      %v2826 = vrot.slane %v2824, 4
      %v2827 = vshll.u32 %v2607, 16
      %v2829 = vrot.slane %v2827, 5
      %v2830 = vor.u32 %v2826, %v2829
      %v2831 = vrot.slane %v2830, 4
      %v2833 = vshll.u32 %v2608, 16
      %v2835 = vrot.slane %v2833, 5
      %v2836 = vsel %vm1536, %v2831, %v2835
      %v2837 = vshrl.u32 %v2608, 16
      %v2839 = vrot.slane %v2837, 4
      %v2840 = vor.u32 %v2839, %v2835
      %v2841 = vrot.slane %v2840, 4
      %v2843 = vshll.u32 %v2609, 16
      %v2845 = vrot.slane %v2843, 5
      %v2846 = vsel %vm1536, %v2841, %v2845
      %v2848 = vshrl.u32 %v2610, 16
      %v2850 = vrot.slane %v2848, 4
      %v2851 = vshll.u32 %v2610, 16
      %v2853 = vrot.slane %v2851, 5
      %v2854 = vor.u32 %v2850, %v2853
      %v2855 = vrot.slane %v2854, 4
      %v2857 = vshll.u32 %v2611, 16
      %v2859 = vrot.slane %v2857, 5
      %v2860 = vsel %vm1536, %v2855, %v2859
      %v2861 = vshrl.u32 %v2611, 16
      %v2863 = vrot.slane %v2861, 4
      %v2864 = vor.u32 %v2863, %v2859
      %v2865 = vrot.slane %v2864, 4
      %v2867 = vshll.u32 %v2612, 16
      %v2869 = vrot.slane %v2867, 5
      %v2870 = vsel %vm1536, %v2865, %v2869
      %v2872 = vshrl.u32 %v2613, 16
      %v2874 = vrot.slane %v2872, 4
      %v2875 = vshll.u32 %v2613, 16
      %v2877 = vrot.slane %v2875, 5
      %v2878 = vor.u32 %v2874, %v2877
      %v2879 = vrot.slane %v2878, 4
      %v2881 = vshll.u32 %v2614, 16
      %v2883 = vrot.slane %v2881, 5
      %v2884 = vsel %vm1536, %v2879, %v2883
      %v2885 = vshrl.u32 %v2614, 16
      %v2887 = vrot.slane %v2885, 4
      %v2888 = vor.u32 %v2887, %v2883
      %v2889 = vrot.slane %v2888, 4
      %v2891 = vshll.u32 %v2615, 16
      %v2893 = vrot.slane %v2891, 5
      %v2894 = vsel %vm1536, %v2889, %v2893
      %v2896 = vshrl.u32 %v2616, 16
      %v2898 = vrot.slane %v2896, 4
      %v2899 = vshll.u32 %v2616, 16
      %v2901 = vrot.slane %v2899, 5
      %v2902 = vor.u32 %v2898, %v2901
      %v2903 = vrot.slane %v2902, 4
      %v2905 = vshll.u32 %v2617, 16
      %v2907 = vrot.slane %v2905, 5
      %v2908 = vsel %vm1536, %v2903, %v2907
      %v2909 = vshrl.u32 %v2617, 16
      %v2911 = vrot.slane %v2909, 4
      %v2912 = vor.u32 %v2911, %v2907
      %v2913 = vrot.slane %v2912, 4
      %v2915 = vshll.u32 %v2618, 16
      %v2917 = vrot.slane %v2915, 5
      %v2918 = vsel %vm1536, %v2913, %v2917
      %v2920 = vshrl.u32 %v2619, 16
      %v2922 = vrot.slane %v2920, 4
      %v2923 = vshll.u32 %v2619, 16
      %v2925 = vrot.slane %v2923, 5
      %v2926 = vor.u32 %v2922, %v2925
      %v2927 = vrot.slane %v2926, 4
      %v2929 = vshll.u32 %v2620, 16
      %v2931 = vrot.slane %v2929, 5
      %v2932 = vsel %vm1536, %v2927, %v2931
      %v2933 = vshrl.u32 %v2620, 16
      %v2935 = vrot.slane %v2933, 4
      %v2936 = vor.u32 %v2935, %v2931
      %v2937 = vrot.slane %v2936, 4
      %v2939 = vshll.u32 %v2621, 16
      %v2941 = vrot.slane %v2939, 5
      %v2942 = vsel %vm1536, %v2937, %v2941
      %v2944 = vshrl.u32 %v2622, 16
      %v2946 = vrot.slane %v2944, 4
      %v2947 = vshll.u32 %v2622, 16
      %v2949 = vrot.slane %v2947, 5
      %v2950 = vor.u32 %v2946, %v2949
      %v2951 = vrot.slane %v2950, 4
      %v2953 = vshll.u32 %v2623, 16
      %v2955 = vrot.slane %v2953, 5
      %v2956 = vsel %vm1536, %v2951, %v2955
      %v2957 = vshrl.u32 %v2623, 16
      %v2959 = vrot.slane %v2957, 4
      %v2960 = vor.u32 %v2959, %v2955
      %v2961 = vrot.slane %v2960, 4
      %v2963 = vshll.u32 %v2624, 16
      %v2965 = vrot.slane %v2963, 5
      %v2966 = vsel %vm1536, %v2961, %v2965
      %v2968 = vshrl.u32 %v2625, 16
      %v2970 = vrot.slane %v2968, 4
      %v2971 = vshll.u32 %v2625, 16
      %v2973 = vrot.slane %v2971, 5
      %v2974 = vor.u32 %v2970, %v2973
      %v2975 = vrot.slane %v2974, 4
      %v2977 = vshll.u32 %v2626, 16
      %v2979 = vrot.slane %v2977, 5
      %v2980 = vsel %vm1536, %v2975, %v2979
      %v2981 = vshrl.u32 %v2626, 16
      %v2983 = vrot.slane %v2981, 4
      %v2984 = vor.u32 %v2983, %v2979
      %v2985 = vrot.slane %v2984, 4
      %v2987 = vshll.u32 %v2627, 16
      %v2989 = vrot.slane %v2987, 5
      %v2990 = vsel %vm1536, %v2985, %v2989
      %v2992 = vshrl.u32 %v2628, 16
      %v2994 = vrot.slane %v2992, 4
      %v2995 = vshll.u32 %v2628, 16
      %v2997 = vrot.slane %v2995, 5
      %v2998 = vor.u32 %v2994, %v2997
      %v2999 = vrot.slane %v2998, 4
      %v3001 = vshll.u32 %v2629, 16
      %v3003 = vrot.slane %v3001, 5
      %v3004 = vsel %vm1536, %v2999, %v3003
      %v3005 = vshrl.u32 %v2629, 16
      %v3007 = vrot.slane %v3005, 4
      %v3008 = vor.u32 %v3007, %v3003
      %v3009 = vrot.slane %v3008, 4
      %v3011 = vshll.u32 %v2630, 16
      %v3013 = vrot.slane %v3011, 5
      %v3014 = vsel %vm1536, %v3009, %v3013
      %3015 = vrot.lane.b32.xlu0 %v2644, 32
      %v3016 = vpop.permute.xlu0 %3015
      %3017 = vrot.lane.b32.xlu0 %v2654, 32
      %v3018 = vpop.permute.xlu0 %3017
      %3019 = vrot.lane.b32.xlu0 %v2668, 32
      %v3020 = vpop.permute.xlu0 %3019
      %3021 = vrot.lane.b32.xlu0 %v2678, 32
      %v3022 = vpop.permute.xlu0 %3021
      %3023 = vrot.lane.b32.xlu0 %v2692, 32
      %v3024 = vpop.permute.xlu0 %3023
      %3025 = vrot.lane.b32.xlu0 %v2702, 32
      %v3026 = vpop.permute.xlu0 %3025
      %3027 = vrot.lane.b32.xlu0 %v2716, 32
      %v3028 = vpop.permute.xlu0 %3027
      %3029 = vrot.lane.b32.xlu0 %v2726, 32
      %v3030 = vpop.permute.xlu0 %3029
      %3031 = vrot.lane.b32.xlu0 %v2740, 32
      %v3032 = vpop.permute.xlu0 %3031
      %3033 = vrot.lane.b32.xlu0 %v2750, 32
      %v3034 = vpop.permute.xlu0 %3033
      %3035 = vrot.lane.b32.xlu0 %v2764, 32
      %v3036 = vpop.permute.xlu0 %3035
      %3037 = vrot.lane.b32.xlu0 %v2774, 32
      %v3038 = vpop.permute.xlu0 %3037
      %3039 = vrot.lane.b32.xlu0 %v2788, 32
      %v3040 = vpop.permute.xlu0 %3039
      %3041 = vrot.lane.b32.xlu0 %v2798, 32
      %v3042 = vpop.permute.xlu0 %3041
      %3043 = vrot.lane.b32.xlu0 %v2812, 32
      %v3044 = vpop.permute.xlu0 %3043
      %3045 = vrot.lane.b32.xlu0 %v2822, 32
      %v3046 = vpop.permute.xlu0 %3045
      %3047 = vrot.lane.b32.xlu0 %v2836, 32
      %v3048 = vpop.permute.xlu0 %3047
      %3049 = vrot.lane.b32.xlu0 %v2846, 32
      %v3050 = vpop.permute.xlu0 %3049
      %3051 = vrot.lane.b32.xlu0 %v2860, 32
      %v3052 = vpop.permute.xlu0 %3051
      %3053 = vrot.lane.b32.xlu0 %v2870, 32
      %v3054 = vpop.permute.xlu0 %3053
      %3055 = vrot.lane.b32.xlu0 %v2884, 32
      %v3056 = vpop.permute.xlu0 %3055
      %3057 = vrot.lane.b32.xlu0 %v2894, 32
      %v3058 = vpop.permute.xlu0 %3057
      %3059 = vrot.lane.b32.xlu0 %v2908, 32
      %v3060 = vpop.permute.xlu0 %3059
      %3061 = vrot.lane.b32.xlu0 %v2918, 32
      %v3062 = vpop.permute.xlu0 %3061
      %3063 = vrot.lane.b32.xlu0 %v2932, 32
      %v3064 = vpop.permute.xlu0 %3063
      %3065 = vrot.lane.b32.xlu0 %v2942, 32
      %v3066 = vpop.permute.xlu0 %3065
      %3067 = vrot.lane.b32.xlu0 %v2956, 32
      %v3068 = vpop.permute.xlu0 %3067
      %3069 = vrot.lane.b32.xlu0 %v2966, 32
      %v3070 = vpop.permute.xlu0 %3069
      %3071 = vrot.lane.b32.xlu0 %v2980, 32
      %v3072 = vpop.permute.xlu0 %3071
      %3073 = vrot.lane.b32.xlu0 %v2990, 32
      %v3074 = vpop.permute.xlu0 %3073
      %3075 = vrot.lane.b32.xlu0 %v3004, 32
      %v3076 = vpop.permute.xlu0 %3075
      %3077 = vrot.lane.b32.xlu0 %v3014, 32
      %v3078 = vpop.permute.xlu0 %3077
      %vm3111 = vcmask 322816
      %3112 = vst.msk [vmem:[#allocation4] sm:$0xf] %vm3111, %v3016
      %3113 = vst.msk [vmem:[#allocation4 + $0x4] sm:$0xf] %vm3111, %v3018
      %3114 = vst.msk [vmem:[#allocation4 + $0x8] sm:$0xf] %vm3111, %v3020
      %3115 = vst.msk [vmem:[#allocation4 + $0xc] sm:$0xf] %vm3111, %v3022
      %3116 = vst.msk [vmem:[#allocation4 + $0x10] sm:$0xf] %vm3111, %v3024
      %3117 = vst.msk [vmem:[#allocation4 + $0x14] sm:$0xf] %vm3111, %v3026
      %3118 = vst.msk [vmem:[#allocation4 + $0x18] sm:$0xf] %vm3111, %v3028
      %3119 = vst.msk [vmem:[#allocation4 + $0x1c] sm:$0xf] %vm3111, %v3030
      %3120 = vst.msk [vmem:[#allocation4 + $0x20] sm:$0xf] %vm3111, %v3032
      %3121 = vst.msk [vmem:[#allocation4 + $0x24] sm:$0xf] %vm3111, %v3034
      %3122 = vst.msk [vmem:[#allocation4 + $0x28] sm:$0xf] %vm3111, %v3036
      %3123 = vst.msk [vmem:[#allocation4 + $0x2c] sm:$0xf] %vm3111, %v3038
      %3124 = vst.msk [vmem:[#allocation4 + $0x30] sm:$0xf] %vm3111, %v3040
      %3125 = vst.msk [vmem:[#allocation4 + $0x34] sm:$0xf] %vm3111, %v3042
      %3126 = vst.msk [vmem:[#allocation4 + $0x38] sm:$0xf] %vm3111, %v3044
      %3127 = vst.msk [vmem:[#allocation4 + $0x3c] sm:$0xf] %vm3111, %v3046
      %3128 = vst.msk [vmem:[#allocation4 + $0x40] sm:$0xf] %vm3111, %v3048
      %3129 = vst.msk [vmem:[#allocation4 + $0x44] sm:$0xf] %vm3111, %v3050
      %3130 = vst.msk [vmem:[#allocation4 + $0x48] sm:$0xf] %vm3111, %v3052
      %3131 = vst.msk [vmem:[#allocation4 + $0x4c] sm:$0xf] %vm3111, %v3054
      %3132 = vst.msk [vmem:[#allocation4 + $0x50] sm:$0xf] %vm3111, %v3056
      %3133 = vst.msk [vmem:[#allocation4 + $0x54] sm:$0xf] %vm3111, %v3058
      %3134 = vst.msk [vmem:[#allocation4 + $0x58] sm:$0xf] %vm3111, %v3060
      %3135 = vst.msk [vmem:[#allocation4 + $0x5c] sm:$0xf] %vm3111, %v3062
      %3136 = vst.msk [vmem:[#allocation4 + $0x60] sm:$0xf] %vm3111, %v3064
      %3137 = vst.msk [vmem:[#allocation4 + $0x64] sm:$0xf] %vm3111, %v3066
      %3138 = vst.msk [vmem:[#allocation4 + $0x68] sm:$0xf] %vm3111, %v3068
      %3139 = vst.msk [vmem:[#allocation4 + $0x6c] sm:$0xf] %vm3111, %v3070
      %3140 = vst.msk [vmem:[#allocation4 + $0x70] sm:$0xf] %vm3111, %v3072
      %3141 = vst.msk [vmem:[#allocation4 + $0x74] sm:$0xf] %vm3111, %v3074
      %3142 = vst.msk [vmem:[#allocation4 + $0x78] sm:$0xf] %vm3111, %v3076
      %3143 = vst.msk [vmem:[#allocation4 + $0x7c] sm:$0xf] %vm3111, %v3078
      %v3144 = vld [vmem:[%s738] sm:$0xe]
      %v3145 = vld [vmem:[%s738 + $0x4] sm:$0xf]
      %v3146 = vld [vmem:[%s738 + $0x8] sm:$0x1]
      %v3147 = vld [vmem:[%s738 + $0xc] sm:$0xe]
      %v3148 = vld [vmem:[%s738 + $0x10] sm:$0xf]
      %v3149 = vld [vmem:[%s738 + $0x14] sm:$0x1]
      %v3150 = vld [vmem:[%s738 + $0x18] sm:$0xe]
      %v3151 = vld [vmem:[%s738 + $0x1c] sm:$0xf]
      %v3152 = vld [vmem:[%s738 + $0x20] sm:$0x1]
      %v3153 = vld [vmem:[%s738 + $0x24] sm:$0xe]
      %v3154 = vld [vmem:[%s738 + $0x28] sm:$0xf]
      %v3155 = vld [vmem:[%s738 + $0x2c] sm:$0x1]
      %v3156 = vld [vmem:[%s738 + $0x30] sm:$0xe]
      %v3157 = vld [vmem:[%s738 + $0x34] sm:$0xf]
      %v3158 = vld [vmem:[%s738 + $0x38] sm:$0x1]
      %v3159 = vld [vmem:[%s738 + $0x3c] sm:$0xe]
      %v3160 = vld [vmem:[%s738 + $0x40] sm:$0xf]
      %v3161 = vld [vmem:[%s738 + $0x44] sm:$0x1]
      %v3162 = vld [vmem:[%s738 + $0x48] sm:$0xe]
      %v3163 = vld [vmem:[%s738 + $0x4c] sm:$0xf]
      %v3164 = vld [vmem:[%s738 + $0x50] sm:$0x1]
      %v3165 = vld [vmem:[%s738 + $0x54] sm:$0xe]
      %v3166 = vld [vmem:[%s738 + $0x58] sm:$0xf]
      %v3167 = vld [vmem:[%s738 + $0x5c] sm:$0x1]
      %v3168 = vld [vmem:[%s738 + $0x60] sm:$0xe]
      %v3169 = vld [vmem:[%s738 + $0x64] sm:$0xf]
      %v3170 = vld [vmem:[%s738 + $0x68] sm:$0x1]
      %v3171 = vld [vmem:[%s738 + $0x6c] sm:$0xe]
      %v3172 = vld [vmem:[%s738 + $0x70] sm:$0xf]
      %v3173 = vld [vmem:[%s738 + $0x74] sm:$0x1]
      %v3174 = vld [vmem:[%s738 + $0x78] sm:$0xe]
      %v3175 = vld [vmem:[%s738 + $0x7c] sm:$0xf]
      %v3176 = vld [vmem:[%s738 + $0x80] sm:$0x1]
      %v3177 = vld [vmem:[%s738 + $0x84] sm:$0xe]
      %v3178 = vld [vmem:[%s738 + $0x88] sm:$0xf]
      %v3179 = vld [vmem:[%s738 + $0x8c] sm:$0x1]
      %v3180 = vld [vmem:[%s738 + $0x90] sm:$0xe]
      %v3181 = vld [vmem:[%s738 + $0x94] sm:$0xf]
      %v3182 = vld [vmem:[%s738 + $0x98] sm:$0x1]
      %v3183 = vld [vmem:[%s738 + $0x9c] sm:$0xe]
      %v3184 = vld [vmem:[%s738 + $0xa0] sm:$0xf]
      %v3185 = vld [vmem:[%s738 + $0xa4] sm:$0x1]
      %v3186 = vld [vmem:[%s738 + $0xa8] sm:$0xe]
      %v3187 = vld [vmem:[%s738 + $0xac] sm:$0xf]
      %v3188 = vld [vmem:[%s738 + $0xb0] sm:$0x1]
      %v3189 = vld [vmem:[%s738 + $0xb4] sm:$0xe]
      %v3190 = vld [vmem:[%s738 + $0xb8] sm:$0xf]
      %v3191 = vld [vmem:[%s738 + $0xbc] sm:$0x1]
      %v3240 = vrot.slane %v3144, 5
      %v3241 = vrot.slane %v3240, 4
      %v3242 = vrot.slane %v3145, 5
      %v3243 = vsel %vm2148, %v3241, %v3242
      %v3244 = vrot.slane %v3242, 4
      %v3245 = vrot.slane %v3146, 5
      %v3246 = vsel %vm2148, %v3244, %v3245
      %v3247 = vrot.slane %v3147, 5
      %v3248 = vrot.slane %v3247, 4
      %v3249 = vrot.slane %v3148, 5
      %v3250 = vsel %vm2148, %v3248, %v3249
      %v3251 = vrot.slane %v3249, 4
      %v3252 = vrot.slane %v3149, 5
      %v3253 = vsel %vm2148, %v3251, %v3252
      %v3254 = vrot.slane %v3150, 5
      %v3255 = vrot.slane %v3254, 4
      %v3256 = vrot.slane %v3151, 5
      %v3257 = vsel %vm2148, %v3255, %v3256
      %v3258 = vrot.slane %v3256, 4
      %v3259 = vrot.slane %v3152, 5
      %v3260 = vsel %vm2148, %v3258, %v3259
      %v3261 = vrot.slane %v3153, 5
      %v3262 = vrot.slane %v3261, 4
      %v3263 = vrot.slane %v3154, 5
      %v3264 = vsel %vm2148, %v3262, %v3263
      %v3265 = vrot.slane %v3263, 4
      %v3266 = vrot.slane %v3155, 5
      %v3267 = vsel %vm2148, %v3265, %v3266
      %v3268 = vrot.slane %v3156, 5
      %v3269 = vrot.slane %v3268, 4
      %v3270 = vrot.slane %v3157, 5
      %v3271 = vsel %vm2148, %v3269, %v3270
      %v3272 = vrot.slane %v3270, 4
      %v3273 = vrot.slane %v3158, 5
      %v3274 = vsel %vm2148, %v3272, %v3273
      %v3275 = vrot.slane %v3159, 5
      %v3276 = vrot.slane %v3275, 4
      %v3277 = vrot.slane %v3160, 5
      %v3278 = vsel %vm2148, %v3276, %v3277
      %v3279 = vrot.slane %v3277, 4
      %v3280 = vrot.slane %v3161, 5
      %v3281 = vsel %vm2148, %v3279, %v3280
      %v3282 = vrot.slane %v3162, 5
      %v3283 = vrot.slane %v3282, 4
      %v3284 = vrot.slane %v3163, 5
      %v3285 = vsel %vm2148, %v3283, %v3284
      %v3286 = vrot.slane %v3284, 4
      %v3287 = vrot.slane %v3164, 5
      %v3288 = vsel %vm2148, %v3286, %v3287
      %v3289 = vrot.slane %v3165, 5
      %v3290 = vrot.slane %v3289, 4
      %v3291 = vrot.slane %v3166, 5
      %v3292 = vsel %vm2148, %v3290, %v3291
      %v3293 = vrot.slane %v3291, 4
      %v3294 = vrot.slane %v3167, 5
      %v3295 = vsel %vm2148, %v3293, %v3294
      %v3296 = vrot.slane %v3168, 5
      %v3297 = vrot.slane %v3296, 4
      %v3298 = vrot.slane %v3169, 5
      %v3299 = vsel %vm2148, %v3297, %v3298
      %v3300 = vrot.slane %v3298, 4
      %v3301 = vrot.slane %v3170, 5
      %v3302 = vsel %vm2148, %v3300, %v3301
      %v3303 = vrot.slane %v3171, 5
      %v3304 = vrot.slane %v3303, 4
      %v3305 = vrot.slane %v3172, 5
      %v3306 = vsel %vm2148, %v3304, %v3305
      %v3307 = vrot.slane %v3305, 4
      %v3308 = vrot.slane %v3173, 5
      %v3309 = vsel %vm2148, %v3307, %v3308
      %v3310 = vrot.slane %v3174, 5
      %v3311 = vrot.slane %v3310, 4
      %v3312 = vrot.slane %v3175, 5
      %v3313 = vsel %vm2148, %v3311, %v3312
      %v3314 = vrot.slane %v3312, 4
      %v3315 = vrot.slane %v3176, 5
      %v3316 = vsel %vm2148, %v3314, %v3315
      %v3317 = vrot.slane %v3177, 5
      %v3318 = vrot.slane %v3317, 4
      %v3319 = vrot.slane %v3178, 5
      %v3320 = vsel %vm2148, %v3318, %v3319
      %v3321 = vrot.slane %v3319, 4
      %v3322 = vrot.slane %v3179, 5
      %v3323 = vsel %vm2148, %v3321, %v3322
      %v3324 = vrot.slane %v3180, 5
      %v3325 = vrot.slane %v3324, 4
      %v3326 = vrot.slane %v3181, 5
      %v3327 = vsel %vm2148, %v3325, %v3326
      %v3328 = vrot.slane %v3326, 4
      %v3329 = vrot.slane %v3182, 5
      %v3330 = vsel %vm2148, %v3328, %v3329
      %v3331 = vrot.slane %v3183, 5
      %v3332 = vrot.slane %v3331, 4
      %v3333 = vrot.slane %v3184, 5
      %v3334 = vsel %vm2148, %v3332, %v3333
      %v3335 = vrot.slane %v3333, 4
      %v3336 = vrot.slane %v3185, 5
      %v3337 = vsel %vm2148, %v3335, %v3336
      %v3338 = vrot.slane %v3186, 5
      %v3339 = vrot.slane %v3338, 4
      %v3340 = vrot.slane %v3187, 5
      %v3341 = vsel %vm2148, %v3339, %v3340
      %v3342 = vrot.slane %v3340, 4
      %v3343 = vrot.slane %v3188, 5
      %v3344 = vsel %vm2148, %v3342, %v3343
      %v3345 = vrot.slane %v3189, 5
      %v3346 = vrot.slane %v3345, 4
      %v3347 = vrot.slane %v3190, 5
      %v3348 = vsel %vm2148, %v3346, %v3347
      %v3349 = vrot.slane %v3347, 4
      %v3350 = vrot.slane %v3191, 5
      %v3351 = vsel %vm2148, %v3349, %v3350
      %3352 = vrot.lane.b32.xlu0 %v3243, 40
      %v3353 = vpop.permute.xlu0 %3352
      %3354 = vrot.lane.b32.xlu0 %v3246, 40
      %v3355 = vpop.permute.xlu0 %3354
      %3356 = vrot.lane.b32.xlu0 %v3250, 40
      %v3357 = vpop.permute.xlu0 %3356
      %3358 = vrot.lane.b32.xlu0 %v3253, 40
      %v3359 = vpop.permute.xlu0 %3358
      %3360 = vrot.lane.b32.xlu0 %v3257, 40
      %v3361 = vpop.permute.xlu0 %3360
      %3362 = vrot.lane.b32.xlu0 %v3260, 40
      %v3363 = vpop.permute.xlu0 %3362
      %3364 = vrot.lane.b32.xlu0 %v3264, 40
      %v3365 = vpop.permute.xlu0 %3364
      %3366 = vrot.lane.b32.xlu0 %v3267, 40
      %v3367 = vpop.permute.xlu0 %3366
      %3368 = vrot.lane.b32.xlu0 %v3271, 40
      %v3369 = vpop.permute.xlu0 %3368
      %3370 = vrot.lane.b32.xlu0 %v3274, 40
      %v3371 = vpop.permute.xlu0 %3370
      %3372 = vrot.lane.b32.xlu0 %v3278, 40
      %v3373 = vpop.permute.xlu0 %3372
      %3374 = vrot.lane.b32.xlu0 %v3281, 40
      %v3375 = vpop.permute.xlu0 %3374
      %3376 = vrot.lane.b32.xlu0 %v3285, 40
      %v3377 = vpop.permute.xlu0 %3376
      %3378 = vrot.lane.b32.xlu0 %v3288, 40
      %v3379 = vpop.permute.xlu0 %3378
      %3380 = vrot.lane.b32.xlu0 %v3292, 40
      %v3381 = vpop.permute.xlu0 %3380
      %3382 = vrot.lane.b32.xlu0 %v3295, 40
      %v3383 = vpop.permute.xlu0 %3382
      %3384 = vrot.lane.b32.xlu0 %v3299, 40
      %v3385 = vpop.permute.xlu0 %3384
      %3386 = vrot.lane.b32.xlu0 %v3302, 40
      %v3387 = vpop.permute.xlu0 %3386
      %3388 = vrot.lane.b32.xlu0 %v3306, 40
      %v3389 = vpop.permute.xlu0 %3388
      %3390 = vrot.lane.b32.xlu0 %v3309, 40
      %v3391 = vpop.permute.xlu0 %3390
      %3392 = vrot.lane.b32.xlu0 %v3313, 40
      %v3393 = vpop.permute.xlu0 %3392
      %3394 = vrot.lane.b32.xlu0 %v3316, 40
      %v3395 = vpop.permute.xlu0 %3394
      %3396 = vrot.lane.b32.xlu0 %v3320, 40
      %v3397 = vpop.permute.xlu0 %3396
      %3398 = vrot.lane.b32.xlu0 %v3323, 40
      %v3399 = vpop.permute.xlu0 %3398
      %3400 = vrot.lane.b32.xlu0 %v3327, 40
      %v3401 = vpop.permute.xlu0 %3400
      %3402 = vrot.lane.b32.xlu0 %v3330, 40
      %v3403 = vpop.permute.xlu0 %3402
      %3404 = vrot.lane.b32.xlu0 %v3334, 40
      %v3405 = vpop.permute.xlu0 %3404
      %3406 = vrot.lane.b32.xlu0 %v3337, 40
      %v3407 = vpop.permute.xlu0 %3406
      %3408 = vrot.lane.b32.xlu0 %v3341, 40
      %v3409 = vpop.permute.xlu0 %3408
      %3410 = vrot.lane.b32.xlu0 %v3344, 40
      %v3411 = vpop.permute.xlu0 %3410
      %3412 = vrot.lane.b32.xlu0 %v3348, 40
      %v3413 = vpop.permute.xlu0 %3412
      %3414 = vrot.lane.b32.xlu0 %v3351, 40
      %v3415 = vpop.permute.xlu0 %3414
      %vm3448 = vcmask 388416
      %3449 = vst.msk [vmem:[#allocation4] sm:$0xf] %vm3448, %v3353
      %3450 = vst.msk [vmem:[#allocation4 + $0x4] sm:$0xf] %vm3448, %v3355
      %3451 = vst.msk [vmem:[#allocation4 + $0x8] sm:$0xf] %vm3448, %v3357
      %3452 = vst.msk [vmem:[#allocation4 + $0xc] sm:$0xf] %vm3448, %v3359
      %3453 = vst.msk [vmem:[#allocation4 + $0x10] sm:$0xf] %vm3448, %v3361
      %3454 = vst.msk [vmem:[#allocation4 + $0x14] sm:$0xf] %vm3448, %v3363
      %3455 = vst.msk [vmem:[#allocation4 + $0x18] sm:$0xf] %vm3448, %v3365
      %3456 = vst.msk [vmem:[#allocation4 + $0x1c] sm:$0xf] %vm3448, %v3367
      %3457 = vst.msk [vmem:[#allocation4 + $0x20] sm:$0xf] %vm3448, %v3369
      %3458 = vst.msk [vmem:[#allocation4 + $0x24] sm:$0xf] %vm3448, %v3371
      %3459 = vst.msk [vmem:[#allocation4 + $0x28] sm:$0xf] %vm3448, %v3373
      %3460 = vst.msk [vmem:[#allocation4 + $0x2c] sm:$0xf] %vm3448, %v3375
      %3461 = vst.msk [vmem:[#allocation4 + $0x30] sm:$0xf] %vm3448, %v3377
      %3462 = vst.msk [vmem:[#allocation4 + $0x34] sm:$0xf] %vm3448, %v3379
      %3463 = vst.msk [vmem:[#allocation4 + $0x38] sm:$0xf] %vm3448, %v3381
      %3464 = vst.msk [vmem:[#allocation4 + $0x3c] sm:$0xf] %vm3448, %v3383
      %3465 = vst.msk [vmem:[#allocation4 + $0x40] sm:$0xf] %vm3448, %v3385
      %3466 = vst.msk [vmem:[#allocation4 + $0x44] sm:$0xf] %vm3448, %v3387
      %3467 = vst.msk [vmem:[#allocation4 + $0x48] sm:$0xf] %vm3448, %v3389
      %3468 = vst.msk [vmem:[#allocation4 + $0x4c] sm:$0xf] %vm3448, %v3391
      %3469 = vst.msk [vmem:[#allocation4 + $0x50] sm:$0xf] %vm3448, %v3393
      %3470 = vst.msk [vmem:[#allocation4 + $0x54] sm:$0xf] %vm3448, %v3395
      %3471 = vst.msk [vmem:[#allocation4 + $0x58] sm:$0xf] %vm3448, %v3397
      %3472 = vst.msk [vmem:[#allocation4 + $0x5c] sm:$0xf] %vm3448, %v3399
      %3473 = vst.msk [vmem:[#allocation4 + $0x60] sm:$0xf] %vm3448, %v3401
      %3474 = vst.msk [vmem:[#allocation4 + $0x64] sm:$0xf] %vm3448, %v3403
      %3475 = vst.msk [vmem:[#allocation4 + $0x68] sm:$0xf] %vm3448, %v3405
      %3476 = vst.msk [vmem:[#allocation4 + $0x6c] sm:$0xf] %vm3448, %v3407
      %3477 = vst.msk [vmem:[#allocation4 + $0x70] sm:$0xf] %vm3448, %v3409
      %3478 = vst.msk [vmem:[#allocation4 + $0x74] sm:$0xf] %vm3448, %v3411
      %3479 = vst.msk [vmem:[#allocation4 + $0x78] sm:$0xf] %vm3448, %v3413
      %3480 = vst.msk [vmem:[#allocation4 + $0x7c] sm:$0xf] %vm3448, %v3415
      %s3481 = scalar_lea.vmem [#allocation2], 24
      %v3482 = vld [vmem:[%s3481] sm:$0xf]
      %v3483 = vld [vmem:[%s3481 + $0x4] sm:$0xf]
      %v3484 = vld [vmem:[%s3481 + $0xc] sm:$0xf]
      %v3485 = vld [vmem:[%s3481 + $0x10] sm:$0xf]
      %v3486 = vld [vmem:[%s3481 + $0x18] sm:$0xf]
      %v3487 = vld [vmem:[%s3481 + $0x1c] sm:$0xf]
      %v3488 = vld [vmem:[%s3481 + $0x24] sm:$0xf]
      %v3489 = vld [vmem:[%s3481 + $0x28] sm:$0xf]
      %v3490 = vld [vmem:[%s3481 + $0x30] sm:$0xf]
      %v3491 = vld [vmem:[%s3481 + $0x34] sm:$0xf]
      %v3492 = vld [vmem:[%s3481 + $0x3c] sm:$0xf]
      %v3493 = vld [vmem:[%s3481 + $0x40] sm:$0xf]
      %v3494 = vld [vmem:[%s3481 + $0x48] sm:$0xf]
      %v3495 = vld [vmem:[%s3481 + $0x4c] sm:$0xf]
      %v3496 = vld [vmem:[%s3481 + $0x54] sm:$0xf]
      %v3497 = vld [vmem:[%s3481 + $0x58] sm:$0xf]
      %v3498 = vld [vmem:[%s3481 + $0x60] sm:$0xf]
      %v3499 = vld [vmem:[%s3481 + $0x64] sm:$0xf]
      %v3500 = vld [vmem:[%s3481 + $0x6c] sm:$0xf]
      %v3501 = vld [vmem:[%s3481 + $0x70] sm:$0xf]
      %v3502 = vld [vmem:[%s3481 + $0x78] sm:$0xf]
      %v3503 = vld [vmem:[%s3481 + $0x7c] sm:$0xf]
      %v3504 = vld [vmem:[%s3481 + $0x84] sm:$0xf]
      %v3505 = vld [vmem:[%s3481 + $0x88] sm:$0xf]
      %v3506 = vld [vmem:[%s3481 + $0x90] sm:$0xf]
      %v3507 = vld [vmem:[%s3481 + $0x94] sm:$0xf]
      %v3508 = vld [vmem:[%s3481 + $0x9c] sm:$0xf]
      %v3509 = vld [vmem:[%s3481 + $0xa0] sm:$0xf]
      %v3510 = vld [vmem:[%s3481 + $0xa8] sm:$0xf]
      %v3511 = vld [vmem:[%s3481 + $0xac] sm:$0xf]
      %v3512 = vld [vmem:[%s3481 + $0xb4] sm:$0xf]
      %v3513 = vld [vmem:[%s3481 + $0xb8] sm:$0xf]
      %3546 = vrot.lane.b32.xlu0 %v3482, 48
      %v3547 = vpop.permute.xlu0 %3546
      %3548 = vrot.lane.b32.xlu0 %v3483, 48
      %v3549 = vpop.permute.xlu0 %3548
      %3550 = vrot.lane.b32.xlu0 %v3484, 48
      %v3551 = vpop.permute.xlu0 %3550
      %3552 = vrot.lane.b32.xlu0 %v3485, 48
      %v3553 = vpop.permute.xlu0 %3552
      %3554 = vrot.lane.b32.xlu0 %v3486, 48
      %v3555 = vpop.permute.xlu0 %3554
      %3556 = vrot.lane.b32.xlu0 %v3487, 48
      %v3557 = vpop.permute.xlu0 %3556
      %3558 = vrot.lane.b32.xlu0 %v3488, 48
      %v3559 = vpop.permute.xlu0 %3558
      %3560 = vrot.lane.b32.xlu0 %v3489, 48
      %v3561 = vpop.permute.xlu0 %3560
      %3562 = vrot.lane.b32.xlu0 %v3490, 48
      %v3563 = vpop.permute.xlu0 %3562
      %3564 = vrot.lane.b32.xlu0 %v3491, 48
      %v3565 = vpop.permute.xlu0 %3564
      %3566 = vrot.lane.b32.xlu0 %v3492, 48
      %v3567 = vpop.permute.xlu0 %3566
      %3568 = vrot.lane.b32.xlu0 %v3493, 48
      %v3569 = vpop.permute.xlu0 %3568
      %3570 = vrot.lane.b32.xlu0 %v3494, 48
      %v3571 = vpop.permute.xlu0 %3570
      %3572 = vrot.lane.b32.xlu0 %v3495, 48
      %v3573 = vpop.permute.xlu0 %3572
      %3574 = vrot.lane.b32.xlu0 %v3496, 48
      %v3575 = vpop.permute.xlu0 %3574
      %3576 = vrot.lane.b32.xlu0 %v3497, 48
      %v3577 = vpop.permute.xlu0 %3576
      %3578 = vrot.lane.b32.xlu0 %v3498, 48
      %v3579 = vpop.permute.xlu0 %3578
      %3580 = vrot.lane.b32.xlu0 %v3499, 48
      %v3581 = vpop.permute.xlu0 %3580
      %3582 = vrot.lane.b32.xlu0 %v3500, 48
      %v3583 = vpop.permute.xlu0 %3582
      %3584 = vrot.lane.b32.xlu0 %v3501, 48
      %v3585 = vpop.permute.xlu0 %3584
      %3586 = vrot.lane.b32.xlu0 %v3502, 48
      %v3587 = vpop.permute.xlu0 %3586
      %3588 = vrot.lane.b32.xlu0 %v3503, 48
      %v3589 = vpop.permute.xlu0 %3588
      %3590 = vrot.lane.b32.xlu0 %v3504, 48
      %v3591 = vpop.permute.xlu0 %3590
      %3592 = vrot.lane.b32.xlu0 %v3505, 48
      %v3593 = vpop.permute.xlu0 %3592
      %3594 = vrot.lane.b32.xlu0 %v3506, 48
      %v3595 = vpop.permute.xlu0 %3594
      %3596 = vrot.lane.b32.xlu0 %v3507, 48
      %v3597 = vpop.permute.xlu0 %3596
      %3598 = vrot.lane.b32.xlu0 %v3508, 48
      %v3599 = vpop.permute.xlu0 %3598
      %3600 = vrot.lane.b32.xlu0 %v3509, 48
      %v3601 = vpop.permute.xlu0 %3600
      %3602 = vrot.lane.b32.xlu0 %v3510, 48
      %v3603 = vpop.permute.xlu0 %3602
      %3604 = vrot.lane.b32.xlu0 %v3511, 48
      %v3605 = vpop.permute.xlu0 %3604
      %3606 = vrot.lane.b32.xlu0 %v3512, 48
      %v3607 = vpop.permute.xlu0 %3606
      %3608 = vrot.lane.b32.xlu0 %v3513, 48
      %v3609 = vpop.permute.xlu0 %3608
      %vm3642 = vcmask 454016
      %3643 = vst.msk [vmem:[#allocation4] sm:$0xf] %vm3642, %v3547
      %3644 = vst.msk [vmem:[#allocation4 + $0x4] sm:$0xf] %vm3642, %v3549
      %3645 = vst.msk [vmem:[#allocation4 + $0x8] sm:$0xf] %vm3642, %v3551
      %3646 = vst.msk [vmem:[#allocation4 + $0xc] sm:$0xf] %vm3642, %v3553
      %3647 = vst.msk [vmem:[#allocation4 + $0x10] sm:$0xf] %vm3642, %v3555
      %3648 = vst.msk [vmem:[#allocation4 + $0x14] sm:$0xf] %vm3642, %v3557
      %3649 = vst.msk [vmem:[#allocation4 + $0x18] sm:$0xf] %vm3642, %v3559
      %3650 = vst.msk [vmem:[#allocation4 + $0x1c] sm:$0xf] %vm3642, %v3561
      %3651 = vst.msk [vmem:[#allocation4 + $0x20] sm:$0xf] %vm3642, %v3563
      %3652 = vst.msk [vmem:[#allocation4 + $0x24] sm:$0xf] %vm3642, %v3565
      %3653 = vst.msk [vmem:[#allocation4 + $0x28] sm:$0xf] %vm3642, %v3567
      %3654 = vst.msk [vmem:[#allocation4 + $0x2c] sm:$0xf] %vm3642, %v3569
      %3655 = vst.msk [vmem:[#allocation4 + $0x30] sm:$0xf] %vm3642, %v3571
      %3656 = vst.msk [vmem:[#allocation4 + $0x34] sm:$0xf] %vm3642, %v3573
      %3657 = vst.msk [vmem:[#allocation4 + $0x38] sm:$0xf] %vm3642, %v3575
      %3658 = vst.msk [vmem:[#allocation4 + $0x3c] sm:$0xf] %vm3642, %v3577
      %3659 = vst.msk [vmem:[#allocation4 + $0x40] sm:$0xf] %vm3642, %v3579
      %3660 = vst.msk [vmem:[#allocation4 + $0x44] sm:$0xf] %vm3642, %v3581
      %3661 = vst.msk [vmem:[#allocation4 + $0x48] sm:$0xf] %vm3642, %v3583
      %3662 = vst.msk [vmem:[#allocation4 + $0x4c] sm:$0xf] %vm3642, %v3585
      %3663 = vst.msk [vmem:[#allocation4 + $0x50] sm:$0xf] %vm3642, %v3587
      %3664 = vst.msk [vmem:[#allocation4 + $0x54] sm:$0xf] %vm3642, %v3589
      %3665 = vst.msk [vmem:[#allocation4 + $0x58] sm:$0xf] %vm3642, %v3591
      %3666 = vst.msk [vmem:[#allocation4 + $0x5c] sm:$0xf] %vm3642, %v3593
      %3667 = vst.msk [vmem:[#allocation4 + $0x60] sm:$0xf] %vm3642, %v3595
      %3668 = vst.msk [vmem:[#allocation4 + $0x64] sm:$0xf] %vm3642, %v3597
      %3669 = vst.msk [vmem:[#allocation4 + $0x68] sm:$0xf] %vm3642, %v3599
      %3670 = vst.msk [vmem:[#allocation4 + $0x6c] sm:$0xf] %vm3642, %v3601
      %3671 = vst.msk [vmem:[#allocation4 + $0x70] sm:$0xf] %vm3642, %v3603
      %3672 = vst.msk [vmem:[#allocation4 + $0x74] sm:$0xf] %vm3642, %v3605
      %3673 = vst.msk [vmem:[#allocation4 + $0x78] sm:$0xf] %vm3642, %v3607
      %3674 = vst.msk [vmem:[#allocation4 + $0x7c] sm:$0xf] %vm3642, %v3609
      %v3675 = vld [vmem:[%s3481] sm:$0xf]
      %v3676 = vld [vmem:[%s3481 + $0x4] sm:$0xf]
      %v3677 = vld [vmem:[%s3481 + $0x8] sm:$0x1]
      %v3678 = vld [vmem:[%s3481 + $0xc] sm:$0xf]
      %v3679 = vld [vmem:[%s3481 + $0x10] sm:$0xf]
      %v3680 = vld [vmem:[%s3481 + $0x14] sm:$0x1]
      %v3681 = vld [vmem:[%s3481 + $0x18] sm:$0xf]
      %v3682 = vld [vmem:[%s3481 + $0x1c] sm:$0xf]
      %v3683 = vld [vmem:[%s3481 + $0x20] sm:$0x1]
      %v3684 = vld [vmem:[%s3481 + $0x24] sm:$0xf]
      %v3685 = vld [vmem:[%s3481 + $0x28] sm:$0xf]
      %v3686 = vld [vmem:[%s3481 + $0x2c] sm:$0x1]
      %v3687 = vld [vmem:[%s3481 + $0x30] sm:$0xf]
      %v3688 = vld [vmem:[%s3481 + $0x34] sm:$0xf]
      %v3689 = vld [vmem:[%s3481 + $0x38] sm:$0x1]
      %v3690 = vld [vmem:[%s3481 + $0x3c] sm:$0xf]
      %v3691 = vld [vmem:[%s3481 + $0x40] sm:$0xf]
      %v3692 = vld [vmem:[%s3481 + $0x44] sm:$0x1]
      %v3693 = vld [vmem:[%s3481 + $0x48] sm:$0xf]
      %v3694 = vld [vmem:[%s3481 + $0x4c] sm:$0xf]
      %v3695 = vld [vmem:[%s3481 + $0x50] sm:$0x1]
      %v3696 = vld [vmem:[%s3481 + $0x54] sm:$0xf]
      %v3697 = vld [vmem:[%s3481 + $0x58] sm:$0xf]
      %v3698 = vld [vmem:[%s3481 + $0x5c] sm:$0x1]
      %v3699 = vld [vmem:[%s3481 + $0x60] sm:$0xf]
      %v3700 = vld [vmem:[%s3481 + $0x64] sm:$0xf]
      %v3701 = vld [vmem:[%s3481 + $0x68] sm:$0x1]
      %v3702 = vld [vmem:[%s3481 + $0x6c] sm:$0xf]
      %v3703 = vld [vmem:[%s3481 + $0x70] sm:$0xf]
      %v3704 = vld [vmem:[%s3481 + $0x74] sm:$0x1]
      %v3705 = vld [vmem:[%s3481 + $0x78] sm:$0xf]
      %v3706 = vld [vmem:[%s3481 + $0x7c] sm:$0xf]
      %v3707 = vld [vmem:[%s3481 + $0x80] sm:$0x1]
      %v3708 = vld [vmem:[%s3481 + $0x84] sm:$0xf]
      %v3709 = vld [vmem:[%s3481 + $0x88] sm:$0xf]
      %v3710 = vld [vmem:[%s3481 + $0x8c] sm:$0x1]
      %v3711 = vld [vmem:[%s3481 + $0x90] sm:$0xf]
      %v3712 = vld [vmem:[%s3481 + $0x94] sm:$0xf]
      %v3713 = vld [vmem:[%s3481 + $0x98] sm:$0x1]
      %v3714 = vld [vmem:[%s3481 + $0x9c] sm:$0xf]
      %v3715 = vld [vmem:[%s3481 + $0xa0] sm:$0xf]
      %v3716 = vld [vmem:[%s3481 + $0xa4] sm:$0x1]
      %v3717 = vld [vmem:[%s3481 + $0xa8] sm:$0xf]
      %v3718 = vld [vmem:[%s3481 + $0xac] sm:$0xf]
      %v3719 = vld [vmem:[%s3481 + $0xb0] sm:$0x1]
      %v3720 = vld [vmem:[%s3481 + $0xb4] sm:$0xf]
      %v3721 = vld [vmem:[%s3481 + $0xb8] sm:$0xf]
      %v3722 = vld [vmem:[%s3481 + $0xbc] sm:$0x1]
      %v3724 = vshrl.u32 %v3675, 16
      %v3726 = vrot.slane %v3724, 4
      %v3727 = vshll.u32 %v3675, 16
      %v3729 = vrot.slane %v3727, 5
      %v3730 = vor.u32 %v3726, %v3729
      %v3731 = vrot.slane %v3730, 4
      %v3733 = vshll.u32 %v3676, 16
      %v3735 = vrot.slane %v3733, 5
      %v3736 = vsel %vm1536, %v3731, %v3735
      %v3737 = vshrl.u32 %v3676, 16
      %v3739 = vrot.slane %v3737, 4
      %v3740 = vor.u32 %v3739, %v3735
      %v3741 = vrot.slane %v3740, 4
      %v3743 = vshll.u32 %v3677, 16
      %v3745 = vrot.slane %v3743, 5
      %v3746 = vsel %vm1536, %v3741, %v3745
      %v3748 = vshrl.u32 %v3678, 16
      %v3750 = vrot.slane %v3748, 4
      %v3751 = vshll.u32 %v3678, 16
      %v3753 = vrot.slane %v3751, 5
      %v3754 = vor.u32 %v3750, %v3753
      %v3755 = vrot.slane %v3754, 4
      %v3757 = vshll.u32 %v3679, 16
      %v3759 = vrot.slane %v3757, 5
      %v3760 = vsel %vm1536, %v3755, %v3759
      %v3761 = vshrl.u32 %v3679, 16
      %v3763 = vrot.slane %v3761, 4
      %v3764 = vor.u32 %v3763, %v3759
      %v3765 = vrot.slane %v3764, 4
      %v3767 = vshll.u32 %v3680, 16
      %v3769 = vrot.slane %v3767, 5
      %v3770 = vsel %vm1536, %v3765, %v3769
      %v3772 = vshrl.u32 %v3681, 16
      %v3774 = vrot.slane %v3772, 4
      %v3775 = vshll.u32 %v3681, 16
      %v3777 = vrot.slane %v3775, 5
      %v3778 = vor.u32 %v3774, %v3777
      %v3779 = vrot.slane %v3778, 4
      %v3781 = vshll.u32 %v3682, 16
      %v3783 = vrot.slane %v3781, 5
      %v3784 = vsel %vm1536, %v3779, %v3783
      %v3785 = vshrl.u32 %v3682, 16
      %v3787 = vrot.slane %v3785, 4
      %v3788 = vor.u32 %v3787, %v3783
      %v3789 = vrot.slane %v3788, 4
      %v3791 = vshll.u32 %v3683, 16
      %v3793 = vrot.slane %v3791, 5
      %v3794 = vsel %vm1536, %v3789, %v3793
      %v3796 = vshrl.u32 %v3684, 16
      %v3798 = vrot.slane %v3796, 4
      %v3799 = vshll.u32 %v3684, 16
      %v3801 = vrot.slane %v3799, 5
      %v3802 = vor.u32 %v3798, %v3801
      %v3803 = vrot.slane %v3802, 4
      %v3805 = vshll.u32 %v3685, 16
      %v3807 = vrot.slane %v3805, 5
      %v3808 = vsel %vm1536, %v3803, %v3807
      %v3809 = vshrl.u32 %v3685, 16
      %v3811 = vrot.slane %v3809, 4
      %v3812 = vor.u32 %v3811, %v3807
      %v3813 = vrot.slane %v3812, 4
      %v3815 = vshll.u32 %v3686, 16
      %v3817 = vrot.slane %v3815, 5
      %v3818 = vsel %vm1536, %v3813, %v3817
      %v3820 = vshrl.u32 %v3687, 16
      %v3822 = vrot.slane %v3820, 4
      %v3823 = vshll.u32 %v3687, 16
      %v3825 = vrot.slane %v3823, 5
      %v3826 = vor.u32 %v3822, %v3825
      %v3827 = vrot.slane %v3826, 4
      %v3829 = vshll.u32 %v3688, 16
      %v3831 = vrot.slane %v3829, 5
      %v3832 = vsel %vm1536, %v3827, %v3831
      %v3833 = vshrl.u32 %v3688, 16
      %v3835 = vrot.slane %v3833, 4
      %v3836 = vor.u32 %v3835, %v3831
      %v3837 = vrot.slane %v3836, 4
      %v3839 = vshll.u32 %v3689, 16
      %v3841 = vrot.slane %v3839, 5
      %v3842 = vsel %vm1536, %v3837, %v3841
      %v3844 = vshrl.u32 %v3690, 16
      %v3846 = vrot.slane %v3844, 4
      %v3847 = vshll.u32 %v3690, 16
      %v3849 = vrot.slane %v3847, 5
      %v3850 = vor.u32 %v3846, %v3849
      %v3851 = vrot.slane %v3850, 4
      %v3853 = vshll.u32 %v3691, 16
      %v3855 = vrot.slane %v3853, 5
      %v3856 = vsel %vm1536, %v3851, %v3855
      %v3857 = vshrl.u32 %v3691, 16
      %v3859 = vrot.slane %v3857, 4
      %v3860 = vor.u32 %v3859, %v3855
      %v3861 = vrot.slane %v3860, 4
      %v3863 = vshll.u32 %v3692, 16
      %v3865 = vrot.slane %v3863, 5
      %v3866 = vsel %vm1536, %v3861, %v3865
      %v3868 = vshrl.u32 %v3693, 16
      %v3870 = vrot.slane %v3868, 4
      %v3871 = vshll.u32 %v3693, 16
      %v3873 = vrot.slane %v3871, 5
      %v3874 = vor.u32 %v3870, %v3873
      %v3875 = vrot.slane %v3874, 4
      %v3877 = vshll.u32 %v3694, 16
      %v3879 = vrot.slane %v3877, 5
      %v3880 = vsel %vm1536, %v3875, %v3879
      %v3881 = vshrl.u32 %v3694, 16
      %v3883 = vrot.slane %v3881, 4
      %v3884 = vor.u32 %v3883, %v3879
      %v3885 = vrot.slane %v3884, 4
      %v3887 = vshll.u32 %v3695, 16
      %v3889 = vrot.slane %v3887, 5
      %v3890 = vsel %vm1536, %v3885, %v3889
      %v3892 = vshrl.u32 %v3696, 16
      %v3894 = vrot.slane %v3892, 4
      %v3895 = vshll.u32 %v3696, 16
      %v3897 = vrot.slane %v3895, 5
      %v3898 = vor.u32 %v3894, %v3897
      %v3899 = vrot.slane %v3898, 4
      %v3901 = vshll.u32 %v3697, 16
      %v3903 = vrot.slane %v3901, 5
      %v3904 = vsel %vm1536, %v3899, %v3903
      %v3905 = vshrl.u32 %v3697, 16
      %v3907 = vrot.slane %v3905, 4
      %v3908 = vor.u32 %v3907, %v3903
      %v3909 = vrot.slane %v3908, 4
      %v3911 = vshll.u32 %v3698, 16
      %v3913 = vrot.slane %v3911, 5
      %v3914 = vsel %vm1536, %v3909, %v3913
      %v3916 = vshrl.u32 %v3699, 16
      %v3918 = vrot.slane %v3916, 4
      %v3919 = vshll.u32 %v3699, 16
      %v3921 = vrot.slane %v3919, 5
      %v3922 = vor.u32 %v3918, %v3921
      %v3923 = vrot.slane %v3922, 4
      %v3925 = vshll.u32 %v3700, 16
      %v3927 = vrot.slane %v3925, 5
      %v3928 = vsel %vm1536, %v3923, %v3927
      %v3929 = vshrl.u32 %v3700, 16
      %v3931 = vrot.slane %v3929, 4
      %v3932 = vor.u32 %v3931, %v3927
      %v3933 = vrot.slane %v3932, 4
      %v3935 = vshll.u32 %v3701, 16
      %v3937 = vrot.slane %v3935, 5
      %v3938 = vsel %vm1536, %v3933, %v3937
      %v3940 = vshrl.u32 %v3702, 16
      %v3942 = vrot.slane %v3940, 4
      %v3943 = vshll.u32 %v3702, 16
      %v3945 = vrot.slane %v3943, 5
      %v3946 = vor.u32 %v3942, %v3945
      %v3947 = vrot.slane %v3946, 4
      %v3949 = vshll.u32 %v3703, 16
      %v3951 = vrot.slane %v3949, 5
      %v3952 = vsel %vm1536, %v3947, %v3951
      %v3953 = vshrl.u32 %v3703, 16
      %v3955 = vrot.slane %v3953, 4
      %v3956 = vor.u32 %v3955, %v3951
      %v3957 = vrot.slane %v3956, 4
      %v3959 = vshll.u32 %v3704, 16
      %v3961 = vrot.slane %v3959, 5
      %v3962 = vsel %vm1536, %v3957, %v3961
      %v3964 = vshrl.u32 %v3705, 16
      %v3966 = vrot.slane %v3964, 4
      %v3967 = vshll.u32 %v3705, 16
      %v3969 = vrot.slane %v3967, 5
      %v3970 = vor.u32 %v3966, %v3969
      %v3971 = vrot.slane %v3970, 4
      %v3973 = vshll.u32 %v3706, 16
      %v3975 = vrot.slane %v3973, 5
      %v3976 = vsel %vm1536, %v3971, %v3975
      %v3977 = vshrl.u32 %v3706, 16
      %v3979 = vrot.slane %v3977, 4
      %v3980 = vor.u32 %v3979, %v3975
      %v3981 = vrot.slane %v3980, 4
      %v3983 = vshll.u32 %v3707, 16
      %v3985 = vrot.slane %v3983, 5
      %v3986 = vsel %vm1536, %v3981, %v3985
      %v3988 = vshrl.u32 %v3708, 16
      %v3990 = vrot.slane %v3988, 4
      %v3991 = vshll.u32 %v3708, 16
      %v3993 = vrot.slane %v3991, 5
      %v3994 = vor.u32 %v3990, %v3993
      %v3995 = vrot.slane %v3994, 4
      %v3997 = vshll.u32 %v3709, 16
      %v3999 = vrot.slane %v3997, 5
      %v4000 = vsel %vm1536, %v3995, %v3999
      %v4001 = vshrl.u32 %v3709, 16
      %v4003 = vrot.slane %v4001, 4
      %v4004 = vor.u32 %v4003, %v3999
      %v4005 = vrot.slane %v4004, 4
      %v4007 = vshll.u32 %v3710, 16
      %v4009 = vrot.slane %v4007, 5
      %v4010 = vsel %vm1536, %v4005, %v4009
      %v4012 = vshrl.u32 %v3711, 16
      %v4014 = vrot.slane %v4012, 4
      %v4015 = vshll.u32 %v3711, 16
      %v4017 = vrot.slane %v4015, 5
      %v4018 = vor.u32 %v4014, %v4017
      %v4019 = vrot.slane %v4018, 4
      %v4021 = vshll.u32 %v3712, 16
      %v4023 = vrot.slane %v4021, 5
      %v4024 = vsel %vm1536, %v4019, %v4023
      %v4025 = vshrl.u32 %v3712, 16
      %v4027 = vrot.slane %v4025, 4
      %v4028 = vor.u32 %v4027, %v4023
      %v4029 = vrot.slane %v4028, 4
      %v4031 = vshll.u32 %v3713, 16
      %v4033 = vrot.slane %v4031, 5
      %v4034 = vsel %vm1536, %v4029, %v4033
      %v4036 = vshrl.u32 %v3714, 16
      %v4038 = vrot.slane %v4036, 4
      %v4039 = vshll.u32 %v3714, 16
      %v4041 = vrot.slane %v4039, 5
      %v4042 = vor.u32 %v4038, %v4041
      %v4043 = vrot.slane %v4042, 4
      %v4045 = vshll.u32 %v3715, 16
      %v4047 = vrot.slane %v4045, 5
      %v4048 = vsel %vm1536, %v4043, %v4047
      %v4049 = vshrl.u32 %v3715, 16
      %v4051 = vrot.slane %v4049, 4
      %v4052 = vor.u32 %v4051, %v4047
      %v4053 = vrot.slane %v4052, 4
      %v4055 = vshll.u32 %v3716, 16
      %v4057 = vrot.slane %v4055, 5
      %v4058 = vsel %vm1536, %v4053, %v4057
      %v4060 = vshrl.u32 %v3717, 16
      %v4062 = vrot.slane %v4060, 4
      %v4063 = vshll.u32 %v3717, 16
      %v4065 = vrot.slane %v4063, 5
      %v4066 = vor.u32 %v4062, %v4065
      %v4067 = vrot.slane %v4066, 4
      %v4069 = vshll.u32 %v3718, 16
      %v4071 = vrot.slane %v4069, 5
      %v4072 = vsel %vm1536, %v4067, %v4071
      %v4073 = vshrl.u32 %v3718, 16
      %v4075 = vrot.slane %v4073, 4
      %v4076 = vor.u32 %v4075, %v4071
      %v4077 = vrot.slane %v4076, 4
      %v4079 = vshll.u32 %v3719, 16
      %v4081 = vrot.slane %v4079, 5
      %v4082 = vsel %vm1536, %v4077, %v4081
      %v4084 = vshrl.u32 %v3720, 16
      %v4086 = vrot.slane %v4084, 4
      %v4087 = vshll.u32 %v3720, 16
      %v4089 = vrot.slane %v4087, 5
      %v4090 = vor.u32 %v4086, %v4089
      %v4091 = vrot.slane %v4090, 4
      %v4093 = vshll.u32 %v3721, 16
      %v4095 = vrot.slane %v4093, 5
      %v4096 = vsel %vm1536, %v4091, %v4095
      %v4097 = vshrl.u32 %v3721, 16
      %v4099 = vrot.slane %v4097, 4
      %v4100 = vor.u32 %v4099, %v4095
      %v4101 = vrot.slane %v4100, 4
      %v4103 = vshll.u32 %v3722, 16
      %v4105 = vrot.slane %v4103, 5
      %v4106 = vsel %vm1536, %v4101, %v4105
      %4107 = vrot.lane.b32.xlu0 %v3736, 56
      %v4108 = vpop.permute.xlu0 %4107
      %4109 = vrot.lane.b32.xlu0 %v3746, 56
      %v4110 = vpop.permute.xlu0 %4109
      %4111 = vrot.lane.b32.xlu0 %v3760, 56
      %v4112 = vpop.permute.xlu0 %4111
      %4113 = vrot.lane.b32.xlu0 %v3770, 56
      %v4114 = vpop.permute.xlu0 %4113
      %4115 = vrot.lane.b32.xlu0 %v3784, 56
      %v4116 = vpop.permute.xlu0 %4115
      %4117 = vrot.lane.b32.xlu0 %v3794, 56
      %v4118 = vpop.permute.xlu0 %4117
      %4119 = vrot.lane.b32.xlu0 %v3808, 56
      %v4120 = vpop.permute.xlu0 %4119
      %4121 = vrot.lane.b32.xlu0 %v3818, 56
      %v4122 = vpop.permute.xlu0 %4121
      %4123 = vrot.lane.b32.xlu0 %v3832, 56
      %v4124 = vpop.permute.xlu0 %4123
      %4125 = vrot.lane.b32.xlu0 %v3842, 56
      %v4126 = vpop.permute.xlu0 %4125
      %4127 = vrot.lane.b32.xlu0 %v3856, 56
      %v4128 = vpop.permute.xlu0 %4127
      %4129 = vrot.lane.b32.xlu0 %v3866, 56
      %v4130 = vpop.permute.xlu0 %4129
      %4131 = vrot.lane.b32.xlu0 %v3880, 56
      %v4132 = vpop.permute.xlu0 %4131
      %4133 = vrot.lane.b32.xlu0 %v3890, 56
      %v4134 = vpop.permute.xlu0 %4133
      %4135 = vrot.lane.b32.xlu0 %v3904, 56
      %v4136 = vpop.permute.xlu0 %4135
      %4137 = vrot.lane.b32.xlu0 %v3914, 56
      %v4138 = vpop.permute.xlu0 %4137
      %4139 = vrot.lane.b32.xlu0 %v3928, 56
      %v4140 = vpop.permute.xlu0 %4139
      %4141 = vrot.lane.b32.xlu0 %v3938, 56
      %v4142 = vpop.permute.xlu0 %4141
      %4143 = vrot.lane.b32.xlu0 %v3952, 56
      %v4144 = vpop.permute.xlu0 %4143
      %4145 = vrot.lane.b32.xlu0 %v3962, 56
      %v4146 = vpop.permute.xlu0 %4145
      %4147 = vrot.lane.b32.xlu0 %v3976, 56
      %v4148 = vpop.permute.xlu0 %4147
      %4149 = vrot.lane.b32.xlu0 %v3986, 56
      %v4150 = vpop.permute.xlu0 %4149
      %4151 = vrot.lane.b32.xlu0 %v4000, 56
      %v4152 = vpop.permute.xlu0 %4151
      %4153 = vrot.lane.b32.xlu0 %v4010, 56
      %v4154 = vpop.permute.xlu0 %4153
      %4155 = vrot.lane.b32.xlu0 %v4024, 56
      %v4156 = vpop.permute.xlu0 %4155
      %4157 = vrot.lane.b32.xlu0 %v4034, 56
      %v4158 = vpop.permute.xlu0 %4157
      %4159 = vrot.lane.b32.xlu0 %v4048, 56
      %v4160 = vpop.permute.xlu0 %4159
      %4161 = vrot.lane.b32.xlu0 %v4058, 56
      %v4162 = vpop.permute.xlu0 %4161
      %4163 = vrot.lane.b32.xlu0 %v4072, 56
      %v4164 = vpop.permute.xlu0 %4163
      %4165 = vrot.lane.b32.xlu0 %v4082, 56
      %v4166 = vpop.permute.xlu0 %4165
      %4167 = vrot.lane.b32.xlu0 %v4096, 56
      %v4168 = vpop.permute.xlu0 %4167
      %4169 = vrot.lane.b32.xlu0 %v4106, 56
      %v4170 = vpop.permute.xlu0 %4169
      %vm4203 = vcmask 519616
      %4204 = vst.msk [vmem:[#allocation4] sm:$0xf] %vm4203, %v4108
      %4205 = vst.msk [vmem:[#allocation4 + $0x4] sm:$0xf] %vm4203, %v4110
      %4206 = vst.msk [vmem:[#allocation4 + $0x8] sm:$0xf] %vm4203, %v4112
      %4207 = vst.msk [vmem:[#allocation4 + $0xc] sm:$0xf] %vm4203, %v4114
      %4208 = vst.msk [vmem:[#allocation4 + $0x10] sm:$0xf] %vm4203, %v4116
      %4209 = vst.msk [vmem:[#allocation4 + $0x14] sm:$0xf] %vm4203, %v4118
      %4210 = vst.msk [vmem:[#allocation4 + $0x18] sm:$0xf] %vm4203, %v4120
      %4211 = vst.msk [vmem:[#allocation4 + $0x1c] sm:$0xf] %vm4203, %v4122
      %4212 = vst.msk [vmem:[#allocation4 + $0x20] sm:$0xf] %vm4203, %v4124
      %4213 = vst.msk [vmem:[#allocation4 + $0x24] sm:$0xf] %vm4203, %v4126
      %4214 = vst.msk [vmem:[#allocation4 + $0x28] sm:$0xf] %vm4203, %v4128
      %4215 = vst.msk [vmem:[#allocation4 + $0x2c] sm:$0xf] %vm4203, %v4130
      %4216 = vst.msk [vmem:[#allocation4 + $0x30] sm:$0xf] %vm4203, %v4132
      %4217 = vst.msk [vmem:[#allocation4 + $0x34] sm:$0xf] %vm4203, %v4134
      %4218 = vst.msk [vmem:[#allocation4 + $0x38] sm:$0xf] %vm4203, %v4136
      %4219 = vst.msk [vmem:[#allocation4 + $0x3c] sm:$0xf] %vm4203, %v4138
      %4220 = vst.msk [vmem:[#allocation4 + $0x40] sm:$0xf] %vm4203, %v4140
      %4221 = vst.msk [vmem:[#allocation4 + $0x44] sm:$0xf] %vm4203, %v4142
      %4222 = vst.msk [vmem:[#allocation4 + $0x48] sm:$0xf] %vm4203, %v4144
      %4223 = vst.msk [vmem:[#allocation4 + $0x4c] sm:$0xf] %vm4203, %v4146
      %4224 = vst.msk [vmem:[#allocation4 + $0x50] sm:$0xf] %vm4203, %v4148
      %4225 = vst.msk [vmem:[#allocation4 + $0x54] sm:$0xf] %vm4203, %v4150
      %4226 = vst.msk [vmem:[#allocation4 + $0x58] sm:$0xf] %vm4203, %v4152
      %4227 = vst.msk [vmem:[#allocation4 + $0x5c] sm:$0xf] %vm4203, %v4154
      %4228 = vst.msk [vmem:[#allocation4 + $0x60] sm:$0xf] %vm4203, %v4156
      %4229 = vst.msk [vmem:[#allocation4 + $0x64] sm:$0xf] %vm4203, %v4158
      %4230 = vst.msk [vmem:[#allocation4 + $0x68] sm:$0xf] %vm4203, %v4160
      %4231 = vst.msk [vmem:[#allocation4 + $0x6c] sm:$0xf] %vm4203, %v4162
      %4232 = vst.msk [vmem:[#allocation4 + $0x70] sm:$0xf] %vm4203, %v4164
      %4233 = vst.msk [vmem:[#allocation4 + $0x74] sm:$0xf] %vm4203, %v4166
      %4234 = vst.msk [vmem:[#allocation4 + $0x78] sm:$0xf] %vm4203, %v4168
      %4235 = vst.msk [vmem:[#allocation4 + $0x7c] sm:$0xf] %vm4203, %v4170
      %v4236 = vld [vmem:[%s3481] sm:$0xe]
      %v4237 = vld [vmem:[%s3481 + $0x4] sm:$0xf]
      %v4238 = vld [vmem:[%s3481 + $0x8] sm:$0x1]
      %v4239 = vld [vmem:[%s3481 + $0xc] sm:$0xe]
      %v4240 = vld [vmem:[%s3481 + $0x10] sm:$0xf]
      %v4241 = vld [vmem:[%s3481 + $0x14] sm:$0x1]
      %v4242 = vld [vmem:[%s3481 + $0x18] sm:$0xe]
      %v4243 = vld [vmem:[%s3481 + $0x1c] sm:$0xf]
      %v4244 = vld [vmem:[%s3481 + $0x20] sm:$0x1]
      %v4245 = vld [vmem:[%s3481 + $0x24] sm:$0xe]
      %v4246 = vld [vmem:[%s3481 + $0x28] sm:$0xf]
      %v4247 = vld [vmem:[%s3481 + $0x2c] sm:$0x1]
      %v4248 = vld [vmem:[%s3481 + $0x30] sm:$0xe]
      %v4249 = vld [vmem:[%s3481 + $0x34] sm:$0xf]
      %v4250 = vld [vmem:[%s3481 + $0x38] sm:$0x1]
      %v4251 = vld [vmem:[%s3481 + $0x3c] sm:$0xe]
      %v4252 = vld [vmem:[%s3481 + $0x40] sm:$0xf]
      %v4253 = vld [vmem:[%s3481 + $0x44] sm:$0x1]
      %v4254 = vld [vmem:[%s3481 + $0x48] sm:$0xe]
      %v4255 = vld [vmem:[%s3481 + $0x4c] sm:$0xf]
      %v4256 = vld [vmem:[%s3481 + $0x50] sm:$0x1]
      %v4257 = vld [vmem:[%s3481 + $0x54] sm:$0xe]
      %v4258 = vld [vmem:[%s3481 + $0x58] sm:$0xf]
      %v4259 = vld [vmem:[%s3481 + $0x5c] sm:$0x1]
      %v4260 = vld [vmem:[%s3481 + $0x60] sm:$0xe]
      %v4261 = vld [vmem:[%s3481 + $0x64] sm:$0xf]
      %v4262 = vld [vmem:[%s3481 + $0x68] sm:$0x1]
      %v4263 = vld [vmem:[%s3481 + $0x6c] sm:$0xe]
      %v4264 = vld [vmem:[%s3481 + $0x70] sm:$0xf]
      %v4265 = vld [vmem:[%s3481 + $0x74] sm:$0x1]
      %v4266 = vld [vmem:[%s3481 + $0x78] sm:$0xe]
      %v4267 = vld [vmem:[%s3481 + $0x7c] sm:$0xf]
      %v4268 = vld [vmem:[%s3481 + $0x80] sm:$0x1]
      %v4269 = vld [vmem:[%s3481 + $0x84] sm:$0xe]
      %v4270 = vld [vmem:[%s3481 + $0x88] sm:$0xf]
      %v4271 = vld [vmem:[%s3481 + $0x8c] sm:$0x1]
      %v4272 = vld [vmem:[%s3481 + $0x90] sm:$0xe]
      %v4273 = vld [vmem:[%s3481 + $0x94] sm:$0xf]
      %v4274 = vld [vmem:[%s3481 + $0x98] sm:$0x1]
      %v4275 = vld [vmem:[%s3481 + $0x9c] sm:$0xe]
      %v4276 = vld [vmem:[%s3481 + $0xa0] sm:$0xf]
      %v4277 = vld [vmem:[%s3481 + $0xa4] sm:$0x1]
      %v4278 = vld [vmem:[%s3481 + $0xa8] sm:$0xe]
      %v4279 = vld [vmem:[%s3481 + $0xac] sm:$0xf]
      %v4280 = vld [vmem:[%s3481 + $0xb0] sm:$0x1]
      %v4281 = vld [vmem:[%s3481 + $0xb4] sm:$0xe]
      %v4282 = vld [vmem:[%s3481 + $0xb8] sm:$0xf]
      %v4283 = vld [vmem:[%s3481 + $0xbc] sm:$0x1]
      %v4332 = vrot.slane %v4236, 5
      %v4333 = vrot.slane %v4332, 4
      %v4334 = vrot.slane %v4237, 5
      %v4335 = vsel %vm2148, %v4333, %v4334
      %v4336 = vrot.slane %v4334, 4
      %v4337 = vrot.slane %v4238, 5
      %v4338 = vsel %vm2148, %v4336, %v4337
      %v4339 = vrot.slane %v4239, 5
      %v4340 = vrot.slane %v4339, 4
      %v4341 = vrot.slane %v4240, 5
      %v4342 = vsel %vm2148, %v4340, %v4341
      %v4343 = vrot.slane %v4341, 4
      %v4344 = vrot.slane %v4241, 5
      %v4345 = vsel %vm2148, %v4343, %v4344
      %v4346 = vrot.slane %v4242, 5
      %v4347 = vrot.slane %v4346, 4
      %v4348 = vrot.slane %v4243, 5
      %v4349 = vsel %vm2148, %v4347, %v4348
      %v4350 = vrot.slane %v4348, 4
      %v4351 = vrot.slane %v4244, 5
      %v4352 = vsel %vm2148, %v4350, %v4351
      %v4353 = vrot.slane %v4245, 5
      %v4354 = vrot.slane %v4353, 4
      %v4355 = vrot.slane %v4246, 5
      %v4356 = vsel %vm2148, %v4354, %v4355
      %v4357 = vrot.slane %v4355, 4
      %v4358 = vrot.slane %v4247, 5
      %v4359 = vsel %vm2148, %v4357, %v4358
      %v4360 = vrot.slane %v4248, 5
      %v4361 = vrot.slane %v4360, 4
      %v4362 = vrot.slane %v4249, 5
      %v4363 = vsel %vm2148, %v4361, %v4362
      %v4364 = vrot.slane %v4362, 4
      %v4365 = vrot.slane %v4250, 5
      %v4366 = vsel %vm2148, %v4364, %v4365
      %v4367 = vrot.slane %v4251, 5
      %v4368 = vrot.slane %v4367, 4
      %v4369 = vrot.slane %v4252, 5
      %v4370 = vsel %vm2148, %v4368, %v4369
      %v4371 = vrot.slane %v4369, 4
      %v4372 = vrot.slane %v4253, 5
      %v4373 = vsel %vm2148, %v4371, %v4372
      %v4374 = vrot.slane %v4254, 5
      %v4375 = vrot.slane %v4374, 4
      %v4376 = vrot.slane %v4255, 5
      %v4377 = vsel %vm2148, %v4375, %v4376
      %v4378 = vrot.slane %v4376, 4
      %v4379 = vrot.slane %v4256, 5
      %v4380 = vsel %vm2148, %v4378, %v4379
      %v4381 = vrot.slane %v4257, 5
      %v4382 = vrot.slane %v4381, 4
      %v4383 = vrot.slane %v4258, 5
      %v4384 = vsel %vm2148, %v4382, %v4383
      %v4385 = vrot.slane %v4383, 4
      %v4386 = vrot.slane %v4259, 5
      %v4387 = vsel %vm2148, %v4385, %v4386
      %v4388 = vrot.slane %v4260, 5
      %v4389 = vrot.slane %v4388, 4
      %v4390 = vrot.slane %v4261, 5
      %v4391 = vsel %vm2148, %v4389, %v4390
      %v4392 = vrot.slane %v4390, 4
      %v4393 = vrot.slane %v4262, 5
      %v4394 = vsel %vm2148, %v4392, %v4393
      %v4395 = vrot.slane %v4263, 5
      %v4396 = vrot.slane %v4395, 4
      %v4397 = vrot.slane %v4264, 5
      %v4398 = vsel %vm2148, %v4396, %v4397
      %v4399 = vrot.slane %v4397, 4
      %v4400 = vrot.slane %v4265, 5
      %v4401 = vsel %vm2148, %v4399, %v4400
      %v4402 = vrot.slane %v4266, 5
      %v4403 = vrot.slane %v4402, 4
      %v4404 = vrot.slane %v4267, 5
      %v4405 = vsel %vm2148, %v4403, %v4404
      %v4406 = vrot.slane %v4404, 4
      %v4407 = vrot.slane %v4268, 5
      %v4408 = vsel %vm2148, %v4406, %v4407
      %v4409 = vrot.slane %v4269, 5
      %v4410 = vrot.slane %v4409, 4
      %v4411 = vrot.slane %v4270, 5
      %v4412 = vsel %vm2148, %v4410, %v4411
      %v4413 = vrot.slane %v4411, 4
      %v4414 = vrot.slane %v4271, 5
      %v4415 = vsel %vm2148, %v4413, %v4414
      %v4416 = vrot.slane %v4272, 5
      %v4417 = vrot.slane %v4416, 4
      %v4418 = vrot.slane %v4273, 5
      %v4419 = vsel %vm2148, %v4417, %v4418
      %v4420 = vrot.slane %v4418, 4
      %v4421 = vrot.slane %v4274, 5
      %v4422 = vsel %vm2148, %v4420, %v4421
      %v4423 = vrot.slane %v4275, 5
      %v4424 = vrot.slane %v4423, 4
      %v4425 = vrot.slane %v4276, 5
      %v4426 = vsel %vm2148, %v4424, %v4425
      %v4427 = vrot.slane %v4425, 4
      %v4428 = vrot.slane %v4277, 5
      %v4429 = vsel %vm2148, %v4427, %v4428
      %v4430 = vrot.slane %v4278, 5
      %v4431 = vrot.slane %v4430, 4
      %v4432 = vrot.slane %v4279, 5
      %v4433 = vsel %vm2148, %v4431, %v4432
      %v4434 = vrot.slane %v4432, 4
      %v4435 = vrot.slane %v4280, 5
      %v4436 = vsel %vm2148, %v4434, %v4435
      %v4437 = vrot.slane %v4281, 5
      %v4438 = vrot.slane %v4437, 4
      %v4439 = vrot.slane %v4282, 5
      %v4440 = vsel %vm2148, %v4438, %v4439
      %v4441 = vrot.slane %v4439, 4
      %v4442 = vrot.slane %v4283, 5
      %v4443 = vsel %vm2148, %v4441, %v4442
      %4444 = vrot.lane.b32.xlu0 %v4335, 64
      %v4445 = vpop.permute.xlu0 %4444
      %4446 = vrot.lane.b32.xlu0 %v4338, 64
      %v4447 = vpop.permute.xlu0 %4446
      %4448 = vrot.lane.b32.xlu0 %v4342, 64
      %v4449 = vpop.permute.xlu0 %4448
      %4450 = vrot.lane.b32.xlu0 %v4345, 64
      %v4451 = vpop.permute.xlu0 %4450
      %4452 = vrot.lane.b32.xlu0 %v4349, 64
      %v4453 = vpop.permute.xlu0 %4452
      %4454 = vrot.lane.b32.xlu0 %v4352, 64
      %v4455 = vpop.permute.xlu0 %4454
      %4456 = vrot.lane.b32.xlu0 %v4356, 64
      %v4457 = vpop.permute.xlu0 %4456
      %4458 = vrot.lane.b32.xlu0 %v4359, 64
      %v4459 = vpop.permute.xlu0 %4458
      %4460 = vrot.lane.b32.xlu0 %v4363, 64
      %v4461 = vpop.permute.xlu0 %4460
      %4462 = vrot.lane.b32.xlu0 %v4366, 64
      %v4463 = vpop.permute.xlu0 %4462
      %4464 = vrot.lane.b32.xlu0 %v4370, 64
      %v4465 = vpop.permute.xlu0 %4464
      %4466 = vrot.lane.b32.xlu0 %v4373, 64
      %v4467 = vpop.permute.xlu0 %4466
      %4468 = vrot.lane.b32.xlu0 %v4377, 64
      %v4469 = vpop.permute.xlu0 %4468
      %4470 = vrot.lane.b32.xlu0 %v4380, 64
      %v4471 = vpop.permute.xlu0 %4470
      %4472 = vrot.lane.b32.xlu0 %v4384, 64
      %v4473 = vpop.permute.xlu0 %4472
      %4474 = vrot.lane.b32.xlu0 %v4387, 64
      %v4475 = vpop.permute.xlu0 %4474
      %4476 = vrot.lane.b32.xlu0 %v4391, 64
      %v4477 = vpop.permute.xlu0 %4476
      %4478 = vrot.lane.b32.xlu0 %v4394, 64
      %v4479 = vpop.permute.xlu0 %4478
      %4480 = vrot.lane.b32.xlu0 %v4398, 64
      %v4481 = vpop.permute.xlu0 %4480
      %4482 = vrot.lane.b32.xlu0 %v4401, 64
      %v4483 = vpop.permute.xlu0 %4482
      %4484 = vrot.lane.b32.xlu0 %v4405, 64
      %v4485 = vpop.permute.xlu0 %4484
      %4486 = vrot.lane.b32.xlu0 %v4408, 64
      %v4487 = vpop.permute.xlu0 %4486
      %4488 = vrot.lane.b32.xlu0 %v4412, 64
      %v4489 = vpop.permute.xlu0 %4488
      %4490 = vrot.lane.b32.xlu0 %v4415, 64
      %v4491 = vpop.permute.xlu0 %4490
      %4492 = vrot.lane.b32.xlu0 %v4419, 64
      %v4493 = vpop.permute.xlu0 %4492
      %4494 = vrot.lane.b32.xlu0 %v4422, 64
      %v4495 = vpop.permute.xlu0 %4494
      %4496 = vrot.lane.b32.xlu0 %v4426, 64
      %v4497 = vpop.permute.xlu0 %4496
      %4498 = vrot.lane.b32.xlu0 %v4429, 64
      %v4499 = vpop.permute.xlu0 %4498
      %4500 = vrot.lane.b32.xlu0 %v4433, 64
      %v4501 = vpop.permute.xlu0 %4500
      %4502 = vrot.lane.b32.xlu0 %v4436, 64
      %v4503 = vpop.permute.xlu0 %4502
      %4504 = vrot.lane.b32.xlu0 %v4440, 64
      %v4505 = vpop.permute.xlu0 %4504
      %4506 = vrot.lane.b32.xlu0 %v4443, 64
      %v4507 = vpop.permute.xlu0 %4506
      %vm4540 = vcmask 585216
      %4541 = vst.msk [vmem:[#allocation4] sm:$0xf] %vm4540, %v4445
      %4542 = vst.msk [vmem:[#allocation4 + $0x4] sm:$0xf] %vm4540, %v4447
      %4543 = vst.msk [vmem:[#allocation4 + $0x8] sm:$0xf] %vm4540, %v4449
      %4544 = vst.msk [vmem:[#allocation4 + $0xc] sm:$0xf] %vm4540, %v4451
      %4545 = vst.msk [vmem:[#allocation4 + $0x10] sm:$0xf] %vm4540, %v4453
      %4546 = vst.msk [vmem:[#allocation4 + $0x14] sm:$0xf] %vm4540, %v4455
      %4547 = vst.msk [vmem:[#allocation4 + $0x18] sm:$0xf] %vm4540, %v4457
      %4548 = vst.msk [vmem:[#allocation4 + $0x1c] sm:$0xf] %vm4540, %v4459
      %4549 = vst.msk [vmem:[#allocation4 + $0x20] sm:$0xf] %vm4540, %v4461
      %4550 = vst.msk [vmem:[#allocation4 + $0x24] sm:$0xf] %vm4540, %v4463
      %4551 = vst.msk [vmem:[#allocation4 + $0x28] sm:$0xf] %vm4540, %v4465
      %4552 = vst.msk [vmem:[#allocation4 + $0x2c] sm:$0xf] %vm4540, %v4467
      %4553 = vst.msk [vmem:[#allocation4 + $0x30] sm:$0xf] %vm4540, %v4469
      %4554 = vst.msk [vmem:[#allocation4 + $0x34] sm:$0xf] %vm4540, %v4471
      %4555 = vst.msk [vmem:[#allocation4 + $0x38] sm:$0xf] %vm4540, %v4473
      %4556 = vst.msk [vmem:[#allocation4 + $0x3c] sm:$0xf] %vm4540, %v4475
      %4557 = vst.msk [vmem:[#allocation4 + $0x40] sm:$0xf] %vm4540, %v4477
      %4558 = vst.msk [vmem:[#allocation4 + $0x44] sm:$0xf] %vm4540, %v4479
      %4559 = vst.msk [vmem:[#allocation4 + $0x48] sm:$0xf] %vm4540, %v4481
      %4560 = vst.msk [vmem:[#allocation4 + $0x4c] sm:$0xf] %vm4540, %v4483
      %4561 = vst.msk [vmem:[#allocation4 + $0x50] sm:$0xf] %vm4540, %v4485
      %4562 = vst.msk [vmem:[#allocation4 + $0x54] sm:$0xf] %vm4540, %v4487
      %4563 = vst.msk [vmem:[#allocation4 + $0x58] sm:$0xf] %vm4540, %v4489
      %4564 = vst.msk [vmem:[#allocation4 + $0x5c] sm:$0xf] %vm4540, %v4491
      %4565 = vst.msk [vmem:[#allocation4 + $0x60] sm:$0xf] %vm4540, %v4493
      %4566 = vst.msk [vmem:[#allocation4 + $0x64] sm:$0xf] %vm4540, %v4495
      %4567 = vst.msk [vmem:[#allocation4 + $0x68] sm:$0xf] %vm4540, %v4497
      %4568 = vst.msk [vmem:[#allocation4 + $0x6c] sm:$0xf] %vm4540, %v4499
      %4569 = vst.msk [vmem:[#allocation4 + $0x70] sm:$0xf] %vm4540, %v4501
      %4570 = vst.msk [vmem:[#allocation4 + $0x74] sm:$0xf] %vm4540, %v4503
      %4571 = vst.msk [vmem:[#allocation4 + $0x78] sm:$0xf] %vm4540, %v4505
      %4572 = vst.msk [vmem:[#allocation4 + $0x7c] sm:$0xf] %vm4540, %v4507
      %v4573 = vld [vmem:[#allocation4] sm:$0xf]
      %v4574 = vld [vmem:[#allocation4 + $0x4] sm:$0xf]
      %v4575 = vld [vmem:[#allocation4 + $0x8] sm:$0xf]
      %v4576 = vld [vmem:[#allocation4 + $0xc] sm:$0xf]
      %v4577 = vld [vmem:[#allocation4 + $0x10] sm:$0xf]
      %v4578 = vld [vmem:[#allocation4 + $0x14] sm:$0xf]
      %v4579 = vld [vmem:[#allocation4 + $0x18] sm:$0xf]
      %v4580 = vld [vmem:[#allocation4 + $0x1c] sm:$0xf]
      %v4581 = vld [vmem:[#allocation4 + $0x20] sm:$0xf]
      %v4582 = vld [vmem:[#allocation4 + $0x24] sm:$0xf]
      %v4583 = vld [vmem:[#allocation4 + $0x28] sm:$0xf]
      %v4584 = vld [vmem:[#allocation4 + $0x2c] sm:$0xf]
      %v4585 = vld [vmem:[#allocation4 + $0x30] sm:$0xf]
      %v4586 = vld [vmem:[#allocation4 + $0x34] sm:$0xf]
      %v4587 = vld [vmem:[#allocation4 + $0x38] sm:$0xf]
      %v4588 = vld [vmem:[#allocation4 + $0x3c] sm:$0xf]
      %v4589 = vld [vmem:[#allocation4 + $0x40] sm:$0xf]
      %v4590 = vld [vmem:[#allocation4 + $0x44] sm:$0xf]
      %v4591 = vld [vmem:[#allocation4 + $0x48] sm:$0xf]
      %v4592 = vld [vmem:[#allocation4 + $0x4c] sm:$0xf]
      %v4593 = vld [vmem:[#allocation4 + $0x50] sm:$0xf]
      %v4594 = vld [vmem:[#allocation4 + $0x54] sm:$0xf]
      %v4595 = vld [vmem:[#allocation4 + $0x58] sm:$0xf]
      %v4596 = vld [vmem:[#allocation4 + $0x5c] sm:$0xf]
      %v4597 = vld [vmem:[#allocation4 + $0x60] sm:$0xf]
      %v4598 = vld [vmem:[#allocation4 + $0x64] sm:$0xf]
      %v4599 = vld [vmem:[#allocation4 + $0x68] sm:$0xf]
      %v4600 = vld [vmem:[#allocation4 + $0x6c] sm:$0xf]
      %v4601 = vld [vmem:[#allocation4 + $0x70] sm:$0xf]
      %v4602 = vld [vmem:[#allocation4 + $0x74] sm:$0xf]
      %v4603 = vld [vmem:[#allocation4 + $0x78] sm:$0xf]
      %v4604 = vld [vmem:[#allocation4 + $0x7c] sm:$0xf]
      %v4605 = vld [vmem:[%s2] sm:$0xf]
      %v4606 = vld [vmem:[%s2 + $0x4] sm:$0xf]
      %v4607 = vld [vmem:[%s2 + $0x8] sm:$0xf]
      %v4608 = vld [vmem:[%s2 + $0xc] sm:$0xf]
      %v4609 = vld [vmem:[%s2 + $0x10] sm:$0xf]
      %v4610 = vld [vmem:[%s2 + $0x14] sm:$0xf]
      %v4611 = vld [vmem:[%s2 + $0x18] sm:$0xf]
      %v4612 = vld [vmem:[%s2 + $0x1c] sm:$0xf]
      %v4613 = vld [vmem:[%s2 + $0x20] sm:$0xf]
      %v4646 = vunpack.c.l.b16 %v4573
      %v4647 = vunpack.c.l.b16 %v4574
      %v4648 = vunpack.c.l.b16 %v4575
      %v4649 = vunpack.c.l.b16 %v4576
      %v4650 = vunpack.c.l.b16 %v4577
      %v4651 = vunpack.c.l.b16 %v4578
      %v4652 = vunpack.c.l.b16 %v4579
      %v4653 = vunpack.c.l.b16 %v4580
      %v4654 = vunpack.c.l.b16 %v4581
      %v4655 = vunpack.c.l.b16 %v4582
      %v4656 = vunpack.c.l.b16 %v4583
      %v4657 = vunpack.c.l.b16 %v4584
      %v4658 = vunpack.c.l.b16 %v4585
      %v4659 = vunpack.c.l.b16 %v4586
      %v4660 = vunpack.c.l.b16 %v4587
      %v4661 = vunpack.c.l.b16 %v4588
      %v4662 = vunpack.c.l.b16 %v4589
      %v4663 = vunpack.c.l.b16 %v4590
      %v4664 = vunpack.c.l.b16 %v4591
      %v4665 = vunpack.c.l.b16 %v4592
      %v4666 = vunpack.c.l.b16 %v4593
      %v4667 = vunpack.c.l.b16 %v4594
      %v4668 = vunpack.c.l.b16 %v4595
      %v4669 = vunpack.c.l.b16 %v4596
      %v4670 = vunpack.c.l.b16 %v4597
      %v4671 = vunpack.c.l.b16 %v4598
      %v4672 = vunpack.c.l.b16 %v4599
      %v4673 = vunpack.c.l.b16 %v4600
      %v4674 = vunpack.c.l.b16 %v4601
      %v4675 = vunpack.c.l.b16 %v4602
      %v4676 = vunpack.c.l.b16 %v4603
      %v4677 = vunpack.c.l.b16 %v4604
      %v4678 = vpack.c.b16 %v4647, %v4646
      %v4679 = vpack.c.b16 %v4649, %v4648
      %v4680 = vpack.c.b16 %v4651, %v4650
      %v4681 = vpack.c.b16 %v4653, %v4652
      %v4682 = vpack.c.b16 %v4655, %v4654
      %v4683 = vpack.c.b16 %v4657, %v4656
      %v4684 = vpack.c.b16 %v4659, %v4658
      %v4685 = vpack.c.b16 %v4661, %v4660
      %v4686 = vpack.c.b16 %v4663, %v4662
      %v4687 = vpack.c.b16 %v4665, %v4664
      %v4688 = vpack.c.b16 %v4667, %v4666
      %v4689 = vpack.c.b16 %v4669, %v4668
      %v4690 = vpack.c.b16 %v4671, %v4670
      %v4691 = vpack.c.b16 %v4673, %v4672
      %v4692 = vpack.c.b16 %v4675, %v4674
      %v4693 = vpack.c.b16 %v4677, %v4676
      %v4703 = vunpack.c.l.b16 %v4605
      %v4704 = vunpack.c.l.b16 %v4606
      %v4705 = vunpack.c.l.b16 %v4607
      %v4706 = vunpack.c.l.b16 %v4608
      %v4707 = vunpack.c.l.b16 %v4609
      %v4708 = vunpack.c.l.b16 %v4610
      %v4709 = vunpack.c.l.b16 %v4611
      %v4710 = vunpack.c.l.b16 %v4612
      %v4711 = vunpack.c.l.b16 %v4613
      %v4712 = vpack.c.b16 %v4704, %v4703
      %v4713 = vpack.c.b16 %v4706, %v4705
      %v4714 = vpack.c.b16 %v4708, %v4707
      %v4715 = vpack.c.b16 %v4710, %v4709
      %v4716 = vpack.c.b16 %v4711, %v4711
      %vm4721 = vcmask 588800
      %v4723 = vsel %vm4721, %v4678, 0
      %v4726 = vsel %vm4721, %v4679, 0
      %v4729 = vsel %vm4721, %v4680, 0
      %v4732 = vsel %vm4721, %v4681, 0
      %v4735 = vsel %vm4721, %v4682, 0
      %v4738 = vsel %vm4721, %v4683, 0
      %v4741 = vsel %vm4721, %v4684, 0
      %v4744 = vsel %vm4721, %v4685, 0
      %v4747 = vsel %vm4721, %v4686, 0
      %v4750 = vsel %vm4721, %v4687, 0
      %v4753 = vsel %vm4721, %v4688, 0
      %v4756 = vsel %vm4721, %v4689, 0
      %v4759 = vsel %vm4721, %v4690, 0
      %v4762 = vsel %vm4721, %v4691, 0
      %v4765 = vsel %vm4721, %v4692, 0
      %v4768 = vsel %vm4721, %v4693, 0
      %vm4770 = vcmask 1043456
      %v4772 = vsel %vm4770, %v4716, 0
      %4774 = vmatprep.subr.bf16.mxu0 0
      %4775 = vmatpush1.bf16.msra.mxu0 0
      %4776 = vmatprep.subr.bf16.mxu0 0
      %4777 = vmatpush1.bf16.msra.mxu0 0
      %4778 = vmatprep.subr.bf16.mxu0 0
      %4779 = vmatpush1.bf16.msra.mxu0 0
      %4780 = vmatprep.subr.bf16.mxu0 0
      %4781 = vmatpush1.bf16.msra.mxu0 %v4772
      %4782 = vmatprep.subr.bf16.mxu0 0
      %4783 = vmatpush1.bf16.msra.mxu0 %v4715
      %4784 = vmatprep.subr.bf16.mxu0 0
      %4785 = vmatpush1.bf16.msra.mxu0 %v4714
      %4786 = vmatprep.subr.bf16.mxu0 0
      %4787 = vmatpush1.bf16.msra.mxu0 %v4713
      %4788 = vmatprep.subr.bf16.mxu0 0
      %4789 = vmatpush1.bf16.msra.mxu0 %v4712
      %4790 = vmatprep.subr.bf16.mxu0 0
      %4791 = vmatpush2.bf16.msra.mxu0 0
      %4792 = vmatprep.subr.bf16.mxu0 0
      %4793 = vmatpush2.bf16.msra.mxu0 0
      %4794 = vmatprep.subr.bf16.mxu0 0
      %4795 = vmatpush2.bf16.msra.mxu0 0
      %4796 = vmatprep.subr.bf16.mxu0 0
      %4797 = vmatpush2.bf16.msra.mxu0 0
      %4798 = vmatprep.subr.bf16.mxu0 0
      %4799 = vmatpush2.bf16.msra.mxu0 0
      %4800 = vmatprep.subr.bf16.mxu0 0
      %4801 = vmatpush2.bf16.msra.mxu0 0
      %4802 = vmatprep.subr.bf16.mxu0 0
      %4803 = vmatpush2.bf16.msra.mxu0 0
      %4804 = vmatprep.subr.bf16.mxu0 0
      %4805 = vmatpush2.bf16.msra.mxu0 0
      %4806 = vmatprep.mubr.bf16.mxu0 0
      %4807 = vmatmul.mubr.bf16.gmra.mxu0 %v4723
      %v4808 = vpop.f32.mrf.mxu0
      %v4809 = vadd.f32 0.0, %v4808
      %v4810 = vpop.f32.mrf.mxu0
      %v4811 = vpop.f32.mrf.mxu0
      %v4812 = vadd.f32 0.0, %v4811
      %v4813 = vpop.f32.mrf.mxu0
      %4814 = vmatprep.mubr.bf16.mxu0 0
      %4815 = vmatmul.mubr.bf16.gmra.mxu0 %v4726
      %v4816 = vpop.f32.mrf.mxu0
      %v4817 = vadd.f32 0.0, %v4816
      %v4818 = vpop.f32.mrf.mxu0
      %v4819 = vpop.f32.mrf.mxu0
      %v4820 = vadd.f32 0.0, %v4819
      %v4821 = vpop.f32.mrf.mxu0
      %4822 = vmatprep.mubr.bf16.mxu0 0
      %4823 = vmatmul.mubr.bf16.gmra.mxu0 %v4729
      %v4824 = vpop.f32.mrf.mxu0
      %v4825 = vadd.f32 0.0, %v4824
      %v4826 = vpop.f32.mrf.mxu0
      %v4827 = vpop.f32.mrf.mxu0
      %v4828 = vadd.f32 0.0, %v4827
      %v4829 = vpop.f32.mrf.mxu0
      %4830 = vmatprep.mubr.bf16.mxu0 0
      %4831 = vmatmul.mubr.bf16.gmra.mxu0 %v4732
      %v4832 = vpop.f32.mrf.mxu0
      %v4833 = vadd.f32 0.0, %v4832
      %v4834 = vpop.f32.mrf.mxu0
      %v4835 = vpop.f32.mrf.mxu0
      %v4836 = vadd.f32 0.0, %v4835
      %v4837 = vpop.f32.mrf.mxu0
      %4838 = vmatprep.mubr.bf16.mxu0 0
      %4839 = vmatmul.mubr.bf16.gmra.mxu0 %v4735
      %v4840 = vpop.f32.mrf.mxu0
      %v4841 = vadd.f32 0.0, %v4840
      %v4842 = vpop.f32.mrf.mxu0
      %v4843 = vpop.f32.mrf.mxu0
      %v4844 = vadd.f32 0.0, %v4843
      %v4845 = vpop.f32.mrf.mxu0
      %4846 = vmatprep.mubr.bf16.mxu0 0
      %4847 = vmatmul.mubr.bf16.gmra.mxu0 %v4738
      %v4848 = vpop.f32.mrf.mxu0
      %v4849 = vadd.f32 0.0, %v4848
      %v4850 = vpop.f32.mrf.mxu0
      %v4851 = vpop.f32.mrf.mxu0
      %v4852 = vadd.f32 0.0, %v4851
      %v4853 = vpop.f32.mrf.mxu0
      %4854 = vmatprep.mubr.bf16.mxu0 0
      %4855 = vmatmul.mubr.bf16.gmra.mxu0 %v4741
      %v4856 = vpop.f32.mrf.mxu0
      %v4857 = vadd.f32 0.0, %v4856
      %v4858 = vpop.f32.mrf.mxu0
      %v4859 = vpop.f32.mrf.mxu0
      %v4860 = vadd.f32 0.0, %v4859
      %v4861 = vpop.f32.mrf.mxu0
      %4862 = vmatprep.mubr.bf16.mxu0 0
      %4863 = vmatmul.mubr.bf16.gmra.mxu0 %v4744
      %v4864 = vpop.f32.mrf.mxu0
      %v4865 = vadd.f32 0.0, %v4864
      %v4866 = vpop.f32.mrf.mxu0
      %v4867 = vpop.f32.mrf.mxu0
      %v4868 = vadd.f32 0.0, %v4867
      %v4869 = vpop.f32.mrf.mxu0
      %4870 = vmatprep.mubr.bf16.mxu0 0
      %4871 = vmatmul.mubr.bf16.gmra.mxu0 %v4747
      %v4872 = vpop.f32.mrf.mxu0
      %v4873 = vadd.f32 0.0, %v4872
      %v4874 = vpop.f32.mrf.mxu0
      %v4875 = vpop.f32.mrf.mxu0
      %v4876 = vadd.f32 0.0, %v4875
      %v4877 = vpop.f32.mrf.mxu0
      %4878 = vmatprep.mubr.bf16.mxu0 0
      %4879 = vmatmul.mubr.bf16.gmra.mxu0 %v4750
      %v4880 = vpop.f32.mrf.mxu0
      %v4881 = vadd.f32 0.0, %v4880
      %v4882 = vpop.f32.mrf.mxu0
      %v4883 = vpop.f32.mrf.mxu0
      %v4884 = vadd.f32 0.0, %v4883
      %v4885 = vpop.f32.mrf.mxu0
      %4886 = vmatprep.mubr.bf16.mxu0 0
      %4887 = vmatmul.mubr.bf16.gmra.mxu0 %v4753
      %v4888 = vpop.f32.mrf.mxu0
      %v4889 = vadd.f32 0.0, %v4888
      %v4890 = vpop.f32.mrf.mxu0
      %v4891 = vpop.f32.mrf.mxu0
      %v4892 = vadd.f32 0.0, %v4891
      %v4893 = vpop.f32.mrf.mxu0
      %4894 = vmatprep.mubr.bf16.mxu0 0
      %4895 = vmatmul.mubr.bf16.gmra.mxu0 %v4756
      %v4896 = vpop.f32.mrf.mxu0
      %v4897 = vadd.f32 0.0, %v4896
      %v4898 = vpop.f32.mrf.mxu0
      %v4899 = vpop.f32.mrf.mxu0
      %v4900 = vadd.f32 0.0, %v4899
      %v4901 = vpop.f32.mrf.mxu0
      %4902 = vmatprep.mubr.bf16.mxu0 0
      %4903 = vmatmul.mubr.bf16.gmra.mxu0 %v4759
      %v4904 = vpop.f32.mrf.mxu0
      %v4905 = vadd.f32 0.0, %v4904
      %v4906 = vpop.f32.mrf.mxu0
      %v4907 = vpop.f32.mrf.mxu0
      %v4908 = vadd.f32 0.0, %v4907
      %v4909 = vpop.f32.mrf.mxu0
      %4910 = vmatprep.mubr.bf16.mxu0 0
      %4911 = vmatmul.mubr.bf16.gmra.mxu0 %v4762
      %v4912 = vpop.f32.mrf.mxu0
      %v4913 = vadd.f32 0.0, %v4912
      %v4914 = vpop.f32.mrf.mxu0
      %v4915 = vpop.f32.mrf.mxu0
      %v4916 = vadd.f32 0.0, %v4915
      %v4917 = vpop.f32.mrf.mxu0
      %4918 = vmatprep.mubr.bf16.mxu0 0
      %4919 = vmatmul.mubr.bf16.gmra.mxu0 %v4765
      %v4920 = vpop.f32.mrf.mxu0
      %v4921 = vadd.f32 0.0, %v4920
      %v4922 = vpop.f32.mrf.mxu0
      %v4923 = vpop.f32.mrf.mxu0
      %v4924 = vadd.f32 0.0, %v4923
      %v4925 = vpop.f32.mrf.mxu0
      %4926 = vmatprep.mubr.bf16.mxu0 0
      %4927 = vmatmul.mubr.bf16.gmra.mxu0 %v4768
      %v4928 = vpop.f32.mrf.mxu0
      %v4929 = vadd.f32 0.0, %v4928
      %v4930 = vpop.f32.mrf.mxu0
      %v4931 = vpop.f32.mrf.mxu0
      %v4932 = vadd.f32 0.0, %v4931
      %v4933 = vpop.f32.mrf.mxu0
      %4934 = vdwg.mxu0
      %v4935 = vld [vmem:[%s3] sm:$0x1]
      %v4937 = vlaneseq
      %v4938 = vshrl.u32 %v4937, 7
      %v4939 = vsub.s32 0, %v4938
      %v4940 = vrot.slane %v4935, %v4939
      %v4942 = vmul.f32 %v4809, %v4940
      %v4943 = vmul.f32 %v4812, %v4940
      %v4944 = vmul.f32 %v4817, %v4940
      %v4945 = vmul.f32 %v4820, %v4940
      %v4946 = vmul.f32 %v4825, %v4940
      %v4947 = vmul.f32 %v4828, %v4940
      %v4948 = vmul.f32 %v4833, %v4940
      %v4949 = vmul.f32 %v4836, %v4940
      %v4950 = vmul.f32 %v4841, %v4940
      %v4951 = vmul.f32 %v4844, %v4940
      %v4952 = vmul.f32 %v4849, %v4940
      %v4953 = vmul.f32 %v4852, %v4940
      %v4954 = vmul.f32 %v4857, %v4940
      %v4955 = vmul.f32 %v4860, %v4940
      %v4956 = vmul.f32 %v4865, %v4940
      %v4957 = vmul.f32 %v4868, %v4940
      %v4958 = vmul.f32 %v4873, %v4940
      %v4959 = vmul.f32 %v4876, %v4940
      %v4960 = vmul.f32 %v4881, %v4940
      %v4961 = vmul.f32 %v4884, %v4940
      %v4962 = vmul.f32 %v4889, %v4940
      %v4963 = vmul.f32 %v4892, %v4940
      %v4964 = vmul.f32 %v4897, %v4940
      %v4965 = vmul.f32 %v4900, %v4940
      %v4966 = vmul.f32 %v4905, %v4940
      %v4967 = vmul.f32 %v4908, %v4940
      %v4968 = vmul.f32 %v4913, %v4940
      %v4969 = vmul.f32 %v4916, %v4940
      %v4970 = vmul.f32 %v4921, %v4940
      %v4971 = vmul.f32 %v4924, %v4940
      %v4972 = vmul.f32 %v4929, %v4940
      %v4973 = vmul.f32 %v4932, %v4940
      %v4974 = vld [vmem:[%s4] sm:$0x1]
      %v4976 = vlaneseq
      %v4977 = vshrl.u32 %v4976, 7
      %v4978 = vsub.s32 0, %v4977
      %v4979 = vrot.slane %v4974, %v4978
      %v4981 = vadd.f32 %v4942, %v4979
      %v4982 = vadd.f32 %v4943, %v4979
      %v4983 = vadd.f32 %v4944, %v4979
      %v4984 = vadd.f32 %v4945, %v4979
      %v4985 = vadd.f32 %v4946, %v4979
      %v4986 = vadd.f32 %v4947, %v4979
      %v4987 = vadd.f32 %v4948, %v4979
      %v4988 = vadd.f32 %v4949, %v4979
      %v4989 = vadd.f32 %v4950, %v4979
      %v4990 = vadd.f32 %v4951, %v4979
      %v4991 = vadd.f32 %v4952, %v4979
      %v4992 = vadd.f32 %v4953, %v4979
      %v4993 = vadd.f32 %v4954, %v4979
      %v4994 = vadd.f32 %v4955, %v4979
      %v4995 = vadd.f32 %v4956, %v4979
      %v4996 = vadd.f32 %v4957, %v4979
      %v4997 = vadd.f32 %v4958, %v4979
      %v4998 = vadd.f32 %v4959, %v4979
      %v4999 = vadd.f32 %v4960, %v4979
      %v5000 = vadd.f32 %v4961, %v4979
      %v5001 = vadd.f32 %v4962, %v4979
      %v5002 = vadd.f32 %v4963, %v4979
      %v5003 = vadd.f32 %v4964, %v4979
      %v5004 = vadd.f32 %v4965, %v4979
      %v5005 = vadd.f32 %v4966, %v4979
      %v5006 = vadd.f32 %v4967, %v4979
      %v5007 = vadd.f32 %v4968, %v4979
      %v5008 = vadd.f32 %v4969, %v4979
      %v5009 = vadd.f32 %v4970, %v4979
      %v5010 = vadd.f32 %v4971, %v4979
      %v5011 = vadd.f32 %v4972, %v4979
      %v5012 = vadd.f32 %v4973, %v4979
      %v5013 = vmax.f32 %v4981, 0.0
      %v5014 = vmax.f32 %v4982, 0.0
      %v5015 = vmax.f32 %v4983, 0.0
      %v5016 = vmax.f32 %v4984, 0.0
      %v5017 = vmax.f32 %v4985, 0.0
      %v5018 = vmax.f32 %v4986, 0.0
      %v5019 = vmax.f32 %v4987, 0.0
      %v5020 = vmax.f32 %v4988, 0.0
      %v5021 = vmax.f32 %v4989, 0.0
      %v5022 = vmax.f32 %v4990, 0.0
      %v5023 = vmax.f32 %v4991, 0.0
      %v5024 = vmax.f32 %v4992, 0.0
      %v5025 = vmax.f32 %v4993, 0.0
      %v5026 = vmax.f32 %v4994, 0.0
      %v5027 = vmax.f32 %v4995, 0.0
      %v5028 = vmax.f32 %v4996, 0.0
      %v5029 = vmax.f32 %v4997, 0.0
      %v5030 = vmax.f32 %v4998, 0.0
      %v5031 = vmax.f32 %v4999, 0.0
      %v5032 = vmax.f32 %v5000, 0.0
      %v5033 = vmax.f32 %v5001, 0.0
      %v5034 = vmax.f32 %v5002, 0.0
      %v5035 = vmax.f32 %v5003, 0.0
      %v5036 = vmax.f32 %v5004, 0.0
      %v5037 = vmax.f32 %v5005, 0.0
      %v5038 = vmax.f32 %v5006, 0.0
      %v5039 = vmax.f32 %v5007, 0.0
      %v5040 = vmax.f32 %v5008, 0.0
      %v5041 = vmax.f32 %v5009, 0.0
      %v5042 = vmax.f32 %v5010, 0.0
      %v5043 = vmax.f32 %v5011, 0.0
      %v5044 = vmax.f32 %v5012, 0.0
      %vm5045 = vcmask 125952
      %5046 = vst.msk [vmem:[#allocation3] sm:$0xf] %vm5045, 0
      %5047 = vst.msk [vmem:[#allocation3 + $0x4] sm:$0xf] %vm5045, 0
      %vm5048 = vcmask 122880
      %5049 = vst.msk [vmem:[#allocation3 + $0x8] sm:$0x1] %vm5048, 0
      %5050 = vst.msk [vmem:[#allocation3 + $0xc] sm:$0xf] %vm5045, 0
      %5051 = vst.msk [vmem:[#allocation3 + $0x10] sm:$0xf] %vm5045, 0
      %5052 = vst.msk [vmem:[#allocation3 + $0x14] sm:$0x1] %vm5048, 0
      %5053 = vst.msk [vmem:[#allocation3 + $0x18] sm:$0xf] %vm5045, 0
      %5054 = vst.msk [vmem:[#allocation3 + $0x1c] sm:$0xf] %vm5045, 0
      %5055 = vst.msk [vmem:[#allocation3 + $0x20] sm:$0x1] %vm5048, 0
      %5056 = vst.msk [vmem:[#allocation3 + $0x24] sm:$0xf] %vm5045, 0
      %5057 = vst.msk [vmem:[#allocation3 + $0x28] sm:$0xf] %vm5045, 0
      %5058 = vst.msk [vmem:[#allocation3 + $0x2c] sm:$0x1] %vm5048, 0
      %5059 = vst.msk [vmem:[#allocation3 + $0x30] sm:$0xf] %vm5045, 0
      %5060 = vst.msk [vmem:[#allocation3 + $0x34] sm:$0xf] %vm5045, 0
      %5061 = vst.msk [vmem:[#allocation3 + $0x38] sm:$0x1] %vm5048, 0
      %5062 = vst.msk [vmem:[#allocation3 + $0x3c] sm:$0xf] %vm5045, 0
      %5063 = vst.msk [vmem:[#allocation3 + $0x40] sm:$0xf] %vm5045, 0
      %5064 = vst.msk [vmem:[#allocation3 + $0x44] sm:$0x1] %vm5048, 0
      %5065 = vst.msk [vmem:[#allocation3 + $0x48] sm:$0xf] %vm5045, 0
      %5066 = vst.msk [vmem:[#allocation3 + $0x4c] sm:$0xf] %vm5045, 0
      %5067 = vst.msk [vmem:[#allocation3 + $0x50] sm:$0x1] %vm5048, 0
      %5068 = vst.msk [vmem:[#allocation3 + $0x54] sm:$0xf] %vm5045, 0
      %5069 = vst.msk [vmem:[#allocation3 + $0x58] sm:$0xf] %vm5045, 0
      %5070 = vst.msk [vmem:[#allocation3 + $0x5c] sm:$0x1] %vm5048, 0
      %5071 = vst.msk [vmem:[#allocation3 + $0x60] sm:$0xf] %vm5045, 0
      %5072 = vst.msk [vmem:[#allocation3 + $0x64] sm:$0xf] %vm5045, 0
      %5073 = vst.msk [vmem:[#allocation3 + $0x68] sm:$0x1] %vm5048, 0
      %5074 = vst.msk [vmem:[#allocation3 + $0x6c] sm:$0xf] %vm5045, 0
      %5075 = vst.msk [vmem:[#allocation3 + $0x70] sm:$0xf] %vm5045, 0
      %5076 = vst.msk [vmem:[#allocation3 + $0x74] sm:$0x1] %vm5048, 0
      %5077 = vst.msk [vmem:[#allocation3 + $0x78] sm:$0xf] %vm5045, 0
      %5078 = vst.msk [vmem:[#allocation3 + $0x7c] sm:$0xf] %vm5045, 0
      %5079 = vst.msk [vmem:[#allocation3 + $0x80] sm:$0x1] %vm5048, 0
      %5080 = vst.msk [vmem:[#allocation3 + $0x84] sm:$0xf] %vm5045, 0
      %5081 = vst.msk [vmem:[#allocation3 + $0x88] sm:$0xf] %vm5045, 0
      %5082 = vst.msk [vmem:[#allocation3 + $0x8c] sm:$0x1] %vm5048, 0
      %5083 = vst.msk [vmem:[#allocation3 + $0x90] sm:$0xf] %vm5045, 0
      %5084 = vst.msk [vmem:[#allocation3 + $0x94] sm:$0xf] %vm5045, 0
      %5085 = vst.msk [vmem:[#allocation3 + $0x98] sm:$0x1] %vm5048, 0
      %5086 = vst.msk [vmem:[#allocation3 + $0x9c] sm:$0xf] %vm5045, 0
      %5087 = vst.msk [vmem:[#allocation3 + $0xa0] sm:$0xf] %vm5045, 0
      %5088 = vst.msk [vmem:[#allocation3 + $0xa4] sm:$0x1] %vm5048, 0
      %5089 = vst.msk [vmem:[#allocation3 + $0xa8] sm:$0xf] %vm5045, 0
      %5090 = vst.msk [vmem:[#allocation3 + $0xac] sm:$0xf] %vm5045, 0
      %5091 = vst.msk [vmem:[#allocation3 + $0xb0] sm:$0x1] %vm5048, 0
      %5092 = vst.msk [vmem:[#allocation3 + $0xb4] sm:$0xf] %vm5045, 0
      %5093 = vst.msk [vmem:[#allocation3 + $0xb8] sm:$0xf] %vm5045, 0
      %5094 = vst.msk [vmem:[#allocation3 + $0xbc] sm:$0x1] %vm5048, 0
      %5095 = vst.msk [vmem:[#allocation3 + $0xc0] sm:$0xf] %vm5045, 0
      %5096 = vst.msk [vmem:[#allocation3 + $0xc4] sm:$0xf] %vm5045, 0
      %5097 = vst.msk [vmem:[#allocation3 + $0xc8] sm:$0x1] %vm5048, 0
      %5098 = vst.msk [vmem:[#allocation3 + $0xcc] sm:$0xf] %vm5045, 0
      %5099 = vst.msk [vmem:[#allocation3 + $0xd0] sm:$0xf] %vm5045, 0
      %5100 = vst.msk [vmem:[#allocation3 + $0xd4] sm:$0x1] %vm5048, 0
      %v5101 = vpack.c.bf16 %v5014, %v5013
      %v5102 = vpack.c.bf16 %v5016, %v5015
      %v5103 = vpack.c.bf16 %v5018, %v5017
      %v5104 = vpack.c.bf16 %v5020, %v5019
      %v5105 = vpack.c.bf16 %v5022, %v5021
      %v5106 = vpack.c.bf16 %v5024, %v5023
      %v5107 = vpack.c.bf16 %v5026, %v5025
      %v5108 = vpack.c.bf16 %v5028, %v5027
      %v5109 = vpack.c.bf16 %v5030, %v5029
      %v5110 = vpack.c.bf16 %v5032, %v5031
      %v5111 = vpack.c.bf16 %v5034, %v5033
      %v5112 = vpack.c.bf16 %v5036, %v5035
      %v5113 = vpack.c.bf16 %v5038, %v5037
      %v5114 = vpack.c.bf16 %v5040, %v5039
      %v5115 = vpack.c.bf16 %v5042, %v5041
      %v5116 = vpack.c.bf16 %v5044, %v5043
      %v5133 = vunpack.c.l.b16 %v5101
      %v5134 = vunpack.c.h.b16 %v5101
      %v5135 = vunpack.c.l.b16 %v5102
      %v5136 = vunpack.c.h.b16 %v5102
      %v5137 = vunpack.c.l.b16 %v5103
      %v5138 = vunpack.c.h.b16 %v5103
      %v5139 = vunpack.c.l.b16 %v5104
      %v5140 = vunpack.c.h.b16 %v5104
      %v5141 = vunpack.c.l.b16 %v5105
      %v5142 = vunpack.c.h.b16 %v5105
      %v5143 = vunpack.c.l.b16 %v5106
      %v5144 = vunpack.c.h.b16 %v5106
      %v5145 = vunpack.c.l.b16 %v5107
      %v5146 = vunpack.c.h.b16 %v5107
      %v5147 = vunpack.c.l.b16 %v5108
      %v5148 = vunpack.c.h.b16 %v5108
      %v5149 = vunpack.c.l.b16 %v5109
      %v5150 = vunpack.c.h.b16 %v5109
      %v5151 = vunpack.c.l.b16 %v5110
      %v5152 = vunpack.c.h.b16 %v5110
      %v5153 = vunpack.c.l.b16 %v5111
      %v5154 = vunpack.c.h.b16 %v5111
      %v5155 = vunpack.c.l.b16 %v5112
      %v5156 = vunpack.c.h.b16 %v5112
      %v5157 = vunpack.c.l.b16 %v5113
      %v5158 = vunpack.c.h.b16 %v5113
      %v5159 = vunpack.c.l.b16 %v5114
      %v5160 = vunpack.c.h.b16 %v5114
      %v5161 = vunpack.c.l.b16 %v5115
      %v5162 = vunpack.c.h.b16 %v5115
      %v5163 = vunpack.c.l.b16 %v5116
      %v5164 = vunpack.c.h.b16 %v5116
      %v5165 = vpack.c.b16 %v5133, %v5133
      %v5166 = vpack.c.b16 %v5134, %v5134
      %v5167 = vpack.c.b16 %v5135, %v5135
      %v5168 = vpack.c.b16 %v5136, %v5136
      %v5169 = vpack.c.b16 %v5137, %v5137
      %v5170 = vpack.c.b16 %v5138, %v5138
      %v5171 = vpack.c.b16 %v5139, %v5139
      %v5172 = vpack.c.b16 %v5140, %v5140
      %v5173 = vpack.c.b16 %v5141, %v5141
      %v5174 = vpack.c.b16 %v5142, %v5142
      %v5175 = vpack.c.b16 %v5143, %v5143
      %v5176 = vpack.c.b16 %v5144, %v5144
      %v5177 = vpack.c.b16 %v5145, %v5145
      %v5178 = vpack.c.b16 %v5146, %v5146
      %v5179 = vpack.c.b16 %v5147, %v5147
      %v5180 = vpack.c.b16 %v5148, %v5148
      %v5181 = vpack.c.b16 %v5149, %v5149
      %v5182 = vpack.c.b16 %v5150, %v5150
      %v5183 = vpack.c.b16 %v5151, %v5151
      %v5184 = vpack.c.b16 %v5152, %v5152
      %v5185 = vpack.c.b16 %v5153, %v5153
      %v5186 = vpack.c.b16 %v5154, %v5154
      %v5187 = vpack.c.b16 %v5155, %v5155
      %v5188 = vpack.c.b16 %v5156, %v5156
      %v5189 = vpack.c.b16 %v5157, %v5157
      %v5190 = vpack.c.b16 %v5158, %v5158
      %v5191 = vpack.c.b16 %v5159, %v5159
      %v5192 = vpack.c.b16 %v5160, %v5160
      %v5193 = vpack.c.b16 %v5161, %v5161
      %v5194 = vpack.c.b16 %v5162, %v5162
      %v5195 = vpack.c.b16 %v5163, %v5163
      %v5196 = vpack.c.b16 %v5164, %v5164
      %v5198 = vshrl.u32 %v5165, 16
      %v5200 = vrot.slane %v5198, 7
      %v5201 = vshll.u32 %v5165, 16
      %v5203 = vor.u32 %v5200, %v5201
      %v5204 = vrot.slane %v5200, 4
      %v5206 = vshrl.u32 %v5166, 16
      %v5208 = vrot.slane %v5206, 7
      %v5209 = vshll.u32 %v5166, 16
      %v5211 = vor.u32 %v5208, %v5209
      %v5212 = vsel %vm417, %v5204, %v5211
      %v5213 = vrot.slane %v5208, 4
      %v5215 = vshrl.u32 %v5167, 16
      %v5217 = vrot.slane %v5215, 7
      %v5218 = vshll.u32 %v5167, 16
      %v5220 = vor.u32 %v5217, %v5218
      %v5221 = vrot.slane %v5217, 4
      %v5223 = vshrl.u32 %v5168, 16
      %v5225 = vrot.slane %v5223, 7
      %v5226 = vshll.u32 %v5168, 16
      %v5228 = vor.u32 %v5225, %v5226
      %v5229 = vsel %vm417, %v5221, %v5228
      %v5230 = vrot.slane %v5225, 4
      %v5232 = vshrl.u32 %v5169, 16
      %v5234 = vrot.slane %v5232, 7
      %v5235 = vshll.u32 %v5169, 16
      %v5237 = vor.u32 %v5234, %v5235
      %v5238 = vrot.slane %v5234, 4
      %v5240 = vshrl.u32 %v5170, 16
      %v5242 = vrot.slane %v5240, 7
      %v5243 = vshll.u32 %v5170, 16
      %v5245 = vor.u32 %v5242, %v5243
      %v5246 = vsel %vm417, %v5238, %v5245
      %v5247 = vrot.slane %v5242, 4
      %v5249 = vshrl.u32 %v5171, 16
      %v5251 = vrot.slane %v5249, 7
      %v5252 = vshll.u32 %v5171, 16
      %v5254 = vor.u32 %v5251, %v5252
      %v5255 = vrot.slane %v5251, 4
      %v5257 = vshrl.u32 %v5172, 16
      %v5259 = vrot.slane %v5257, 7
      %v5260 = vshll.u32 %v5172, 16
      %v5262 = vor.u32 %v5259, %v5260
      %v5263 = vsel %vm417, %v5255, %v5262
      %v5264 = vrot.slane %v5259, 4
      %v5266 = vshrl.u32 %v5173, 16
      %v5268 = vrot.slane %v5266, 7
      %v5269 = vshll.u32 %v5173, 16
      %v5271 = vor.u32 %v5268, %v5269
      %v5272 = vrot.slane %v5268, 4
      %v5274 = vshrl.u32 %v5174, 16
      %v5276 = vrot.slane %v5274, 7
      %v5277 = vshll.u32 %v5174, 16
      %v5279 = vor.u32 %v5276, %v5277
      %v5280 = vsel %vm417, %v5272, %v5279
      %v5281 = vrot.slane %v5276, 4
      %v5283 = vshrl.u32 %v5175, 16
      %v5285 = vrot.slane %v5283, 7
      %v5286 = vshll.u32 %v5175, 16
      %v5288 = vor.u32 %v5285, %v5286
      %v5289 = vrot.slane %v5285, 4
      %v5291 = vshrl.u32 %v5176, 16
      %v5293 = vrot.slane %v5291, 7
      %v5294 = vshll.u32 %v5176, 16
      %v5296 = vor.u32 %v5293, %v5294
      %v5297 = vsel %vm417, %v5289, %v5296
      %v5298 = vrot.slane %v5293, 4
      %v5300 = vshrl.u32 %v5177, 16
      %v5302 = vrot.slane %v5300, 7
      %v5303 = vshll.u32 %v5177, 16
      %v5305 = vor.u32 %v5302, %v5303
      %v5306 = vrot.slane %v5302, 4
      %v5308 = vshrl.u32 %v5178, 16
      %v5310 = vrot.slane %v5308, 7
      %v5311 = vshll.u32 %v5178, 16
      %v5313 = vor.u32 %v5310, %v5311
      %v5314 = vsel %vm417, %v5306, %v5313
      %v5315 = vrot.slane %v5310, 4
      %v5317 = vshrl.u32 %v5179, 16
      %v5319 = vrot.slane %v5317, 7
      %v5320 = vshll.u32 %v5179, 16
      %v5322 = vor.u32 %v5319, %v5320
      %v5323 = vrot.slane %v5319, 4
      %v5325 = vshrl.u32 %v5180, 16
      %v5327 = vrot.slane %v5325, 7
      %v5328 = vshll.u32 %v5180, 16
      %v5330 = vor.u32 %v5327, %v5328
      %v5331 = vsel %vm417, %v5323, %v5330
      %v5332 = vrot.slane %v5327, 4
      %v5334 = vshrl.u32 %v5181, 16
      %v5336 = vrot.slane %v5334, 7
      %v5337 = vshll.u32 %v5181, 16
      %v5339 = vor.u32 %v5336, %v5337
      %v5340 = vrot.slane %v5336, 4
      %v5342 = vshrl.u32 %v5182, 16
      %v5344 = vrot.slane %v5342, 7
      %v5345 = vshll.u32 %v5182, 16
      %v5347 = vor.u32 %v5344, %v5345
      %v5348 = vsel %vm417, %v5340, %v5347
      %v5349 = vrot.slane %v5344, 4
      %v5351 = vshrl.u32 %v5183, 16
      %v5353 = vrot.slane %v5351, 7
      %v5354 = vshll.u32 %v5183, 16
      %v5356 = vor.u32 %v5353, %v5354
      %v5357 = vrot.slane %v5353, 4
      %v5359 = vshrl.u32 %v5184, 16
      %v5361 = vrot.slane %v5359, 7
      %v5362 = vshll.u32 %v5184, 16
      %v5364 = vor.u32 %v5361, %v5362
      %v5365 = vsel %vm417, %v5357, %v5364
      %v5366 = vrot.slane %v5361, 4
      %v5368 = vshrl.u32 %v5185, 16
      %v5370 = vrot.slane %v5368, 7
      %v5371 = vshll.u32 %v5185, 16
      %v5373 = vor.u32 %v5370, %v5371
      %v5374 = vrot.slane %v5370, 4
      %v5376 = vshrl.u32 %v5186, 16
      %v5378 = vrot.slane %v5376, 7
      %v5379 = vshll.u32 %v5186, 16
      %v5381 = vor.u32 %v5378, %v5379
      %v5382 = vsel %vm417, %v5374, %v5381
      %v5383 = vrot.slane %v5378, 4
      %v5385 = vshrl.u32 %v5187, 16
      %v5387 = vrot.slane %v5385, 7
      %v5388 = vshll.u32 %v5187, 16
      %v5390 = vor.u32 %v5387, %v5388
      %v5391 = vrot.slane %v5387, 4
      %v5393 = vshrl.u32 %v5188, 16
      %v5395 = vrot.slane %v5393, 7
      %v5396 = vshll.u32 %v5188, 16
      %v5398 = vor.u32 %v5395, %v5396
      %v5399 = vsel %vm417, %v5391, %v5398
      %v5400 = vrot.slane %v5395, 4
      %v5402 = vshrl.u32 %v5189, 16
      %v5404 = vrot.slane %v5402, 7
      %v5405 = vshll.u32 %v5189, 16
      %v5407 = vor.u32 %v5404, %v5405
      %v5408 = vrot.slane %v5404, 4
      %v5410 = vshrl.u32 %v5190, 16
      %v5412 = vrot.slane %v5410, 7
      %v5413 = vshll.u32 %v5190, 16
      %v5415 = vor.u32 %v5412, %v5413
      %v5416 = vsel %vm417, %v5408, %v5415
      %v5417 = vrot.slane %v5412, 4
      %v5419 = vshrl.u32 %v5191, 16
      %v5421 = vrot.slane %v5419, 7
      %v5422 = vshll.u32 %v5191, 16
      %v5424 = vor.u32 %v5421, %v5422
      %v5425 = vrot.slane %v5421, 4
      %v5427 = vshrl.u32 %v5192, 16
      %v5429 = vrot.slane %v5427, 7
      %v5430 = vshll.u32 %v5192, 16
      %v5432 = vor.u32 %v5429, %v5430
      %v5433 = vsel %vm417, %v5425, %v5432
      %v5434 = vrot.slane %v5429, 4
      %v5436 = vshrl.u32 %v5193, 16
      %v5438 = vrot.slane %v5436, 7
      %v5439 = vshll.u32 %v5193, 16
      %v5441 = vor.u32 %v5438, %v5439
      %v5442 = vrot.slane %v5438, 4
      %v5444 = vshrl.u32 %v5194, 16
      %v5446 = vrot.slane %v5444, 7
      %v5447 = vshll.u32 %v5194, 16
      %v5449 = vor.u32 %v5446, %v5447
      %v5450 = vsel %vm417, %v5442, %v5449
      %v5451 = vrot.slane %v5446, 4
      %v5453 = vshrl.u32 %v5195, 16
      %v5455 = vrot.slane %v5453, 7
      %v5456 = vshll.u32 %v5195, 16
      %v5458 = vor.u32 %v5455, %v5456
      %v5459 = vrot.slane %v5455, 4
      %v5461 = vshrl.u32 %v5196, 16
      %v5463 = vrot.slane %v5461, 7
      %v5464 = vshll.u32 %v5196, 16
      %v5466 = vor.u32 %v5463, %v5464
      %v5467 = vsel %vm417, %v5459, %v5466
      %v5468 = vrot.slane %v5463, 4
      %s5517 = scalar_lea.vmem [#allocation3], 12
      %vm5518 = vcmask 125952
      %vm5519 = vmand %vm5518, %vm740
      %v5520 = vld [vmem:[%s5517] sm:$0xf]
      %v5521 = vsel %vm5519, %v5203, %v5520
      %5522 = vst [vmem:[%s5517] sm:$0xf] %v5521
      %5523 = vst.msk [vmem:[%s5517 + $0x4] sm:$0xf] %vm5045, %v5212
      %vm5524 = vcmask 122880
      %vm5525 = vmand %vm5524, %vm415
      %v5526 = vld [vmem:[%s5517 + $0x8] sm:$0x1]
      %v5527 = vsel %vm5525, %v5213, %v5526
      %5528 = vst [vmem:[%s5517 + $0x8] sm:$0x1] %v5527
      %v5529 = vld [vmem:[%s5517 + $0xc] sm:$0xf]
      %v5530 = vsel %vm5519, %v5220, %v5529
      %5531 = vst [vmem:[%s5517 + $0xc] sm:$0xf] %v5530
      %5532 = vst.msk [vmem:[%s5517 + $0x10] sm:$0xf] %vm5045, %v5229
      %v5533 = vld [vmem:[%s5517 + $0x14] sm:$0x1]
      %v5534 = vsel %vm5525, %v5230, %v5533
      %5535 = vst [vmem:[%s5517 + $0x14] sm:$0x1] %v5534
      %v5536 = vld [vmem:[%s5517 + $0x18] sm:$0xf]
      %v5537 = vsel %vm5519, %v5237, %v5536
      %5538 = vst [vmem:[%s5517 + $0x18] sm:$0xf] %v5537
      %5539 = vst.msk [vmem:[%s5517 + $0x1c] sm:$0xf] %vm5045, %v5246
      %v5540 = vld [vmem:[%s5517 + $0x20] sm:$0x1]
      %v5541 = vsel %vm5525, %v5247, %v5540
      %5542 = vst [vmem:[%s5517 + $0x20] sm:$0x1] %v5541
      %v5543 = vld [vmem:[%s5517 + $0x24] sm:$0xf]
      %v5544 = vsel %vm5519, %v5254, %v5543
      %5545 = vst [vmem:[%s5517 + $0x24] sm:$0xf] %v5544
      %5546 = vst.msk [vmem:[%s5517 + $0x28] sm:$0xf] %vm5045, %v5263
      %v5547 = vld [vmem:[%s5517 + $0x2c] sm:$0x1]
      %v5548 = vsel %vm5525, %v5264, %v5547
      %5549 = vst [vmem:[%s5517 + $0x2c] sm:$0x1] %v5548
      %v5550 = vld [vmem:[%s5517 + $0x30] sm:$0xf]
      %v5551 = vsel %vm5519, %v5271, %v5550
      %5552 = vst [vmem:[%s5517 + $0x30] sm:$0xf] %v5551
      %5553 = vst.msk [vmem:[%s5517 + $0x34] sm:$0xf] %vm5045, %v5280
      %v5554 = vld [vmem:[%s5517 + $0x38] sm:$0x1]
      %v5555 = vsel %vm5525, %v5281, %v5554
      %5556 = vst [vmem:[%s5517 + $0x38] sm:$0x1] %v5555
      %v5557 = vld [vmem:[%s5517 + $0x3c] sm:$0xf]
      %v5558 = vsel %vm5519, %v5288, %v5557
      %5559 = vst [vmem:[%s5517 + $0x3c] sm:$0xf] %v5558
      %5560 = vst.msk [vmem:[%s5517 + $0x40] sm:$0xf] %vm5045, %v5297
      %v5561 = vld [vmem:[%s5517 + $0x44] sm:$0x1]
      %v5562 = vsel %vm5525, %v5298, %v5561
      %5563 = vst [vmem:[%s5517 + $0x44] sm:$0x1] %v5562
      %v5564 = vld [vmem:[%s5517 + $0x48] sm:$0xf]
      %v5565 = vsel %vm5519, %v5305, %v5564
      %5566 = vst [vmem:[%s5517 + $0x48] sm:$0xf] %v5565
      %5567 = vst.msk [vmem:[%s5517 + $0x4c] sm:$0xf] %vm5045, %v5314
      %v5568 = vld [vmem:[%s5517 + $0x50] sm:$0x1]
      %v5569 = vsel %vm5525, %v5315, %v5568
      %5570 = vst [vmem:[%s5517 + $0x50] sm:$0x1] %v5569
      %v5571 = vld [vmem:[%s5517 + $0x54] sm:$0xf]
      %v5572 = vsel %vm5519, %v5322, %v5571
      %5573 = vst [vmem:[%s5517 + $0x54] sm:$0xf] %v5572
      %5574 = vst.msk [vmem:[%s5517 + $0x58] sm:$0xf] %vm5045, %v5331
      %v5575 = vld [vmem:[%s5517 + $0x5c] sm:$0x1]
      %v5576 = vsel %vm5525, %v5332, %v5575
      %5577 = vst [vmem:[%s5517 + $0x5c] sm:$0x1] %v5576
      %v5578 = vld [vmem:[%s5517 + $0x60] sm:$0xf]
      %v5579 = vsel %vm5519, %v5339, %v5578
      %5580 = vst [vmem:[%s5517 + $0x60] sm:$0xf] %v5579
      %5581 = vst.msk [vmem:[%s5517 + $0x64] sm:$0xf] %vm5045, %v5348
      %v5582 = vld [vmem:[%s5517 + $0x68] sm:$0x1]
      %v5583 = vsel %vm5525, %v5349, %v5582
      %5584 = vst [vmem:[%s5517 + $0x68] sm:$0x1] %v5583
      %v5585 = vld [vmem:[%s5517 + $0x6c] sm:$0xf]
      %v5586 = vsel %vm5519, %v5356, %v5585
      %5587 = vst [vmem:[%s5517 + $0x6c] sm:$0xf] %v5586
      %5588 = vst.msk [vmem:[%s5517 + $0x70] sm:$0xf] %vm5045, %v5365
      %v5589 = vld [vmem:[%s5517 + $0x74] sm:$0x1]
      %v5590 = vsel %vm5525, %v5366, %v5589
      %5591 = vst [vmem:[%s5517 + $0x74] sm:$0x1] %v5590
      %v5592 = vld [vmem:[%s5517 + $0x78] sm:$0xf]
      %v5593 = vsel %vm5519, %v5373, %v5592
      %5594 = vst [vmem:[%s5517 + $0x78] sm:$0xf] %v5593
      %5595 = vst.msk [vmem:[%s5517 + $0x7c] sm:$0xf] %vm5045, %v5382
      %v5596 = vld [vmem:[%s5517 + $0x80] sm:$0x1]
      %v5597 = vsel %vm5525, %v5383, %v5596
      %5598 = vst [vmem:[%s5517 + $0x80] sm:$0x1] %v5597
      %v5599 = vld [vmem:[%s5517 + $0x84] sm:$0xf]
      %v5600 = vsel %vm5519, %v5390, %v5599
      %5601 = vst [vmem:[%s5517 + $0x84] sm:$0xf] %v5600
      %5602 = vst.msk [vmem:[%s5517 + $0x88] sm:$0xf] %vm5045, %v5399
      %v5603 = vld [vmem:[%s5517 + $0x8c] sm:$0x1]
      %v5604 = vsel %vm5525, %v5400, %v5603
      %5605 = vst [vmem:[%s5517 + $0x8c] sm:$0x1] %v5604
      %v5606 = vld [vmem:[%s5517 + $0x90] sm:$0xf]
      %v5607 = vsel %vm5519, %v5407, %v5606
      %5608 = vst [vmem:[%s5517 + $0x90] sm:$0xf] %v5607
      %5609 = vst.msk [vmem:[%s5517 + $0x94] sm:$0xf] %vm5045, %v5416
      %v5610 = vld [vmem:[%s5517 + $0x98] sm:$0x1]
      %v5611 = vsel %vm5525, %v5417, %v5610
      %5612 = vst [vmem:[%s5517 + $0x98] sm:$0x1] %v5611
      %v5613 = vld [vmem:[%s5517 + $0x9c] sm:$0xf]
      %v5614 = vsel %vm5519, %v5424, %v5613
      %5615 = vst [vmem:[%s5517 + $0x9c] sm:$0xf] %v5614
      %5616 = vst.msk [vmem:[%s5517 + $0xa0] sm:$0xf] %vm5045, %v5433
      %v5617 = vld [vmem:[%s5517 + $0xa4] sm:$0x1]
      %v5618 = vsel %vm5525, %v5434, %v5617
      %5619 = vst [vmem:[%s5517 + $0xa4] sm:$0x1] %v5618
      %v5620 = vld [vmem:[%s5517 + $0xa8] sm:$0xf]
      %v5621 = vsel %vm5519, %v5441, %v5620
      %5622 = vst [vmem:[%s5517 + $0xa8] sm:$0xf] %v5621
      %5623 = vst.msk [vmem:[%s5517 + $0xac] sm:$0xf] %vm5045, %v5450
      %v5624 = vld [vmem:[%s5517 + $0xb0] sm:$0x1]
      %v5625 = vsel %vm5525, %v5451, %v5624
      %5626 = vst [vmem:[%s5517 + $0xb0] sm:$0x1] %v5625
      %v5627 = vld [vmem:[%s5517 + $0xb4] sm:$0xf]
      %v5628 = vsel %vm5519, %v5458, %v5627
      %5629 = vst [vmem:[%s5517 + $0xb4] sm:$0xf] %v5628
      %5630 = vst.msk [vmem:[%s5517 + $0xb8] sm:$0xf] %vm5045, %v5467
      %v5631 = vld [vmem:[%s5517 + $0xbc] sm:$0x1]
      %v5632 = vsel %vm5525, %v5468, %v5631
      %5633 = vst [vmem:[%s5517 + $0xbc] sm:$0x1] %v5632
      %v5634 = vld [vmem:[#allocation3] sm:$0xf]
      %v5635 = vld [vmem:[#allocation3 + $0x4] sm:$0xf]
      %v5636 = vld [vmem:[#allocation3 + $0xc] sm:$0xf]
      %v5637 = vld [vmem:[#allocation3 + $0x10] sm:$0xf]
      %v5638 = vld [vmem:[#allocation3 + $0x18] sm:$0xf]
      %v5639 = vld [vmem:[#allocation3 + $0x1c] sm:$0xf]
      %v5640 = vld [vmem:[#allocation3 + $0x24] sm:$0xf]
      %v5641 = vld [vmem:[#allocation3 + $0x28] sm:$0xf]
      %v5642 = vld [vmem:[#allocation3 + $0x30] sm:$0xf]
      %v5643 = vld [vmem:[#allocation3 + $0x34] sm:$0xf]
      %v5644 = vld [vmem:[#allocation3 + $0x3c] sm:$0xf]
      %v5645 = vld [vmem:[#allocation3 + $0x40] sm:$0xf]
      %v5646 = vld [vmem:[#allocation3 + $0x48] sm:$0xf]
      %v5647 = vld [vmem:[#allocation3 + $0x4c] sm:$0xf]
      %v5648 = vld [vmem:[#allocation3 + $0x54] sm:$0xf]
      %v5649 = vld [vmem:[#allocation3 + $0x58] sm:$0xf]
      %v5650 = vld [vmem:[#allocation3 + $0x60] sm:$0xf]
      %v5651 = vld [vmem:[#allocation3 + $0x64] sm:$0xf]
      %v5652 = vld [vmem:[#allocation3 + $0x6c] sm:$0xf]
      %v5653 = vld [vmem:[#allocation3 + $0x70] sm:$0xf]
      %v5654 = vld [vmem:[#allocation3 + $0x78] sm:$0xf]
      %v5655 = vld [vmem:[#allocation3 + $0x7c] sm:$0xf]
      %v5656 = vld [vmem:[#allocation3 + $0x84] sm:$0xf]
      %v5657 = vld [vmem:[#allocation3 + $0x88] sm:$0xf]
      %v5658 = vld [vmem:[#allocation3 + $0x90] sm:$0xf]
      %v5659 = vld [vmem:[#allocation3 + $0x94] sm:$0xf]
      %v5660 = vld [vmem:[#allocation3 + $0x9c] sm:$0xf]
      %v5661 = vld [vmem:[#allocation3 + $0xa0] sm:$0xf]
      %v5662 = vld [vmem:[#allocation3 + $0xa8] sm:$0xf]
      %v5663 = vld [vmem:[#allocation3 + $0xac] sm:$0xf]
      %v5664 = vld [vmem:[#allocation3 + $0xb4] sm:$0xf]
      %v5665 = vld [vmem:[#allocation3 + $0xb8] sm:$0xf]
      %5666 = vst.msk [vmem:[#allocation5] sm:$0xf] %vm5045, %v5634
      %5667 = vst.msk [vmem:[#allocation5 + $0x8] sm:$0xf] %vm5045, %v5635
      %5668 = vst.msk [vmem:[#allocation5 + $0x10] sm:$0xf] %vm5045, %v5636
      %5669 = vst.msk [vmem:[#allocation5 + $0x18] sm:$0xf] %vm5045, %v5637
      %5670 = vst.msk [vmem:[#allocation5 + $0x20] sm:$0xf] %vm5045, %v5638
      %5671 = vst.msk [vmem:[#allocation5 + $0x28] sm:$0xf] %vm5045, %v5639
      %5672 = vst.msk [vmem:[#allocation5 + $0x30] sm:$0xf] %vm5045, %v5640
      %5673 = vst.msk [vmem:[#allocation5 + $0x38] sm:$0xf] %vm5045, %v5641
      %5674 = vst.msk [vmem:[#allocation5 + $0x40] sm:$0xf] %vm5045, %v5642
      %5675 = vst.msk [vmem:[#allocation5 + $0x48] sm:$0xf] %vm5045, %v5643
      %5676 = vst.msk [vmem:[#allocation5 + $0x50] sm:$0xf] %vm5045, %v5644
      %5677 = vst.msk [vmem:[#allocation5 + $0x58] sm:$0xf] %vm5045, %v5645
      %5678 = vst.msk [vmem:[#allocation5 + $0x60] sm:$0xf] %vm5045, %v5646
      %5679 = vst.msk [vmem:[#allocation5 + $0x68] sm:$0xf] %vm5045, %v5647
      %5680 = vst.msk [vmem:[#allocation5 + $0x70] sm:$0xf] %vm5045, %v5648
      %5681 = vst.msk [vmem:[#allocation5 + $0x78] sm:$0xf] %vm5045, %v5649
      %5682 = vst.msk [vmem:[#allocation5 + $0x80] sm:$0xf] %vm5045, %v5650
      %5683 = vst.msk [vmem:[#allocation5 + $0x88] sm:$0xf] %vm5045, %v5651
      %5684 = vst.msk [vmem:[#allocation5 + $0x90] sm:$0xf] %vm5045, %v5652
      %5685 = vst.msk [vmem:[#allocation5 + $0x98] sm:$0xf] %vm5045, %v5653
      %5686 = vst.msk [vmem:[#allocation5 + $0xa0] sm:$0xf] %vm5045, %v5654
      %5687 = vst.msk [vmem:[#allocation5 + $0xa8] sm:$0xf] %vm5045, %v5655
      %5688 = vst.msk [vmem:[#allocation5 + $0xb0] sm:$0xf] %vm5045, %v5656
      %5689 = vst.msk [vmem:[#allocation5 + $0xb8] sm:$0xf] %vm5045, %v5657
      %5690 = vst.msk [vmem:[#allocation5 + $0xc0] sm:$0xf] %vm5045, %v5658
      %5691 = vst.msk [vmem:[#allocation5 + $0xc8] sm:$0xf] %vm5045, %v5659
      %5692 = vst.msk [vmem:[#allocation5 + $0xd0] sm:$0xf] %vm5045, %v5660
      %5693 = vst.msk [vmem:[#allocation5 + $0xd8] sm:$0xf] %vm5045, %v5661
      %5694 = vst.msk [vmem:[#allocation5 + $0xe0] sm:$0xf] %vm5045, %v5662
      %5695 = vst.msk [vmem:[#allocation5 + $0xe8] sm:$0xf] %vm5045, %v5663
      %5696 = vst.msk [vmem:[#allocation5 + $0xf0] sm:$0xf] %vm5045, %v5664
      %5697 = vst.msk [vmem:[#allocation5 + $0xf8] sm:$0xf] %vm5045, %v5665
      %v5698 = vld [vmem:[#allocation3] sm:$0xf]
      %v5699 = vld [vmem:[#allocation3 + $0x4] sm:$0xf]
      %v5700 = vld [vmem:[#allocation3 + $0x8] sm:$0x1]
      %v5701 = vld [vmem:[#allocation3 + $0xc] sm:$0xf]
      %v5702 = vld [vmem:[#allocation3 + $0x10] sm:$0xf]
      %v5703 = vld [vmem:[#allocation3 + $0x14] sm:$0x1]
      %v5704 = vld [vmem:[#allocation3 + $0x18] sm:$0xf]
      %v5705 = vld [vmem:[#allocation3 + $0x1c] sm:$0xf]
      %v5706 = vld [vmem:[#allocation3 + $0x20] sm:$0x1]
      %v5707 = vld [vmem:[#allocation3 + $0x24] sm:$0xf]
      %v5708 = vld [vmem:[#allocation3 + $0x28] sm:$0xf]
      %v5709 = vld [vmem:[#allocation3 + $0x2c] sm:$0x1]
      %v5710 = vld [vmem:[#allocation3 + $0x30] sm:$0xf]
      %v5711 = vld [vmem:[#allocation3 + $0x34] sm:$0xf]
      %v5712 = vld [vmem:[#allocation3 + $0x38] sm:$0x1]
      %v5713 = vld [vmem:[#allocation3 + $0x3c] sm:$0xf]
      %v5714 = vld [vmem:[#allocation3 + $0x40] sm:$0xf]
      %v5715 = vld [vmem:[#allocation3 + $0x44] sm:$0x1]
      %v5716 = vld [vmem:[#allocation3 + $0x48] sm:$0xf]
      %v5717 = vld [vmem:[#allocation3 + $0x4c] sm:$0xf]
      %v5718 = vld [vmem:[#allocation3 + $0x50] sm:$0x1]
      %v5719 = vld [vmem:[#allocation3 + $0x54] sm:$0xf]
      %v5720 = vld [vmem:[#allocation3 + $0x58] sm:$0xf]
      %v5721 = vld [vmem:[#allocation3 + $0x5c] sm:$0x1]
      %v5722 = vld [vmem:[#allocation3 + $0x60] sm:$0xf]
      %v5723 = vld [vmem:[#allocation3 + $0x64] sm:$0xf]
      %v5724 = vld [vmem:[#allocation3 + $0x68] sm:$0x1]
      %v5725 = vld [vmem:[#allocation3 + $0x6c] sm:$0xf]
      %v5726 = vld [vmem:[#allocation3 + $0x70] sm:$0xf]
      %v5727 = vld [vmem:[#allocation3 + $0x74] sm:$0x1]
      %v5728 = vld [vmem:[#allocation3 + $0x78] sm:$0xf]
      %v5729 = vld [vmem:[#allocation3 + $0x7c] sm:$0xf]
      %v5730 = vld [vmem:[#allocation3 + $0x80] sm:$0x1]
      %v5731 = vld [vmem:[#allocation3 + $0x84] sm:$0xf]
      %v5732 = vld [vmem:[#allocation3 + $0x88] sm:$0xf]
      %v5733 = vld [vmem:[#allocation3 + $0x8c] sm:$0x1]
      %v5734 = vld [vmem:[#allocation3 + $0x90] sm:$0xf]
      %v5735 = vld [vmem:[#allocation3 + $0x94] sm:$0xf]
      %v5736 = vld [vmem:[#allocation3 + $0x98] sm:$0x1]
      %v5737 = vld [vmem:[#allocation3 + $0x9c] sm:$0xf]
      %v5738 = vld [vmem:[#allocation3 + $0xa0] sm:$0xf]
      %v5739 = vld [vmem:[#allocation3 + $0xa4] sm:$0x1]
      %v5740 = vld [vmem:[#allocation3 + $0xa8] sm:$0xf]
      %v5741 = vld [vmem:[#allocation3 + $0xac] sm:$0xf]
      %v5742 = vld [vmem:[#allocation3 + $0xb0] sm:$0x1]
      %v5743 = vld [vmem:[#allocation3 + $0xb4] sm:$0xf]
      %v5744 = vld [vmem:[#allocation3 + $0xb8] sm:$0xf]
      %v5745 = vld [vmem:[#allocation3 + $0xbc] sm:$0x1]
      %v5747 = vshrl.u32 %v5698, 16
      %v5749 = vrot.slane %v5747, 4
      %v5750 = vshll.u32 %v5698, 16
      %v5752 = vrot.slane %v5750, 5
      %v5753 = vor.u32 %v5749, %v5752
      %v5754 = vrot.slane %v5753, 4
      %v5756 = vshll.u32 %v5699, 16
      %v5758 = vrot.slane %v5756, 5
      %v5759 = vsel %vm1536, %v5754, %v5758
      %v5760 = vshrl.u32 %v5699, 16
      %v5762 = vrot.slane %v5760, 4
      %v5763 = vor.u32 %v5762, %v5758
      %v5764 = vrot.slane %v5763, 4
      %v5766 = vshll.u32 %v5700, 16
      %v5768 = vrot.slane %v5766, 5
      %v5769 = vsel %vm1536, %v5764, %v5768
      %v5771 = vshrl.u32 %v5701, 16
      %v5773 = vrot.slane %v5771, 4
      %v5774 = vshll.u32 %v5701, 16
      %v5776 = vrot.slane %v5774, 5
      %v5777 = vor.u32 %v5773, %v5776
      %v5778 = vrot.slane %v5777, 4
      %v5780 = vshll.u32 %v5702, 16
      %v5782 = vrot.slane %v5780, 5
      %v5783 = vsel %vm1536, %v5778, %v5782
      %v5784 = vshrl.u32 %v5702, 16
      %v5786 = vrot.slane %v5784, 4
      %v5787 = vor.u32 %v5786, %v5782
      %v5788 = vrot.slane %v5787, 4
      %v5790 = vshll.u32 %v5703, 16
      %v5792 = vrot.slane %v5790, 5
      %v5793 = vsel %vm1536, %v5788, %v5792
      %v5795 = vshrl.u32 %v5704, 16
      %v5797 = vrot.slane %v5795, 4
      %v5798 = vshll.u32 %v5704, 16
      %v5800 = vrot.slane %v5798, 5
      %v5801 = vor.u32 %v5797, %v5800
      %v5802 = vrot.slane %v5801, 4
      %v5804 = vshll.u32 %v5705, 16
      %v5806 = vrot.slane %v5804, 5
      %v5807 = vsel %vm1536, %v5802, %v5806
      %v5808 = vshrl.u32 %v5705, 16
      %v5810 = vrot.slane %v5808, 4
      %v5811 = vor.u32 %v5810, %v5806
      %v5812 = vrot.slane %v5811, 4
      %v5814 = vshll.u32 %v5706, 16
      %v5816 = vrot.slane %v5814, 5
      %v5817 = vsel %vm1536, %v5812, %v5816
      %v5819 = vshrl.u32 %v5707, 16
      %v5821 = vrot.slane %v5819, 4
      %v5822 = vshll.u32 %v5707, 16
      %v5824 = vrot.slane %v5822, 5
      %v5825 = vor.u32 %v5821, %v5824
      %v5826 = vrot.slane %v5825, 4
      %v5828 = vshll.u32 %v5708, 16
      %v5830 = vrot.slane %v5828, 5
      %v5831 = vsel %vm1536, %v5826, %v5830
      %v5832 = vshrl.u32 %v5708, 16
      %v5834 = vrot.slane %v5832, 4
      %v5835 = vor.u32 %v5834, %v5830
      %v5836 = vrot.slane %v5835, 4
      %v5838 = vshll.u32 %v5709, 16
      %v5840 = vrot.slane %v5838, 5
      %v5841 = vsel %vm1536, %v5836, %v5840
      %v5843 = vshrl.u32 %v5710, 16
      %v5845 = vrot.slane %v5843, 4
      %v5846 = vshll.u32 %v5710, 16
      %v5848 = vrot.slane %v5846, 5
      %v5849 = vor.u32 %v5845, %v5848
      %v5850 = vrot.slane %v5849, 4
      %v5852 = vshll.u32 %v5711, 16
      %v5854 = vrot.slane %v5852, 5
      %v5855 = vsel %vm1536, %v5850, %v5854
      %v5856 = vshrl.u32 %v5711, 16
      %v5858 = vrot.slane %v5856, 4
      %v5859 = vor.u32 %v5858, %v5854
      %v5860 = vrot.slane %v5859, 4
      %v5862 = vshll.u32 %v5712, 16
      %v5864 = vrot.slane %v5862, 5
      %v5865 = vsel %vm1536, %v5860, %v5864
      %v5867 = vshrl.u32 %v5713, 16
      %v5869 = vrot.slane %v5867, 4
      %v5870 = vshll.u32 %v5713, 16
      %v5872 = vrot.slane %v5870, 5
      %v5873 = vor.u32 %v5869, %v5872
      %v5874 = vrot.slane %v5873, 4
      %v5876 = vshll.u32 %v5714, 16
      %v5878 = vrot.slane %v5876, 5
      %v5879 = vsel %vm1536, %v5874, %v5878
      %v5880 = vshrl.u32 %v5714, 16
      %v5882 = vrot.slane %v5880, 4
      %v5883 = vor.u32 %v5882, %v5878
      %v5884 = vrot.slane %v5883, 4
      %v5886 = vshll.u32 %v5715, 16
      %v5888 = vrot.slane %v5886, 5
      %v5889 = vsel %vm1536, %v5884, %v5888
      %v5891 = vshrl.u32 %v5716, 16
      %v5893 = vrot.slane %v5891, 4
      %v5894 = vshll.u32 %v5716, 16
      %v5896 = vrot.slane %v5894, 5
      %v5897 = vor.u32 %v5893, %v5896
      %v5898 = vrot.slane %v5897, 4
      %v5900 = vshll.u32 %v5717, 16
      %v5902 = vrot.slane %v5900, 5
      %v5903 = vsel %vm1536, %v5898, %v5902
      %v5904 = vshrl.u32 %v5717, 16
      %v5906 = vrot.slane %v5904, 4
      %v5907 = vor.u32 %v5906, %v5902
      %v5908 = vrot.slane %v5907, 4
      %v5910 = vshll.u32 %v5718, 16
      %v5912 = vrot.slane %v5910, 5
      %v5913 = vsel %vm1536, %v5908, %v5912
      %v5915 = vshrl.u32 %v5719, 16
      %v5917 = vrot.slane %v5915, 4
      %v5918 = vshll.u32 %v5719, 16
      %v5920 = vrot.slane %v5918, 5
      %v5921 = vor.u32 %v5917, %v5920
      %v5922 = vrot.slane %v5921, 4
      %v5924 = vshll.u32 %v5720, 16
      %v5926 = vrot.slane %v5924, 5
      %v5927 = vsel %vm1536, %v5922, %v5926
      %v5928 = vshrl.u32 %v5720, 16
      %v5930 = vrot.slane %v5928, 4
      %v5931 = vor.u32 %v5930, %v5926
      %v5932 = vrot.slane %v5931, 4
      %v5934 = vshll.u32 %v5721, 16
      %v5936 = vrot.slane %v5934, 5
      %v5937 = vsel %vm1536, %v5932, %v5936
      %v5939 = vshrl.u32 %v5722, 16
      %v5941 = vrot.slane %v5939, 4
      %v5942 = vshll.u32 %v5722, 16
      %v5944 = vrot.slane %v5942, 5
      %v5945 = vor.u32 %v5941, %v5944
      %v5946 = vrot.slane %v5945, 4
      %v5948 = vshll.u32 %v5723, 16
      %v5950 = vrot.slane %v5948, 5
      %v5951 = vsel %vm1536, %v5946, %v5950
      %v5952 = vshrl.u32 %v5723, 16
      %v5954 = vrot.slane %v5952, 4
      %v5955 = vor.u32 %v5954, %v5950
      %v5956 = vrot.slane %v5955, 4
      %v5958 = vshll.u32 %v5724, 16
      %v5960 = vrot.slane %v5958, 5
      %v5961 = vsel %vm1536, %v5956, %v5960
      %v5963 = vshrl.u32 %v5725, 16
      %v5965 = vrot.slane %v5963, 4
      %v5966 = vshll.u32 %v5725, 16
      %v5968 = vrot.slane %v5966, 5
      %v5969 = vor.u32 %v5965, %v5968
      %v5970 = vrot.slane %v5969, 4
      %v5972 = vshll.u32 %v5726, 16
      %v5974 = vrot.slane %v5972, 5
      %v5975 = vsel %vm1536, %v5970, %v5974
      %v5976 = vshrl.u32 %v5726, 16
      %v5978 = vrot.slane %v5976, 4
      %v5979 = vor.u32 %v5978, %v5974
      %v5980 = vrot.slane %v5979, 4
      %v5982 = vshll.u32 %v5727, 16
      %v5984 = vrot.slane %v5982, 5
      %v5985 = vsel %vm1536, %v5980, %v5984
      %v5987 = vshrl.u32 %v5728, 16
      %v5989 = vrot.slane %v5987, 4
      %v5990 = vshll.u32 %v5728, 16
      %v5992 = vrot.slane %v5990, 5
      %v5993 = vor.u32 %v5989, %v5992
      %v5994 = vrot.slane %v5993, 4
      %v5996 = vshll.u32 %v5729, 16
      %v5998 = vrot.slane %v5996, 5
      %v5999 = vsel %vm1536, %v5994, %v5998
      %v6000 = vshrl.u32 %v5729, 16
      %v6002 = vrot.slane %v6000, 4
      %v6003 = vor.u32 %v6002, %v5998
      %v6004 = vrot.slane %v6003, 4
      %v6006 = vshll.u32 %v5730, 16
      %v6008 = vrot.slane %v6006, 5
      %v6009 = vsel %vm1536, %v6004, %v6008
      %v6011 = vshrl.u32 %v5731, 16
      %v6013 = vrot.slane %v6011, 4
      %v6014 = vshll.u32 %v5731, 16
      %v6016 = vrot.slane %v6014, 5
      %v6017 = vor.u32 %v6013, %v6016
      %v6018 = vrot.slane %v6017, 4
      %v6020 = vshll.u32 %v5732, 16
      %v6022 = vrot.slane %v6020, 5
      %v6023 = vsel %vm1536, %v6018, %v6022
      %v6024 = vshrl.u32 %v5732, 16
      %v6026 = vrot.slane %v6024, 4
      %v6027 = vor.u32 %v6026, %v6022
      %v6028 = vrot.slane %v6027, 4
      %v6030 = vshll.u32 %v5733, 16
      %v6032 = vrot.slane %v6030, 5
      %v6033 = vsel %vm1536, %v6028, %v6032
      %v6035 = vshrl.u32 %v5734, 16
      %v6037 = vrot.slane %v6035, 4
      %v6038 = vshll.u32 %v5734, 16
      %v6040 = vrot.slane %v6038, 5
      %v6041 = vor.u32 %v6037, %v6040
      %v6042 = vrot.slane %v6041, 4
      %v6044 = vshll.u32 %v5735, 16
      %v6046 = vrot.slane %v6044, 5
      %v6047 = vsel %vm1536, %v6042, %v6046
      %v6048 = vshrl.u32 %v5735, 16
      %v6050 = vrot.slane %v6048, 4
      %v6051 = vor.u32 %v6050, %v6046
      %v6052 = vrot.slane %v6051, 4
      %v6054 = vshll.u32 %v5736, 16
      %v6056 = vrot.slane %v6054, 5
      %v6057 = vsel %vm1536, %v6052, %v6056
      %v6059 = vshrl.u32 %v5737, 16
      %v6061 = vrot.slane %v6059, 4
      %v6062 = vshll.u32 %v5737, 16
      %v6064 = vrot.slane %v6062, 5
      %v6065 = vor.u32 %v6061, %v6064
      %v6066 = vrot.slane %v6065, 4
      %v6068 = vshll.u32 %v5738, 16
      %v6070 = vrot.slane %v6068, 5
      %v6071 = vsel %vm1536, %v6066, %v6070
      %v6072 = vshrl.u32 %v5738, 16
      %v6074 = vrot.slane %v6072, 4
      %v6075 = vor.u32 %v6074, %v6070
      %v6076 = vrot.slane %v6075, 4
      %v6078 = vshll.u32 %v5739, 16
      %v6080 = vrot.slane %v6078, 5
      %v6081 = vsel %vm1536, %v6076, %v6080
      %v6083 = vshrl.u32 %v5740, 16
      %v6085 = vrot.slane %v6083, 4
      %v6086 = vshll.u32 %v5740, 16
      %v6088 = vrot.slane %v6086, 5
      %v6089 = vor.u32 %v6085, %v6088
      %v6090 = vrot.slane %v6089, 4
      %v6092 = vshll.u32 %v5741, 16
      %v6094 = vrot.slane %v6092, 5
      %v6095 = vsel %vm1536, %v6090, %v6094
      %v6096 = vshrl.u32 %v5741, 16
      %v6098 = vrot.slane %v6096, 4
      %v6099 = vor.u32 %v6098, %v6094
      %v6100 = vrot.slane %v6099, 4
      %v6102 = vshll.u32 %v5742, 16
      %v6104 = vrot.slane %v6102, 5
      %v6105 = vsel %vm1536, %v6100, %v6104
      %v6107 = vshrl.u32 %v5743, 16
      %v6109 = vrot.slane %v6107, 4
      %v6110 = vshll.u32 %v5743, 16
      %v6112 = vrot.slane %v6110, 5
      %v6113 = vor.u32 %v6109, %v6112
      %v6114 = vrot.slane %v6113, 4
      %v6116 = vshll.u32 %v5744, 16
      %v6118 = vrot.slane %v6116, 5
      %v6119 = vsel %vm1536, %v6114, %v6118
      %v6120 = vshrl.u32 %v5744, 16
      %v6122 = vrot.slane %v6120, 4
      %v6123 = vor.u32 %v6122, %v6118
      %v6124 = vrot.slane %v6123, 4
      %v6126 = vshll.u32 %v5745, 16
      %v6128 = vrot.slane %v6126, 5
      %v6129 = vsel %vm1536, %v6124, %v6128
      %6130 = vrot.lane.b32.xlu0 %v5759, 16
      %v6131 = vpop.permute.xlu0 %6130
      %6132 = vrot.lane.b32.xlu0 %v5769, 16
      %v6133 = vpop.permute.xlu0 %6132
      %6134 = vrot.lane.b32.xlu0 %v5783, 16
      %v6135 = vpop.permute.xlu0 %6134
      %6136 = vrot.lane.b32.xlu0 %v5793, 16
      %v6137 = vpop.permute.xlu0 %6136
      %6138 = vrot.lane.b32.xlu0 %v5807, 16
      %v6139 = vpop.permute.xlu0 %6138
      %6140 = vrot.lane.b32.xlu0 %v5817, 16
      %v6141 = vpop.permute.xlu0 %6140
      %6142 = vrot.lane.b32.xlu0 %v5831, 16
      %v6143 = vpop.permute.xlu0 %6142
      %6144 = vrot.lane.b32.xlu0 %v5841, 16
      %v6145 = vpop.permute.xlu0 %6144
      %6146 = vrot.lane.b32.xlu0 %v5855, 16
      %v6147 = vpop.permute.xlu0 %6146
      %6148 = vrot.lane.b32.xlu0 %v5865, 16
      %v6149 = vpop.permute.xlu0 %6148
      %6150 = vrot.lane.b32.xlu0 %v5879, 16
      %v6151 = vpop.permute.xlu0 %6150
      %6152 = vrot.lane.b32.xlu0 %v5889, 16
      %v6153 = vpop.permute.xlu0 %6152
      %6154 = vrot.lane.b32.xlu0 %v5903, 16
      %v6155 = vpop.permute.xlu0 %6154
      %6156 = vrot.lane.b32.xlu0 %v5913, 16
      %v6157 = vpop.permute.xlu0 %6156
      %6158 = vrot.lane.b32.xlu0 %v5927, 16
      %v6159 = vpop.permute.xlu0 %6158
      %6160 = vrot.lane.b32.xlu0 %v5937, 16
      %v6161 = vpop.permute.xlu0 %6160
      %6162 = vrot.lane.b32.xlu0 %v5951, 16
      %v6163 = vpop.permute.xlu0 %6162
      %6164 = vrot.lane.b32.xlu0 %v5961, 16
      %v6165 = vpop.permute.xlu0 %6164
      %6166 = vrot.lane.b32.xlu0 %v5975, 16
      %v6167 = vpop.permute.xlu0 %6166
      %6168 = vrot.lane.b32.xlu0 %v5985, 16
      %v6169 = vpop.permute.xlu0 %6168
      %6170 = vrot.lane.b32.xlu0 %v5999, 16
      %v6171 = vpop.permute.xlu0 %6170
      %6172 = vrot.lane.b32.xlu0 %v6009, 16
      %v6173 = vpop.permute.xlu0 %6172
      %6174 = vrot.lane.b32.xlu0 %v6023, 16
      %v6175 = vpop.permute.xlu0 %6174
      %6176 = vrot.lane.b32.xlu0 %v6033, 16
      %v6177 = vpop.permute.xlu0 %6176
      %6178 = vrot.lane.b32.xlu0 %v6047, 16
      %v6179 = vpop.permute.xlu0 %6178
      %6180 = vrot.lane.b32.xlu0 %v6057, 16
      %v6181 = vpop.permute.xlu0 %6180
      %6182 = vrot.lane.b32.xlu0 %v6071, 16
      %v6183 = vpop.permute.xlu0 %6182
      %6184 = vrot.lane.b32.xlu0 %v6081, 16
      %v6185 = vpop.permute.xlu0 %6184
      %6186 = vrot.lane.b32.xlu0 %v6095, 16
      %v6187 = vpop.permute.xlu0 %6186
      %6188 = vrot.lane.b32.xlu0 %v6105, 16
      %v6189 = vpop.permute.xlu0 %6188
      %6190 = vrot.lane.b32.xlu0 %v6119, 16
      %v6191 = vpop.permute.xlu0 %6190
      %6192 = vrot.lane.b32.xlu0 %v6129, 16
      %v6193 = vpop.permute.xlu0 %6192
      %vm6226 = vcmask 257152
      %6227 = vst.msk [vmem:[#allocation5] sm:$0xf] %vm6226, %v6131
      %6228 = vst.msk [vmem:[#allocation5 + $0x8] sm:$0xf] %vm6226, %v6133
      %6229 = vst.msk [vmem:[#allocation5 + $0x10] sm:$0xf] %vm6226, %v6135
      %6230 = vst.msk [vmem:[#allocation5 + $0x18] sm:$0xf] %vm6226, %v6137
      %6231 = vst.msk [vmem:[#allocation5 + $0x20] sm:$0xf] %vm6226, %v6139
      %6232 = vst.msk [vmem:[#allocation5 + $0x28] sm:$0xf] %vm6226, %v6141
      %6233 = vst.msk [vmem:[#allocation5 + $0x30] sm:$0xf] %vm6226, %v6143
      %6234 = vst.msk [vmem:[#allocation5 + $0x38] sm:$0xf] %vm6226, %v6145
      %6235 = vst.msk [vmem:[#allocation5 + $0x40] sm:$0xf] %vm6226, %v6147
      %6236 = vst.msk [vmem:[#allocation5 + $0x48] sm:$0xf] %vm6226, %v6149
      %6237 = vst.msk [vmem:[#allocation5 + $0x50] sm:$0xf] %vm6226, %v6151
      %6238 = vst.msk [vmem:[#allocation5 + $0x58] sm:$0xf] %vm6226, %v6153
      %6239 = vst.msk [vmem:[#allocation5 + $0x60] sm:$0xf] %vm6226, %v6155
      %6240 = vst.msk [vmem:[#allocation5 + $0x68] sm:$0xf] %vm6226, %v6157
      %6241 = vst.msk [vmem:[#allocation5 + $0x70] sm:$0xf] %vm6226, %v6159
      %6242 = vst.msk [vmem:[#allocation5 + $0x78] sm:$0xf] %vm6226, %v6161
      %6243 = vst.msk [vmem:[#allocation5 + $0x80] sm:$0xf] %vm6226, %v6163
      %6244 = vst.msk [vmem:[#allocation5 + $0x88] sm:$0xf] %vm6226, %v6165
      %6245 = vst.msk [vmem:[#allocation5 + $0x90] sm:$0xf] %vm6226, %v6167
      %6246 = vst.msk [vmem:[#allocation5 + $0x98] sm:$0xf] %vm6226, %v6169
      %6247 = vst.msk [vmem:[#allocation5 + $0xa0] sm:$0xf] %vm6226, %v6171
      %6248 = vst.msk [vmem:[#allocation5 + $0xa8] sm:$0xf] %vm6226, %v6173
      %6249 = vst.msk [vmem:[#allocation5 + $0xb0] sm:$0xf] %vm6226, %v6175
      %6250 = vst.msk [vmem:[#allocation5 + $0xb8] sm:$0xf] %vm6226, %v6177
      %6251 = vst.msk [vmem:[#allocation5 + $0xc0] sm:$0xf] %vm6226, %v6179
      %6252 = vst.msk [vmem:[#allocation5 + $0xc8] sm:$0xf] %vm6226, %v6181
      %6253 = vst.msk [vmem:[#allocation5 + $0xd0] sm:$0xf] %vm6226, %v6183
      %6254 = vst.msk [vmem:[#allocation5 + $0xd8] sm:$0xf] %vm6226, %v6185
      %6255 = vst.msk [vmem:[#allocation5 + $0xe0] sm:$0xf] %vm6226, %v6187
      %6256 = vst.msk [vmem:[#allocation5 + $0xe8] sm:$0xf] %vm6226, %v6189
      %6257 = vst.msk [vmem:[#allocation5 + $0xf0] sm:$0xf] %vm6226, %v6191
      %6258 = vst.msk [vmem:[#allocation5 + $0xf8] sm:$0xf] %vm6226, %v6193
      %v6259 = vld [vmem:[#allocation3] sm:$0xe]
      %v6260 = vld [vmem:[#allocation3 + $0x4] sm:$0xf]
      %v6261 = vld [vmem:[#allocation3 + $0x8] sm:$0x1]
      %v6262 = vld [vmem:[#allocation3 + $0xc] sm:$0xe]
      %v6263 = vld [vmem:[#allocation3 + $0x10] sm:$0xf]
      %v6264 = vld [vmem:[#allocation3 + $0x14] sm:$0x1]
      %v6265 = vld [vmem:[#allocation3 + $0x18] sm:$0xe]
      %v6266 = vld [vmem:[#allocation3 + $0x1c] sm:$0xf]
      %v6267 = vld [vmem:[#allocation3 + $0x20] sm:$0x1]
      %v6268 = vld [vmem:[#allocation3 + $0x24] sm:$0xe]
      %v6269 = vld [vmem:[#allocation3 + $0x28] sm:$0xf]
      %v6270 = vld [vmem:[#allocation3 + $0x2c] sm:$0x1]
      %v6271 = vld [vmem:[#allocation3 + $0x30] sm:$0xe]
      %v6272 = vld [vmem:[#allocation3 + $0x34] sm:$0xf]
      %v6273 = vld [vmem:[#allocation3 + $0x38] sm:$0x1]
      %v6274 = vld [vmem:[#allocation3 + $0x3c] sm:$0xe]
      %v6275 = vld [vmem:[#allocation3 + $0x40] sm:$0xf]
      %v6276 = vld [vmem:[#allocation3 + $0x44] sm:$0x1]
      %v6277 = vld [vmem:[#allocation3 + $0x48] sm:$0xe]
      %v6278 = vld [vmem:[#allocation3 + $0x4c] sm:$0xf]
      %v6279 = vld [vmem:[#allocation3 + $0x50] sm:$0x1]
      %v6280 = vld [vmem:[#allocation3 + $0x54] sm:$0xe]
      %v6281 = vld [vmem:[#allocation3 + $0x58] sm:$0xf]
      %v6282 = vld [vmem:[#allocation3 + $0x5c] sm:$0x1]
      %v6283 = vld [vmem:[#allocation3 + $0x60] sm:$0xe]
      %v6284 = vld [vmem:[#allocation3 + $0x64] sm:$0xf]
      %v6285 = vld [vmem:[#allocation3 + $0x68] sm:$0x1]
      %v6286 = vld [vmem:[#allocation3 + $0x6c] sm:$0xe]
      %v6287 = vld [vmem:[#allocation3 + $0x70] sm:$0xf]
      %v6288 = vld [vmem:[#allocation3 + $0x74] sm:$0x1]
      %v6289 = vld [vmem:[#allocation3 + $0x78] sm:$0xe]
      %v6290 = vld [vmem:[#allocation3 + $0x7c] sm:$0xf]
      %v6291 = vld [vmem:[#allocation3 + $0x80] sm:$0x1]
      %v6292 = vld [vmem:[#allocation3 + $0x84] sm:$0xe]
      %v6293 = vld [vmem:[#allocation3 + $0x88] sm:$0xf]
      %v6294 = vld [vmem:[#allocation3 + $0x8c] sm:$0x1]
      %v6295 = vld [vmem:[#allocation3 + $0x90] sm:$0xe]
      %v6296 = vld [vmem:[#allocation3 + $0x94] sm:$0xf]
      %v6297 = vld [vmem:[#allocation3 + $0x98] sm:$0x1]
      %v6298 = vld [vmem:[#allocation3 + $0x9c] sm:$0xe]
      %v6299 = vld [vmem:[#allocation3 + $0xa0] sm:$0xf]
      %v6300 = vld [vmem:[#allocation3 + $0xa4] sm:$0x1]
      %v6301 = vld [vmem:[#allocation3 + $0xa8] sm:$0xe]
      %v6302 = vld [vmem:[#allocation3 + $0xac] sm:$0xf]
      %v6303 = vld [vmem:[#allocation3 + $0xb0] sm:$0x1]
      %v6304 = vld [vmem:[#allocation3 + $0xb4] sm:$0xe]
      %v6305 = vld [vmem:[#allocation3 + $0xb8] sm:$0xf]
      %v6306 = vld [vmem:[#allocation3 + $0xbc] sm:$0x1]
      %v6355 = vrot.slane %v6259, 5
      %v6356 = vrot.slane %v6355, 4
      %v6357 = vrot.slane %v6260, 5
      %v6358 = vsel %vm2148, %v6356, %v6357
      %v6359 = vrot.slane %v6357, 4
      %v6360 = vrot.slane %v6261, 5
      %v6361 = vsel %vm2148, %v6359, %v6360
      %v6362 = vrot.slane %v6262, 5
      %v6363 = vrot.slane %v6362, 4
      %v6364 = vrot.slane %v6263, 5
      %v6365 = vsel %vm2148, %v6363, %v6364
      %v6366 = vrot.slane %v6364, 4
      %v6367 = vrot.slane %v6264, 5
      %v6368 = vsel %vm2148, %v6366, %v6367
      %v6369 = vrot.slane %v6265, 5
      %v6370 = vrot.slane %v6369, 4
      %v6371 = vrot.slane %v6266, 5
      %v6372 = vsel %vm2148, %v6370, %v6371
      %v6373 = vrot.slane %v6371, 4
      %v6374 = vrot.slane %v6267, 5
      %v6375 = vsel %vm2148, %v6373, %v6374
      %v6376 = vrot.slane %v6268, 5
      %v6377 = vrot.slane %v6376, 4
      %v6378 = vrot.slane %v6269, 5
      %v6379 = vsel %vm2148, %v6377, %v6378
      %v6380 = vrot.slane %v6378, 4
      %v6381 = vrot.slane %v6270, 5
      %v6382 = vsel %vm2148, %v6380, %v6381
      %v6383 = vrot.slane %v6271, 5
      %v6384 = vrot.slane %v6383, 4
      %v6385 = vrot.slane %v6272, 5
      %v6386 = vsel %vm2148, %v6384, %v6385
      %v6387 = vrot.slane %v6385, 4
      %v6388 = vrot.slane %v6273, 5
      %v6389 = vsel %vm2148, %v6387, %v6388
      %v6390 = vrot.slane %v6274, 5
      %v6391 = vrot.slane %v6390, 4
      %v6392 = vrot.slane %v6275, 5
      %v6393 = vsel %vm2148, %v6391, %v6392
      %v6394 = vrot.slane %v6392, 4
      %v6395 = vrot.slane %v6276, 5
      %v6396 = vsel %vm2148, %v6394, %v6395
      %v6397 = vrot.slane %v6277, 5
      %v6398 = vrot.slane %v6397, 4
      %v6399 = vrot.slane %v6278, 5
      %v6400 = vsel %vm2148, %v6398, %v6399
      %v6401 = vrot.slane %v6399, 4
      %v6402 = vrot.slane %v6279, 5
      %v6403 = vsel %vm2148, %v6401, %v6402
      %v6404 = vrot.slane %v6280, 5
      %v6405 = vrot.slane %v6404, 4
      %v6406 = vrot.slane %v6281, 5
      %v6407 = vsel %vm2148, %v6405, %v6406
      %v6408 = vrot.slane %v6406, 4
      %v6409 = vrot.slane %v6282, 5
      %v6410 = vsel %vm2148, %v6408, %v6409
      %v6411 = vrot.slane %v6283, 5
      %v6412 = vrot.slane %v6411, 4
      %v6413 = vrot.slane %v6284, 5
      %v6414 = vsel %vm2148, %v6412, %v6413
      %v6415 = vrot.slane %v6413, 4
      %v6416 = vrot.slane %v6285, 5
      %v6417 = vsel %vm2148, %v6415, %v6416
      %v6418 = vrot.slane %v6286, 5
      %v6419 = vrot.slane %v6418, 4
      %v6420 = vrot.slane %v6287, 5
      %v6421 = vsel %vm2148, %v6419, %v6420
      %v6422 = vrot.slane %v6420, 4
      %v6423 = vrot.slane %v6288, 5
      %v6424 = vsel %vm2148, %v6422, %v6423
      %v6425 = vrot.slane %v6289, 5
      %v6426 = vrot.slane %v6425, 4
      %v6427 = vrot.slane %v6290, 5
      %v6428 = vsel %vm2148, %v6426, %v6427
      %v6429 = vrot.slane %v6427, 4
      %v6430 = vrot.slane %v6291, 5
      %v6431 = vsel %vm2148, %v6429, %v6430
      %v6432 = vrot.slane %v6292, 5
      %v6433 = vrot.slane %v6432, 4
      %v6434 = vrot.slane %v6293, 5
      %v6435 = vsel %vm2148, %v6433, %v6434
      %v6436 = vrot.slane %v6434, 4
      %v6437 = vrot.slane %v6294, 5
      %v6438 = vsel %vm2148, %v6436, %v6437
      %v6439 = vrot.slane %v6295, 5
      %v6440 = vrot.slane %v6439, 4
      %v6441 = vrot.slane %v6296, 5
      %v6442 = vsel %vm2148, %v6440, %v6441
      %v6443 = vrot.slane %v6441, 4
      %v6444 = vrot.slane %v6297, 5
      %v6445 = vsel %vm2148, %v6443, %v6444
      %v6446 = vrot.slane %v6298, 5
      %v6447 = vrot.slane %v6446, 4
      %v6448 = vrot.slane %v6299, 5
      %v6449 = vsel %vm2148, %v6447, %v6448
      %v6450 = vrot.slane %v6448, 4
      %v6451 = vrot.slane %v6300, 5
      %v6452 = vsel %vm2148, %v6450, %v6451
      %v6453 = vrot.slane %v6301, 5
      %v6454 = vrot.slane %v6453, 4
      %v6455 = vrot.slane %v6302, 5
      %v6456 = vsel %vm2148, %v6454, %v6455
      %v6457 = vrot.slane %v6455, 4
      %v6458 = vrot.slane %v6303, 5
      %v6459 = vsel %vm2148, %v6457, %v6458
      %v6460 = vrot.slane %v6304, 5
      %v6461 = vrot.slane %v6460, 4
      %v6462 = vrot.slane %v6305, 5
      %v6463 = vsel %vm2148, %v6461, %v6462
      %v6464 = vrot.slane %v6462, 4
      %v6465 = vrot.slane %v6306, 5
      %v6466 = vsel %vm2148, %v6464, %v6465
      %6467 = vrot.lane.b32.xlu0 %v6358, 32
      %v6468 = vpop.permute.xlu0 %6467
      %6469 = vrot.lane.b32.xlu0 %v6361, 32
      %v6470 = vpop.permute.xlu0 %6469
      %6471 = vrot.lane.b32.xlu0 %v6365, 32
      %v6472 = vpop.permute.xlu0 %6471
      %6473 = vrot.lane.b32.xlu0 %v6368, 32
      %v6474 = vpop.permute.xlu0 %6473
      %6475 = vrot.lane.b32.xlu0 %v6372, 32
      %v6476 = vpop.permute.xlu0 %6475
      %6477 = vrot.lane.b32.xlu0 %v6375, 32
      %v6478 = vpop.permute.xlu0 %6477
      %6479 = vrot.lane.b32.xlu0 %v6379, 32
      %v6480 = vpop.permute.xlu0 %6479
      %6481 = vrot.lane.b32.xlu0 %v6382, 32
      %v6482 = vpop.permute.xlu0 %6481
      %6483 = vrot.lane.b32.xlu0 %v6386, 32
      %v6484 = vpop.permute.xlu0 %6483
      %6485 = vrot.lane.b32.xlu0 %v6389, 32
      %v6486 = vpop.permute.xlu0 %6485
      %6487 = vrot.lane.b32.xlu0 %v6393, 32
      %v6488 = vpop.permute.xlu0 %6487
      %6489 = vrot.lane.b32.xlu0 %v6396, 32
      %v6490 = vpop.permute.xlu0 %6489
      %6491 = vrot.lane.b32.xlu0 %v6400, 32
      %v6492 = vpop.permute.xlu0 %6491
      %6493 = vrot.lane.b32.xlu0 %v6403, 32
      %v6494 = vpop.permute.xlu0 %6493
      %6495 = vrot.lane.b32.xlu0 %v6407, 32
      %v6496 = vpop.permute.xlu0 %6495
      %6497 = vrot.lane.b32.xlu0 %v6410, 32
      %v6498 = vpop.permute.xlu0 %6497
      %6499 = vrot.lane.b32.xlu0 %v6414, 32
      %v6500 = vpop.permute.xlu0 %6499
      %6501 = vrot.lane.b32.xlu0 %v6417, 32
      %v6502 = vpop.permute.xlu0 %6501
      %6503 = vrot.lane.b32.xlu0 %v6421, 32
      %v6504 = vpop.permute.xlu0 %6503
      %6505 = vrot.lane.b32.xlu0 %v6424, 32
      %v6506 = vpop.permute.xlu0 %6505
      %6507 = vrot.lane.b32.xlu0 %v6428, 32
      %v6508 = vpop.permute.xlu0 %6507
      %6509 = vrot.lane.b32.xlu0 %v6431, 32
      %v6510 = vpop.permute.xlu0 %6509
      %6511 = vrot.lane.b32.xlu0 %v6435, 32
      %v6512 = vpop.permute.xlu0 %6511
      %6513 = vrot.lane.b32.xlu0 %v6438, 32
      %v6514 = vpop.permute.xlu0 %6513
      %6515 = vrot.lane.b32.xlu0 %v6442, 32
      %v6516 = vpop.permute.xlu0 %6515
      %6517 = vrot.lane.b32.xlu0 %v6445, 32
      %v6518 = vpop.permute.xlu0 %6517
      %6519 = vrot.lane.b32.xlu0 %v6449, 32
      %v6520 = vpop.permute.xlu0 %6519
      %6521 = vrot.lane.b32.xlu0 %v6452, 32
      %v6522 = vpop.permute.xlu0 %6521
      %6523 = vrot.lane.b32.xlu0 %v6456, 32
      %v6524 = vpop.permute.xlu0 %6523
      %6525 = vrot.lane.b32.xlu0 %v6459, 32
      %v6526 = vpop.permute.xlu0 %6525
      %6527 = vrot.lane.b32.xlu0 %v6463, 32
      %v6528 = vpop.permute.xlu0 %6527
      %6529 = vrot.lane.b32.xlu0 %v6466, 32
      %v6530 = vpop.permute.xlu0 %6529
      %vm6563 = vcmask 388352
      %6564 = vst.msk [vmem:[#allocation5] sm:$0xf] %vm6563, %v6468
      %6565 = vst.msk [vmem:[#allocation5 + $0x8] sm:$0xf] %vm6563, %v6470
      %6566 = vst.msk [vmem:[#allocation5 + $0x10] sm:$0xf] %vm6563, %v6472
      %6567 = vst.msk [vmem:[#allocation5 + $0x18] sm:$0xf] %vm6563, %v6474
      %6568 = vst.msk [vmem:[#allocation5 + $0x20] sm:$0xf] %vm6563, %v6476
      %6569 = vst.msk [vmem:[#allocation5 + $0x28] sm:$0xf] %vm6563, %v6478
      %6570 = vst.msk [vmem:[#allocation5 + $0x30] sm:$0xf] %vm6563, %v6480
      %6571 = vst.msk [vmem:[#allocation5 + $0x38] sm:$0xf] %vm6563, %v6482
      %6572 = vst.msk [vmem:[#allocation5 + $0x40] sm:$0xf] %vm6563, %v6484
      %6573 = vst.msk [vmem:[#allocation5 + $0x48] sm:$0xf] %vm6563, %v6486
      %6574 = vst.msk [vmem:[#allocation5 + $0x50] sm:$0xf] %vm6563, %v6488
      %6575 = vst.msk [vmem:[#allocation5 + $0x58] sm:$0xf] %vm6563, %v6490
      %6576 = vst.msk [vmem:[#allocation5 + $0x60] sm:$0xf] %vm6563, %v6492
      %6577 = vst.msk [vmem:[#allocation5 + $0x68] sm:$0xf] %vm6563, %v6494
      %6578 = vst.msk [vmem:[#allocation5 + $0x70] sm:$0xf] %vm6563, %v6496
      %6579 = vst.msk [vmem:[#allocation5 + $0x78] sm:$0xf] %vm6563, %v6498
      %6580 = vst.msk [vmem:[#allocation5 + $0x80] sm:$0xf] %vm6563, %v6500
      %6581 = vst.msk [vmem:[#allocation5 + $0x88] sm:$0xf] %vm6563, %v6502
      %6582 = vst.msk [vmem:[#allocation5 + $0x90] sm:$0xf] %vm6563, %v6504
      %6583 = vst.msk [vmem:[#allocation5 + $0x98] sm:$0xf] %vm6563, %v6506
      %6584 = vst.msk [vmem:[#allocation5 + $0xa0] sm:$0xf] %vm6563, %v6508
      %6585 = vst.msk [vmem:[#allocation5 + $0xa8] sm:$0xf] %vm6563, %v6510
      %6586 = vst.msk [vmem:[#allocation5 + $0xb0] sm:$0xf] %vm6563, %v6512
      %6587 = vst.msk [vmem:[#allocation5 + $0xb8] sm:$0xf] %vm6563, %v6514
      %6588 = vst.msk [vmem:[#allocation5 + $0xc0] sm:$0xf] %vm6563, %v6516
      %6589 = vst.msk [vmem:[#allocation5 + $0xc8] sm:$0xf] %vm6563, %v6518
      %6590 = vst.msk [vmem:[#allocation5 + $0xd0] sm:$0xf] %vm6563, %v6520
      %6591 = vst.msk [vmem:[#allocation5 + $0xd8] sm:$0xf] %vm6563, %v6522
      %6592 = vst.msk [vmem:[#allocation5 + $0xe0] sm:$0xf] %vm6563, %v6524
      %6593 = vst.msk [vmem:[#allocation5 + $0xe8] sm:$0xf] %vm6563, %v6526
      %6594 = vst.msk [vmem:[#allocation5 + $0xf0] sm:$0xf] %vm6563, %v6528
      %6595 = vst.msk [vmem:[#allocation5 + $0xf8] sm:$0xf] %vm6563, %v6530
      %v6596 = vld [vmem:[%s5517] sm:$0xf]
      %v6597 = vld [vmem:[%s5517 + $0x4] sm:$0xf]
      %v6598 = vld [vmem:[%s5517 + $0xc] sm:$0xf]
      %v6599 = vld [vmem:[%s5517 + $0x10] sm:$0xf]
      %v6600 = vld [vmem:[%s5517 + $0x18] sm:$0xf]
      %v6601 = vld [vmem:[%s5517 + $0x1c] sm:$0xf]
      %v6602 = vld [vmem:[%s5517 + $0x24] sm:$0xf]
      %v6603 = vld [vmem:[%s5517 + $0x28] sm:$0xf]
      %v6604 = vld [vmem:[%s5517 + $0x30] sm:$0xf]
      %v6605 = vld [vmem:[%s5517 + $0x34] sm:$0xf]
      %v6606 = vld [vmem:[%s5517 + $0x3c] sm:$0xf]
      %v6607 = vld [vmem:[%s5517 + $0x40] sm:$0xf]
      %v6608 = vld [vmem:[%s5517 + $0x48] sm:$0xf]
      %v6609 = vld [vmem:[%s5517 + $0x4c] sm:$0xf]
      %v6610 = vld [vmem:[%s5517 + $0x54] sm:$0xf]
      %v6611 = vld [vmem:[%s5517 + $0x58] sm:$0xf]
      %v6612 = vld [vmem:[%s5517 + $0x60] sm:$0xf]
      %v6613 = vld [vmem:[%s5517 + $0x64] sm:$0xf]
      %v6614 = vld [vmem:[%s5517 + $0x6c] sm:$0xf]
      %v6615 = vld [vmem:[%s5517 + $0x70] sm:$0xf]
      %v6616 = vld [vmem:[%s5517 + $0x78] sm:$0xf]
      %v6617 = vld [vmem:[%s5517 + $0x7c] sm:$0xf]
      %v6618 = vld [vmem:[%s5517 + $0x84] sm:$0xf]
      %v6619 = vld [vmem:[%s5517 + $0x88] sm:$0xf]
      %v6620 = vld [vmem:[%s5517 + $0x90] sm:$0xf]
      %v6621 = vld [vmem:[%s5517 + $0x94] sm:$0xf]
      %v6622 = vld [vmem:[%s5517 + $0x9c] sm:$0xf]
      %v6623 = vld [vmem:[%s5517 + $0xa0] sm:$0xf]
      %v6624 = vld [vmem:[%s5517 + $0xa8] sm:$0xf]
      %v6625 = vld [vmem:[%s5517 + $0xac] sm:$0xf]
      %v6626 = vld [vmem:[%s5517 + $0xb4] sm:$0xf]
      %v6627 = vld [vmem:[%s5517 + $0xb8] sm:$0xf]
      %6660 = vrot.lane.b32.xlu0 %v6596, 48
      %v6661 = vpop.permute.xlu0 %6660
      %6662 = vrot.lane.b32.xlu0 %v6597, 48
      %v6663 = vpop.permute.xlu0 %6662
      %6664 = vrot.lane.b32.xlu0 %v6598, 48
      %v6665 = vpop.permute.xlu0 %6664
      %6666 = vrot.lane.b32.xlu0 %v6599, 48
      %v6667 = vpop.permute.xlu0 %6666
      %6668 = vrot.lane.b32.xlu0 %v6600, 48
      %v6669 = vpop.permute.xlu0 %6668
      %6670 = vrot.lane.b32.xlu0 %v6601, 48
      %v6671 = vpop.permute.xlu0 %6670
      %6672 = vrot.lane.b32.xlu0 %v6602, 48
      %v6673 = vpop.permute.xlu0 %6672
      %6674 = vrot.lane.b32.xlu0 %v6603, 48
      %v6675 = vpop.permute.xlu0 %6674
      %6676 = vrot.lane.b32.xlu0 %v6604, 48
      %v6677 = vpop.permute.xlu0 %6676
      %6678 = vrot.lane.b32.xlu0 %v6605, 48
      %v6679 = vpop.permute.xlu0 %6678
      %6680 = vrot.lane.b32.xlu0 %v6606, 48
      %v6681 = vpop.permute.xlu0 %6680
      %6682 = vrot.lane.b32.xlu0 %v6607, 48
      %v6683 = vpop.permute.xlu0 %6682
      %6684 = vrot.lane.b32.xlu0 %v6608, 48
      %v6685 = vpop.permute.xlu0 %6684
      %6686 = vrot.lane.b32.xlu0 %v6609, 48
      %v6687 = vpop.permute.xlu0 %6686
      %6688 = vrot.lane.b32.xlu0 %v6610, 48
      %v6689 = vpop.permute.xlu0 %6688
      %6690 = vrot.lane.b32.xlu0 %v6611, 48
      %v6691 = vpop.permute.xlu0 %6690
      %6692 = vrot.lane.b32.xlu0 %v6612, 48
      %v6693 = vpop.permute.xlu0 %6692
      %6694 = vrot.lane.b32.xlu0 %v6613, 48
      %v6695 = vpop.permute.xlu0 %6694
      %6696 = vrot.lane.b32.xlu0 %v6614, 48
      %v6697 = vpop.permute.xlu0 %6696
      %6698 = vrot.lane.b32.xlu0 %v6615, 48
      %v6699 = vpop.permute.xlu0 %6698
      %6700 = vrot.lane.b32.xlu0 %v6616, 48
      %v6701 = vpop.permute.xlu0 %6700
      %6702 = vrot.lane.b32.xlu0 %v6617, 48
      %v6703 = vpop.permute.xlu0 %6702
      %6704 = vrot.lane.b32.xlu0 %v6618, 48
      %v6705 = vpop.permute.xlu0 %6704
      %6706 = vrot.lane.b32.xlu0 %v6619, 48
      %v6707 = vpop.permute.xlu0 %6706
      %6708 = vrot.lane.b32.xlu0 %v6620, 48
      %v6709 = vpop.permute.xlu0 %6708
      %6710 = vrot.lane.b32.xlu0 %v6621, 48
      %v6711 = vpop.permute.xlu0 %6710
      %6712 = vrot.lane.b32.xlu0 %v6622, 48
      %v6713 = vpop.permute.xlu0 %6712
      %6714 = vrot.lane.b32.xlu0 %v6623, 48
      %v6715 = vpop.permute.xlu0 %6714
      %6716 = vrot.lane.b32.xlu0 %v6624, 48
      %v6717 = vpop.permute.xlu0 %6716
      %6718 = vrot.lane.b32.xlu0 %v6625, 48
      %v6719 = vpop.permute.xlu0 %6718
      %6720 = vrot.lane.b32.xlu0 %v6626, 48
      %v6721 = vpop.permute.xlu0 %6720
      %6722 = vrot.lane.b32.xlu0 %v6627, 48
      %v6723 = vpop.permute.xlu0 %6722
      %vm6756 = vcmask 519552
      %6757 = vst.msk [vmem:[#allocation5] sm:$0xf] %vm6756, %v6661
      %6758 = vst.msk [vmem:[#allocation5 + $0x8] sm:$0xf] %vm6756, %v6663
      %6759 = vst.msk [vmem:[#allocation5 + $0x10] sm:$0xf] %vm6756, %v6665
      %6760 = vst.msk [vmem:[#allocation5 + $0x18] sm:$0xf] %vm6756, %v6667
      %6761 = vst.msk [vmem:[#allocation5 + $0x20] sm:$0xf] %vm6756, %v6669
      %6762 = vst.msk [vmem:[#allocation5 + $0x28] sm:$0xf] %vm6756, %v6671
      %6763 = vst.msk [vmem:[#allocation5 + $0x30] sm:$0xf] %vm6756, %v6673
      %6764 = vst.msk [vmem:[#allocation5 + $0x38] sm:$0xf] %vm6756, %v6675
      %6765 = vst.msk [vmem:[#allocation5 + $0x40] sm:$0xf] %vm6756, %v6677
      %6766 = vst.msk [vmem:[#allocation5 + $0x48] sm:$0xf] %vm6756, %v6679
      %6767 = vst.msk [vmem:[#allocation5 + $0x50] sm:$0xf] %vm6756, %v6681
      %6768 = vst.msk [vmem:[#allocation5 + $0x58] sm:$0xf] %vm6756, %v6683
      %6769 = vst.msk [vmem:[#allocation5 + $0x60] sm:$0xf] %vm6756, %v6685
      %6770 = vst.msk [vmem:[#allocation5 + $0x68] sm:$0xf] %vm6756, %v6687
      %6771 = vst.msk [vmem:[#allocation5 + $0x70] sm:$0xf] %vm6756, %v6689
      %6772 = vst.msk [vmem:[#allocation5 + $0x78] sm:$0xf] %vm6756, %v6691
      %6773 = vst.msk [vmem:[#allocation5 + $0x80] sm:$0xf] %vm6756, %v6693
      %6774 = vst.msk [vmem:[#allocation5 + $0x88] sm:$0xf] %vm6756, %v6695
      %6775 = vst.msk [vmem:[#allocation5 + $0x90] sm:$0xf] %vm6756, %v6697
      %6776 = vst.msk [vmem:[#allocation5 + $0x98] sm:$0xf] %vm6756, %v6699
      %6777 = vst.msk [vmem:[#allocation5 + $0xa0] sm:$0xf] %vm6756, %v6701
      %6778 = vst.msk [vmem:[#allocation5 + $0xa8] sm:$0xf] %vm6756, %v6703
      %6779 = vst.msk [vmem:[#allocation5 + $0xb0] sm:$0xf] %vm6756, %v6705
      %6780 = vst.msk [vmem:[#allocation5 + $0xb8] sm:$0xf] %vm6756, %v6707
      %6781 = vst.msk [vmem:[#allocation5 + $0xc0] sm:$0xf] %vm6756, %v6709
      %6782 = vst.msk [vmem:[#allocation5 + $0xc8] sm:$0xf] %vm6756, %v6711
      %6783 = vst.msk [vmem:[#allocation5 + $0xd0] sm:$0xf] %vm6756, %v6713
      %6784 = vst.msk [vmem:[#allocation5 + $0xd8] sm:$0xf] %vm6756, %v6715
      %6785 = vst.msk [vmem:[#allocation5 + $0xe0] sm:$0xf] %vm6756, %v6717
      %6786 = vst.msk [vmem:[#allocation5 + $0xe8] sm:$0xf] %vm6756, %v6719
      %6787 = vst.msk [vmem:[#allocation5 + $0xf0] sm:$0xf] %vm6756, %v6721
      %6788 = vst.msk [vmem:[#allocation5 + $0xf8] sm:$0xf] %vm6756, %v6723
      %v6789 = vld [vmem:[%s5517] sm:$0xf]
      %v6790 = vld [vmem:[%s5517 + $0x4] sm:$0xf]
      %v6791 = vld [vmem:[%s5517 + $0x8] sm:$0x1]
      %v6792 = vld [vmem:[%s5517 + $0xc] sm:$0xf]
      %v6793 = vld [vmem:[%s5517 + $0x10] sm:$0xf]
      %v6794 = vld [vmem:[%s5517 + $0x14] sm:$0x1]
      %v6795 = vld [vmem:[%s5517 + $0x18] sm:$0xf]
      %v6796 = vld [vmem:[%s5517 + $0x1c] sm:$0xf]
      %v6797 = vld [vmem:[%s5517 + $0x20] sm:$0x1]
      %v6798 = vld [vmem:[%s5517 + $0x24] sm:$0xf]
      %v6799 = vld [vmem:[%s5517 + $0x28] sm:$0xf]
      %v6800 = vld [vmem:[%s5517 + $0x2c] sm:$0x1]
      %v6801 = vld [vmem:[%s5517 + $0x30] sm:$0xf]
      %v6802 = vld [vmem:[%s5517 + $0x34] sm:$0xf]
      %v6803 = vld [vmem:[%s5517 + $0x38] sm:$0x1]
      %v6804 = vld [vmem:[%s5517 + $0x3c] sm:$0xf]
      %v6805 = vld [vmem:[%s5517 + $0x40] sm:$0xf]
      %v6806 = vld [vmem:[%s5517 + $0x44] sm:$0x1]
      %v6807 = vld [vmem:[%s5517 + $0x48] sm:$0xf]
      %v6808 = vld [vmem:[%s5517 + $0x4c] sm:$0xf]
      %v6809 = vld [vmem:[%s5517 + $0x50] sm:$0x1]
      %v6810 = vld [vmem:[%s5517 + $0x54] sm:$0xf]
      %v6811 = vld [vmem:[%s5517 + $0x58] sm:$0xf]
      %v6812 = vld [vmem:[%s5517 + $0x5c] sm:$0x1]
      %v6813 = vld [vmem:[%s5517 + $0x60] sm:$0xf]
      %v6814 = vld [vmem:[%s5517 + $0x64] sm:$0xf]
      %v6815 = vld [vmem:[%s5517 + $0x68] sm:$0x1]
      %v6816 = vld [vmem:[%s5517 + $0x6c] sm:$0xf]
      %v6817 = vld [vmem:[%s5517 + $0x70] sm:$0xf]
      %v6818 = vld [vmem:[%s5517 + $0x74] sm:$0x1]
      %v6819 = vld [vmem:[%s5517 + $0x78] sm:$0xf]
      %v6820 = vld [vmem:[%s5517 + $0x7c] sm:$0xf]
      %v6821 = vld [vmem:[%s5517 + $0x80] sm:$0x1]
      %v6822 = vld [vmem:[%s5517 + $0x84] sm:$0xf]
      %v6823 = vld [vmem:[%s5517 + $0x88] sm:$0xf]
      %v6824 = vld [vmem:[%s5517 + $0x8c] sm:$0x1]
      %v6825 = vld [vmem:[%s5517 + $0x90] sm:$0xf]
      %v6826 = vld [vmem:[%s5517 + $0x94] sm:$0xf]
      %v6827 = vld [vmem:[%s5517 + $0x98] sm:$0x1]
      %v6828 = vld [vmem:[%s5517 + $0x9c] sm:$0xf]
      %v6829 = vld [vmem:[%s5517 + $0xa0] sm:$0xf]
      %v6830 = vld [vmem:[%s5517 + $0xa4] sm:$0x1]
      %v6831 = vld [vmem:[%s5517 + $0xa8] sm:$0xf]
      %v6832 = vld [vmem:[%s5517 + $0xac] sm:$0xf]
      %v6833 = vld [vmem:[%s5517 + $0xb0] sm:$0x1]
      %v6834 = vld [vmem:[%s5517 + $0xb4] sm:$0xf]
      %v6835 = vld [vmem:[%s5517 + $0xb8] sm:$0xf]
      %v6836 = vld [vmem:[%s5517 + $0xbc] sm:$0x1]
      %v6838 = vshrl.u32 %v6789, 16
      %v6840 = vrot.slane %v6838, 4
      %v6841 = vshll.u32 %v6789, 16
      %v6843 = vrot.slane %v6841, 5
      %v6844 = vor.u32 %v6840, %v6843
      %v6845 = vrot.slane %v6844, 4
      %v6847 = vshll.u32 %v6790, 16
      %v6849 = vrot.slane %v6847, 5
      %v6850 = vsel %vm1536, %v6845, %v6849
      %v6851 = vshrl.u32 %v6790, 16
      %v6853 = vrot.slane %v6851, 4
      %v6854 = vor.u32 %v6853, %v6849
      %v6855 = vrot.slane %v6854, 4
      %v6857 = vshll.u32 %v6791, 16
      %v6859 = vrot.slane %v6857, 5
      %v6860 = vsel %vm1536, %v6855, %v6859
      %v6862 = vshrl.u32 %v6792, 16
      %v6864 = vrot.slane %v6862, 4
      %v6865 = vshll.u32 %v6792, 16
      %v6867 = vrot.slane %v6865, 5
      %v6868 = vor.u32 %v6864, %v6867
      %v6869 = vrot.slane %v6868, 4
      %v6871 = vshll.u32 %v6793, 16
      %v6873 = vrot.slane %v6871, 5
      %v6874 = vsel %vm1536, %v6869, %v6873
      %v6875 = vshrl.u32 %v6793, 16
      %v6877 = vrot.slane %v6875, 4
      %v6878 = vor.u32 %v6877, %v6873
      %v6879 = vrot.slane %v6878, 4
      %v6881 = vshll.u32 %v6794, 16
      %v6883 = vrot.slane %v6881, 5
      %v6884 = vsel %vm1536, %v6879, %v6883
      %v6886 = vshrl.u32 %v6795, 16
      %v6888 = vrot.slane %v6886, 4
      %v6889 = vshll.u32 %v6795, 16
      %v6891 = vrot.slane %v6889, 5
      %v6892 = vor.u32 %v6888, %v6891
      %v6893 = vrot.slane %v6892, 4
      %v6895 = vshll.u32 %v6796, 16
      %v6897 = vrot.slane %v6895, 5
      %v6898 = vsel %vm1536, %v6893, %v6897
      %v6899 = vshrl.u32 %v6796, 16
      %v6901 = vrot.slane %v6899, 4
      %v6902 = vor.u32 %v6901, %v6897
      %v6903 = vrot.slane %v6902, 4
      %v6905 = vshll.u32 %v6797, 16
      %v6907 = vrot.slane %v6905, 5
      %v6908 = vsel %vm1536, %v6903, %v6907
      %v6910 = vshrl.u32 %v6798, 16
      %v6912 = vrot.slane %v6910, 4
      %v6913 = vshll.u32 %v6798, 16
      %v6915 = vrot.slane %v6913, 5
      %v6916 = vor.u32 %v6912, %v6915
      %v6917 = vrot.slane %v6916, 4
      %v6919 = vshll.u32 %v6799, 16
      %v6921 = vrot.slane %v6919, 5
      %v6922 = vsel %vm1536, %v6917, %v6921
      %v6923 = vshrl.u32 %v6799, 16
      %v6925 = vrot.slane %v6923, 4
      %v6926 = vor.u32 %v6925, %v6921
      %v6927 = vrot.slane %v6926, 4
      %v6929 = vshll.u32 %v6800, 16
      %v6931 = vrot.slane %v6929, 5
      %v6932 = vsel %vm1536, %v6927, %v6931
      %v6934 = vshrl.u32 %v6801, 16
      %v6936 = vrot.slane %v6934, 4
      %v6937 = vshll.u32 %v6801, 16
      %v6939 = vrot.slane %v6937, 5
      %v6940 = vor.u32 %v6936, %v6939
      %v6941 = vrot.slane %v6940, 4
      %v6943 = vshll.u32 %v6802, 16
      %v6945 = vrot.slane %v6943, 5
      %v6946 = vsel %vm1536, %v6941, %v6945
      %v6947 = vshrl.u32 %v6802, 16
      %v6949 = vrot.slane %v6947, 4
      %v6950 = vor.u32 %v6949, %v6945
      %v6951 = vrot.slane %v6950, 4
      %v6953 = vshll.u32 %v6803, 16
      %v6955 = vrot.slane %v6953, 5
      %v6956 = vsel %vm1536, %v6951, %v6955
      %v6958 = vshrl.u32 %v6804, 16
      %v6960 = vrot.slane %v6958, 4
      %v6961 = vshll.u32 %v6804, 16
      %v6963 = vrot.slane %v6961, 5
      %v6964 = vor.u32 %v6960, %v6963
      %v6965 = vrot.slane %v6964, 4
      %v6967 = vshll.u32 %v6805, 16
      %v6969 = vrot.slane %v6967, 5
      %v6970 = vsel %vm1536, %v6965, %v6969
      %v6971 = vshrl.u32 %v6805, 16
      %v6973 = vrot.slane %v6971, 4
      %v6974 = vor.u32 %v6973, %v6969
      %v6975 = vrot.slane %v6974, 4
      %v6977 = vshll.u32 %v6806, 16
      %v6979 = vrot.slane %v6977, 5
      %v6980 = vsel %vm1536, %v6975, %v6979
      %v6982 = vshrl.u32 %v6807, 16
      %v6984 = vrot.slane %v6982, 4
      %v6985 = vshll.u32 %v6807, 16
      %v6987 = vrot.slane %v6985, 5
      %v6988 = vor.u32 %v6984, %v6987
      %v6989 = vrot.slane %v6988, 4
      %v6991 = vshll.u32 %v6808, 16
      %v6993 = vrot.slane %v6991, 5
      %v6994 = vsel %vm1536, %v6989, %v6993
      %v6995 = vshrl.u32 %v6808, 16
      %v6997 = vrot.slane %v6995, 4
      %v6998 = vor.u32 %v6997, %v6993
      %v6999 = vrot.slane %v6998, 4
      %v7001 = vshll.u32 %v6809, 16
      %v7003 = vrot.slane %v7001, 5
      %v7004 = vsel %vm1536, %v6999, %v7003
      %v7006 = vshrl.u32 %v6810, 16
      %v7008 = vrot.slane %v7006, 4
      %v7009 = vshll.u32 %v6810, 16
      %v7011 = vrot.slane %v7009, 5
      %v7012 = vor.u32 %v7008, %v7011
      %v7013 = vrot.slane %v7012, 4
      %v7015 = vshll.u32 %v6811, 16
      %v7017 = vrot.slane %v7015, 5
      %v7018 = vsel %vm1536, %v7013, %v7017
      %v7019 = vshrl.u32 %v6811, 16
      %v7021 = vrot.slane %v7019, 4
      %v7022 = vor.u32 %v7021, %v7017
      %v7023 = vrot.slane %v7022, 4
      %v7025 = vshll.u32 %v6812, 16
      %v7027 = vrot.slane %v7025, 5
      %v7028 = vsel %vm1536, %v7023, %v7027
      %v7030 = vshrl.u32 %v6813, 16
      %v7032 = vrot.slane %v7030, 4
      %v7033 = vshll.u32 %v6813, 16
      %v7035 = vrot.slane %v7033, 5
      %v7036 = vor.u32 %v7032, %v7035
      %v7037 = vrot.slane %v7036, 4
      %v7039 = vshll.u32 %v6814, 16
      %v7041 = vrot.slane %v7039, 5
      %v7042 = vsel %vm1536, %v7037, %v7041
      %v7043 = vshrl.u32 %v6814, 16
      %v7045 = vrot.slane %v7043, 4
      %v7046 = vor.u32 %v7045, %v7041
      %v7047 = vrot.slane %v7046, 4
      %v7049 = vshll.u32 %v6815, 16
      %v7051 = vrot.slane %v7049, 5
      %v7052 = vsel %vm1536, %v7047, %v7051
      %v7054 = vshrl.u32 %v6816, 16
      %v7056 = vrot.slane %v7054, 4
      %v7057 = vshll.u32 %v6816, 16
      %v7059 = vrot.slane %v7057, 5
      %v7060 = vor.u32 %v7056, %v7059
      %v7061 = vrot.slane %v7060, 4
      %v7063 = vshll.u32 %v6817, 16
      %v7065 = vrot.slane %v7063, 5
      %v7066 = vsel %vm1536, %v7061, %v7065
      %v7067 = vshrl.u32 %v6817, 16
      %v7069 = vrot.slane %v7067, 4
      %v7070 = vor.u32 %v7069, %v7065
      %v7071 = vrot.slane %v7070, 4
      %v7073 = vshll.u32 %v6818, 16
      %v7075 = vrot.slane %v7073, 5
      %v7076 = vsel %vm1536, %v7071, %v7075
      %v7078 = vshrl.u32 %v6819, 16
      %v7080 = vrot.slane %v7078, 4
      %v7081 = vshll.u32 %v6819, 16
      %v7083 = vrot.slane %v7081, 5
      %v7084 = vor.u32 %v7080, %v7083
      %v7085 = vrot.slane %v7084, 4
      %v7087 = vshll.u32 %v6820, 16
      %v7089 = vrot.slane %v7087, 5
      %v7090 = vsel %vm1536, %v7085, %v7089
      %v7091 = vshrl.u32 %v6820, 16
      %v7093 = vrot.slane %v7091, 4
      %v7094 = vor.u32 %v7093, %v7089
      %v7095 = vrot.slane %v7094, 4
      %v7097 = vshll.u32 %v6821, 16
      %v7099 = vrot.slane %v7097, 5
      %v7100 = vsel %vm1536, %v7095, %v7099
      %v7102 = vshrl.u32 %v6822, 16
      %v7104 = vrot.slane %v7102, 4
      %v7105 = vshll.u32 %v6822, 16
      %v7107 = vrot.slane %v7105, 5
      %v7108 = vor.u32 %v7104, %v7107
      %v7109 = vrot.slane %v7108, 4
      %v7111 = vshll.u32 %v6823, 16
      %v7113 = vrot.slane %v7111, 5
      %v7114 = vsel %vm1536, %v7109, %v7113
      %v7115 = vshrl.u32 %v6823, 16
      %v7117 = vrot.slane %v7115, 4
      %v7118 = vor.u32 %v7117, %v7113
      %v7119 = vrot.slane %v7118, 4
      %v7121 = vshll.u32 %v6824, 16
      %v7123 = vrot.slane %v7121, 5
      %v7124 = vsel %vm1536, %v7119, %v7123
      %v7126 = vshrl.u32 %v6825, 16
      %v7128 = vrot.slane %v7126, 4
      %v7129 = vshll.u32 %v6825, 16
      %v7131 = vrot.slane %v7129, 5
      %v7132 = vor.u32 %v7128, %v7131
      %v7133 = vrot.slane %v7132, 4
      %v7135 = vshll.u32 %v6826, 16
      %v7137 = vrot.slane %v7135, 5
      %v7138 = vsel %vm1536, %v7133, %v7137
      %v7139 = vshrl.u32 %v6826, 16
      %v7141 = vrot.slane %v7139, 4
      %v7142 = vor.u32 %v7141, %v7137
      %v7143 = vrot.slane %v7142, 4
      %v7145 = vshll.u32 %v6827, 16
      %v7147 = vrot.slane %v7145, 5
      %v7148 = vsel %vm1536, %v7143, %v7147
      %v7150 = vshrl.u32 %v6828, 16
      %v7152 = vrot.slane %v7150, 4
      %v7153 = vshll.u32 %v6828, 16
      %v7155 = vrot.slane %v7153, 5
      %v7156 = vor.u32 %v7152, %v7155
      %v7157 = vrot.slane %v7156, 4
      %v7159 = vshll.u32 %v6829, 16
      %v7161 = vrot.slane %v7159, 5
      %v7162 = vsel %vm1536, %v7157, %v7161
      %v7163 = vshrl.u32 %v6829, 16
      %v7165 = vrot.slane %v7163, 4
      %v7166 = vor.u32 %v7165, %v7161
      %v7167 = vrot.slane %v7166, 4
      %v7169 = vshll.u32 %v6830, 16
      %v7171 = vrot.slane %v7169, 5
      %v7172 = vsel %vm1536, %v7167, %v7171
      %v7174 = vshrl.u32 %v6831, 16
      %v7176 = vrot.slane %v7174, 4
      %v7177 = vshll.u32 %v6831, 16
      %v7179 = vrot.slane %v7177, 5
      %v7180 = vor.u32 %v7176, %v7179
      %v7181 = vrot.slane %v7180, 4
      %v7183 = vshll.u32 %v6832, 16
      %v7185 = vrot.slane %v7183, 5
      %v7186 = vsel %vm1536, %v7181, %v7185
      %v7187 = vshrl.u32 %v6832, 16
      %v7189 = vrot.slane %v7187, 4
      %v7190 = vor.u32 %v7189, %v7185
      %v7191 = vrot.slane %v7190, 4
      %v7193 = vshll.u32 %v6833, 16
      %v7195 = vrot.slane %v7193, 5
      %v7196 = vsel %vm1536, %v7191, %v7195
      %v7198 = vshrl.u32 %v6834, 16
      %v7200 = vrot.slane %v7198, 4
      %v7201 = vshll.u32 %v6834, 16
      %v7203 = vrot.slane %v7201, 5
      %v7204 = vor.u32 %v7200, %v7203
      %v7205 = vrot.slane %v7204, 4
      %v7207 = vshll.u32 %v6835, 16
      %v7209 = vrot.slane %v7207, 5
      %v7210 = vsel %vm1536, %v7205, %v7209
      %v7211 = vshrl.u32 %v6835, 16
      %v7213 = vrot.slane %v7211, 4
      %v7214 = vor.u32 %v7213, %v7209
      %v7215 = vrot.slane %v7214, 4
      %v7217 = vshll.u32 %v6836, 16
      %v7219 = vrot.slane %v7217, 5
      %v7220 = vsel %vm1536, %v7215, %v7219
      %7221 = vrot.lane.b32.xlu0 %v6850, 64
      %v7222 = vpop.permute.xlu0 %7221
      %7223 = vrot.lane.b32.xlu0 %v6860, 64
      %v7224 = vpop.permute.xlu0 %7223
      %7225 = vrot.lane.b32.xlu0 %v6874, 64
      %v7226 = vpop.permute.xlu0 %7225
      %7227 = vrot.lane.b32.xlu0 %v6884, 64
      %v7228 = vpop.permute.xlu0 %7227
      %7229 = vrot.lane.b32.xlu0 %v6898, 64
      %v7230 = vpop.permute.xlu0 %7229
      %7231 = vrot.lane.b32.xlu0 %v6908, 64
      %v7232 = vpop.permute.xlu0 %7231
      %7233 = vrot.lane.b32.xlu0 %v6922, 64
      %v7234 = vpop.permute.xlu0 %7233
      %7235 = vrot.lane.b32.xlu0 %v6932, 64
      %v7236 = vpop.permute.xlu0 %7235
      %7237 = vrot.lane.b32.xlu0 %v6946, 64
      %v7238 = vpop.permute.xlu0 %7237
      %7239 = vrot.lane.b32.xlu0 %v6956, 64
      %v7240 = vpop.permute.xlu0 %7239
      %7241 = vrot.lane.b32.xlu0 %v6970, 64
      %v7242 = vpop.permute.xlu0 %7241
      %7243 = vrot.lane.b32.xlu0 %v6980, 64
      %v7244 = vpop.permute.xlu0 %7243
      %7245 = vrot.lane.b32.xlu0 %v6994, 64
      %v7246 = vpop.permute.xlu0 %7245
      %7247 = vrot.lane.b32.xlu0 %v7004, 64
      %v7248 = vpop.permute.xlu0 %7247
      %7249 = vrot.lane.b32.xlu0 %v7018, 64
      %v7250 = vpop.permute.xlu0 %7249
      %7251 = vrot.lane.b32.xlu0 %v7028, 64
      %v7252 = vpop.permute.xlu0 %7251
      %7253 = vrot.lane.b32.xlu0 %v7042, 64
      %v7254 = vpop.permute.xlu0 %7253
      %7255 = vrot.lane.b32.xlu0 %v7052, 64
      %v7256 = vpop.permute.xlu0 %7255
      %7257 = vrot.lane.b32.xlu0 %v7066, 64
      %v7258 = vpop.permute.xlu0 %7257
      %7259 = vrot.lane.b32.xlu0 %v7076, 64
      %v7260 = vpop.permute.xlu0 %7259
      %7261 = vrot.lane.b32.xlu0 %v7090, 64
      %v7262 = vpop.permute.xlu0 %7261
      %7263 = vrot.lane.b32.xlu0 %v7100, 64
      %v7264 = vpop.permute.xlu0 %7263
      %7265 = vrot.lane.b32.xlu0 %v7114, 64
      %v7266 = vpop.permute.xlu0 %7265
      %7267 = vrot.lane.b32.xlu0 %v7124, 64
      %v7268 = vpop.permute.xlu0 %7267
      %7269 = vrot.lane.b32.xlu0 %v7138, 64
      %v7270 = vpop.permute.xlu0 %7269
      %7271 = vrot.lane.b32.xlu0 %v7148, 64
      %v7272 = vpop.permute.xlu0 %7271
      %7273 = vrot.lane.b32.xlu0 %v7162, 64
      %v7274 = vpop.permute.xlu0 %7273
      %7275 = vrot.lane.b32.xlu0 %v7172, 64
      %v7276 = vpop.permute.xlu0 %7275
      %7277 = vrot.lane.b32.xlu0 %v7186, 64
      %v7278 = vpop.permute.xlu0 %7277
      %7279 = vrot.lane.b32.xlu0 %v7196, 64
      %v7280 = vpop.permute.xlu0 %7279
      %7281 = vrot.lane.b32.xlu0 %v7210, 64
      %v7282 = vpop.permute.xlu0 %7281
      %7283 = vrot.lane.b32.xlu0 %v7220, 64
      %v7284 = vpop.permute.xlu0 %7283
      %vm7317 = vcmask 650752
      %7318 = vst.msk [vmem:[#allocation5] sm:$0xf] %vm7317, %v7222
      %7319 = vst.msk [vmem:[#allocation5 + $0x8] sm:$0xf] %vm7317, %v7224
      %7320 = vst.msk [vmem:[#allocation5 + $0x10] sm:$0xf] %vm7317, %v7226
      %7321 = vst.msk [vmem:[#allocation5 + $0x18] sm:$0xf] %vm7317, %v7228
      %7322 = vst.msk [vmem:[#allocation5 + $0x20] sm:$0xf] %vm7317, %v7230
      %7323 = vst.msk [vmem:[#allocation5 + $0x28] sm:$0xf] %vm7317, %v7232
      %7324 = vst.msk [vmem:[#allocation5 + $0x30] sm:$0xf] %vm7317, %v7234
      %7325 = vst.msk [vmem:[#allocation5 + $0x38] sm:$0xf] %vm7317, %v7236
      %7326 = vst.msk [vmem:[#allocation5 + $0x40] sm:$0xf] %vm7317, %v7238
      %7327 = vst.msk [vmem:[#allocation5 + $0x48] sm:$0xf] %vm7317, %v7240
      %7328 = vst.msk [vmem:[#allocation5 + $0x50] sm:$0xf] %vm7317, %v7242
      %7329 = vst.msk [vmem:[#allocation5 + $0x58] sm:$0xf] %vm7317, %v7244
      %7330 = vst.msk [vmem:[#allocation5 + $0x60] sm:$0xf] %vm7317, %v7246
      %7331 = vst.msk [vmem:[#allocation5 + $0x68] sm:$0xf] %vm7317, %v7248
      %7332 = vst.msk [vmem:[#allocation5 + $0x70] sm:$0xf] %vm7317, %v7250
      %7333 = vst.msk [vmem:[#allocation5 + $0x78] sm:$0xf] %vm7317, %v7252
      %7334 = vst.msk [vmem:[#allocation5 + $0x80] sm:$0xf] %vm7317, %v7254
      %7335 = vst.msk [vmem:[#allocation5 + $0x88] sm:$0xf] %vm7317, %v7256
      %7336 = vst.msk [vmem:[#allocation5 + $0x90] sm:$0xf] %vm7317, %v7258
      %7337 = vst.msk [vmem:[#allocation5 + $0x98] sm:$0xf] %vm7317, %v7260
      %7338 = vst.msk [vmem:[#allocation5 + $0xa0] sm:$0xf] %vm7317, %v7262
      %7339 = vst.msk [vmem:[#allocation5 + $0xa8] sm:$0xf] %vm7317, %v7264
      %7340 = vst.msk [vmem:[#allocation5 + $0xb0] sm:$0xf] %vm7317, %v7266
      %7341 = vst.msk [vmem:[#allocation5 + $0xb8] sm:$0xf] %vm7317, %v7268
      %7342 = vst.msk [vmem:[#allocation5 + $0xc0] sm:$0xf] %vm7317, %v7270
      %7343 = vst.msk [vmem:[#allocation5 + $0xc8] sm:$0xf] %vm7317, %v7272
      %7344 = vst.msk [vmem:[#allocation5 + $0xd0] sm:$0xf] %vm7317, %v7274
      %7345 = vst.msk [vmem:[#allocation5 + $0xd8] sm:$0xf] %vm7317, %v7276
      %7346 = vst.msk [vmem:[#allocation5 + $0xe0] sm:$0xf] %vm7317, %v7278
      %7347 = vst.msk [vmem:[#allocation5 + $0xe8] sm:$0xf] %vm7317, %v7280
      %7348 = vst.msk [vmem:[#allocation5 + $0xf0] sm:$0xf] %vm7317, %v7282
      %7349 = vst.msk [vmem:[#allocation5 + $0xf8] sm:$0xf] %vm7317, %v7284
      %v7350 = vld [vmem:[%s5517] sm:$0xe]
      %v7351 = vld [vmem:[%s5517 + $0x4] sm:$0xf]
      %v7352 = vld [vmem:[%s5517 + $0x8] sm:$0x1]
      %v7353 = vld [vmem:[%s5517 + $0xc] sm:$0xe]
      %v7354 = vld [vmem:[%s5517 + $0x10] sm:$0xf]
      %v7355 = vld [vmem:[%s5517 + $0x14] sm:$0x1]
      %v7356 = vld [vmem:[%s5517 + $0x18] sm:$0xe]
      %v7357 = vld [vmem:[%s5517 + $0x1c] sm:$0xf]
      %v7358 = vld [vmem:[%s5517 + $0x20] sm:$0x1]
      %v7359 = vld [vmem:[%s5517 + $0x24] sm:$0xe]
      %v7360 = vld [vmem:[%s5517 + $0x28] sm:$0xf]
      %v7361 = vld [vmem:[%s5517 + $0x2c] sm:$0x1]
      %v7362 = vld [vmem:[%s5517 + $0x30] sm:$0xe]
      %v7363 = vld [vmem:[%s5517 + $0x34] sm:$0xf]
      %v7364 = vld [vmem:[%s5517 + $0x38] sm:$0x1]
      %v7365 = vld [vmem:[%s5517 + $0x3c] sm:$0xe]
      %v7366 = vld [vmem:[%s5517 + $0x40] sm:$0xf]
      %v7367 = vld [vmem:[%s5517 + $0x44] sm:$0x1]
      %v7368 = vld [vmem:[%s5517 + $0x48] sm:$0xe]
      %v7369 = vld [vmem:[%s5517 + $0x4c] sm:$0xf]
      %v7370 = vld [vmem:[%s5517 + $0x50] sm:$0x1]
      %v7371 = vld [vmem:[%s5517 + $0x54] sm:$0xe]
      %v7372 = vld [vmem:[%s5517 + $0x58] sm:$0xf]
      %v7373 = vld [vmem:[%s5517 + $0x5c] sm:$0x1]
      %v7374 = vld [vmem:[%s5517 + $0x60] sm:$0xe]
      %v7375 = vld [vmem:[%s5517 + $0x64] sm:$0xf]
      %v7376 = vld [vmem:[%s5517 + $0x68] sm:$0x1]
      %v7377 = vld [vmem:[%s5517 + $0x6c] sm:$0xe]
      %v7378 = vld [vmem:[%s5517 + $0x70] sm:$0xf]
      %v7379 = vld [vmem:[%s5517 + $0x74] sm:$0x1]
      %v7380 = vld [vmem:[%s5517 + $0x78] sm:$0xe]
      %v7381 = vld [vmem:[%s5517 + $0x7c] sm:$0xf]
      %v7382 = vld [vmem:[%s5517 + $0x80] sm:$0x1]
      %v7383 = vld [vmem:[%s5517 + $0x84] sm:$0xe]
      %v7384 = vld [vmem:[%s5517 + $0x88] sm:$0xf]
      %v7385 = vld [vmem:[%s5517 + $0x8c] sm:$0x1]
      %v7386 = vld [vmem:[%s5517 + $0x90] sm:$0xe]
      %v7387 = vld [vmem:[%s5517 + $0x94] sm:$0xf]
      %v7388 = vld [vmem:[%s5517 + $0x98] sm:$0x1]
      %v7389 = vld [vmem:[%s5517 + $0x9c] sm:$0xe]
      %v7390 = vld [vmem:[%s5517 + $0xa0] sm:$0xf]
      %v7391 = vld [vmem:[%s5517 + $0xa4] sm:$0x1]
      %v7392 = vld [vmem:[%s5517 + $0xa8] sm:$0xe]
      %v7393 = vld [vmem:[%s5517 + $0xac] sm:$0xf]
      %v7394 = vld [vmem:[%s5517 + $0xb0] sm:$0x1]
      %v7395 = vld [vmem:[%s5517 + $0xb4] sm:$0xe]
      %v7396 = vld [vmem:[%s5517 + $0xb8] sm:$0xf]
      %v7397 = vld [vmem:[%s5517 + $0xbc] sm:$0x1]
      %v7446 = vrot.slane %v7350, 5
      %v7447 = vrot.slane %v7446, 4
      %v7448 = vrot.slane %v7351, 5
      %v7449 = vsel %vm2148, %v7447, %v7448
      %v7450 = vrot.slane %v7448, 4
      %v7451 = vrot.slane %v7352, 5
      %v7452 = vsel %vm2148, %v7450, %v7451
      %v7453 = vrot.slane %v7353, 5
      %v7454 = vrot.slane %v7453, 4
      %v7455 = vrot.slane %v7354, 5
      %v7456 = vsel %vm2148, %v7454, %v7455
      %v7457 = vrot.slane %v7455, 4
      %v7458 = vrot.slane %v7355, 5
      %v7459 = vsel %vm2148, %v7457, %v7458
      %v7460 = vrot.slane %v7356, 5
      %v7461 = vrot.slane %v7460, 4
      %v7462 = vrot.slane %v7357, 5
      %v7463 = vsel %vm2148, %v7461, %v7462
      %v7464 = vrot.slane %v7462, 4
      %v7465 = vrot.slane %v7358, 5
      %v7466 = vsel %vm2148, %v7464, %v7465
      %v7467 = vrot.slane %v7359, 5
      %v7468 = vrot.slane %v7467, 4
      %v7469 = vrot.slane %v7360, 5
      %v7470 = vsel %vm2148, %v7468, %v7469
      %v7471 = vrot.slane %v7469, 4
      %v7472 = vrot.slane %v7361, 5
      %v7473 = vsel %vm2148, %v7471, %v7472
      %v7474 = vrot.slane %v7362, 5
      %v7475 = vrot.slane %v7474, 4
      %v7476 = vrot.slane %v7363, 5
      %v7477 = vsel %vm2148, %v7475, %v7476
      %v7478 = vrot.slane %v7476, 4
      %v7479 = vrot.slane %v7364, 5
      %v7480 = vsel %vm2148, %v7478, %v7479
      %v7481 = vrot.slane %v7365, 5
      %v7482 = vrot.slane %v7481, 4
      %v7483 = vrot.slane %v7366, 5
      %v7484 = vsel %vm2148, %v7482, %v7483
      %v7485 = vrot.slane %v7483, 4
      %v7486 = vrot.slane %v7367, 5
      %v7487 = vsel %vm2148, %v7485, %v7486
      %v7488 = vrot.slane %v7368, 5
      %v7489 = vrot.slane %v7488, 4
      %v7490 = vrot.slane %v7369, 5
      %v7491 = vsel %vm2148, %v7489, %v7490
      %v7492 = vrot.slane %v7490, 4
      %v7493 = vrot.slane %v7370, 5
      %v7494 = vsel %vm2148, %v7492, %v7493
      %v7495 = vrot.slane %v7371, 5
      %v7496 = vrot.slane %v7495, 4
      %v7497 = vrot.slane %v7372, 5
      %v7498 = vsel %vm2148, %v7496, %v7497
      %v7499 = vrot.slane %v7497, 4
      %v7500 = vrot.slane %v7373, 5
      %v7501 = vsel %vm2148, %v7499, %v7500
      %v7502 = vrot.slane %v7374, 5
      %v7503 = vrot.slane %v7502, 4
      %v7504 = vrot.slane %v7375, 5
      %v7505 = vsel %vm2148, %v7503, %v7504
      %v7506 = vrot.slane %v7504, 4
      %v7507 = vrot.slane %v7376, 5
      %v7508 = vsel %vm2148, %v7506, %v7507
      %v7509 = vrot.slane %v7377, 5
      %v7510 = vrot.slane %v7509, 4
      %v7511 = vrot.slane %v7378, 5
      %v7512 = vsel %vm2148, %v7510, %v7511
      %v7513 = vrot.slane %v7511, 4
      %v7514 = vrot.slane %v7379, 5
      %v7515 = vsel %vm2148, %v7513, %v7514
      %v7516 = vrot.slane %v7380, 5
      %v7517 = vrot.slane %v7516, 4
      %v7518 = vrot.slane %v7381, 5
      %v7519 = vsel %vm2148, %v7517, %v7518
      %v7520 = vrot.slane %v7518, 4
      %v7521 = vrot.slane %v7382, 5
      %v7522 = vsel %vm2148, %v7520, %v7521
      %v7523 = vrot.slane %v7383, 5
      %v7524 = vrot.slane %v7523, 4
      %v7525 = vrot.slane %v7384, 5
      %v7526 = vsel %vm2148, %v7524, %v7525
      %v7527 = vrot.slane %v7525, 4
      %v7528 = vrot.slane %v7385, 5
      %v7529 = vsel %vm2148, %v7527, %v7528
      %v7530 = vrot.slane %v7386, 5
      %v7531 = vrot.slane %v7530, 4
      %v7532 = vrot.slane %v7387, 5
      %v7533 = vsel %vm2148, %v7531, %v7532
      %v7534 = vrot.slane %v7532, 4
      %v7535 = vrot.slane %v7388, 5
      %v7536 = vsel %vm2148, %v7534, %v7535
      %v7537 = vrot.slane %v7389, 5
      %v7538 = vrot.slane %v7537, 4
      %v7539 = vrot.slane %v7390, 5
      %v7540 = vsel %vm2148, %v7538, %v7539
      %v7541 = vrot.slane %v7539, 4
      %v7542 = vrot.slane %v7391, 5
      %v7543 = vsel %vm2148, %v7541, %v7542
      %v7544 = vrot.slane %v7392, 5
      %v7545 = vrot.slane %v7544, 4
      %v7546 = vrot.slane %v7393, 5
      %v7547 = vsel %vm2148, %v7545, %v7546
      %v7548 = vrot.slane %v7546, 4
      %v7549 = vrot.slane %v7394, 5
      %v7550 = vsel %vm2148, %v7548, %v7549
      %v7551 = vrot.slane %v7395, 5
      %v7552 = vrot.slane %v7551, 4
      %v7553 = vrot.slane %v7396, 5
      %v7554 = vsel %vm2148, %v7552, %v7553
      %v7555 = vrot.slane %v7553, 4
      %v7556 = vrot.slane %v7397, 5
      %v7557 = vsel %vm2148, %v7555, %v7556
      %7558 = vrot.lane.b32.xlu0 %v7449, 80
      %v7559 = vpop.permute.xlu0 %7558
      %7560 = vrot.lane.b32.xlu0 %v7452, 80
      %v7561 = vpop.permute.xlu0 %7560
      %7562 = vrot.lane.b32.xlu0 %v7456, 80
      %v7563 = vpop.permute.xlu0 %7562
      %7564 = vrot.lane.b32.xlu0 %v7459, 80
      %v7565 = vpop.permute.xlu0 %7564
      %7566 = vrot.lane.b32.xlu0 %v7463, 80
      %v7567 = vpop.permute.xlu0 %7566
      %7568 = vrot.lane.b32.xlu0 %v7466, 80
      %v7569 = vpop.permute.xlu0 %7568
      %7570 = vrot.lane.b32.xlu0 %v7470, 80
      %v7571 = vpop.permute.xlu0 %7570
      %7572 = vrot.lane.b32.xlu0 %v7473, 80
      %v7573 = vpop.permute.xlu0 %7572
      %7574 = vrot.lane.b32.xlu0 %v7477, 80
      %v7575 = vpop.permute.xlu0 %7574
      %7576 = vrot.lane.b32.xlu0 %v7480, 80
      %v7577 = vpop.permute.xlu0 %7576
      %7578 = vrot.lane.b32.xlu0 %v7484, 80
      %v7579 = vpop.permute.xlu0 %7578
      %7580 = vrot.lane.b32.xlu0 %v7487, 80
      %v7581 = vpop.permute.xlu0 %7580
      %7582 = vrot.lane.b32.xlu0 %v7491, 80
      %v7583 = vpop.permute.xlu0 %7582
      %7584 = vrot.lane.b32.xlu0 %v7494, 80
      %v7585 = vpop.permute.xlu0 %7584
      %7586 = vrot.lane.b32.xlu0 %v7498, 80
      %v7587 = vpop.permute.xlu0 %7586
      %7588 = vrot.lane.b32.xlu0 %v7501, 80
      %v7589 = vpop.permute.xlu0 %7588
      %7590 = vrot.lane.b32.xlu0 %v7505, 80
      %v7591 = vpop.permute.xlu0 %7590
      %7592 = vrot.lane.b32.xlu0 %v7508, 80
      %v7593 = vpop.permute.xlu0 %7592
      %7594 = vrot.lane.b32.xlu0 %v7512, 80
      %v7595 = vpop.permute.xlu0 %7594
      %7596 = vrot.lane.b32.xlu0 %v7515, 80
      %v7597 = vpop.permute.xlu0 %7596
      %7598 = vrot.lane.b32.xlu0 %v7519, 80
      %v7599 = vpop.permute.xlu0 %7598
      %7600 = vrot.lane.b32.xlu0 %v7522, 80
      %v7601 = vpop.permute.xlu0 %7600
      %7602 = vrot.lane.b32.xlu0 %v7526, 80
      %v7603 = vpop.permute.xlu0 %7602
      %7604 = vrot.lane.b32.xlu0 %v7529, 80
      %v7605 = vpop.permute.xlu0 %7604
      %7606 = vrot.lane.b32.xlu0 %v7533, 80
      %v7607 = vpop.permute.xlu0 %7606
      %7608 = vrot.lane.b32.xlu0 %v7536, 80
      %v7609 = vpop.permute.xlu0 %7608
      %7610 = vrot.lane.b32.xlu0 %v7540, 80
      %v7611 = vpop.permute.xlu0 %7610
      %7612 = vrot.lane.b32.xlu0 %v7543, 80
      %v7613 = vpop.permute.xlu0 %7612
      %7614 = vrot.lane.b32.xlu0 %v7547, 80
      %v7615 = vpop.permute.xlu0 %7614
      %7616 = vrot.lane.b32.xlu0 %v7550, 80
      %v7617 = vpop.permute.xlu0 %7616
      %7618 = vrot.lane.b32.xlu0 %v7554, 80
      %v7619 = vpop.permute.xlu0 %7618
      %7620 = vrot.lane.b32.xlu0 %v7557, 80
      %v7621 = vpop.permute.xlu0 %7620
      %vm7654 = vcmask 781952
      %7655 = vst.msk [vmem:[#allocation5] sm:$0xf] %vm7654, %v7559
      %7656 = vst.msk [vmem:[#allocation5 + $0x8] sm:$0xf] %vm7654, %v7561
      %7657 = vst.msk [vmem:[#allocation5 + $0x10] sm:$0xf] %vm7654, %v7563
      %7658 = vst.msk [vmem:[#allocation5 + $0x18] sm:$0xf] %vm7654, %v7565
      %7659 = vst.msk [vmem:[#allocation5 + $0x20] sm:$0xf] %vm7654, %v7567
      %7660 = vst.msk [vmem:[#allocation5 + $0x28] sm:$0xf] %vm7654, %v7569
      %7661 = vst.msk [vmem:[#allocation5 + $0x30] sm:$0xf] %vm7654, %v7571
      %7662 = vst.msk [vmem:[#allocation5 + $0x38] sm:$0xf] %vm7654, %v7573
      %7663 = vst.msk [vmem:[#allocation5 + $0x40] sm:$0xf] %vm7654, %v7575
      %7664 = vst.msk [vmem:[#allocation5 + $0x48] sm:$0xf] %vm7654, %v7577
      %7665 = vst.msk [vmem:[#allocation5 + $0x50] sm:$0xf] %vm7654, %v7579
      %7666 = vst.msk [vmem:[#allocation5 + $0x58] sm:$0xf] %vm7654, %v7581
      %7667 = vst.msk [vmem:[#allocation5 + $0x60] sm:$0xf] %vm7654, %v7583
      %7668 = vst.msk [vmem:[#allocation5 + $0x68] sm:$0xf] %vm7654, %v7585
      %7669 = vst.msk [vmem:[#allocation5 + $0x70] sm:$0xf] %vm7654, %v7587
      %7670 = vst.msk [vmem:[#allocation5 + $0x78] sm:$0xf] %vm7654, %v7589
      %7671 = vst.msk [vmem:[#allocation5 + $0x80] sm:$0xf] %vm7654, %v7591
      %7672 = vst.msk [vmem:[#allocation5 + $0x88] sm:$0xf] %vm7654, %v7593
      %7673 = vst.msk [vmem:[#allocation5 + $0x90] sm:$0xf] %vm7654, %v7595
      %7674 = vst.msk [vmem:[#allocation5 + $0x98] sm:$0xf] %vm7654, %v7597
      %7675 = vst.msk [vmem:[#allocation5 + $0xa0] sm:$0xf] %vm7654, %v7599
      %7676 = vst.msk [vmem:[#allocation5 + $0xa8] sm:$0xf] %vm7654, %v7601
      %7677 = vst.msk [vmem:[#allocation5 + $0xb0] sm:$0xf] %vm7654, %v7603
      %7678 = vst.msk [vmem:[#allocation5 + $0xb8] sm:$0xf] %vm7654, %v7605
      %7679 = vst.msk [vmem:[#allocation5 + $0xc0] sm:$0xf] %vm7654, %v7607
      %7680 = vst.msk [vmem:[#allocation5 + $0xc8] sm:$0xf] %vm7654, %v7609
      %7681 = vst.msk [vmem:[#allocation5 + $0xd0] sm:$0xf] %vm7654, %v7611
      %7682 = vst.msk [vmem:[#allocation5 + $0xd8] sm:$0xf] %vm7654, %v7613
      %7683 = vst.msk [vmem:[#allocation5 + $0xe0] sm:$0xf] %vm7654, %v7615
      %7684 = vst.msk [vmem:[#allocation5 + $0xe8] sm:$0xf] %vm7654, %v7617
      %7685 = vst.msk [vmem:[#allocation5 + $0xf0] sm:$0xf] %vm7654, %v7619
      %7686 = vst.msk [vmem:[#allocation5 + $0xf8] sm:$0xf] %vm7654, %v7621
      %s7687 = scalar_lea.vmem [#allocation3], 24
      %v7688 = vld [vmem:[%s7687] sm:$0xf]
      %v7689 = vld [vmem:[%s7687 + $0x4] sm:$0xf]
      %v7690 = vld [vmem:[%s7687 + $0xc] sm:$0xf]
      %v7691 = vld [vmem:[%s7687 + $0x10] sm:$0xf]
      %v7692 = vld [vmem:[%s7687 + $0x18] sm:$0xf]
      %v7693 = vld [vmem:[%s7687 + $0x1c] sm:$0xf]
      %v7694 = vld [vmem:[%s7687 + $0x24] sm:$0xf]
      %v7695 = vld [vmem:[%s7687 + $0x28] sm:$0xf]
      %v7696 = vld [vmem:[%s7687 + $0x30] sm:$0xf]
      %v7697 = vld [vmem:[%s7687 + $0x34] sm:$0xf]
      %v7698 = vld [vmem:[%s7687 + $0x3c] sm:$0xf]
      %v7699 = vld [vmem:[%s7687 + $0x40] sm:$0xf]
      %v7700 = vld [vmem:[%s7687 + $0x48] sm:$0xf]
      %v7701 = vld [vmem:[%s7687 + $0x4c] sm:$0xf]
      %v7702 = vld [vmem:[%s7687 + $0x54] sm:$0xf]
      %v7703 = vld [vmem:[%s7687 + $0x58] sm:$0xf]
      %v7704 = vld [vmem:[%s7687 + $0x60] sm:$0xf]
      %v7705 = vld [vmem:[%s7687 + $0x64] sm:$0xf]
      %v7706 = vld [vmem:[%s7687 + $0x6c] sm:$0xf]
      %v7707 = vld [vmem:[%s7687 + $0x70] sm:$0xf]
      %v7708 = vld [vmem:[%s7687 + $0x78] sm:$0xf]
      %v7709 = vld [vmem:[%s7687 + $0x7c] sm:$0xf]
      %v7710 = vld [vmem:[%s7687 + $0x84] sm:$0xf]
      %v7711 = vld [vmem:[%s7687 + $0x88] sm:$0xf]
      %v7712 = vld [vmem:[%s7687 + $0x90] sm:$0xf]
      %v7713 = vld [vmem:[%s7687 + $0x94] sm:$0xf]
      %v7714 = vld [vmem:[%s7687 + $0x9c] sm:$0xf]
      %v7715 = vld [vmem:[%s7687 + $0xa0] sm:$0xf]
      %v7716 = vld [vmem:[%s7687 + $0xa8] sm:$0xf]
      %v7717 = vld [vmem:[%s7687 + $0xac] sm:$0xf]
      %v7718 = vld [vmem:[%s7687 + $0xb4] sm:$0xf]
      %v7719 = vld [vmem:[%s7687 + $0xb8] sm:$0xf]
      %7752 = vrot.lane.b32.xlu0 %v7688, 96
      %v7753 = vpop.permute.xlu0 %7752
      %7754 = vrot.lane.b32.xlu0 %v7689, 96
      %v7755 = vpop.permute.xlu0 %7754
      %7756 = vrot.lane.b32.xlu0 %v7690, 96
      %v7757 = vpop.permute.xlu0 %7756
      %7758 = vrot.lane.b32.xlu0 %v7691, 96
      %v7759 = vpop.permute.xlu0 %7758
      %7760 = vrot.lane.b32.xlu0 %v7692, 96
      %v7761 = vpop.permute.xlu0 %7760
      %7762 = vrot.lane.b32.xlu0 %v7693, 96
      %v7763 = vpop.permute.xlu0 %7762
      %7764 = vrot.lane.b32.xlu0 %v7694, 96
      %v7765 = vpop.permute.xlu0 %7764
      %7766 = vrot.lane.b32.xlu0 %v7695, 96
      %v7767 = vpop.permute.xlu0 %7766
      %7768 = vrot.lane.b32.xlu0 %v7696, 96
      %v7769 = vpop.permute.xlu0 %7768
      %7770 = vrot.lane.b32.xlu0 %v7697, 96
      %v7771 = vpop.permute.xlu0 %7770
      %7772 = vrot.lane.b32.xlu0 %v7698, 96
      %v7773 = vpop.permute.xlu0 %7772
      %7774 = vrot.lane.b32.xlu0 %v7699, 96
      %v7775 = vpop.permute.xlu0 %7774
      %7776 = vrot.lane.b32.xlu0 %v7700, 96
      %v7777 = vpop.permute.xlu0 %7776
      %7778 = vrot.lane.b32.xlu0 %v7701, 96
      %v7779 = vpop.permute.xlu0 %7778
      %7780 = vrot.lane.b32.xlu0 %v7702, 96
      %v7781 = vpop.permute.xlu0 %7780
      %7782 = vrot.lane.b32.xlu0 %v7703, 96
      %v7783 = vpop.permute.xlu0 %7782
      %7784 = vrot.lane.b32.xlu0 %v7704, 96
      %v7785 = vpop.permute.xlu0 %7784
      %7786 = vrot.lane.b32.xlu0 %v7705, 96
      %v7787 = vpop.permute.xlu0 %7786
      %7788 = vrot.lane.b32.xlu0 %v7706, 96
      %v7789 = vpop.permute.xlu0 %7788
      %7790 = vrot.lane.b32.xlu0 %v7707, 96
      %v7791 = vpop.permute.xlu0 %7790
      %7792 = vrot.lane.b32.xlu0 %v7708, 96
      %v7793 = vpop.permute.xlu0 %7792
      %7794 = vrot.lane.b32.xlu0 %v7709, 96
      %v7795 = vpop.permute.xlu0 %7794
      %7796 = vrot.lane.b32.xlu0 %v7710, 96
      %v7797 = vpop.permute.xlu0 %7796
      %7798 = vrot.lane.b32.xlu0 %v7711, 96
      %v7799 = vpop.permute.xlu0 %7798
      %7800 = vrot.lane.b32.xlu0 %v7712, 96
      %v7801 = vpop.permute.xlu0 %7800
      %7802 = vrot.lane.b32.xlu0 %v7713, 96
      %v7803 = vpop.permute.xlu0 %7802
      %7804 = vrot.lane.b32.xlu0 %v7714, 96
      %v7805 = vpop.permute.xlu0 %7804
      %7806 = vrot.lane.b32.xlu0 %v7715, 96
      %v7807 = vpop.permute.xlu0 %7806
      %7808 = vrot.lane.b32.xlu0 %v7716, 96
      %v7809 = vpop.permute.xlu0 %7808
      %7810 = vrot.lane.b32.xlu0 %v7717, 96
      %v7811 = vpop.permute.xlu0 %7810
      %7812 = vrot.lane.b32.xlu0 %v7718, 96
      %v7813 = vpop.permute.xlu0 %7812
      %7814 = vrot.lane.b32.xlu0 %v7719, 96
      %v7815 = vpop.permute.xlu0 %7814
      %vm7848 = vcmask 913152
      %7849 = vst.msk [vmem:[#allocation5] sm:$0xf] %vm7848, %v7753
      %7850 = vst.msk [vmem:[#allocation5 + $0x8] sm:$0xf] %vm7848, %v7755
      %7851 = vst.msk [vmem:[#allocation5 + $0x10] sm:$0xf] %vm7848, %v7757
      %7852 = vst.msk [vmem:[#allocation5 + $0x18] sm:$0xf] %vm7848, %v7759
      %7853 = vst.msk [vmem:[#allocation5 + $0x20] sm:$0xf] %vm7848, %v7761
      %7854 = vst.msk [vmem:[#allocation5 + $0x28] sm:$0xf] %vm7848, %v7763
      %7855 = vst.msk [vmem:[#allocation5 + $0x30] sm:$0xf] %vm7848, %v7765
      %7856 = vst.msk [vmem:[#allocation5 + $0x38] sm:$0xf] %vm7848, %v7767
      %7857 = vst.msk [vmem:[#allocation5 + $0x40] sm:$0xf] %vm7848, %v7769
      %7858 = vst.msk [vmem:[#allocation5 + $0x48] sm:$0xf] %vm7848, %v7771
      %7859 = vst.msk [vmem:[#allocation5 + $0x50] sm:$0xf] %vm7848, %v7773
      %7860 = vst.msk [vmem:[#allocation5 + $0x58] sm:$0xf] %vm7848, %v7775
      %7861 = vst.msk [vmem:[#allocation5 + $0x60] sm:$0xf] %vm7848, %v7777
      %7862 = vst.msk [vmem:[#allocation5 + $0x68] sm:$0xf] %vm7848, %v7779
      %7863 = vst.msk [vmem:[#allocation5 + $0x70] sm:$0xf] %vm7848, %v7781
      %7864 = vst.msk [vmem:[#allocation5 + $0x78] sm:$0xf] %vm7848, %v7783
      %7865 = vst.msk [vmem:[#allocation5 + $0x80] sm:$0xf] %vm7848, %v7785
      %7866 = vst.msk [vmem:[#allocation5 + $0x88] sm:$0xf] %vm7848, %v7787
      %7867 = vst.msk [vmem:[#allocation5 + $0x90] sm:$0xf] %vm7848, %v7789
      %7868 = vst.msk [vmem:[#allocation5 + $0x98] sm:$0xf] %vm7848, %v7791
      %7869 = vst.msk [vmem:[#allocation5 + $0xa0] sm:$0xf] %vm7848, %v7793
      %7870 = vst.msk [vmem:[#allocation5 + $0xa8] sm:$0xf] %vm7848, %v7795
      %7871 = vst.msk [vmem:[#allocation5 + $0xb0] sm:$0xf] %vm7848, %v7797
      %7872 = vst.msk [vmem:[#allocation5 + $0xb8] sm:$0xf] %vm7848, %v7799
      %7873 = vst.msk [vmem:[#allocation5 + $0xc0] sm:$0xf] %vm7848, %v7801
      %7874 = vst.msk [vmem:[#allocation5 + $0xc8] sm:$0xf] %vm7848, %v7803
      %7875 = vst.msk [vmem:[#allocation5 + $0xd0] sm:$0xf] %vm7848, %v7805
      %7876 = vst.msk [vmem:[#allocation5 + $0xd8] sm:$0xf] %vm7848, %v7807
      %7877 = vst.msk [vmem:[#allocation5 + $0xe0] sm:$0xf] %vm7848, %v7809
      %7878 = vst.msk [vmem:[#allocation5 + $0xe8] sm:$0xf] %vm7848, %v7811
      %7879 = vst.msk [vmem:[#allocation5 + $0xf0] sm:$0xf] %vm7848, %v7813
      %7880 = vst.msk [vmem:[#allocation5 + $0xf8] sm:$0xf] %vm7848, %v7815
      %v7881 = vld [vmem:[%s7687] sm:$0xf]
      %v7882 = vld [vmem:[%s7687 + $0x4] sm:$0xf]
      %v7883 = vld [vmem:[%s7687 + $0x8] sm:$0x1]
      %v7884 = vld [vmem:[%s7687 + $0xc] sm:$0xf]
      %v7885 = vld [vmem:[%s7687 + $0x10] sm:$0xf]
      %v7886 = vld [vmem:[%s7687 + $0x14] sm:$0x1]
      %v7887 = vld [vmem:[%s7687 + $0x18] sm:$0xf]
      %v7888 = vld [vmem:[%s7687 + $0x1c] sm:$0xf]
      %v7889 = vld [vmem:[%s7687 + $0x20] sm:$0x1]
      %v7890 = vld [vmem:[%s7687 + $0x24] sm:$0xf]
      %v7891 = vld [vmem:[%s7687 + $0x28] sm:$0xf]
      %v7892 = vld [vmem:[%s7687 + $0x2c] sm:$0x1]
      %v7893 = vld [vmem:[%s7687 + $0x30] sm:$0xf]
      %v7894 = vld [vmem:[%s7687 + $0x34] sm:$0xf]
      %v7895 = vld [vmem:[%s7687 + $0x38] sm:$0x1]
      %v7896 = vld [vmem:[%s7687 + $0x3c] sm:$0xf]
      %v7897 = vld [vmem:[%s7687 + $0x40] sm:$0xf]
      %v7898 = vld [vmem:[%s7687 + $0x44] sm:$0x1]
      %v7899 = vld [vmem:[%s7687 + $0x48] sm:$0xf]
      %v7900 = vld [vmem:[%s7687 + $0x4c] sm:$0xf]
      %v7901 = vld [vmem:[%s7687 + $0x50] sm:$0x1]
      %v7902 = vld [vmem:[%s7687 + $0x54] sm:$0xf]
      %v7903 = vld [vmem:[%s7687 + $0x58] sm:$0xf]
      %v7904 = vld [vmem:[%s7687 + $0x5c] sm:$0x1]
      %v7905 = vld [vmem:[%s7687 + $0x60] sm:$0xf]
      %v7906 = vld [vmem:[%s7687 + $0x64] sm:$0xf]
      %v7907 = vld [vmem:[%s7687 + $0x68] sm:$0x1]
      %v7908 = vld [vmem:[%s7687 + $0x6c] sm:$0xf]
      %v7909 = vld [vmem:[%s7687 + $0x70] sm:$0xf]
      %v7910 = vld [vmem:[%s7687 + $0x74] sm:$0x1]
      %v7911 = vld [vmem:[%s7687 + $0x78] sm:$0xf]
      %v7912 = vld [vmem:[%s7687 + $0x7c] sm:$0xf]
      %v7913 = vld [vmem:[%s7687 + $0x80] sm:$0x1]
      %v7914 = vld [vmem:[%s7687 + $0x84] sm:$0xf]
      %v7915 = vld [vmem:[%s7687 + $0x88] sm:$0xf]
      %v7916 = vld [vmem:[%s7687 + $0x8c] sm:$0x1]
      %v7917 = vld [vmem:[%s7687 + $0x90] sm:$0xf]
      %v7918 = vld [vmem:[%s7687 + $0x94] sm:$0xf]
      %v7919 = vld [vmem:[%s7687 + $0x98] sm:$0x1]
      %v7920 = vld [vmem:[%s7687 + $0x9c] sm:$0xf]
      %v7921 = vld [vmem:[%s7687 + $0xa0] sm:$0xf]
      %v7922 = vld [vmem:[%s7687 + $0xa4] sm:$0x1]
      %v7923 = vld [vmem:[%s7687 + $0xa8] sm:$0xf]
      %v7924 = vld [vmem:[%s7687 + $0xac] sm:$0xf]
      %v7925 = vld [vmem:[%s7687 + $0xb0] sm:$0x1]
      %v7926 = vld [vmem:[%s7687 + $0xb4] sm:$0xf]
      %v7927 = vld [vmem:[%s7687 + $0xb8] sm:$0xf]
      %v7928 = vld [vmem:[%s7687 + $0xbc] sm:$0x1]
      %v7930 = vshrl.u32 %v7881, 16
      %v7932 = vrot.slane %v7930, 4
      %v7933 = vshll.u32 %v7881, 16
      %v7935 = vrot.slane %v7933, 5
      %v7936 = vor.u32 %v7932, %v7935
      %v7937 = vrot.slane %v7936, 4
      %v7939 = vshll.u32 %v7882, 16
      %v7941 = vrot.slane %v7939, 5
      %v7942 = vsel %vm1536, %v7937, %v7941
      %v7943 = vshrl.u32 %v7882, 16
      %v7945 = vrot.slane %v7943, 4
      %v7946 = vor.u32 %v7945, %v7941
      %v7947 = vrot.slane %v7946, 4
      %v7949 = vshll.u32 %v7883, 16
      %v7951 = vrot.slane %v7949, 5
      %v7952 = vsel %vm1536, %v7947, %v7951
      %v7954 = vshrl.u32 %v7884, 16
      %v7956 = vrot.slane %v7954, 4
      %v7957 = vshll.u32 %v7884, 16
      %v7959 = vrot.slane %v7957, 5
      %v7960 = vor.u32 %v7956, %v7959
      %v7961 = vrot.slane %v7960, 4
      %v7963 = vshll.u32 %v7885, 16
      %v7965 = vrot.slane %v7963, 5
      %v7966 = vsel %vm1536, %v7961, %v7965
      %v7967 = vshrl.u32 %v7885, 16
      %v7969 = vrot.slane %v7967, 4
      %v7970 = vor.u32 %v7969, %v7965
      %v7971 = vrot.slane %v7970, 4
      %v7973 = vshll.u32 %v7886, 16
      %v7975 = vrot.slane %v7973, 5
      %v7976 = vsel %vm1536, %v7971, %v7975
      %v7978 = vshrl.u32 %v7887, 16
      %v7980 = vrot.slane %v7978, 4
      %v7981 = vshll.u32 %v7887, 16
      %v7983 = vrot.slane %v7981, 5
      %v7984 = vor.u32 %v7980, %v7983
      %v7985 = vrot.slane %v7984, 4
      %v7987 = vshll.u32 %v7888, 16
      %v7989 = vrot.slane %v7987, 5
      %v7990 = vsel %vm1536, %v7985, %v7989
      %v7991 = vshrl.u32 %v7888, 16
      %v7993 = vrot.slane %v7991, 4
      %v7994 = vor.u32 %v7993, %v7989
      %v7995 = vrot.slane %v7994, 4
      %v7997 = vshll.u32 %v7889, 16
      %v7999 = vrot.slane %v7997, 5
      %v8000 = vsel %vm1536, %v7995, %v7999
      %v8002 = vshrl.u32 %v7890, 16
      %v8004 = vrot.slane %v8002, 4
      %v8005 = vshll.u32 %v7890, 16
      %v8007 = vrot.slane %v8005, 5
      %v8008 = vor.u32 %v8004, %v8007
      %v8009 = vrot.slane %v8008, 4
      %v8011 = vshll.u32 %v7891, 16
      %v8013 = vrot.slane %v8011, 5
      %v8014 = vsel %vm1536, %v8009, %v8013
      %v8015 = vshrl.u32 %v7891, 16
      %v8017 = vrot.slane %v8015, 4
      %v8018 = vor.u32 %v8017, %v8013
      %v8019 = vrot.slane %v8018, 4
      %v8021 = vshll.u32 %v7892, 16
      %v8023 = vrot.slane %v8021, 5
      %v8024 = vsel %vm1536, %v8019, %v8023
      %v8026 = vshrl.u32 %v7893, 16
      %v8028 = vrot.slane %v8026, 4
      %v8029 = vshll.u32 %v7893, 16
      %v8031 = vrot.slane %v8029, 5
      %v8032 = vor.u32 %v8028, %v8031
      %v8033 = vrot.slane %v8032, 4
      %v8035 = vshll.u32 %v7894, 16
      %v8037 = vrot.slane %v8035, 5
      %v8038 = vsel %vm1536, %v8033, %v8037
      %v8039 = vshrl.u32 %v7894, 16
      %v8041 = vrot.slane %v8039, 4
      %v8042 = vor.u32 %v8041, %v8037
      %v8043 = vrot.slane %v8042, 4
      %v8045 = vshll.u32 %v7895, 16
      %v8047 = vrot.slane %v8045, 5
      %v8048 = vsel %vm1536, %v8043, %v8047
      %v8050 = vshrl.u32 %v7896, 16
      %v8052 = vrot.slane %v8050, 4
      %v8053 = vshll.u32 %v7896, 16
      %v8055 = vrot.slane %v8053, 5
      %v8056 = vor.u32 %v8052, %v8055
      %v8057 = vrot.slane %v8056, 4
      %v8059 = vshll.u32 %v7897, 16
      %v8061 = vrot.slane %v8059, 5
      %v8062 = vsel %vm1536, %v8057, %v8061
      %v8063 = vshrl.u32 %v7897, 16
      %v8065 = vrot.slane %v8063, 4
      %v8066 = vor.u32 %v8065, %v8061
      %v8067 = vrot.slane %v8066, 4
      %v8069 = vshll.u32 %v7898, 16
      %v8071 = vrot.slane %v8069, 5
      %v8072 = vsel %vm1536, %v8067, %v8071
      %v8074 = vshrl.u32 %v7899, 16
      %v8076 = vrot.slane %v8074, 4
      %v8077 = vshll.u32 %v7899, 16
      %v8079 = vrot.slane %v8077, 5
      %v8080 = vor.u32 %v8076, %v8079
      %v8081 = vrot.slane %v8080, 4
      %v8083 = vshll.u32 %v7900, 16
      %v8085 = vrot.slane %v8083, 5
      %v8086 = vsel %vm1536, %v8081, %v8085
      %v8087 = vshrl.u32 %v7900, 16
      %v8089 = vrot.slane %v8087, 4
      %v8090 = vor.u32 %v8089, %v8085
      %v8091 = vrot.slane %v8090, 4
      %v8093 = vshll.u32 %v7901, 16
      %v8095 = vrot.slane %v8093, 5
      %v8096 = vsel %vm1536, %v8091, %v8095
      %v8098 = vshrl.u32 %v7902, 16
      %v8100 = vrot.slane %v8098, 4
      %v8101 = vshll.u32 %v7902, 16
      %v8103 = vrot.slane %v8101, 5
      %v8104 = vor.u32 %v8100, %v8103
      %v8105 = vrot.slane %v8104, 4
      %v8107 = vshll.u32 %v7903, 16
      %v8109 = vrot.slane %v8107, 5
      %v8110 = vsel %vm1536, %v8105, %v8109
      %v8111 = vshrl.u32 %v7903, 16
      %v8113 = vrot.slane %v8111, 4
      %v8114 = vor.u32 %v8113, %v8109
      %v8115 = vrot.slane %v8114, 4
      %v8117 = vshll.u32 %v7904, 16
      %v8119 = vrot.slane %v8117, 5
      %v8120 = vsel %vm1536, %v8115, %v8119
      %v8122 = vshrl.u32 %v7905, 16
      %v8124 = vrot.slane %v8122, 4
      %v8125 = vshll.u32 %v7905, 16
      %v8127 = vrot.slane %v8125, 5
      %v8128 = vor.u32 %v8124, %v8127
      %v8129 = vrot.slane %v8128, 4
      %v8131 = vshll.u32 %v7906, 16
      %v8133 = vrot.slane %v8131, 5
      %v8134 = vsel %vm1536, %v8129, %v8133
      %v8135 = vshrl.u32 %v7906, 16
      %v8137 = vrot.slane %v8135, 4
      %v8138 = vor.u32 %v8137, %v8133
      %v8139 = vrot.slane %v8138, 4
      %v8141 = vshll.u32 %v7907, 16
      %v8143 = vrot.slane %v8141, 5
      %v8144 = vsel %vm1536, %v8139, %v8143
      %v8146 = vshrl.u32 %v7908, 16
      %v8148 = vrot.slane %v8146, 4
      %v8149 = vshll.u32 %v7908, 16
      %v8151 = vrot.slane %v8149, 5
      %v8152 = vor.u32 %v8148, %v8151
      %v8153 = vrot.slane %v8152, 4
      %v8155 = vshll.u32 %v7909, 16
      %v8157 = vrot.slane %v8155, 5
      %v8158 = vsel %vm1536, %v8153, %v8157
      %v8159 = vshrl.u32 %v7909, 16
      %v8161 = vrot.slane %v8159, 4
      %v8162 = vor.u32 %v8161, %v8157
      %v8163 = vrot.slane %v8162, 4
      %v8165 = vshll.u32 %v7910, 16
      %v8167 = vrot.slane %v8165, 5
      %v8168 = vsel %vm1536, %v8163, %v8167
      %v8170 = vshrl.u32 %v7911, 16
      %v8172 = vrot.slane %v8170, 4
      %v8173 = vshll.u32 %v7911, 16
      %v8175 = vrot.slane %v8173, 5
      %v8176 = vor.u32 %v8172, %v8175
      %v8177 = vrot.slane %v8176, 4
      %v8179 = vshll.u32 %v7912, 16
      %v8181 = vrot.slane %v8179, 5
      %v8182 = vsel %vm1536, %v8177, %v8181
      %v8183 = vshrl.u32 %v7912, 16
      %v8185 = vrot.slane %v8183, 4
      %v8186 = vor.u32 %v8185, %v8181
      %v8187 = vrot.slane %v8186, 4
      %v8189 = vshll.u32 %v7913, 16
      %v8191 = vrot.slane %v8189, 5
      %v8192 = vsel %vm1536, %v8187, %v8191
      %v8194 = vshrl.u32 %v7914, 16
      %v8196 = vrot.slane %v8194, 4
      %v8197 = vshll.u32 %v7914, 16
      %v8199 = vrot.slane %v8197, 5
      %v8200 = vor.u32 %v8196, %v8199
      %v8201 = vrot.slane %v8200, 4
      %v8203 = vshll.u32 %v7915, 16
      %v8205 = vrot.slane %v8203, 5
      %v8206 = vsel %vm1536, %v8201, %v8205
      %v8207 = vshrl.u32 %v7915, 16
      %v8209 = vrot.slane %v8207, 4
      %v8210 = vor.u32 %v8209, %v8205
      %v8211 = vrot.slane %v8210, 4
      %v8213 = vshll.u32 %v7916, 16
      %v8215 = vrot.slane %v8213, 5
      %v8216 = vsel %vm1536, %v8211, %v8215
      %v8218 = vshrl.u32 %v7917, 16
      %v8220 = vrot.slane %v8218, 4
      %v8221 = vshll.u32 %v7917, 16
      %v8223 = vrot.slane %v8221, 5
      %v8224 = vor.u32 %v8220, %v8223
      %v8225 = vrot.slane %v8224, 4
      %v8227 = vshll.u32 %v7918, 16
      %v8229 = vrot.slane %v8227, 5
      %v8230 = vsel %vm1536, %v8225, %v8229
      %v8231 = vshrl.u32 %v7918, 16
      %v8233 = vrot.slane %v8231, 4
      %v8234 = vor.u32 %v8233, %v8229
      %v8235 = vrot.slane %v8234, 4
      %v8237 = vshll.u32 %v7919, 16
      %v8239 = vrot.slane %v8237, 5
      %v8240 = vsel %vm1536, %v8235, %v8239
      %v8242 = vshrl.u32 %v7920, 16
      %v8244 = vrot.slane %v8242, 4
      %v8245 = vshll.u32 %v7920, 16
      %v8247 = vrot.slane %v8245, 5
      %v8248 = vor.u32 %v8244, %v8247
      %v8249 = vrot.slane %v8248, 4
      %v8251 = vshll.u32 %v7921, 16
      %v8253 = vrot.slane %v8251, 5
      %v8254 = vsel %vm1536, %v8249, %v8253
      %v8255 = vshrl.u32 %v7921, 16
      %v8257 = vrot.slane %v8255, 4
      %v8258 = vor.u32 %v8257, %v8253
      %v8259 = vrot.slane %v8258, 4
      %v8261 = vshll.u32 %v7922, 16
      %v8263 = vrot.slane %v8261, 5
      %v8264 = vsel %vm1536, %v8259, %v8263
      %v8266 = vshrl.u32 %v7923, 16
      %v8268 = vrot.slane %v8266, 4
      %v8269 = vshll.u32 %v7923, 16
      %v8271 = vrot.slane %v8269, 5
      %v8272 = vor.u32 %v8268, %v8271
      %v8273 = vrot.slane %v8272, 4
      %v8275 = vshll.u32 %v7924, 16
      %v8277 = vrot.slane %v8275, 5
      %v8278 = vsel %vm1536, %v8273, %v8277
      %v8279 = vshrl.u32 %v7924, 16
      %v8281 = vrot.slane %v8279, 4
      %v8282 = vor.u32 %v8281, %v8277
      %v8283 = vrot.slane %v8282, 4
      %v8285 = vshll.u32 %v7925, 16
      %v8287 = vrot.slane %v8285, 5
      %v8288 = vsel %vm1536, %v8283, %v8287
      %v8290 = vshrl.u32 %v7926, 16
      %v8292 = vrot.slane %v8290, 4
      %v8293 = vshll.u32 %v7926, 16
      %v8295 = vrot.slane %v8293, 5
      %v8296 = vor.u32 %v8292, %v8295
      %v8297 = vrot.slane %v8296, 4
      %v8299 = vshll.u32 %v7927, 16
      %v8301 = vrot.slane %v8299, 5
      %v8302 = vsel %vm1536, %v8297, %v8301
      %v8303 = vshrl.u32 %v7927, 16
      %v8305 = vrot.slane %v8303, 4
      %v8306 = vor.u32 %v8305, %v8301
      %v8307 = vrot.slane %v8306, 4
      %v8309 = vshll.u32 %v7928, 16
      %v8311 = vrot.slane %v8309, 5
      %v8312 = vsel %vm1536, %v8307, %v8311
      %8313 = vrot.lane.b32.xlu0 %v7942, 112
      %v8314 = vpop.permute.xlu0 %8313
      %8315 = vrot.lane.b32.xlu0 %v7952, 112
      %v8316 = vpop.permute.xlu0 %8315
      %8317 = vrot.lane.b32.xlu0 %v7966, 112
      %v8318 = vpop.permute.xlu0 %8317
      %8319 = vrot.lane.b32.xlu0 %v7976, 112
      %v8320 = vpop.permute.xlu0 %8319
      %8321 = vrot.lane.b32.xlu0 %v7990, 112
      %v8322 = vpop.permute.xlu0 %8321
      %8323 = vrot.lane.b32.xlu0 %v8000, 112
      %v8324 = vpop.permute.xlu0 %8323
      %8325 = vrot.lane.b32.xlu0 %v8014, 112
      %v8326 = vpop.permute.xlu0 %8325
      %8327 = vrot.lane.b32.xlu0 %v8024, 112
      %v8328 = vpop.permute.xlu0 %8327
      %8329 = vrot.lane.b32.xlu0 %v8038, 112
      %v8330 = vpop.permute.xlu0 %8329
      %8331 = vrot.lane.b32.xlu0 %v8048, 112
      %v8332 = vpop.permute.xlu0 %8331
      %8333 = vrot.lane.b32.xlu0 %v8062, 112
      %v8334 = vpop.permute.xlu0 %8333
      %8335 = vrot.lane.b32.xlu0 %v8072, 112
      %v8336 = vpop.permute.xlu0 %8335
      %8337 = vrot.lane.b32.xlu0 %v8086, 112
      %v8338 = vpop.permute.xlu0 %8337
      %8339 = vrot.lane.b32.xlu0 %v8096, 112
      %v8340 = vpop.permute.xlu0 %8339
      %8341 = vrot.lane.b32.xlu0 %v8110, 112
      %v8342 = vpop.permute.xlu0 %8341
      %8343 = vrot.lane.b32.xlu0 %v8120, 112
      %v8344 = vpop.permute.xlu0 %8343
      %8345 = vrot.lane.b32.xlu0 %v8134, 112
      %v8346 = vpop.permute.xlu0 %8345
      %8347 = vrot.lane.b32.xlu0 %v8144, 112
      %v8348 = vpop.permute.xlu0 %8347
      %8349 = vrot.lane.b32.xlu0 %v8158, 112
      %v8350 = vpop.permute.xlu0 %8349
      %8351 = vrot.lane.b32.xlu0 %v8168, 112
      %v8352 = vpop.permute.xlu0 %8351
      %8353 = vrot.lane.b32.xlu0 %v8182, 112
      %v8354 = vpop.permute.xlu0 %8353
      %8355 = vrot.lane.b32.xlu0 %v8192, 112
      %v8356 = vpop.permute.xlu0 %8355
      %8357 = vrot.lane.b32.xlu0 %v8206, 112
      %v8358 = vpop.permute.xlu0 %8357
      %8359 = vrot.lane.b32.xlu0 %v8216, 112
      %v8360 = vpop.permute.xlu0 %8359
      %8361 = vrot.lane.b32.xlu0 %v8230, 112
      %v8362 = vpop.permute.xlu0 %8361
      %8363 = vrot.lane.b32.xlu0 %v8240, 112
      %v8364 = vpop.permute.xlu0 %8363
      %8365 = vrot.lane.b32.xlu0 %v8254, 112
      %v8366 = vpop.permute.xlu0 %8365
      %8367 = vrot.lane.b32.xlu0 %v8264, 112
      %v8368 = vpop.permute.xlu0 %8367
      %8369 = vrot.lane.b32.xlu0 %v8278, 112
      %v8370 = vpop.permute.xlu0 %8369
      %8371 = vrot.lane.b32.xlu0 %v8288, 112
      %v8372 = vpop.permute.xlu0 %8371
      %8373 = vrot.lane.b32.xlu0 %v8302, 112
      %v8374 = vpop.permute.xlu0 %8373
      %8375 = vrot.lane.b32.xlu0 %v8312, 112
      %v8376 = vpop.permute.xlu0 %8375
      %vm8409 = vcmask 1044352
      %8410 = vst.msk [vmem:[#allocation5] sm:$0xf] %vm8409, %v8314
      %8411 = vst.msk [vmem:[#allocation5 + $0x8] sm:$0xf] %vm8409, %v8316
      %8412 = vst.msk [vmem:[#allocation5 + $0x10] sm:$0xf] %vm8409, %v8318
      %8413 = vst.msk [vmem:[#allocation5 + $0x18] sm:$0xf] %vm8409, %v8320
      %8414 = vst.msk [vmem:[#allocation5 + $0x20] sm:$0xf] %vm8409, %v8322
      %8415 = vst.msk [vmem:[#allocation5 + $0x28] sm:$0xf] %vm8409, %v8324
      %8416 = vst.msk [vmem:[#allocation5 + $0x30] sm:$0xf] %vm8409, %v8326
      %8417 = vst.msk [vmem:[#allocation5 + $0x38] sm:$0xf] %vm8409, %v8328
      %8418 = vst.msk [vmem:[#allocation5 + $0x40] sm:$0xf] %vm8409, %v8330
      %8419 = vst.msk [vmem:[#allocation5 + $0x48] sm:$0xf] %vm8409, %v8332
      %8420 = vst.msk [vmem:[#allocation5 + $0x50] sm:$0xf] %vm8409, %v8334
      %8421 = vst.msk [vmem:[#allocation5 + $0x58] sm:$0xf] %vm8409, %v8336
      %8422 = vst.msk [vmem:[#allocation5 + $0x60] sm:$0xf] %vm8409, %v8338
      %8423 = vst.msk [vmem:[#allocation5 + $0x68] sm:$0xf] %vm8409, %v8340
      %8424 = vst.msk [vmem:[#allocation5 + $0x70] sm:$0xf] %vm8409, %v8342
      %8425 = vst.msk [vmem:[#allocation5 + $0x78] sm:$0xf] %vm8409, %v8344
      %8426 = vst.msk [vmem:[#allocation5 + $0x80] sm:$0xf] %vm8409, %v8346
      %8427 = vst.msk [vmem:[#allocation5 + $0x88] sm:$0xf] %vm8409, %v8348
      %8428 = vst.msk [vmem:[#allocation5 + $0x90] sm:$0xf] %vm8409, %v8350
      %8429 = vst.msk [vmem:[#allocation5 + $0x98] sm:$0xf] %vm8409, %v8352
      %8430 = vst.msk [vmem:[#allocation5 + $0xa0] sm:$0xf] %vm8409, %v8354
      %8431 = vst.msk [vmem:[#allocation5 + $0xa8] sm:$0xf] %vm8409, %v8356
      %8432 = vst.msk [vmem:[#allocation5 + $0xb0] sm:$0xf] %vm8409, %v8358
      %8433 = vst.msk [vmem:[#allocation5 + $0xb8] sm:$0xf] %vm8409, %v8360
      %8434 = vst.msk [vmem:[#allocation5 + $0xc0] sm:$0xf] %vm8409, %v8362
      %8435 = vst.msk [vmem:[#allocation5 + $0xc8] sm:$0xf] %vm8409, %v8364
      %8436 = vst.msk [vmem:[#allocation5 + $0xd0] sm:$0xf] %vm8409, %v8366
      %8437 = vst.msk [vmem:[#allocation5 + $0xd8] sm:$0xf] %vm8409, %v8368
      %8438 = vst.msk [vmem:[#allocation5 + $0xe0] sm:$0xf] %vm8409, %v8370
      %8439 = vst.msk [vmem:[#allocation5 + $0xe8] sm:$0xf] %vm8409, %v8372
      %8440 = vst.msk [vmem:[#allocation5 + $0xf0] sm:$0xf] %vm8409, %v8374
      %8441 = vst.msk [vmem:[#allocation5 + $0xf8] sm:$0xf] %vm8409, %v8376
      %v8442 = vld [vmem:[%s7687] sm:$0xe]
      %v8443 = vld [vmem:[%s7687 + $0x4] sm:$0xf]
      %v8444 = vld [vmem:[%s7687 + $0x8] sm:$0x1]
      %v8445 = vld [vmem:[%s7687 + $0xc] sm:$0xe]
      %v8446 = vld [vmem:[%s7687 + $0x10] sm:$0xf]
      %v8447 = vld [vmem:[%s7687 + $0x14] sm:$0x1]
      %v8448 = vld [vmem:[%s7687 + $0x18] sm:$0xe]
      %v8449 = vld [vmem:[%s7687 + $0x1c] sm:$0xf]
      %v8450 = vld [vmem:[%s7687 + $0x20] sm:$0x1]
      %v8451 = vld [vmem:[%s7687 + $0x24] sm:$0xe]
      %v8452 = vld [vmem:[%s7687 + $0x28] sm:$0xf]
      %v8453 = vld [vmem:[%s7687 + $0x2c] sm:$0x1]
      %v8454 = vld [vmem:[%s7687 + $0x30] sm:$0xe]
      %v8455 = vld [vmem:[%s7687 + $0x34] sm:$0xf]
      %v8456 = vld [vmem:[%s7687 + $0x38] sm:$0x1]
      %v8457 = vld [vmem:[%s7687 + $0x3c] sm:$0xe]
      %v8458 = vld [vmem:[%s7687 + $0x40] sm:$0xf]
      %v8459 = vld [vmem:[%s7687 + $0x44] sm:$0x1]
      %v8460 = vld [vmem:[%s7687 + $0x48] sm:$0xe]
      %v8461 = vld [vmem:[%s7687 + $0x4c] sm:$0xf]
      %v8462 = vld [vmem:[%s7687 + $0x50] sm:$0x1]
      %v8463 = vld [vmem:[%s7687 + $0x54] sm:$0xe]
      %v8464 = vld [vmem:[%s7687 + $0x58] sm:$0xf]
      %v8465 = vld [vmem:[%s7687 + $0x5c] sm:$0x1]
      %v8466 = vld [vmem:[%s7687 + $0x60] sm:$0xe]
      %v8467 = vld [vmem:[%s7687 + $0x64] sm:$0xf]
      %v8468 = vld [vmem:[%s7687 + $0x68] sm:$0x1]
      %v8469 = vld [vmem:[%s7687 + $0x6c] sm:$0xe]
      %v8470 = vld [vmem:[%s7687 + $0x70] sm:$0xf]
      %v8471 = vld [vmem:[%s7687 + $0x74] sm:$0x1]
      %v8472 = vld [vmem:[%s7687 + $0x78] sm:$0xe]
      %v8473 = vld [vmem:[%s7687 + $0x7c] sm:$0xf]
      %v8474 = vld [vmem:[%s7687 + $0x80] sm:$0x1]
      %v8475 = vld [vmem:[%s7687 + $0x84] sm:$0xe]
      %v8476 = vld [vmem:[%s7687 + $0x88] sm:$0xf]
      %v8477 = vld [vmem:[%s7687 + $0x8c] sm:$0x1]
      %v8478 = vld [vmem:[%s7687 + $0x90] sm:$0xe]
      %v8479 = vld [vmem:[%s7687 + $0x94] sm:$0xf]
      %v8480 = vld [vmem:[%s7687 + $0x98] sm:$0x1]
      %v8481 = vld [vmem:[%s7687 + $0x9c] sm:$0xe]
      %v8482 = vld [vmem:[%s7687 + $0xa0] sm:$0xf]
      %v8483 = vld [vmem:[%s7687 + $0xa4] sm:$0x1]
      %v8484 = vld [vmem:[%s7687 + $0xa8] sm:$0xe]
      %v8485 = vld [vmem:[%s7687 + $0xac] sm:$0xf]
      %v8486 = vld [vmem:[%s7687 + $0xb0] sm:$0x1]
      %v8487 = vld [vmem:[%s7687 + $0xb4] sm:$0xe]
      %v8488 = vld [vmem:[%s7687 + $0xb8] sm:$0xf]
      %v8489 = vld [vmem:[%s7687 + $0xbc] sm:$0x1]
      %v8538 = vrot.slane %v8442, 5
      %v8539 = vrot.slane %v8538, 4
      %v8540 = vrot.slane %v8443, 5
      %v8541 = vsel %vm2148, %v8539, %v8540
      %v8542 = vrot.slane %v8540, 4
      %v8543 = vrot.slane %v8444, 5
      %v8544 = vsel %vm2148, %v8542, %v8543
      %v8545 = vrot.slane %v8445, 5
      %v8546 = vrot.slane %v8545, 4
      %v8547 = vrot.slane %v8446, 5
      %v8548 = vsel %vm2148, %v8546, %v8547
      %v8549 = vrot.slane %v8547, 4
      %v8550 = vrot.slane %v8447, 5
      %v8551 = vsel %vm2148, %v8549, %v8550
      %v8552 = vrot.slane %v8448, 5
      %v8553 = vrot.slane %v8552, 4
      %v8554 = vrot.slane %v8449, 5
      %v8555 = vsel %vm2148, %v8553, %v8554
      %v8556 = vrot.slane %v8554, 4
      %v8557 = vrot.slane %v8450, 5
      %v8558 = vsel %vm2148, %v8556, %v8557
      %v8559 = vrot.slane %v8451, 5
      %v8560 = vrot.slane %v8559, 4
      %v8561 = vrot.slane %v8452, 5
      %v8562 = vsel %vm2148, %v8560, %v8561
      %v8563 = vrot.slane %v8561, 4
      %v8564 = vrot.slane %v8453, 5
      %v8565 = vsel %vm2148, %v8563, %v8564
      %v8566 = vrot.slane %v8454, 5
      %v8567 = vrot.slane %v8566, 4
      %v8568 = vrot.slane %v8455, 5
      %v8569 = vsel %vm2148, %v8567, %v8568
      %v8570 = vrot.slane %v8568, 4
      %v8571 = vrot.slane %v8456, 5
      %v8572 = vsel %vm2148, %v8570, %v8571
      %v8573 = vrot.slane %v8457, 5
      %v8574 = vrot.slane %v8573, 4
      %v8575 = vrot.slane %v8458, 5
      %v8576 = vsel %vm2148, %v8574, %v8575
      %v8577 = vrot.slane %v8575, 4
      %v8578 = vrot.slane %v8459, 5
      %v8579 = vsel %vm2148, %v8577, %v8578
      %v8580 = vrot.slane %v8460, 5
      %v8581 = vrot.slane %v8580, 4
      %v8582 = vrot.slane %v8461, 5
      %v8583 = vsel %vm2148, %v8581, %v8582
      %v8584 = vrot.slane %v8582, 4
      %v8585 = vrot.slane %v8462, 5
      %v8586 = vsel %vm2148, %v8584, %v8585
      %v8587 = vrot.slane %v8463, 5
      %v8588 = vrot.slane %v8587, 4
      %v8589 = vrot.slane %v8464, 5
      %v8590 = vsel %vm2148, %v8588, %v8589
      %v8591 = vrot.slane %v8589, 4
      %v8592 = vrot.slane %v8465, 5
      %v8593 = vsel %vm2148, %v8591, %v8592
      %v8594 = vrot.slane %v8466, 5
      %v8595 = vrot.slane %v8594, 4
      %v8596 = vrot.slane %v8467, 5
      %v8597 = vsel %vm2148, %v8595, %v8596
      %v8598 = vrot.slane %v8596, 4
      %v8599 = vrot.slane %v8468, 5
      %v8600 = vsel %vm2148, %v8598, %v8599
      %v8601 = vrot.slane %v8469, 5
      %v8602 = vrot.slane %v8601, 4
      %v8603 = vrot.slane %v8470, 5
      %v8604 = vsel %vm2148, %v8602, %v8603
      %v8605 = vrot.slane %v8603, 4
      %v8606 = vrot.slane %v8471, 5
      %v8607 = vsel %vm2148, %v8605, %v8606
      %v8608 = vrot.slane %v8472, 5
      %v8609 = vrot.slane %v8608, 4
      %v8610 = vrot.slane %v8473, 5
      %v8611 = vsel %vm2148, %v8609, %v8610
      %v8612 = vrot.slane %v8610, 4
      %v8613 = vrot.slane %v8474, 5
      %v8614 = vsel %vm2148, %v8612, %v8613
      %v8615 = vrot.slane %v8475, 5
      %v8616 = vrot.slane %v8615, 4
      %v8617 = vrot.slane %v8476, 5
      %v8618 = vsel %vm2148, %v8616, %v8617
      %v8619 = vrot.slane %v8617, 4
      %v8620 = vrot.slane %v8477, 5
      %v8621 = vsel %vm2148, %v8619, %v8620
      %v8622 = vrot.slane %v8478, 5
      %v8623 = vrot.slane %v8622, 4
      %v8624 = vrot.slane %v8479, 5
      %v8625 = vsel %vm2148, %v8623, %v8624
      %v8626 = vrot.slane %v8624, 4
      %v8627 = vrot.slane %v8480, 5
      %v8628 = vsel %vm2148, %v8626, %v8627
      %v8629 = vrot.slane %v8481, 5
      %v8630 = vrot.slane %v8629, 4
      %v8631 = vrot.slane %v8482, 5
      %v8632 = vsel %vm2148, %v8630, %v8631
      %v8633 = vrot.slane %v8631, 4
      %v8634 = vrot.slane %v8483, 5
      %v8635 = vsel %vm2148, %v8633, %v8634
      %v8636 = vrot.slane %v8484, 5
      %v8637 = vrot.slane %v8636, 4
      %v8638 = vrot.slane %v8485, 5
      %v8639 = vsel %vm2148, %v8637, %v8638
      %v8640 = vrot.slane %v8638, 4
      %v8641 = vrot.slane %v8486, 5
      %v8642 = vsel %vm2148, %v8640, %v8641
      %v8643 = vrot.slane %v8487, 5
      %v8644 = vrot.slane %v8643, 4
      %v8645 = vrot.slane %v8488, 5
      %v8646 = vsel %vm2148, %v8644, %v8645
      %v8647 = vrot.slane %v8645, 4
      %v8648 = vrot.slane %v8489, 5
      %v8649 = vsel %vm2148, %v8647, %v8648
      %8682 = vst.msk [vmem:[#allocation5 + $0x4] sm:$0xf] %vm5045, %v8541
      %8683 = vst.msk [vmem:[#allocation5 + $0xc] sm:$0xf] %vm5045, %v8544
      %8684 = vst.msk [vmem:[#allocation5 + $0x14] sm:$0xf] %vm5045, %v8548
      %8685 = vst.msk [vmem:[#allocation5 + $0x1c] sm:$0xf] %vm5045, %v8551
      %8686 = vst.msk [vmem:[#allocation5 + $0x24] sm:$0xf] %vm5045, %v8555
      %8687 = vst.msk [vmem:[#allocation5 + $0x2c] sm:$0xf] %vm5045, %v8558
      %8688 = vst.msk [vmem:[#allocation5 + $0x34] sm:$0xf] %vm5045, %v8562
      %8689 = vst.msk [vmem:[#allocation5 + $0x3c] sm:$0xf] %vm5045, %v8565
      %8690 = vst.msk [vmem:[#allocation5 + $0x44] sm:$0xf] %vm5045, %v8569
      %8691 = vst.msk [vmem:[#allocation5 + $0x4c] sm:$0xf] %vm5045, %v8572
      %8692 = vst.msk [vmem:[#allocation5 + $0x54] sm:$0xf] %vm5045, %v8576
      %8693 = vst.msk [vmem:[#allocation5 + $0x5c] sm:$0xf] %vm5045, %v8579
      %8694 = vst.msk [vmem:[#allocation5 + $0x64] sm:$0xf] %vm5045, %v8583
      %8695 = vst.msk [vmem:[#allocation5 + $0x6c] sm:$0xf] %vm5045, %v8586
      %8696 = vst.msk [vmem:[#allocation5 + $0x74] sm:$0xf] %vm5045, %v8590
      %8697 = vst.msk [vmem:[#allocation5 + $0x7c] sm:$0xf] %vm5045, %v8593
      %8698 = vst.msk [vmem:[#allocation5 + $0x84] sm:$0xf] %vm5045, %v8597
      %8699 = vst.msk [vmem:[#allocation5 + $0x8c] sm:$0xf] %vm5045, %v8600
      %8700 = vst.msk [vmem:[#allocation5 + $0x94] sm:$0xf] %vm5045, %v8604
      %8701 = vst.msk [vmem:[#allocation5 + $0x9c] sm:$0xf] %vm5045, %v8607
      %8702 = vst.msk [vmem:[#allocation5 + $0xa4] sm:$0xf] %vm5045, %v8611
      %8703 = vst.msk [vmem:[#allocation5 + $0xac] sm:$0xf] %vm5045, %v8614
      %8704 = vst.msk [vmem:[#allocation5 + $0xb4] sm:$0xf] %vm5045, %v8618
      %8705 = vst.msk [vmem:[#allocation5 + $0xbc] sm:$0xf] %vm5045, %v8621
      %8706 = vst.msk [vmem:[#allocation5 + $0xc4] sm:$0xf] %vm5045, %v8625
      %8707 = vst.msk [vmem:[#allocation5 + $0xcc] sm:$0xf] %vm5045, %v8628
      %8708 = vst.msk [vmem:[#allocation5 + $0xd4] sm:$0xf] %vm5045, %v8632
      %8709 = vst.msk [vmem:[#allocation5 + $0xdc] sm:$0xf] %vm5045, %v8635
      %8710 = vst.msk [vmem:[#allocation5 + $0xe4] sm:$0xf] %vm5045, %v8639
      %8711 = vst.msk [vmem:[#allocation5 + $0xec] sm:$0xf] %vm5045, %v8642
      %8712 = vst.msk [vmem:[#allocation5 + $0xf4] sm:$0xf] %vm5045, %v8646
      %8713 = vst.msk [vmem:[#allocation5 + $0xfc] sm:$0xf] %vm5045, %v8649
      %v8714 = vld [vmem:[#allocation5] sm:$0xff]
      %v8715 = vld [vmem:[#allocation5 + $0x8] sm:$0xff]
      %v8716 = vld [vmem:[#allocation5 + $0x10] sm:$0xff]
      %v8717 = vld [vmem:[#allocation5 + $0x18] sm:$0xff]
      %v8718 = vld [vmem:[#allocation5 + $0x20] sm:$0xff]
      %v8719 = vld [vmem:[#allocation5 + $0x28] sm:$0xff]
      %v8720 = vld [vmem:[#allocation5 + $0x30] sm:$0xff]
      %v8721 = vld [vmem:[#allocation5 + $0x38] sm:$0xff]
      %v8722 = vld [vmem:[#allocation5 + $0x40] sm:$0xff]
      %v8723 = vld [vmem:[#allocation5 + $0x48] sm:$0xff]
      %v8724 = vld [vmem:[#allocation5 + $0x50] sm:$0xff]
      %v8725 = vld [vmem:[#allocation5 + $0x58] sm:$0xff]
      %v8726 = vld [vmem:[#allocation5 + $0x60] sm:$0xff]
      %v8727 = vld [vmem:[#allocation5 + $0x68] sm:$0xff]
      %v8728 = vld [vmem:[#allocation5 + $0x70] sm:$0xff]
      %v8729 = vld [vmem:[#allocation5 + $0x78] sm:$0xff]
      %v8730 = vld [vmem:[#allocation5 + $0x80] sm:$0xff]
      %v8731 = vld [vmem:[#allocation5 + $0x88] sm:$0xff]
      %v8732 = vld [vmem:[#allocation5 + $0x90] sm:$0xff]
      %v8733 = vld [vmem:[#allocation5 + $0x98] sm:$0xff]
      %v8734 = vld [vmem:[#allocation5 + $0xa0] sm:$0xff]
      %v8735 = vld [vmem:[#allocation5 + $0xa8] sm:$0xff]
      %v8736 = vld [vmem:[#allocation5 + $0xb0] sm:$0xff]
      %v8737 = vld [vmem:[#allocation5 + $0xb8] sm:$0xff]
      %v8738 = vld [vmem:[#allocation5 + $0xc0] sm:$0xff]
      %v8739 = vld [vmem:[#allocation5 + $0xc8] sm:$0xff]
      %v8740 = vld [vmem:[#allocation5 + $0xd0] sm:$0xff]
      %v8741 = vld [vmem:[#allocation5 + $0xd8] sm:$0xff]
      %v8742 = vld [vmem:[#allocation5 + $0xe0] sm:$0xff]
      %v8743 = vld [vmem:[#allocation5 + $0xe8] sm:$0xff]
      %v8744 = vld [vmem:[#allocation5 + $0xf0] sm:$0xff]
      %v8745 = vld [vmem:[#allocation5 + $0xf8] sm:$0xff]
      %v8746 = vld [vmem:[%s5] sm:$0xf]
      %v8747 = vld [vmem:[%s5 + $0x4] sm:$0xf]
      %v8748 = vld [vmem:[%s5 + $0x8] sm:$0xf]
      %v8749 = vld [vmem:[%s5 + $0xc] sm:$0xf]
      %v8750 = vld [vmem:[%s5 + $0x10] sm:$0xf]
      %v8751 = vld [vmem:[%s5 + $0x14] sm:$0xf]
      %v8752 = vld [vmem:[%s5 + $0x18] sm:$0xf]
      %v8753 = vld [vmem:[%s5 + $0x1c] sm:$0xf]
      %v8754 = vld [vmem:[%s5 + $0x20] sm:$0xf]
      %v8755 = vld [vmem:[%s5 + $0x24] sm:$0xf]
      %v8756 = vld [vmem:[%s5 + $0x28] sm:$0xf]
      %v8757 = vld [vmem:[%s5 + $0x2c] sm:$0xf]
      %v8758 = vld [vmem:[%s5 + $0x30] sm:$0xf]
      %v8759 = vld [vmem:[%s5 + $0x34] sm:$0xf]
      %v8760 = vld [vmem:[%s5 + $0x38] sm:$0xf]
      %v8761 = vld [vmem:[%s5 + $0x3c] sm:$0xf]
      %v8762 = vld [vmem:[%s5 + $0x40] sm:$0xf]
      %v8763 = vld [vmem:[%s5 + $0x44] sm:$0xf]
      %v8796 = vunpack.c.l.b16 %v8714
      %v8797 = vunpack.c.h.b16 %v8714
      %v8798 = vunpack.c.l.b16 %v8715
      %v8799 = vunpack.c.h.b16 %v8715
      %v8800 = vunpack.c.l.b16 %v8716
      %v8801 = vunpack.c.h.b16 %v8716
      %v8802 = vunpack.c.l.b16 %v8717
      %v8803 = vunpack.c.h.b16 %v8717
      %v8804 = vunpack.c.l.b16 %v8718
      %v8805 = vunpack.c.h.b16 %v8718
      %v8806 = vunpack.c.l.b16 %v8719
      %v8807 = vunpack.c.h.b16 %v8719
      %v8808 = vunpack.c.l.b16 %v8720
      %v8809 = vunpack.c.h.b16 %v8720
      %v8810 = vunpack.c.l.b16 %v8721
      %v8811 = vunpack.c.h.b16 %v8721
      %v8812 = vunpack.c.l.b16 %v8722
      %v8813 = vunpack.c.h.b16 %v8722
      %v8814 = vunpack.c.l.b16 %v8723
      %v8815 = vunpack.c.h.b16 %v8723
      %v8816 = vunpack.c.l.b16 %v8724
      %v8817 = vunpack.c.h.b16 %v8724
      %v8818 = vunpack.c.l.b16 %v8725
      %v8819 = vunpack.c.h.b16 %v8725
      %v8820 = vunpack.c.l.b16 %v8726
      %v8821 = vunpack.c.h.b16 %v8726
      %v8822 = vunpack.c.l.b16 %v8727
      %v8823 = vunpack.c.h.b16 %v8727
      %v8824 = vunpack.c.l.b16 %v8728
      %v8825 = vunpack.c.h.b16 %v8728
      %v8826 = vunpack.c.l.b16 %v8729
      %v8827 = vunpack.c.h.b16 %v8729
      %v8828 = vunpack.c.l.b16 %v8730
      %v8829 = vunpack.c.h.b16 %v8730
      %v8830 = vunpack.c.l.b16 %v8731
      %v8831 = vunpack.c.h.b16 %v8731
      %v8832 = vunpack.c.l.b16 %v8732
      %v8833 = vunpack.c.h.b16 %v8732
      %v8834 = vunpack.c.l.b16 %v8733
      %v8835 = vunpack.c.h.b16 %v8733
      %v8836 = vunpack.c.l.b16 %v8734
      %v8837 = vunpack.c.h.b16 %v8734
      %v8838 = vunpack.c.l.b16 %v8735
      %v8839 = vunpack.c.h.b16 %v8735
      %v8840 = vunpack.c.l.b16 %v8736
      %v8841 = vunpack.c.h.b16 %v8736
      %v8842 = vunpack.c.l.b16 %v8737
      %v8843 = vunpack.c.h.b16 %v8737
      %v8844 = vunpack.c.l.b16 %v8738
      %v8845 = vunpack.c.h.b16 %v8738
      %v8846 = vunpack.c.l.b16 %v8739
      %v8847 = vunpack.c.h.b16 %v8739
      %v8848 = vunpack.c.l.b16 %v8740
      %v8849 = vunpack.c.h.b16 %v8740
      %v8850 = vunpack.c.l.b16 %v8741
      %v8851 = vunpack.c.h.b16 %v8741
      %v8852 = vunpack.c.l.b16 %v8742
      %v8853 = vunpack.c.h.b16 %v8742
      %v8854 = vunpack.c.l.b16 %v8743
      %v8855 = vunpack.c.h.b16 %v8743
      %v8856 = vunpack.c.l.b16 %v8744
      %v8857 = vunpack.c.h.b16 %v8744
      %v8858 = vunpack.c.l.b16 %v8745
      %v8859 = vunpack.c.h.b16 %v8745
      %v8860 = vpack.c.b16 %v8798, %v8796
      %v8861 = vpack.c.b16 %v8799, %v8797
      %v8862 = vpack.c.b16 %v8802, %v8800
      %v8863 = vpack.c.b16 %v8803, %v8801
      %v8864 = vpack.c.b16 %v8806, %v8804
      %v8865 = vpack.c.b16 %v8807, %v8805
      %v8866 = vpack.c.b16 %v8810, %v8808
      %v8867 = vpack.c.b16 %v8811, %v8809
      %v8868 = vpack.c.b16 %v8814, %v8812
      %v8869 = vpack.c.b16 %v8815, %v8813
      %v8870 = vpack.c.b16 %v8818, %v8816
      %v8871 = vpack.c.b16 %v8819, %v8817
      %v8872 = vpack.c.b16 %v8822, %v8820
      %v8873 = vpack.c.b16 %v8823, %v8821
      %v8874 = vpack.c.b16 %v8826, %v8824
      %v8875 = vpack.c.b16 %v8827, %v8825
      %v8876 = vpack.c.b16 %v8830, %v8828
      %v8877 = vpack.c.b16 %v8831, %v8829
      %v8878 = vpack.c.b16 %v8834, %v8832
      %v8879 = vpack.c.b16 %v8835, %v8833
      %v8880 = vpack.c.b16 %v8838, %v8836
      %v8881 = vpack.c.b16 %v8839, %v8837
      %v8882 = vpack.c.b16 %v8842, %v8840
      %v8883 = vpack.c.b16 %v8843, %v8841
      %v8884 = vpack.c.b16 %v8846, %v8844
      %v8885 = vpack.c.b16 %v8847, %v8845
      %v8886 = vpack.c.b16 %v8850, %v8848
      %v8887 = vpack.c.b16 %v8851, %v8849
      %v8888 = vpack.c.b16 %v8854, %v8852
      %v8889 = vpack.c.b16 %v8855, %v8853
      %v8890 = vpack.c.b16 %v8858, %v8856
      %v8891 = vpack.c.b16 %v8859, %v8857
      %v8926 = vunpack.c.l.b16 %v8746
      %v8927 = vunpack.c.l.b16 %v8747
      %v8928 = vunpack.c.l.b16 %v8748
      %v8929 = vunpack.c.l.b16 %v8749
      %v8930 = vunpack.c.l.b16 %v8750
      %v8931 = vunpack.c.l.b16 %v8751
      %v8932 = vunpack.c.l.b16 %v8752
      %v8933 = vunpack.c.l.b16 %v8753
      %v8934 = vunpack.c.l.b16 %v8754
      %v8935 = vunpack.c.l.b16 %v8755
      %v8936 = vunpack.c.l.b16 %v8756
      %v8937 = vunpack.c.l.b16 %v8757
      %v8938 = vunpack.c.l.b16 %v8758
      %v8939 = vunpack.c.l.b16 %v8759
      %v8940 = vunpack.c.l.b16 %v8760
      %v8941 = vunpack.c.l.b16 %v8761
      %v8942 = vunpack.c.l.b16 %v8762
      %v8943 = vunpack.c.l.b16 %v8763
      %v8944 = vpack.c.b16 %v8927, %v8926
      %v8945 = vpack.c.b16 %v8929, %v8928
      %v8946 = vpack.c.b16 %v8931, %v8930
      %v8947 = vpack.c.b16 %v8933, %v8932
      %v8948 = vpack.c.b16 %v8935, %v8934
      %v8949 = vpack.c.b16 %v8937, %v8936
      %v8950 = vpack.c.b16 %v8939, %v8938
      %v8951 = vpack.c.b16 %v8941, %v8940
      %v8952 = vpack.c.b16 %v8943, %v8942
      %vm8962 = vcmask 130048
      %v8964 = vsel %vm8962, %v8861, 0
      %v8967 = vsel %vm8962, %v8863, 0
      %v8970 = vsel %vm8962, %v8865, 0
      %v8973 = vsel %vm8962, %v8867, 0
      %v8976 = vsel %vm8962, %v8869, 0
      %v8979 = vsel %vm8962, %v8871, 0
      %v8982 = vsel %vm8962, %v8873, 0
      %v8985 = vsel %vm8962, %v8875, 0
      %v8988 = vsel %vm8962, %v8877, 0
      %v8991 = vsel %vm8962, %v8879, 0
      %v8994 = vsel %vm8962, %v8881, 0
      %v8997 = vsel %vm8962, %v8883, 0
      %v9000 = vsel %vm8962, %v8885, 0
      %v9003 = vsel %vm8962, %v8887, 0
      %v9006 = vsel %vm8962, %v8889, 0
      %v9009 = vsel %vm8962, %v8891, 0
      %9011 = vmatprep.subr.bf16.mxu0 0
      %9012 = vmatpush1.bf16.msra.mxu0 %v8951
      %9013 = vmatprep.subr.bf16.mxu0 0
      %9014 = vmatpush1.bf16.msra.mxu0 %v8950
      %9015 = vmatprep.subr.bf16.mxu0 0
      %9016 = vmatpush1.bf16.msra.mxu0 %v8949
      %9017 = vmatprep.subr.bf16.mxu0 0
      %9018 = vmatpush1.bf16.msra.mxu0 %v8948
      %9019 = vmatprep.subr.bf16.mxu0 0
      %9020 = vmatpush1.bf16.msra.mxu0 %v8947
      %9021 = vmatprep.subr.bf16.mxu0 0
      %9022 = vmatpush1.bf16.msra.mxu0 %v8946
      %9023 = vmatprep.subr.bf16.mxu0 0
      %9024 = vmatpush1.bf16.msra.mxu0 %v8945
      %9025 = vmatprep.subr.bf16.mxu0 0
      %9026 = vmatpush1.bf16.msra.mxu0 %v8944
      %9027 = vmatprep.subr.bf16.mxu0 0
      %9028 = vmatpush2.bf16.msra.mxu0 0
      %9029 = vmatprep.subr.bf16.mxu0 0
      %9030 = vmatpush2.bf16.msra.mxu0 0
      %9031 = vmatprep.subr.bf16.mxu0 0
      %9032 = vmatpush2.bf16.msra.mxu0 0
      %9033 = vmatprep.subr.bf16.mxu0 0
      %9034 = vmatpush2.bf16.msra.mxu0 0
      %9035 = vmatprep.subr.bf16.mxu0 0
      %9036 = vmatpush2.bf16.msra.mxu0 0
      %9037 = vmatprep.subr.bf16.mxu0 0
      %9038 = vmatpush2.bf16.msra.mxu0 0
      %9039 = vmatprep.subr.bf16.mxu0 0
      %9040 = vmatpush2.bf16.msra.mxu0 0
      %9041 = vmatprep.subr.bf16.mxu0 0
      %9042 = vmatpush2.bf16.msra.mxu0 %v8952
      %9043 = vmatprep.mubr.bf16.mxu0 %v8964
      %9044 = vmatmul.mubr.bf16.gmra.mxu0 %v8860
      %v9045 = vpop.f32.mrf.mxu0
      %v9046 = vadd.f32 0.0, %v9045
      %v9047 = vpop.f32.mrf.mxu0
      %v9048 = vpop.f32.mrf.mxu0
      %v9049 = vadd.f32 0.0, %v9048
      %v9050 = vpop.f32.mrf.mxu0
      %9051 = vmatprep.mubr.bf16.mxu0 %v8967
      %9052 = vmatmul.mubr.bf16.gmra.mxu0 %v8862
      %v9053 = vpop.f32.mrf.mxu0
      %v9054 = vadd.f32 0.0, %v9053
      %v9055 = vpop.f32.mrf.mxu0
      %v9056 = vpop.f32.mrf.mxu0
      %v9057 = vadd.f32 0.0, %v9056
      %v9058 = vpop.f32.mrf.mxu0
      %9059 = vmatprep.mubr.bf16.mxu0 %v8970
      %9060 = vmatmul.mubr.bf16.gmra.mxu0 %v8864
      %v9061 = vpop.f32.mrf.mxu0
      %v9062 = vadd.f32 0.0, %v9061
      %v9063 = vpop.f32.mrf.mxu0
      %v9064 = vpop.f32.mrf.mxu0
      %v9065 = vadd.f32 0.0, %v9064
      %v9066 = vpop.f32.mrf.mxu0
      %9067 = vmatprep.mubr.bf16.mxu0 %v8973
      %9068 = vmatmul.mubr.bf16.gmra.mxu0 %v8866
      %v9069 = vpop.f32.mrf.mxu0
      %v9070 = vadd.f32 0.0, %v9069
      %v9071 = vpop.f32.mrf.mxu0
      %v9072 = vpop.f32.mrf.mxu0
      %v9073 = vadd.f32 0.0, %v9072
      %v9074 = vpop.f32.mrf.mxu0
      %9075 = vmatprep.mubr.bf16.mxu0 %v8976
      %9076 = vmatmul.mubr.bf16.gmra.mxu0 %v8868
      %v9077 = vpop.f32.mrf.mxu0
      %v9078 = vadd.f32 0.0, %v9077
      %v9079 = vpop.f32.mrf.mxu0
      %v9080 = vpop.f32.mrf.mxu0
      %v9081 = vadd.f32 0.0, %v9080
      %v9082 = vpop.f32.mrf.mxu0
      %9083 = vmatprep.mubr.bf16.mxu0 %v8979
      %9084 = vmatmul.mubr.bf16.gmra.mxu0 %v8870
      %v9085 = vpop.f32.mrf.mxu0
      %v9086 = vadd.f32 0.0, %v9085
      %v9087 = vpop.f32.mrf.mxu0
      %v9088 = vpop.f32.mrf.mxu0
      %v9089 = vadd.f32 0.0, %v9088
      %v9090 = vpop.f32.mrf.mxu0
      %9091 = vmatprep.mubr.bf16.mxu0 %v8982
      %9092 = vmatmul.mubr.bf16.gmra.mxu0 %v8872
      %v9093 = vpop.f32.mrf.mxu0
      %v9094 = vadd.f32 0.0, %v9093
      %v9095 = vpop.f32.mrf.mxu0
      %v9096 = vpop.f32.mrf.mxu0
      %v9097 = vadd.f32 0.0, %v9096
      %v9098 = vpop.f32.mrf.mxu0
      %9099 = vmatprep.mubr.bf16.mxu0 %v8985
      %9100 = vmatmul.mubr.bf16.gmra.mxu0 %v8874
      %v9101 = vpop.f32.mrf.mxu0
      %v9102 = vadd.f32 0.0, %v9101
      %v9103 = vpop.f32.mrf.mxu0
      %v9104 = vpop.f32.mrf.mxu0
      %v9105 = vadd.f32 0.0, %v9104
      %v9106 = vpop.f32.mrf.mxu0
      %9107 = vmatprep.mubr.bf16.mxu0 %v8988
      %9108 = vmatmul.mubr.bf16.gmra.mxu0 %v8876
      %v9109 = vpop.f32.mrf.mxu0
      %v9110 = vadd.f32 0.0, %v9109
      %v9111 = vpop.f32.mrf.mxu0
      %v9112 = vpop.f32.mrf.mxu0
      %v9113 = vadd.f32 0.0, %v9112
      %v9114 = vpop.f32.mrf.mxu0
      %9115 = vmatprep.mubr.bf16.mxu0 %v8991
      %9116 = vmatmul.mubr.bf16.gmra.mxu0 %v8878
      %v9117 = vpop.f32.mrf.mxu0
      %v9118 = vadd.f32 0.0, %v9117
      %v9119 = vpop.f32.mrf.mxu0
      %v9120 = vpop.f32.mrf.mxu0
      %v9121 = vadd.f32 0.0, %v9120
      %v9122 = vpop.f32.mrf.mxu0
      %9123 = vmatprep.mubr.bf16.mxu0 %v8994
      %9124 = vmatmul.mubr.bf16.gmra.mxu0 %v8880
      %v9125 = vpop.f32.mrf.mxu0
      %v9126 = vadd.f32 0.0, %v9125
      %v9127 = vpop.f32.mrf.mxu0
      %v9128 = vpop.f32.mrf.mxu0
      %v9129 = vadd.f32 0.0, %v9128
      %v9130 = vpop.f32.mrf.mxu0
      %9131 = vmatprep.mubr.bf16.mxu0 %v8997
      %9132 = vmatmul.mubr.bf16.gmra.mxu0 %v8882
      %v9133 = vpop.f32.mrf.mxu0
      %v9134 = vadd.f32 0.0, %v9133
      %v9135 = vpop.f32.mrf.mxu0
      %v9136 = vpop.f32.mrf.mxu0
      %v9137 = vadd.f32 0.0, %v9136
      %v9138 = vpop.f32.mrf.mxu0
      %9139 = vmatprep.mubr.bf16.mxu0 %v9000
      %9140 = vmatmul.mubr.bf16.gmra.mxu0 %v8884
      %v9141 = vpop.f32.mrf.mxu0
      %v9142 = vadd.f32 0.0, %v9141
      %v9143 = vpop.f32.mrf.mxu0
      %v9144 = vpop.f32.mrf.mxu0
      %v9145 = vadd.f32 0.0, %v9144
      %v9146 = vpop.f32.mrf.mxu0
      %9147 = vmatprep.mubr.bf16.mxu0 %v9003
      %9148 = vmatmul.mubr.bf16.gmra.mxu0 %v8886
      %v9149 = vpop.f32.mrf.mxu0
      %v9150 = vadd.f32 0.0, %v9149
      %v9151 = vpop.f32.mrf.mxu0
      %v9152 = vpop.f32.mrf.mxu0
      %v9153 = vadd.f32 0.0, %v9152
      %v9154 = vpop.f32.mrf.mxu0
      %9155 = vmatprep.mubr.bf16.mxu0 %v9006
      %9156 = vmatmul.mubr.bf16.gmra.mxu0 %v8888
      %v9157 = vpop.f32.mrf.mxu0
      %v9158 = vadd.f32 0.0, %v9157
      %v9159 = vpop.f32.mrf.mxu0
      %v9160 = vpop.f32.mrf.mxu0
      %v9161 = vadd.f32 0.0, %v9160
      %v9162 = vpop.f32.mrf.mxu0
      %9163 = vmatprep.mubr.bf16.mxu0 %v9009
      %9164 = vmatmul.mubr.bf16.gmra.mxu0 %v8890
      %v9165 = vpop.f32.mrf.mxu0
      %v9166 = vadd.f32 0.0, %v9165
      %v9167 = vpop.f32.mrf.mxu0
      %v9168 = vpop.f32.mrf.mxu0
      %v9169 = vadd.f32 0.0, %v9168
      %v9170 = vpop.f32.mrf.mxu0
      %9171 = vdwg.mxu0
      %v9172 = vld [vmem:[%s6] sm:$0x1]
      %v9174 = vlaneseq
      %v9175 = vshrl.u32 %v9174, 7
      %v9176 = vsub.s32 0, %v9175
      %v9177 = vrot.slane %v9172, %v9176
      %v9179 = vmul.f32 %v9046, %v9177
      %v9180 = vmul.f32 %v9049, %v9177
      %v9181 = vmul.f32 %v9054, %v9177
      %v9182 = vmul.f32 %v9057, %v9177
      %v9183 = vmul.f32 %v9062, %v9177
      %v9184 = vmul.f32 %v9065, %v9177
      %v9185 = vmul.f32 %v9070, %v9177
      %v9186 = vmul.f32 %v9073, %v9177
      %v9187 = vmul.f32 %v9078, %v9177
      %v9188 = vmul.f32 %v9081, %v9177
      %v9189 = vmul.f32 %v9086, %v9177
      %v9190 = vmul.f32 %v9089, %v9177
      %v9191 = vmul.f32 %v9094, %v9177
      %v9192 = vmul.f32 %v9097, %v9177
      %v9193 = vmul.f32 %v9102, %v9177
      %v9194 = vmul.f32 %v9105, %v9177
      %v9195 = vmul.f32 %v9110, %v9177
      %v9196 = vmul.f32 %v9113, %v9177
      %v9197 = vmul.f32 %v9118, %v9177
      %v9198 = vmul.f32 %v9121, %v9177
      %v9199 = vmul.f32 %v9126, %v9177
      %v9200 = vmul.f32 %v9129, %v9177
      %v9201 = vmul.f32 %v9134, %v9177
      %v9202 = vmul.f32 %v9137, %v9177
      %v9203 = vmul.f32 %v9142, %v9177
      %v9204 = vmul.f32 %v9145, %v9177
      %v9205 = vmul.f32 %v9150, %v9177
      %v9206 = vmul.f32 %v9153, %v9177
      %v9207 = vmul.f32 %v9158, %v9177
      %v9208 = vmul.f32 %v9161, %v9177
      %v9209 = vmul.f32 %v9166, %v9177
      %v9210 = vmul.f32 %v9169, %v9177
      %v9211 = vld [vmem:[%s7] sm:$0x1]
      %v9213 = vlaneseq
      %v9214 = vshrl.u32 %v9213, 7
      %v9215 = vsub.s32 0, %v9214
      %v9216 = vrot.slane %v9211, %v9215
      %v9218 = vadd.f32 %v9179, %v9216
      %v9219 = vadd.f32 %v9180, %v9216
      %v9220 = vadd.f32 %v9181, %v9216
      %v9221 = vadd.f32 %v9182, %v9216
      %v9222 = vadd.f32 %v9183, %v9216
      %v9223 = vadd.f32 %v9184, %v9216
      %v9224 = vadd.f32 %v9185, %v9216
      %v9225 = vadd.f32 %v9186, %v9216
      %v9226 = vadd.f32 %v9187, %v9216
      %v9227 = vadd.f32 %v9188, %v9216
      %v9228 = vadd.f32 %v9189, %v9216
      %v9229 = vadd.f32 %v9190, %v9216
      %v9230 = vadd.f32 %v9191, %v9216
      %v9231 = vadd.f32 %v9192, %v9216
      %v9232 = vadd.f32 %v9193, %v9216
      %v9233 = vadd.f32 %v9194, %v9216
      %v9234 = vadd.f32 %v9195, %v9216
      %v9235 = vadd.f32 %v9196, %v9216
      %v9236 = vadd.f32 %v9197, %v9216
      %v9237 = vadd.f32 %v9198, %v9216
      %v9238 = vadd.f32 %v9199, %v9216
      %v9239 = vadd.f32 %v9200, %v9216
      %v9240 = vadd.f32 %v9201, %v9216
      %v9241 = vadd.f32 %v9202, %v9216
      %v9242 = vadd.f32 %v9203, %v9216
      %v9243 = vadd.f32 %v9204, %v9216
      %v9244 = vadd.f32 %v9205, %v9216
      %v9245 = vadd.f32 %v9206, %v9216
      %v9246 = vadd.f32 %v9207, %v9216
      %v9247 = vadd.f32 %v9208, %v9216
      %v9248 = vadd.f32 %v9209, %v9216
      %v9249 = vadd.f32 %v9210, %v9216
      %v9250 = vmax.f32 %v9218, 0.0
      %v9251 = vmax.f32 %v9219, 0.0
      %v9252 = vmax.f32 %v9220, 0.0
      %v9253 = vmax.f32 %v9221, 0.0
      %v9254 = vmax.f32 %v9222, 0.0
      %v9255 = vmax.f32 %v9223, 0.0
      %v9256 = vmax.f32 %v9224, 0.0
      %v9257 = vmax.f32 %v9225, 0.0
      %v9258 = vmax.f32 %v9226, 0.0
      %v9259 = vmax.f32 %v9227, 0.0
      %v9260 = vmax.f32 %v9228, 0.0
      %v9261 = vmax.f32 %v9229, 0.0
      %v9262 = vmax.f32 %v9230, 0.0
      %v9263 = vmax.f32 %v9231, 0.0
      %v9264 = vmax.f32 %v9232, 0.0
      %v9265 = vmax.f32 %v9233, 0.0
      %v9266 = vmax.f32 %v9234, 0.0
      %v9267 = vmax.f32 %v9235, 0.0
      %v9268 = vmax.f32 %v9236, 0.0
      %v9269 = vmax.f32 %v9237, 0.0
      %v9270 = vmax.f32 %v9238, 0.0
      %v9271 = vmax.f32 %v9239, 0.0
      %v9272 = vmax.f32 %v9240, 0.0
      %v9273 = vmax.f32 %v9241, 0.0
      %v9274 = vmax.f32 %v9242, 0.0
      %v9275 = vmax.f32 %v9243, 0.0
      %v9276 = vmax.f32 %v9244, 0.0
      %v9277 = vmax.f32 %v9245, 0.0
      %v9278 = vmax.f32 %v9246, 0.0
      %v9279 = vmax.f32 %v9247, 0.0
      %v9280 = vmax.f32 %v9248, 0.0
      %v9281 = vmax.f32 %v9249, 0.0
      %9282 = vst.msk [vmem:[%s325] sm:$0xff] %vm8962, %v9250
      %9283 = vst.msk [vmem:[%s325 + $0x8] sm:$0xff] %vm8962, %v9251
      %9284 = vst.msk [vmem:[%s325 + $0x10] sm:$0xff] %vm8962, %v9252
      %9285 = vst.msk [vmem:[%s325 + $0x18] sm:$0xff] %vm8962, %v9253
      %9286 = vst.msk [vmem:[%s325 + $0x20] sm:$0xff] %vm8962, %v9254
      %9287 = vst.msk [vmem:[%s325 + $0x28] sm:$0xff] %vm8962, %v9255
      %9288 = vst.msk [vmem:[%s325 + $0x30] sm:$0xff] %vm8962, %v9256
      %9289 = vst.msk [vmem:[%s325 + $0x38] sm:$0xff] %vm8962, %v9257
      %9290 = vst.msk [vmem:[%s325 + $0x40] sm:$0xff] %vm8962, %v9258
      %9291 = vst.msk [vmem:[%s325 + $0x48] sm:$0xff] %vm8962, %v9259
      %9292 = vst.msk [vmem:[%s325 + $0x50] sm:$0xff] %vm8962, %v9260
      %9293 = vst.msk [vmem:[%s325 + $0x58] sm:$0xff] %vm8962, %v9261
      %9294 = vst.msk [vmem:[%s325 + $0x60] sm:$0xff] %vm8962, %v9262
      %9295 = vst.msk [vmem:[%s325 + $0x68] sm:$0xff] %vm8962, %v9263
      %9296 = vst.msk [vmem:[%s325 + $0x70] sm:$0xff] %vm8962, %v9264
      %9297 = vst.msk [vmem:[%s325 + $0x78] sm:$0xff] %vm8962, %v9265
      %9298 = vst.msk [vmem:[%s325 + $0x80] sm:$0xff] %vm8962, %v9266
      %9299 = vst.msk [vmem:[%s325 + $0x88] sm:$0xff] %vm8962, %v9267
      %9300 = vst.msk [vmem:[%s325 + $0x90] sm:$0xff] %vm8962, %v9268
      %9301 = vst.msk [vmem:[%s325 + $0x98] sm:$0xff] %vm8962, %v9269
      %9302 = vst.msk [vmem:[%s325 + $0xa0] sm:$0xff] %vm8962, %v9270
      %9303 = vst.msk [vmem:[%s325 + $0xa8] sm:$0xff] %vm8962, %v9271
      %9304 = vst.msk [vmem:[%s325 + $0xb0] sm:$0xff] %vm8962, %v9272
      %9305 = vst.msk [vmem:[%s325 + $0xb8] sm:$0xff] %vm8962, %v9273
      %9306 = vst.msk [vmem:[%s325 + $0xc0] sm:$0xff] %vm8962, %v9274
      %9307 = vst.msk [vmem:[%s325 + $0xc8] sm:$0xff] %vm8962, %v9275
      %9308 = vst.msk [vmem:[%s325 + $0xd0] sm:$0xff] %vm8962, %v9276
      %9309 = vst.msk [vmem:[%s325 + $0xd8] sm:$0xff] %vm8962, %v9277
      %9310 = vst.msk [vmem:[%s325 + $0xe0] sm:$0xff] %vm8962, %v9278
      %9311 = vst.msk [vmem:[%s325 + $0xe8] sm:$0xff] %vm8962, %v9279
      %9312 = vst.msk [vmem:[%s325 + $0xf0] sm:$0xff] %vm8962, %v9280
      %9313 = vst.msk [vmem:[%s325 + $0xf8] sm:$0xff] %vm8962, %v9281
      %p9314 = scmp.lt.s32.totalorder %s19, 1
      %s9315 = scalar_select %p9314, %s19, 1
      %s9316 = smul.addr %s9315, 32
      %s9317 = smul.addr %s9316, 8
      %s9318 = scalar_lea.vmem %s8, %s9317
      // Predicated region
      $region53: #{up_forward.3} parent=51 // pred_check
        %p9319 = pneg %p215
      $region54: #{up_forward.3} parent=51 // pred_check_branch
        %9321 = sbr.rel (%p9319) target = $region56
      $region55: #{up_forward.3} parent=51 // pred_region
        _
      $region56: #{up_forward.3} parent=51 // pred_fallthru
        _
    $region52: #{up_forward.3} parent=5 // pred_fallthru
      _
    %p9322 = scmp.le.s32.totalorder 2, %s14
    // Predicated region
    $region57: #{up_forward.3} parent=5 // pred_check
      %p9323 = pneg %p9322
    $region58: #{up_forward.3} parent=5 // pred_check_branch
      %9325 = sbr.rel (%p9323) target = $region60
    $region59: #{up_forward.3} parent=5 // pred_region
      %s9326 = ssub.s32 %s14, 2
      // Predicated region
      $region61: #{up_forward.3} parent=59 // pred_check
        %p9327 = pneg %p221
      $region62: #{up_forward.3} parent=59 // pred_check_branch
        %9329 = sbr.rel (%p9327) target = $region64
      $region63: #{up_forward.3} parent=59 // pred_region
        %p9330 = scmp.lt.s32.totalorder %s20, 1
        %s9331 = scalar_select %p9330, %s20, 1
        %s9332 = smul.addr %s9331, 32
        %s9333 = smul.addr %s9332, 8
        %s9334 = scalar_lea.vmem %s8, %s9333
      $region64: #{up_forward.3} parent=59 // pred_fallthru
        _
    $region60: #{up_forward.3} parent=5 // pred_fallthru
      _
  $region6: #{up_forward.3} parent=0 // loop_footer
    %s18 = sadd.s32 1, %s14
  $region7: #{up_forward.3} parent=0 // loop_footer_branch
    %13 = sbr.rel target = $region3
  $region8: #{up_forward.3} parent=0 // loop_exit
    _

</llo_original>
